<compile_context>
chip_gen: v7x
topology: tpu7x:2x2x1
jax: 0.10.0
libtpu: 0.0.40
codegen_flags: <defaults>
</compile_context>

<pallas_src>
import functools
import math

import jax
import jax.numpy as jnp
from jax.experimental import pallas as pl
from jax.experimental.pallas import tpu as pltpu


_LN_EPS = 1e-5            # torch.nn.LayerNorm default eps
_L2_EPS = 1e-12           # torch F.normalize default eps
_VMEM_LIMIT = 48 * 1024 * 1024   # below v7x 64 MiB physical VMEM


# ------------------------------ in-kernel helpers ------------------------------

def _layernorm(x, gamma, beta):
    mean = jnp.mean(x, axis=-1, keepdims=True)
    var = jnp.mean(jnp.square(x - mean), axis=-1, keepdims=True)
    return (x - mean) * jax.lax.rsqrt(var + _LN_EPS) * gamma + beta


def _split_heads(x, nhead, dk):
    """(T, nhead*dk) -> (nhead, T, dk) via static lane slices + leading-axis stack."""
    return jnp.stack([x[:, h * dk:(h + 1) * dk] for h in range(nhead)], axis=0)


def _mha(q, k, v, nhead):
    """q: (Tq, D) [already scaled], k/v: (Tk, D) -> per-head output (nhead, Tq, dk)."""
    dk = q.shape[-1] // nhead
    qh = _split_heads(q, nhead, dk)                       # (H, Tq, dk)
    kh = _split_heads(k, nhead, dk)                       # (H, Tk, dk)
    vh = _split_heads(v, nhead, dk)                       # (H, Tk, dk)
    s = jnp.einsum('hqd,hkd->hqk', qh, kh,
                   preferred_element_type=jnp.float32)    # (H, Tq, Tk)
    m = jnp.max(s, axis=-1, keepdims=True)
    e = jnp.exp(s - m)
    p = e * pl.reciprocal(jnp.sum(e, axis=-1, keepdims=True), approx=True)
    return jnp.einsum('hqk,hkd->hqd', p, vh,
                      preferred_element_type=jnp.float32)  # (H, Tq, dk)


def _out_proj(att_h, wo_h, bo):
    """att_h: (H, Tq, dk), wo_h: (H, dk, D) -> (Tq, D).  No lane concat."""
    y = jnp.einsum('htd,hdk->htk', att_h, wo_h,
                   preferred_element_type=jnp.float32)     # (H, Tq, D)
    return jnp.sum(y, axis=0) + bo


# ---------------------------------- kernel ----------------------------------

def _decoder_kernel(x_dec_ref, x_fea_ref, q_aux_ref, k_pos_ref,
                    wq_x_ref, wq_a_ref, bq_c_ref,
                    wkv_x_ref, wkv_p_ref, bkv_c_ref,
                    wo_c_ref, bo_c_ref, ln1_g_ref, ln1_b_ref,
                    wqkv_s_ref, bqkv_s_ref, wo_s_ref, bo_s_ref,
                    ln2_g_ref, ln2_b_ref,
                    w1_ref, b1_ref, w2_ref, b2_ref, ln3_g_ref, ln3_b_ref,
                    wout_ref, bout_ref,
                    o_ref, *, num_layers, nhead):
    f32 = jnp.float32
    x = x_dec_ref[0].astype(f32)           # (Tq, D)
    x_fea = x_fea_ref[0].astype(f32)        # (Tk, D)
    q_aux = q_aux_ref[0].astype(f32)        # (Tq, Da)
    k_pos = k_pos_ref[0].astype(f32)        # (Tk, Dp)
    D = x.shape[-1]

    # F.normalize(q_aux, p=2, dim=-1) -- computed once, reused by every layer.
    nrm = jnp.sqrt(jnp.sum(q_aux * q_aux, axis=-1, keepdims=True))
    q_aux_n = q_aux / jnp.maximum(nrm, _L2_EPS)

    for l in range(num_layers):             # static unroll; weights indexed statically
        # ---- cross attention (Fq/Fk + 1/sqrt(dk) scale folded on host) ----
        q = (jnp.dot(x, wq_x_ref[l], preferred_element_type=f32)
             + jnp.dot(q_aux_n, wq_a_ref[l], preferred_element_type=f32)
             + bq_c_ref[l])
        kv = (jnp.dot(x_fea, wkv_x_ref[l], preferred_element_type=f32)
              + jnp.dot(k_pos, wkv_p_ref[l], preferred_element_type=f32)
              + bkv_c_ref[l])
        att = _mha(q, kv[:, :D], kv[:, D:], nhead)
        y = _out_proj(att, wo_c_ref[l], bo_c_ref[l])
        x = _layernorm(x + y, ln1_g_ref[l], ln1_b_ref[l])

        # ---- self attention (fused (D,3D) in-projection) ----
        qkv = jnp.dot(x, wqkv_s_ref[l], preferred_element_type=f32) + bqkv_s_ref[l]
        att = _mha(qkv[:, :D], qkv[:, D:2 * D], qkv[:, 2 * D:], nhead)
        y = _out_proj(att, wo_s_ref[l], bo_s_ref[l])
        x = _layernorm(x + y, ln2_g_ref[l], ln2_b_ref[l])

        # ---- FFN ----
        h = jnp.maximum(jnp.dot(x, w1_ref[l], preferred_element_type=f32) + b1_ref[l], 0.0)
        y = jnp.dot(h, w2_ref[l], preferred_element_type=f32) + b2_ref[l]
        x = _layernorm(x + y, ln3_g_ref[l], ln3_b_ref[l])

    # ---- final output projection (fused; avoids a separate 4-lane-wide call) ----
    out = jnp.dot(x, wout_ref[...], preferred_element_type=f32) + bout_ref[...]
    o_ref[0] = out.astype(o_ref.dtype)


# ------------------------- host-side weight preparation -------------------------

def init_params(key, d_model, nhead, d_ff, num_layers, d_aux, d_pos, out_dim):
    """Raw per-layer params, PyTorch-equivalent, stored in x @ W orientation."""
    scale = 0.05

    def nxt():
        nonlocal key
        key, sub = jax.random.split(key)
        return sub

    def w(i, o):
        return jax.random.normal(nxt(), (i, o), jnp.float32) * scale

    zeros = lambda n: jnp.zeros((n,), jnp.float32)
    ones = lambda n: jnp.ones((n,), jnp.float32)

    def mha():
        return {"wq": w(d_model, d_model), "bq": zeros(d_model),
                "wk": w(d_model, d_model), "bk": zeros(d_model),
                "wv": w(d_model, d_model), "bv": zeros(d_model),
                "wo": w(d_model, d_model), "bo": zeros(d_model)}

    layers = []
    for _ in range(num_layers):
        layers.append({
            "fq_w": w(d_aux, d_model), "fq_b": zeros(d_model),
            "fk_w": w(d_pos, d_model), "fk_b": zeros(d_model),
            "cross_attn": mha(), "self_attn": mha(),
            "ffn_w1": w(d_model, d_ff), "ffn_b1": zeros(d_ff),
            "ffn_w2": w(d_ff, d_model), "ffn_b2": zeros(d_model),
            "norm1_g": ones(d_model), "norm1_b": zeros(d_model),
            "norm2_g": ones(d_model), "norm2_b": zeros(d_model),
            "norm3_g": ones(d_model), "norm3_b": zeros(d_model),
        })

    return {"layers": layers,
            "out_w": w(d_model, out_dim), "out_b": zeros(out_dim),
            "d_model": d_model, "nhead": nhead}


def fold_params(params):
    """Algebraic folding (Fq/Fk into QKV projections, attention scale into Wq,
    fused QKV / KV weights, per-head out-proj weights) + stacking over layers."""
    d_model = params["d_model"]
    nhead = params["nhead"]
    dk = d_model // nhead
    inv_sqrt_d = 1.0 / math.sqrt(d_model)
    att_scale = 1.0 / math.sqrt(dk)
    layers = params["layers"]

    def stk(fn):                       # stack matrices -> (L, ...)
        return jnp.stack([fn(lp) for lp in layers], axis=0)

    def stk_row(fn):                   # stack vectors -> (L, 1, N) for broadcasting
        return jnp.stack([fn(lp) for lp in layers], axis=0)[:, None, :]

    f = {}
    # cross-attention Q path:  (x + (q_aux@Wfq + bfq)/sqrt(D)) @ Wq * att_scale + bq*att_scale
    f["wq_x"] = stk(lambda lp: lp["cross_attn"]["wq"] * att_scale)
    f["wq_a"] = stk(lambda lp: (lp["fq_w"] @ lp["cross_attn"]["wq"]) * (inv_sqrt_d * att_scale))
    f["bq_c"] = stk_row(lambda lp: ((lp["fq_b"] @ lp["cross_attn"]["wq"]) * inv_sqrt_d
                                    + lp["cross_attn"]["bq"]) * att_scale)
    # cross-attention fused K|V path
    f["wkv_x"] = stk(lambda lp: jnp.concatenate(
        [lp["cross_attn"]["wk"], lp["cross_attn"]["wv"]], axis=1))
    f["wkv_p"] = stk(lambda lp: jnp.concatenate(
        [lp["fk_w"] @ lp["cross_attn"]["wk"],
         lp["fk_w"] @ lp["cross_attn"]["wv"]], axis=1) * inv_sqrt_d)
    f["bkv_c"] = stk_row(lambda lp: jnp.concatenate(
        [(lp["fk_b"] @ lp["cross_attn"]["wk"]) * inv_sqrt_d + lp["cross_attn"]["bk"],
         (lp["fk_b"] @ lp["cross_attn"]["wv"]) * inv_sqrt_d + lp["cross_attn"]["bv"]], axis=0))
    f["wo_c"] = stk(lambda lp: lp["cross_attn"]["wo"].reshape(nhead, dk, d_model))
    f["bo_c"] = stk_row(lambda lp: lp["cross_attn"]["bo"])
    f["ln1_g"] = stk_row(lambda lp: lp["norm1_g"])
    f["ln1_b"] = stk_row(lambda lp: lp["norm1_b"])
    # self-attention fused Q|K|V (scale folded into the Q block)
    f["wqkv_s"] = stk(lambda lp: jnp.concatenate(
        [lp["self_attn"]["wq"] * att_scale, lp["self_attn"]["wk"], lp["self_attn"]["wv"]], axis=1))
    f["bqkv_s"] = stk_row(lambda lp: jnp.concatenate(
        [lp["self_attn"]["bq"] * att_scale, lp["self_attn"]["bk"], lp["self_attn"]["bv"]], axis=0))
    f["wo_s"] = stk(lambda lp: lp["self_attn"]["wo"].reshape(nhead, dk, d_model))
    f["bo_s"] = stk_row(lambda lp: lp["self_attn"]["bo"])
    f["ln2_g"] = stk_row(lambda lp: lp["norm2_g"])
    f["ln2_b"] = stk_row(lambda lp: lp["norm2_b"])
    # FFN
    f["w1"] = stk(lambda lp: lp["ffn_w1"])
    f["b1"] = stk_row(lambda lp: lp["ffn_b1"])
    f["w2"] = stk(lambda lp: lp["ffn_w2"])
    f["b2"] = stk_row(lambda lp: lp["ffn_b2"])
    f["ln3_g"] = stk_row(lambda lp: lp["norm3_g"])
    f["ln3_b"] = stk_row(lambda lp: lp["norm3_b"])
    # final projection
    f["out_w"] = params["out_w"]
    f["out_b"] = params["out_b"].reshape(1, -1)
    f["nhead"] = nhead
    f["num_layers"] = len(layers)
    return f


# -------------------------------- model forward --------------------------------

def detection_decoder_forward(folded, x_dec, x_fea, q_aux, k_pos):
    """x_dec: (B,Tq,D), x_fea: (B,Tk,D), q_aux: (B,Tq,Da), k_pos: (B,Tk,Dp)."""
    B, Tq, D = x_dec.shape
    Tk = x_fea.shape[1]
    Da = q_aux.shape[-1]
    Dp = k_pos.shape[-1]
    out_dim = folded["out_w"].shape[1]

    def bspec(T, F):
        return pl.BlockSpec((1, T, F), lambda b: (b, 0, 0))

    def wspec(a):
        n = a.ndim
        return pl.BlockSpec(a.shape, lambda b, n=n: (0,) * n)

    weights = (folded["wq_x"], folded["wq_a"], folded["bq_c"],
               folded["wkv_x"], folded["wkv_p"], folded["bkv_c"],
               folded["wo_c"], folded["bo_c"], folded["ln1_g"], folded["ln1_b"],
               folded["wqkv_s"], folded["bqkv_s"], folded["wo_s"], folded["bo_s"],
               folded["ln2_g"], folded["ln2_b"],
               folded["w1"], folded["b1"], folded["w2"], folded["b2"],
               folded["ln3_g"], folded["ln3_b"],
               folded["out_w"], folded["out_b"])

    in_specs = [bspec(Tq, D), bspec(Tk, D), bspec(Tq, Da), bspec(Tk, Dp)]
    in_specs += [wspec(a) for a in weights]

    return pl.pallas_call(
        functools.partial(_decoder_kernel,
                          num_layers=folded["num_layers"], nhead=folded["nhead"]),
        out_shape=jax.ShapeDtypeStruct((B, Tq, out_dim), x_dec.dtype),
        grid=(B,),
        in_specs=in_specs,
        out_specs=bspec(Tq, out_dim),
        compiler_params=pltpu.CompilerParams(
            dimension_semantics=("parallel",),
            vmem_limit_bytes=_VMEM_LIMIT),
    )(x_dec, x_fea, q_aux, k_pos, *weights)


# -------------------------- pure-JAX reference (checking) --------------------------

def reference_forward(params, x_dec, x_fea, q_aux, k_pos):
    d_model, nhead = params["d_model"], params["nhead"]
    dk = d_model // nhead
    inv_sqrt_d = 1.0 / math.sqrt(d_model)
    hp = jax.lax.Precision.HIGHEST

    def mha(qin, kin, vin, p):
        q = qin @ p["wq"] + p["bq"]
        k = kin @ p["wk"] + p["bk"]
        v = kin @ p["wv"] + p["bv"]
        B, T, _ = q.shape
        S = k.shape[1]
        qh = q.reshape(B, T, nhead, dk).transpose(0, 2, 1, 3) * (dk ** -0.5)
        kh = k.reshape(B, S, nhead, dk).transpose(0, 2, 1, 3)
        vh = v.reshape(B, S, nhead, dk).transpose(0, 2, 1, 3)
        s = jnp.einsum('bhtd,bhsd->bhts', qh, kh, precision=hp)
        a = jax.nn.softmax(s, axis=-1)
        o = jnp.einsum('bhts,bhsd->bhtd', a, vh, precision=hp)
        o = o.transpose(0, 2, 1, 3).reshape(B, T, d_model)
        return o @ p["wo"] + p["bo"]

    def ln(x, g, b):
        m = jnp.mean(x, -1, keepdims=True)
        v = jnp.mean((x - m) ** 2, -1, keepdims=True)
        return (x - m) / jnp.sqrt(v + _LN_EPS) * g + b

    q_aux_n = q_aux / jnp.maximum(
        jnp.sqrt(jnp.sum(q_aux * q_aux, -1, keepdims=True)), _L2_EPS)
    x = x_dec
    for lp in params["layers"]:
        Q = x + (q_aux_n @ lp["fq_w"] + lp["fq_b"]) * inv_sqrt_d
        K = x_fea + (k_pos @ lp["fk_w"] + lp["fk_b"]) * inv_sqrt_d
        x = ln(x + mha(Q, K, K, lp["cross_attn"]), lp["norm1_g"], lp["norm1_b"])
        x = ln(x + mha(x, x, x, lp["self_attn"]), lp["norm2_g"], lp["norm2_b"])
        h = jax.nn.relu(x @ lp["ffn_w1"] + lp["ffn_b1"])
        y = h @ lp["ffn_w2"] + lp["ffn_b2"]
        x = ln(x + y, lp["norm3_g"], lp["norm3_b"])
    return x @ params["out_w"] + params["out_b"]


# ------------------------------------- main -------------------------------------

if __name__ == "__main__":
    # Small shapes consistent with the module (d_model divisible by nhead).
    B, Tq, Tk = 2, 8, 16
    d_model, nhead, d_ff, num_layers = 32, 4, 64, 2
    d_aux, d_pos, out_dim = 32, 16, 4

    key = jax.random.PRNGKey(0)
    pkey, k1, k2, k3, k4 = jax.random.split(key, 5)
    params = init_params(pkey, d_model, nhead, d_ff, num_layers, d_aux, d_pos, out_dim)
    folded = fold_params(params)

    x_dec = jax.random.normal(k1, (B, Tq, d_model), jnp.float32)
    x_fea = jax.random.normal(k2, (B, Tk, d_model), jnp.float32)
    q_aux = jax.random.normal(k3, (B, Tq, d_aux), jnp.float32)
    k_pos = jax.random.normal(k4, (B, Tk, d_pos), jnp.float32)

    fwd = jax.jit(lambda a, b, c, d: detection_decoder_forward(folded, a, b, c, d))
    out = fwd(x_dec, x_fea, q_aux, k_pos)
    jax.block_until_ready(out)

    assert out.shape == (B, Tq, out_dim), out.shape
    assert bool(jnp.all(jnp.isfinite(out)))
    # tolerance note: pl.reciprocal(approx=True) in softmax -> ~1e-3 rel. error vs exact
    ref = reference_forward(params, x_dec, x_fea, q_aux, k_pos)
    assert bool(jnp.allclose(out, ref, atol=5e-2, rtol=5e-2))
    print("KERNEL_OK")
</pallas_src>

<mosaic_0001>
module attributes {stable_mosaic.version = 11 : i64} {
  func.func @_decoder_kernel(%arg0: i32, %arg1: memref<1x8x32xf32, #tpu.memory_space<vmem>>, %arg2: memref<1x16x32xf32, #tpu.memory_space<vmem>>, %arg3: memref<1x8x32xf32, #tpu.memory_space<vmem>>, %arg4: memref<1x16x16xf32, #tpu.memory_space<vmem>>, %arg5: memref<2x32x32xf32, #tpu.memory_space<vmem>>, %arg6: memref<2x32x32xf32, #tpu.memory_space<vmem>>, %arg7: memref<2x1x32xf32, #tpu.memory_space<vmem>>, %arg8: memref<2x32x64xf32, #tpu.memory_space<vmem>>, %arg9: memref<2x16x64xf32, #tpu.memory_space<vmem>>, %arg10: memref<2x1x64xf32, #tpu.memory_space<vmem>>, %arg11: memref<2x4x8x32xf32, #tpu.memory_space<vmem>>, %arg12: memref<2x1x32xf32, #tpu.memory_space<vmem>>, %arg13: memref<2x1x32xf32, #tpu.memory_space<vmem>>, %arg14: memref<2x1x32xf32, #tpu.memory_space<vmem>>, %arg15: memref<2x32x96xf32, #tpu.memory_space<vmem>>, %arg16: memref<2x1x96xf32, #tpu.memory_space<vmem>>, %arg17: memref<2x4x8x32xf32, #tpu.memory_space<vmem>>, %arg18: memref<2x1x32xf32, #tpu.memory_space<vmem>>, %arg19: memref<2x1x32xf32, #tpu.memory_space<vmem>>, %arg20: memref<2x1x32xf32, #tpu.memory_space<vmem>>, %arg21: memref<2x32x64xf32, #tpu.memory_space<vmem>>, %arg22: memref<2x1x64xf32, #tpu.memory_space<vmem>>, %arg23: memref<2x64x32xf32, #tpu.memory_space<vmem>>, %arg24: memref<2x1x32xf32, #tpu.memory_space<vmem>>, %arg25: memref<2x1x32xf32, #tpu.memory_space<vmem>>, %arg26: memref<2x1x32xf32, #tpu.memory_space<vmem>>, %arg27: memref<32x4xf32, #tpu.memory_space<vmem>>, %arg28: memref<1x4xf32, #tpu.memory_space<vmem>>, %arg29: memref<1x8x4xf32, #tpu.memory_space<vmem>>) attributes {dimension_semantics = [#tpu.dimension_semantics<parallel>], iteration_bounds = array<i64: 2>, scalar_prefetch = 0 : i64, scratch_operands = 0 : i64, tpu.core_type = #tpu.core_type<tc>, window_params = [{transform_indices = @transform_0, window_bounds = array<i64: 1, 8, 32>}, {transform_indices = @transform_1, window_bounds = array<i64: 1, 16, 32>}, {transform_indices = @transform_2, window_bounds = array<i64: 1, 8, 32>}, {transform_indices = @transform_3, window_bounds = array<i64: 1, 16, 16>}, {pipeline_mode = #tpu.pipeline_mode<synchronous>, transform_indices = @transform_4, window_bounds = array<i64: 2, 32, 32>}, {pipeline_mode = #tpu.pipeline_mode<synchronous>, transform_indices = @transform_5, window_bounds = array<i64: 2, 32, 32>}, {pipeline_mode = #tpu.pipeline_mode<synchronous>, transform_indices = @transform_6, window_bounds = array<i64: 2, 1, 32>}, {pipeline_mode = #tpu.pipeline_mode<synchronous>, transform_indices = @transform_7, window_bounds = array<i64: 2, 32, 64>}, {pipeline_mode = #tpu.pipeline_mode<synchronous>, transform_indices = @transform_8, window_bounds = array<i64: 2, 16, 64>}, {pipeline_mode = #tpu.pipeline_mode<synchronous>, transform_indices = @transform_9, window_bounds = array<i64: 2, 1, 64>}, {pipeline_mode = #tpu.pipeline_mode<synchronous>, transform_indices = @transform_10, window_bounds = array<i64: 2, 4, 8, 32>}, {pipeline_mode = #tpu.pipeline_mode<synchronous>, transform_indices = @transform_11, window_bounds = array<i64: 2, 1, 32>}, {pipeline_mode = #tpu.pipeline_mode<synchronous>, transform_indices = @transform_12, window_bounds = array<i64: 2, 1, 32>}, {pipeline_mode = #tpu.pipeline_mode<synchronous>, transform_indices = @transform_13, window_bounds = array<i64: 2, 1, 32>}, {pipeline_mode = #tpu.pipeline_mode<synchronous>, transform_indices = @transform_14, window_bounds = array<i64: 2, 32, 96>}, {pipeline_mode = #tpu.pipeline_mode<synchronous>, transform_indices = @transform_15, window_bounds = array<i64: 2, 1, 96>}, {pipeline_mode = #tpu.pipeline_mode<synchronous>, transform_indices = @transform_16, window_bounds = array<i64: 2, 4, 8, 32>}, {pipeline_mode = #tpu.pipeline_mode<synchronous>, transform_indices = @transform_17, window_bounds = array<i64: 2, 1, 32>}, {pipeline_mode = #tpu.pipeline_mode<synchronous>, transform_indices = @transform_18, window_bounds = array<i64: 2, 1, 32>}, {pipeline_mode = #tpu.pipeline_mode<synchronous>, transform_indices = @transform_19, window_bounds = array<i64: 2, 1, 32>}, {pipeline_mode = #tpu.pipeline_mode<synchronous>, transform_indices = @transform_20, window_bounds = array<i64: 2, 32, 64>}, {pipeline_mode = #tpu.pipeline_mode<synchronous>, transform_indices = @transform_21, window_bounds = array<i64: 2, 1, 64>}, {pipeline_mode = #tpu.pipeline_mode<synchronous>, transform_indices = @transform_22, window_bounds = array<i64: 2, 64, 32>}, {pipeline_mode = #tpu.pipeline_mode<synchronous>, transform_indices = @transform_23, window_bounds = array<i64: 2, 1, 32>}, {pipeline_mode = #tpu.pipeline_mode<synchronous>, transform_indices = @transform_24, window_bounds = array<i64: 2, 1, 32>}, {pipeline_mode = #tpu.pipeline_mode<synchronous>, transform_indices = @transform_25, window_bounds = array<i64: 2, 1, 32>}, {pipeline_mode = #tpu.pipeline_mode<synchronous>, transform_indices = @transform_26, window_bounds = array<i64: 32, 4>}, {pipeline_mode = #tpu.pipeline_mode<synchronous>, transform_indices = @transform_27, window_bounds = array<i64: 1, 4>}, {transform_indices = @transform_28, window_bounds = array<i64: 1, 8, 4>}]} {
    %c0 = arith.constant 0 : index
    %c0_0 = arith.constant 0 : index
    %c0_1 = arith.constant 0 : index
    %0 = vector.load %arg1[%c0, %c0_0, %c0_1] : memref<1x8x32xf32, #tpu.memory_space<vmem>>, vector<1x8x32xf32>
    %1 = vector.shape_cast %0 : vector<1x8x32xf32> to vector<8x32xf32>
    %c0_2 = arith.constant 0 : index
    %c0_3 = arith.constant 0 : index
    %c0_4 = arith.constant 0 : index
    %2 = vector.load %arg2[%c0_2, %c0_3, %c0_4] : memref<1x16x32xf32, #tpu.memory_space<vmem>>, vector<1x16x32xf32>
    %3 = vector.shape_cast %2 : vector<1x16x32xf32> to vector<16x32xf32>
    %c0_5 = arith.constant 0 : index
    %c0_6 = arith.constant 0 : index
    %c0_7 = arith.constant 0 : index
    %4 = vector.load %arg3[%c0_5, %c0_6, %c0_7] : memref<1x8x32xf32, #tpu.memory_space<vmem>>, vector<1x8x32xf32>
    %5 = vector.shape_cast %4 : vector<1x8x32xf32> to vector<8x32xf32>
    %c0_8 = arith.constant 0 : index
    %c0_9 = arith.constant 0 : index
    %c0_10 = arith.constant 0 : index
    %6 = vector.load %arg4[%c0_8, %c0_9, %c0_10] : memref<1x16x16xf32, #tpu.memory_space<vmem>>, vector<1x16x16xf32>
    %7 = vector.shape_cast %6 : vector<1x16x16xf32> to vector<16x16xf32>
    %8 = arith.mulf %5, %5 : vector<8x32xf32>
    %cst = arith.constant dense<0.000000e+00> : vector<8xf32>
    %9 = vector.multi_reduction <add>, %8, %cst [1] : vector<8x32xf32> to vector<8xf32>
    %10 = vector.shape_cast %9 : vector<8xf32> to vector<8x1xf32>
    %11 = math.sqrt %10 : vector<8x1xf32>
    %cst_11 = arith.constant 9.99999996E-13 : f32
    %12 = vector.broadcast %cst_11 : f32 to vector<8x1xf32>
    %13 = arith.maximumf %11, %12 : vector<8x1xf32>
    %14 = vector.broadcast %13 : vector<8x1xf32> to vector<8x32xf32>
    %15 = arith.divf %5, %14 : vector<8x32xf32>
    %c0_12 = arith.constant 0 : index
    %c0_13 = arith.constant 0 : index
    %c0_14 = arith.constant 0 : index
    %16 = vector.load %arg5[%c0_12, %c0_13, %c0_14] : memref<2x32x32xf32, #tpu.memory_space<vmem>>, vector<1x32x32xf32>
    %17 = vector.shape_cast %16 : vector<1x32x32xf32> to vector<32x32xf32>
    %cst_15 = arith.constant dense<0.000000e+00> : vector<8x32xf32>
    %18 = tpu.matmul %1, %17, %cst_15 {dimension_numbers = #tpu.dot_dimension_numbers<[1], [0], [0], [1], [0, 0, 1, 1], [], []>} : vector<8x32xf32>, vector<32x32xf32>, vector<8x32xf32> -> vector<8x32xf32>
    %c0_16 = arith.constant 0 : index
    %c0_17 = arith.constant 0 : index
    %c0_18 = arith.constant 0 : index
    %19 = vector.load %arg6[%c0_16, %c0_17, %c0_18] : memref<2x32x32xf32, #tpu.memory_space<vmem>>, vector<1x32x32xf32>
    %20 = vector.shape_cast %19 : vector<1x32x32xf32> to vector<32x32xf32>
    %cst_19 = arith.constant dense<0.000000e+00> : vector<8x32xf32>
    %21 = tpu.matmul %15, %20, %cst_19 {dimension_numbers = #tpu.dot_dimension_numbers<[1], [0], [0], [1], [0, 0, 1, 1], [], []>} : vector<8x32xf32>, vector<32x32xf32>, vector<8x32xf32> -> vector<8x32xf32>
    %22 = arith.addf %18, %21 : vector<8x32xf32>
    %c0_20 = arith.constant 0 : index
    %c0_21 = arith.constant 0 : index
    %c0_22 = arith.constant 0 : index
    %23 = vector.load %arg7[%c0_20, %c0_21, %c0_22] : memref<2x1x32xf32, #tpu.memory_space<vmem>>, vector<1x1x32xf32>
    %24 = vector.shape_cast %23 : vector<1x1x32xf32> to vector<1x32xf32>
    %25 = vector.broadcast %24 : vector<1x32xf32> to vector<8x32xf32>
    %26 = arith.addf %22, %25 : vector<8x32xf32>
    %c0_23 = arith.constant 0 : index
    %c0_24 = arith.constant 0 : index
    %c0_25 = arith.constant 0 : index
    %27 = vector.load %arg8[%c0_23, %c0_24, %c0_25] : memref<2x32x64xf32, #tpu.memory_space<vmem>>, vector<1x32x64xf32>
    %28 = vector.shape_cast %27 : vector<1x32x64xf32> to vector<32x64xf32>
    %cst_26 = arith.constant dense<0.000000e+00> : vector<16x64xf32>
    %29 = tpu.matmul %3, %28, %cst_26 {dimension_numbers = #tpu.dot_dimension_numbers<[1], [0], [0], [1], [0, 0, 1, 1], [], []>} : vector<16x32xf32>, vector<32x64xf32>, vector<16x64xf32> -> vector<16x64xf32>
    %c0_27 = arith.constant 0 : index
    %c0_28 = arith.constant 0 : index
    %c0_29 = arith.constant 0 : index
    %30 = vector.load %arg9[%c0_27, %c0_28, %c0_29] : memref<2x16x64xf32, #tpu.memory_space<vmem>>, vector<1x16x64xf32>
    %31 = vector.shape_cast %30 : vector<1x16x64xf32> to vector<16x64xf32>
    %cst_30 = arith.constant dense<0.000000e+00> : vector<16x64xf32>
    %32 = tpu.matmul %7, %31, %cst_30 {dimension_numbers = #tpu.dot_dimension_numbers<[1], [0], [0], [1], [0, 0, 1, 1], [], []>} : vector<16x16xf32>, vector<16x64xf32>, vector<16x64xf32> -> vector<16x64xf32>
    %33 = arith.addf %29, %32 : vector<16x64xf32>
    %c0_31 = arith.constant 0 : index
    %c0_32 = arith.constant 0 : index
    %c0_33 = arith.constant 0 : index
    %34 = vector.load %arg10[%c0_31, %c0_32, %c0_33] : memref<2x1x64xf32, #tpu.memory_space<vmem>>, vector<1x1x64xf32>
    %35 = vector.shape_cast %34 : vector<1x1x64xf32> to vector<1x64xf32>
    %36 = vector.broadcast %35 : vector<1x64xf32> to vector<16x64xf32>
    %37 = arith.addf %33, %36 : vector<16x64xf32>
    %38 = vector.extract_strided_slice %37 {offsets = [0, 0], sizes = [16, 32], strides = [1, 1]} : vector<16x64xf32> to vector<16x32xf32>
    %39 = vector.extract_strided_slice %37 {offsets = [0, 32], sizes = [16, 32], strides = [1, 1]} : vector<16x64xf32> to vector<16x32xf32>
    %40 = vector.extract_strided_slice %26 {offsets = [0, 0], sizes = [8, 8], strides = [1, 1]} : vector<8x32xf32> to vector<8x8xf32>
    %41 = vector.extract_strided_slice %26 {offsets = [0, 8], sizes = [8, 8], strides = [1, 1]} : vector<8x32xf32> to vector<8x8xf32>
    %42 = vector.extract_strided_slice %26 {offsets = [0, 16], sizes = [8, 8], strides = [1, 1]} : vector<8x32xf32> to vector<8x8xf32>
    %43 = vector.extract_strided_slice %26 {offsets = [0, 24], sizes = [8, 8], strides = [1, 1]} : vector<8x32xf32> to vector<8x8xf32>
    %44 = vector.shape_cast %40 : vector<8x8xf32> to vector<1x8x8xf32>
    %45 = vector.shape_cast %41 : vector<8x8xf32> to vector<1x8x8xf32>
    %46 = vector.shape_cast %42 : vector<8x8xf32> to vector<1x8x8xf32>
    %47 = vector.shape_cast %43 : vector<8x8xf32> to vector<1x8x8xf32>
    %48 = tpu.concatenate %44, %45, %46, %47 in 0 : vector<1x8x8xf32>, vector<1x8x8xf32>, vector<1x8x8xf32>, vector<1x8x8xf32> -> vector<4x8x8xf32>
    %49 = vector.extract_strided_slice %38 {offsets = [0, 0], sizes = [16, 8], strides = [1, 1]} : vector<16x32xf32> to vector<16x8xf32>
    %50 = vector.extract_strided_slice %38 {offsets = [0, 8], sizes = [16, 8], strides = [1, 1]} : vector<16x32xf32> to vector<16x8xf32>
    %51 = vector.extract_strided_slice %38 {offsets = [0, 16], sizes = [16, 8], strides = [1, 1]} : vector<16x32xf32> to vector<16x8xf32>
    %52 = vector.extract_strided_slice %38 {offsets = [0, 24], sizes = [16, 8], strides = [1, 1]} : vector<16x32xf32> to vector<16x8xf32>
    %53 = vector.shape_cast %49 : vector<16x8xf32> to vector<1x16x8xf32>
    %54 = vector.shape_cast %50 : vector<16x8xf32> to vector<1x16x8xf32>
    %55 = vector.shape_cast %51 : vector<16x8xf32> to vector<1x16x8xf32>
    %56 = vector.shape_cast %52 : vector<16x8xf32> to vector<1x16x8xf32>
    %57 = tpu.concatenate %53, %54, %55, %56 in 0 : vector<1x16x8xf32>, vector<1x16x8xf32>, vector<1x16x8xf32>, vector<1x16x8xf32> -> vector<4x16x8xf32>
    %58 = vector.extract_strided_slice %39 {offsets = [0, 0], sizes = [16, 8], strides = [1, 1]} : vector<16x32xf32> to vector<16x8xf32>
    %59 = vector.extract_strided_slice %39 {offsets = [0, 8], sizes = [16, 8], strides = [1, 1]} : vector<16x32xf32> to vector<16x8xf32>
    %60 = vector.extract_strided_slice %39 {offsets = [0, 16], sizes = [16, 8], strides = [1, 1]} : vector<16x32xf32> to vector<16x8xf32>
    %61 = vector.extract_strided_slice %39 {offsets = [0, 24], sizes = [16, 8], strides = [1, 1]} : vector<16x32xf32> to vector<16x8xf32>
    %62 = vector.shape_cast %58 : vector<16x8xf32> to vector<1x16x8xf32>
    %63 = vector.shape_cast %59 : vector<16x8xf32> to vector<1x16x8xf32>
    %64 = vector.shape_cast %60 : vector<16x8xf32> to vector<1x16x8xf32>
    %65 = vector.shape_cast %61 : vector<16x8xf32> to vector<1x16x8xf32>
    %66 = tpu.concatenate %62, %63, %64, %65 in 0 : vector<1x16x8xf32>, vector<1x16x8xf32>, vector<1x16x8xf32>, vector<1x16x8xf32> -> vector<4x16x8xf32>
    "tpu.trace_start"() <{level = 10 : i32, message = "hqd,hkd->hqk"}> : () -> ()
    %cst_34 = arith.constant dense<0.000000e+00> : vector<4x8x16xf32>
    %67 = tpu.matmul %48, %57, %cst_34 {dimension_numbers = #tpu.dot_dimension_numbers<[2], [2], [1], [1], [0, 0, 0, 1, 1, 1], [0], [0]>} : vector<4x8x8xf32>, vector<4x16x8xf32>, vector<4x8x16xf32> -> vector<4x8x16xf32>
    "tpu.trace_stop"() : () -> ()
    %cst_35 = arith.constant dense<0xFF800000> : vector<4x8xf32>
    %68 = vector.multi_reduction <maximumf>, %67, %cst_35 [2] : vector<4x8x16xf32> to vector<4x8xf32>
    %69 = vector.shape_cast %68 : vector<4x8xf32> to vector<4x8x1xf32>
    %70 = vector.broadcast %69 : vector<4x8x1xf32> to vector<4x8x16xf32>
    %71 = arith.subf %67, %70 : vector<4x8x16xf32>
    %72 = math.exp %71 : vector<4x8x16xf32>
    %cst_36 = arith.constant dense<0.000000e+00> : vector<4x8xf32>
    %73 = vector.multi_reduction <add>, %72, %cst_36 [2] : vector<4x8x16xf32> to vector<4x8xf32>
    %74 = vector.shape_cast %73 : vector<4x8xf32> to vector<4x8x1xf32>
    %75 = tpu.reciprocal %74 {approx = true} : vector<4x8x1xf32> -> vector<4x8x1xf32>
    %76 = vector.broadcast %75 : vector<4x8x1xf32> to vector<4x8x16xf32>
    %77 = arith.mulf %72, %76 : vector<4x8x16xf32>
    "tpu.trace_start"() <{level = 10 : i32, message = "hqk,hkd->hqd"}> : () -> ()
    %cst_37 = arith.constant dense<0.000000e+00> : vector<4x8x8xf32>
    %78 = tpu.matmul %77, %66, %cst_37 {dimension_numbers = #tpu.dot_dimension_numbers<[2], [1], [1], [2], [0, 0, 0, 1, 1, 2], [0], [0]>} : vector<4x8x16xf32>, vector<4x16x8xf32>, vector<4x8x8xf32> -> vector<4x8x8xf32>
    "tpu.trace_stop"() : () -> ()
    %c0_38 = arith.constant 0 : index
    %c0_39 = arith.constant 0 : index
    %c0_40 = arith.constant 0 : index
    %c0_41 = arith.constant 0 : index
    %79 = vector.load %arg11[%c0_38, %c0_39, %c0_40, %c0_41] : memref<2x4x8x32xf32, #tpu.memory_space<vmem>>, vector<1x4x8x32xf32>
    %80 = vector.shape_cast %79 : vector<1x4x8x32xf32> to vector<4x8x32xf32>
    %c0_42 = arith.constant 0 : index
    %c0_43 = arith.constant 0 : index
    %c0_44 = arith.constant 0 : index
    %81 = vector.load %arg12[%c0_42, %c0_43, %c0_44] : memref<2x1x32xf32, #tpu.memory_space<vmem>>, vector<1x1x32xf32>
    %82 = vector.shape_cast %81 : vector<1x1x32xf32> to vector<1x32xf32>
    "tpu.trace_start"() <{level = 10 : i32, message = "htd,hdk->htk"}> : () -> ()
    %cst_45 = arith.constant dense<0.000000e+00> : vector<4x8x32xf32>
    %83 = tpu.matmul %78, %80, %cst_45 {dimension_numbers = #tpu.dot_dimension_numbers<[2], [1], [1], [2], [0, 0, 0, 1, 1, 2], [0], [0]>} : vector<4x8x8xf32>, vector<4x8x32xf32>, vector<4x8x32xf32> -> vector<4x8x32xf32>
    "tpu.trace_stop"() : () -> ()
    %cst_46 = arith.constant dense<0.000000e+00> : vector<8x32xf32>
    %84 = vector.multi_reduction <add>, %83, %cst_46 [0] : vector<4x8x32xf32> to vector<8x32xf32>
    %85 = vector.broadcast %82 : vector<1x32xf32> to vector<8x32xf32>
    %86 = arith.addf %84, %85 : vector<8x32xf32>
    %87 = arith.addf %1, %86 : vector<8x32xf32>
    %c0_47 = arith.constant 0 : index
    %c0_48 = arith.constant 0 : index
    %c0_49 = arith.constant 0 : index
    %88 = vector.load %arg13[%c0_47, %c0_48, %c0_49] : memref<2x1x32xf32, #tpu.memory_space<vmem>>, vector<1x1x32xf32>
    %89 = vector.shape_cast %88 : vector<1x1x32xf32> to vector<1x32xf32>
    %c0_50 = arith.constant 0 : index
    %c0_51 = arith.constant 0 : index
    %c0_52 = arith.constant 0 : index
    %90 = vector.load %arg14[%c0_50, %c0_51, %c0_52] : memref<2x1x32xf32, #tpu.memory_space<vmem>>, vector<1x1x32xf32>
    %91 = vector.shape_cast %90 : vector<1x1x32xf32> to vector<1x32xf32>
    %cst_53 = arith.constant dense<0.000000e+00> : vector<8xf32>
    %92 = vector.multi_reduction <add>, %87, %cst_53 [1] : vector<8x32xf32> to vector<8xf32>
    %93 = vector.shape_cast %92 : vector<8xf32> to vector<8x1xf32>
    %cst_54 = arith.constant 3.200000e+01 : f32
    %94 = vector.broadcast %cst_54 : f32 to vector<8x1xf32>
    %95 = arith.divf %93, %94 : vector<8x1xf32>
    %96 = vector.broadcast %95 : vector<8x1xf32> to vector<8x32xf32>
    %97 = arith.subf %87, %96 : vector<8x32xf32>
    %98 = arith.mulf %97, %97 : vector<8x32xf32>
    %cst_55 = arith.constant dense<0.000000e+00> : vector<8xf32>
    %99 = vector.multi_reduction <add>, %98, %cst_55 [1] : vector<8x32xf32> to vector<8xf32>
    %100 = vector.shape_cast %99 : vector<8xf32> to vector<8x1xf32>
    %cst_56 = arith.constant 3.200000e+01 : f32
    %101 = vector.broadcast %cst_56 : f32 to vector<8x1xf32>
    %102 = arith.divf %100, %101 : vector<8x1xf32>
    %103 = vector.broadcast %95 : vector<8x1xf32> to vector<8x32xf32>
    %104 = arith.subf %87, %103 : vector<8x32xf32>
    %cst_57 = arith.constant 9.99999974E-6 : f32
    %105 = vector.broadcast %cst_57 : f32 to vector<8x1xf32>
    %106 = arith.addf %102, %105 : vector<8x1xf32>
    %107 = math.rsqrt %106 : vector<8x1xf32>
    %108 = vector.broadcast %107 : vector<8x1xf32> to vector<8x32xf32>
    %109 = arith.mulf %104, %108 : vector<8x32xf32>
    %110 = vector.broadcast %89 : vector<1x32xf32> to vector<8x32xf32>
    %111 = arith.mulf %109, %110 : vector<8x32xf32>
    %112 = vector.broadcast %91 : vector<1x32xf32> to vector<8x32xf32>
    %113 = arith.addf %111, %112 : vector<8x32xf32>
    %c0_58 = arith.constant 0 : index
    %c0_59 = arith.constant 0 : index
    %c0_60 = arith.constant 0 : index
    %114 = vector.load %arg15[%c0_58, %c0_59, %c0_60] : memref<2x32x96xf32, #tpu.memory_space<vmem>>, vector<1x32x96xf32>
    %115 = vector.shape_cast %114 : vector<1x32x96xf32> to vector<32x96xf32>
    %cst_61 = arith.constant dense<0.000000e+00> : vector<8x96xf32>
    %116 = tpu.matmul %113, %115, %cst_61 {dimension_numbers = #tpu.dot_dimension_numbers<[1], [0], [0], [1], [0, 0, 1, 1], [], []>} : vector<8x32xf32>, vector<32x96xf32>, vector<8x96xf32> -> vector<8x96xf32>
    %c0_62 = arith.constant 0 : index
    %c0_63 = arith.constant 0 : index
    %c0_64 = arith.constant 0 : index
    %117 = vector.load %arg16[%c0_62, %c0_63, %c0_64] : memref<2x1x96xf32, #tpu.memory_space<vmem>>, vector<1x1x96xf32>
    %118 = vector.shape_cast %117 : vector<1x1x96xf32> to vector<1x96xf32>
    %119 = vector.broadcast %118 : vector<1x96xf32> to vector<8x96xf32>
    %120 = arith.addf %116, %119 : vector<8x96xf32>
    %121 = vector.extract_strided_slice %120 {offsets = [0, 0], sizes = [8, 32], strides = [1, 1]} : vector<8x96xf32> to vector<8x32xf32>
    %122 = vector.extract_strided_slice %120 {offsets = [0, 32], sizes = [8, 32], strides = [1, 1]} : vector<8x96xf32> to vector<8x32xf32>
    %123 = vector.extract_strided_slice %120 {offsets = [0, 64], sizes = [8, 32], strides = [1, 1]} : vector<8x96xf32> to vector<8x32xf32>
    %124 = vector.extract_strided_slice %121 {offsets = [0, 0], sizes = [8, 8], strides = [1, 1]} : vector<8x32xf32> to vector<8x8xf32>
    %125 = vector.extract_strided_slice %121 {offsets = [0, 8], sizes = [8, 8], strides = [1, 1]} : vector<8x32xf32> to vector<8x8xf32>
    %126 = vector.extract_strided_slice %121 {offsets = [0, 16], sizes = [8, 8], strides = [1, 1]} : vector<8x32xf32> to vector<8x8xf32>
    %127 = vector.extract_strided_slice %121 {offsets = [0, 24], sizes = [8, 8], strides = [1, 1]} : vector<8x32xf32> to vector<8x8xf32>
    %128 = vector.shape_cast %124 : vector<8x8xf32> to vector<1x8x8xf32>
    %129 = vector.shape_cast %125 : vector<8x8xf32> to vector<1x8x8xf32>
    %130 = vector.shape_cast %126 : vector<8x8xf32> to vector<1x8x8xf32>
    %131 = vector.shape_cast %127 : vector<8x8xf32> to vector<1x8x8xf32>
    %132 = tpu.concatenate %128, %129, %130, %131 in 0 : vector<1x8x8xf32>, vector<1x8x8xf32>, vector<1x8x8xf32>, vector<1x8x8xf32> -> vector<4x8x8xf32>
    %133 = vector.extract_strided_slice %122 {offsets = [0, 0], sizes = [8, 8], strides = [1, 1]} : vector<8x32xf32> to vector<8x8xf32>
    %134 = vector.extract_strided_slice %122 {offsets = [0, 8], sizes = [8, 8], strides = [1, 1]} : vector<8x32xf32> to vector<8x8xf32>
    %135 = vector.extract_strided_slice %122 {offsets = [0, 16], sizes = [8, 8], strides = [1, 1]} : vector<8x32xf32> to vector<8x8xf32>
    %136 = vector.extract_strided_slice %122 {offsets = [0, 24], sizes = [8, 8], strides = [1, 1]} : vector<8x32xf32> to vector<8x8xf32>
    %137 = vector.shape_cast %133 : vector<8x8xf32> to vector<1x8x8xf32>
    %138 = vector.shape_cast %134 : vector<8x8xf32> to vector<1x8x8xf32>
    %139 = vector.shape_cast %135 : vector<8x8xf32> to vector<1x8x8xf32>
    %140 = vector.shape_cast %136 : vector<8x8xf32> to vector<1x8x8xf32>
    %141 = tpu.concatenate %137, %138, %139, %140 in 0 : vector<1x8x8xf32>, vector<1x8x8xf32>, vector<1x8x8xf32>, vector<1x8x8xf32> -> vector<4x8x8xf32>
    %142 = vector.extract_strided_slice %123 {offsets = [0, 0], sizes = [8, 8], strides = [1, 1]} : vector<8x32xf32> to vector<8x8xf32>
    %143 = vector.extract_strided_slice %123 {offsets = [0, 8], sizes = [8, 8], strides = [1, 1]} : vector<8x32xf32> to vector<8x8xf32>
    %144 = vector.extract_strided_slice %123 {offsets = [0, 16], sizes = [8, 8], strides = [1, 1]} : vector<8x32xf32> to vector<8x8xf32>
    %145 = vector.extract_strided_slice %123 {offsets = [0, 24], sizes = [8, 8], strides = [1, 1]} : vector<8x32xf32> to vector<8x8xf32>
    %146 = vector.shape_cast %142 : vector<8x8xf32> to vector<1x8x8xf32>
    %147 = vector.shape_cast %143 : vector<8x8xf32> to vector<1x8x8xf32>
    %148 = vector.shape_cast %144 : vector<8x8xf32> to vector<1x8x8xf32>
    %149 = vector.shape_cast %145 : vector<8x8xf32> to vector<1x8x8xf32>
    %150 = tpu.concatenate %146, %147, %148, %149 in 0 : vector<1x8x8xf32>, vector<1x8x8xf32>, vector<1x8x8xf32>, vector<1x8x8xf32> -> vector<4x8x8xf32>
    "tpu.trace_start"() <{level = 10 : i32, message = "hqd,hkd->hqk"}> : () -> ()
    %cst_65 = arith.constant dense<0.000000e+00> : vector<4x8x8xf32>
    %151 = tpu.matmul %132, %141, %cst_65 {dimension_numbers = #tpu.dot_dimension_numbers<[2], [2], [1], [1], [0, 0, 0, 1, 1, 1], [0], [0]>} : vector<4x8x8xf32>, vector<4x8x8xf32>, vector<4x8x8xf32> -> vector<4x8x8xf32>
    "tpu.trace_stop"() : () -> ()
    %cst_66 = arith.constant dense<0xFF800000> : vector<4x8xf32>
    %152 = vector.multi_reduction <maximumf>, %151, %cst_66 [2] : vector<4x8x8xf32> to vector<4x8xf32>
    %153 = vector.shape_cast %152 : vector<4x8xf32> to vector<4x8x1xf32>
    %154 = vector.broadcast %153 : vector<4x8x1xf32> to vector<4x8x8xf32>
    %155 = arith.subf %151, %154 : vector<4x8x8xf32>
    %156 = math.exp %155 : vector<4x8x8xf32>
    %cst_67 = arith.constant dense<0.000000e+00> : vector<4x8xf32>
    %157 = vector.multi_reduction <add>, %156, %cst_67 [2] : vector<4x8x8xf32> to vector<4x8xf32>
    %158 = vector.shape_cast %157 : vector<4x8xf32> to vector<4x8x1xf32>
    %159 = tpu.reciprocal %158 {approx = true} : vector<4x8x1xf32> -> vector<4x8x1xf32>
    %160 = vector.broadcast %159 : vector<4x8x1xf32> to vector<4x8x8xf32>
    %161 = arith.mulf %156, %160 : vector<4x8x8xf32>
    "tpu.trace_start"() <{level = 10 : i32, message = "hqk,hkd->hqd"}> : () -> ()
    %cst_68 = arith.constant dense<0.000000e+00> : vector<4x8x8xf32>
    %162 = tpu.matmul %161, %150, %cst_68 {dimension_numbers = #tpu.dot_dimension_numbers<[2], [1], [1], [2], [0, 0, 0, 1, 1, 2], [0], [0]>} : vector<4x8x8xf32>, vector<4x8x8xf32>, vector<4x8x8xf32> -> vector<4x8x8xf32>
    "tpu.trace_stop"() : () -> ()
    %c0_69 = arith.constant 0 : index
    %c0_70 = arith.constant 0 : index
    %c0_71 = arith.constant 0 : index
    %c0_72 = arith.constant 0 : index
    %163 = vector.load %arg17[%c0_69, %c0_70, %c0_71, %c0_72] : memref<2x4x8x32xf32, #tpu.memory_space<vmem>>, vector<1x4x8x32xf32>
    %164 = vector.shape_cast %163 : vector<1x4x8x32xf32> to vector<4x8x32xf32>
    %c0_73 = arith.constant 0 : index
    %c0_74 = arith.constant 0 : index
    %c0_75 = arith.constant 0 : index
    %165 = vector.load %arg18[%c0_73, %c0_74, %c0_75] : memref<2x1x32xf32, #tpu.memory_space<vmem>>, vector<1x1x32xf32>
    %166 = vector.shape_cast %165 : vector<1x1x32xf32> to vector<1x32xf32>
    "tpu.trace_start"() <{level = 10 : i32, message = "htd,hdk->htk"}> : () -> ()
    %cst_76 = arith.constant dense<0.000000e+00> : vector<4x8x32xf32>
    %167 = tpu.matmul %162, %164, %cst_76 {dimension_numbers = #tpu.dot_dimension_numbers<[2], [1], [1], [2], [0, 0, 0, 1, 1, 2], [0], [0]>} : vector<4x8x8xf32>, vector<4x8x32xf32>, vector<4x8x32xf32> -> vector<4x8x32xf32>
    "tpu.trace_stop"() : () -> ()
    %cst_77 = arith.constant dense<0.000000e+00> : vector<8x32xf32>
    %168 = vector.multi_reduction <add>, %167, %cst_77 [0] : vector<4x8x32xf32> to vector<8x32xf32>
    %169 = vector.broadcast %166 : vector<1x32xf32> to vector<8x32xf32>
    %170 = arith.addf %168, %169 : vector<8x32xf32>
    %171 = arith.addf %113, %170 : vector<8x32xf32>
    %c0_78 = arith.constant 0 : index
    %c0_79 = arith.constant 0 : index
    %c0_80 = arith.constant 0 : index
    %172 = vector.load %arg19[%c0_78, %c0_79, %c0_80] : memref<2x1x32xf32, #tpu.memory_space<vmem>>, vector<1x1x32xf32>
    %173 = vector.shape_cast %172 : vector<1x1x32xf32> to vector<1x32xf32>
    %c0_81 = arith.constant 0 : index
    %c0_82 = arith.constant 0 : index
    %c0_83 = arith.constant 0 : index
    %174 = vector.load %arg20[%c0_81, %c0_82, %c0_83] : memref<2x1x32xf32, #tpu.memory_space<vmem>>, vector<1x1x32xf32>
    %175 = vector.shape_cast %174 : vector<1x1x32xf32> to vector<1x32xf32>
    %cst_84 = arith.constant dense<0.000000e+00> : vector<8xf32>
    %176 = vector.multi_reduction <add>, %171, %cst_84 [1] : vector<8x32xf32> to vector<8xf32>
    %177 = vector.shape_cast %176 : vector<8xf32> to vector<8x1xf32>
    %cst_85 = arith.constant 3.200000e+01 : f32
    %178 = vector.broadcast %cst_85 : f32 to vector<8x1xf32>
    %179 = arith.divf %177, %178 : vector<8x1xf32>
    %180 = vector.broadcast %179 : vector<8x1xf32> to vector<8x32xf32>
    %181 = arith.subf %171, %180 : vector<8x32xf32>
    %182 = arith.mulf %181, %181 : vector<8x32xf32>
    %cst_86 = arith.constant dense<0.000000e+00> : vector<8xf32>
    %183 = vector.multi_reduction <add>, %182, %cst_86 [1] : vector<8x32xf32> to vector<8xf32>
    %184 = vector.shape_cast %183 : vector<8xf32> to vector<8x1xf32>
    %cst_87 = arith.constant 3.200000e+01 : f32
    %185 = vector.broadcast %cst_87 : f32 to vector<8x1xf32>
    %186 = arith.divf %184, %185 : vector<8x1xf32>
    %187 = vector.broadcast %179 : vector<8x1xf32> to vector<8x32xf32>
    %188 = arith.subf %171, %187 : vector<8x32xf32>
    %cst_88 = arith.constant 9.99999974E-6 : f32
    %189 = vector.broadcast %cst_88 : f32 to vector<8x1xf32>
    %190 = arith.addf %186, %189 : vector<8x1xf32>
    %191 = math.rsqrt %190 : vector<8x1xf32>
    %192 = vector.broadcast %191 : vector<8x1xf32> to vector<8x32xf32>
    %193 = arith.mulf %188, %192 : vector<8x32xf32>
    %194 = vector.broadcast %173 : vector<1x32xf32> to vector<8x32xf32>
    %195 = arith.mulf %193, %194 : vector<8x32xf32>
    %196 = vector.broadcast %175 : vector<1x32xf32> to vector<8x32xf32>
    %197 = arith.addf %195, %196 : vector<8x32xf32>
    %c0_89 = arith.constant 0 : index
    %c0_90 = arith.constant 0 : index
    %c0_91 = arith.constant 0 : index
    %198 = vector.load %arg21[%c0_89, %c0_90, %c0_91] : memref<2x32x64xf32, #tpu.memory_space<vmem>>, vector<1x32x64xf32>
    %199 = vector.shape_cast %198 : vector<1x32x64xf32> to vector<32x64xf32>
    %cst_92 = arith.constant dense<0.000000e+00> : vector<8x64xf32>
    %200 = tpu.matmul %197, %199, %cst_92 {dimension_numbers = #tpu.dot_dimension_numbers<[1], [0], [0], [1], [0, 0, 1, 1], [], []>} : vector<8x32xf32>, vector<32x64xf32>, vector<8x64xf32> -> vector<8x64xf32>
    %c0_93 = arith.constant 0 : index
    %c0_94 = arith.constant 0 : index
    %c0_95 = arith.constant 0 : index
    %201 = vector.load %arg22[%c0_93, %c0_94, %c0_95] : memref<2x1x64xf32, #tpu.memory_space<vmem>>, vector<1x1x64xf32>
    %202 = vector.shape_cast %201 : vector<1x1x64xf32> to vector<1x64xf32>
    %203 = vector.broadcast %202 : vector<1x64xf32> to vector<8x64xf32>
    %204 = arith.addf %200, %203 : vector<8x64xf32>
    %cst_96 = arith.constant 0.000000e+00 : f32
    %205 = vector.broadcast %cst_96 : f32 to vector<8x64xf32>
    %206 = arith.maximumf %204, %205 : vector<8x64xf32>
    %c0_97 = arith.constant 0 : index
    %c0_98 = arith.constant 0 : index
    %c0_99 = arith.constant 0 : index
    %207 = vector.load %arg23[%c0_97, %c0_98, %c0_99] : memref<2x64x32xf32, #tpu.memory_space<vmem>>, vector<1x64x32xf32>
    %208 = vector.shape_cast %207 : vector<1x64x32xf32> to vector<64x32xf32>
    %cst_100 = arith.constant dense<0.000000e+00> : vector<8x32xf32>
    %209 = tpu.matmul %206, %208, %cst_100 {dimension_numbers = #tpu.dot_dimension_numbers<[1], [0], [0], [1], [0, 0, 1, 1], [], []>} : vector<8x64xf32>, vector<64x32xf32>, vector<8x32xf32> -> vector<8x32xf32>
    %c0_101 = arith.constant 0 : index
    %c0_102 = arith.constant 0 : index
    %c0_103 = arith.constant 0 : index
    %210 = vector.load %arg24[%c0_101, %c0_102, %c0_103] : memref<2x1x32xf32, #tpu.memory_space<vmem>>, vector<1x1x32xf32>
    %211 = vector.shape_cast %210 : vector<1x1x32xf32> to vector<1x32xf32>
    %212 = vector.broadcast %211 : vector<1x32xf32> to vector<8x32xf32>
    %213 = arith.addf %209, %212 : vector<8x32xf32>
    %214 = arith.addf %197, %213 : vector<8x32xf32>
    %c0_104 = arith.constant 0 : index
    %c0_105 = arith.constant 0 : index
    %c0_106 = arith.constant 0 : index
    %215 = vector.load %arg25[%c0_104, %c0_105, %c0_106] : memref<2x1x32xf32, #tpu.memory_space<vmem>>, vector<1x1x32xf32>
    %216 = vector.shape_cast %215 : vector<1x1x32xf32> to vector<1x32xf32>
    %c0_107 = arith.constant 0 : index
    %c0_108 = arith.constant 0 : index
    %c0_109 = arith.constant 0 : index
    %217 = vector.load %arg26[%c0_107, %c0_108, %c0_109] : memref<2x1x32xf32, #tpu.memory_space<vmem>>, vector<1x1x32xf32>
    %218 = vector.shape_cast %217 : vector<1x1x32xf32> to vector<1x32xf32>
    %cst_110 = arith.constant dense<0.000000e+00> : vector<8xf32>
    %219 = vector.multi_reduction <add>, %214, %cst_110 [1] : vector<8x32xf32> to vector<8xf32>
    %220 = vector.shape_cast %219 : vector<8xf32> to vector<8x1xf32>
    %cst_111 = arith.constant 3.200000e+01 : f32
    %221 = vector.broadcast %cst_111 : f32 to vector<8x1xf32>
    %222 = arith.divf %220, %221 : vector<8x1xf32>
    %223 = vector.broadcast %222 : vector<8x1xf32> to vector<8x32xf32>
    %224 = arith.subf %214, %223 : vector<8x32xf32>
    %225 = arith.mulf %224, %224 : vector<8x32xf32>
    %cst_112 = arith.constant dense<0.000000e+00> : vector<8xf32>
    %226 = vector.multi_reduction <add>, %225, %cst_112 [1] : vector<8x32xf32> to vector<8xf32>
    %227 = vector.shape_cast %226 : vector<8xf32> to vector<8x1xf32>
    %cst_113 = arith.constant 3.200000e+01 : f32
    %228 = vector.broadcast %cst_113 : f32 to vector<8x1xf32>
    %229 = arith.divf %227, %228 : vector<8x1xf32>
    %230 = vector.broadcast %222 : vector<8x1xf32> to vector<8x32xf32>
    %231 = arith.subf %214, %230 : vector<8x32xf32>
    %cst_114 = arith.constant 9.99999974E-6 : f32
    %232 = vector.broadcast %cst_114 : f32 to vector<8x1xf32>
    %233 = arith.addf %229, %232 : vector<8x1xf32>
    %234 = math.rsqrt %233 : vector<8x1xf32>
    %235 = vector.broadcast %234 : vector<8x1xf32> to vector<8x32xf32>
    %236 = arith.mulf %231, %235 : vector<8x32xf32>
    %237 = vector.broadcast %216 : vector<1x32xf32> to vector<8x32xf32>
    %238 = arith.mulf %236, %237 : vector<8x32xf32>
    %239 = vector.broadcast %218 : vector<1x32xf32> to vector<8x32xf32>
    %240 = arith.addf %238, %239 : vector<8x32xf32>
    %c1 = arith.constant 1 : index
    %c0_115 = arith.constant 0 : index
    %c0_116 = arith.constant 0 : index
    %241 = vector.load %arg5[%c1, %c0_115, %c0_116] : memref<2x32x32xf32, #tpu.memory_space<vmem>>, vector<1x32x32xf32>
    %242 = vector.shape_cast %241 : vector<1x32x32xf32> to vector<32x32xf32>
    %cst_117 = arith.constant dense<0.000000e+00> : vector<8x32xf32>
    %243 = tpu.matmul %240, %242, %cst_117 {dimension_numbers = #tpu.dot_dimension_numbers<[1], [0], [0], [1], [0, 0, 1, 1], [], []>} : vector<8x32xf32>, vector<32x32xf32>, vector<8x32xf32> -> vector<8x32xf32>
    %c1_118 = arith.constant 1 : index
    %c0_119 = arith.constant 0 : index
    %c0_120 = arith.constant 0 : index
    %244 = vector.load %arg6[%c1_118, %c0_119, %c0_120] : memref<2x32x32xf32, #tpu.memory_space<vmem>>, vector<1x32x32xf32>
    %245 = vector.shape_cast %244 : vector<1x32x32xf32> to vector<32x32xf32>
    %cst_121 = arith.constant dense<0.000000e+00> : vector<8x32xf32>
    %246 = tpu.matmul %15, %245, %cst_121 {dimension_numbers = #tpu.dot_dimension_numbers<[1], [0], [0], [1], [0, 0, 1, 1], [], []>} : vector<8x32xf32>, vector<32x32xf32>, vector<8x32xf32> -> vector<8x32xf32>
    %247 = arith.addf %243, %246 : vector<8x32xf32>
    %c1_122 = arith.constant 1 : index
    %c0_123 = arith.constant 0 : index
    %c0_124 = arith.constant 0 : index
    %248 = vector.load %arg7[%c1_122, %c0_123, %c0_124] : memref<2x1x32xf32, #tpu.memory_space<vmem>>, vector<1x1x32xf32>
    %249 = vector.shape_cast %248 : vector<1x1x32xf32> to vector<1x32xf32>
    %250 = vector.broadcast %249 : vector<1x32xf32> to vector<8x32xf32>
    %251 = arith.addf %247, %250 : vector<8x32xf32>
    %c1_125 = arith.constant 1 : index
    %c0_126 = arith.constant 0 : index
    %c0_127 = arith.constant 0 : index
    %252 = vector.load %arg8[%c1_125, %c0_126, %c0_127] : memref<2x32x64xf32, #tpu.memory_space<vmem>>, vector<1x32x64xf32>
    %253 = vector.shape_cast %252 : vector<1x32x64xf32> to vector<32x64xf32>
    %cst_128 = arith.constant dense<0.000000e+00> : vector<16x64xf32>
    %254 = tpu.matmul %3, %253, %cst_128 {dimension_numbers = #tpu.dot_dimension_numbers<[1], [0], [0], [1], [0, 0, 1, 1], [], []>} : vector<16x32xf32>, vector<32x64xf32>, vector<16x64xf32> -> vector<16x64xf32>
    %c1_129 = arith.constant 1 : index
    %c0_130 = arith.constant 0 : index
    %c0_131 = arith.constant 0 : index
    %255 = vector.load %arg9[%c1_129, %c0_130, %c0_131] : memref<2x16x64xf32, #tpu.memory_space<vmem>>, vector<1x16x64xf32>
    %256 = vector.shape_cast %255 : vector<1x16x64xf32> to vector<16x64xf32>
    %cst_132 = arith.constant dense<0.000000e+00> : vector<16x64xf32>
    %257 = tpu.matmul %7, %256, %cst_132 {dimension_numbers = #tpu.dot_dimension_numbers<[1], [0], [0], [1], [0, 0, 1, 1], [], []>} : vector<16x16xf32>, vector<16x64xf32>, vector<16x64xf32> -> vector<16x64xf32>
    %258 = arith.addf %254, %257 : vector<16x64xf32>
    %c1_133 = arith.constant 1 : index
    %c0_134 = arith.constant 0 : index
    %c0_135 = arith.constant 0 : index
    %259 = vector.load %arg10[%c1_133, %c0_134, %c0_135] : memref<2x1x64xf32, #tpu.memory_space<vmem>>, vector<1x1x64xf32>
    %260 = vector.shape_cast %259 : vector<1x1x64xf32> to vector<1x64xf32>
    %261 = vector.broadcast %260 : vector<1x64xf32> to vector<16x64xf32>
    %262 = arith.addf %258, %261 : vector<16x64xf32>
    %263 = vector.extract_strided_slice %262 {offsets = [0, 0], sizes = [16, 32], strides = [1, 1]} : vector<16x64xf32> to vector<16x32xf32>
    %264 = vector.extract_strided_slice %262 {offsets = [0, 32], sizes = [16, 32], strides = [1, 1]} : vector<16x64xf32> to vector<16x32xf32>
    %265 = vector.extract_strided_slice %251 {offsets = [0, 0], sizes = [8, 8], strides = [1, 1]} : vector<8x32xf32> to vector<8x8xf32>
    %266 = vector.extract_strided_slice %251 {offsets = [0, 8], sizes = [8, 8], strides = [1, 1]} : vector<8x32xf32> to vector<8x8xf32>
    %267 = vector.extract_strided_slice %251 {offsets = [0, 16], sizes = [8, 8], strides = [1, 1]} : vector<8x32xf32> to vector<8x8xf32>
    %268 = vector.extract_strided_slice %251 {offsets = [0, 24], sizes = [8, 8], strides = [1, 1]} : vector<8x32xf32> to vector<8x8xf32>
    %269 = vector.shape_cast %265 : vector<8x8xf32> to vector<1x8x8xf32>
    %270 = vector.shape_cast %266 : vector<8x8xf32> to vector<1x8x8xf32>
    %271 = vector.shape_cast %267 : vector<8x8xf32> to vector<1x8x8xf32>
    %272 = vector.shape_cast %268 : vector<8x8xf32> to vector<1x8x8xf32>
    %273 = tpu.concatenate %269, %270, %271, %272 in 0 : vector<1x8x8xf32>, vector<1x8x8xf32>, vector<1x8x8xf32>, vector<1x8x8xf32> -> vector<4x8x8xf32>
    %274 = vector.extract_strided_slice %263 {offsets = [0, 0], sizes = [16, 8], strides = [1, 1]} : vector<16x32xf32> to vector<16x8xf32>
    %275 = vector.extract_strided_slice %263 {offsets = [0, 8], sizes = [16, 8], strides = [1, 1]} : vector<16x32xf32> to vector<16x8xf32>
    %276 = vector.extract_strided_slice %263 {offsets = [0, 16], sizes = [16, 8], strides = [1, 1]} : vector<16x32xf32> to vector<16x8xf32>
    %277 = vector.extract_strided_slice %263 {offsets = [0, 24], sizes = [16, 8], strides = [1, 1]} : vector<16x32xf32> to vector<16x8xf32>
    %278 = vector.shape_cast %274 : vector<16x8xf32> to vector<1x16x8xf32>
    %279 = vector.shape_cast %275 : vector<16x8xf32> to vector<1x16x8xf32>
    %280 = vector.shape_cast %276 : vector<16x8xf32> to vector<1x16x8xf32>
    %281 = vector.shape_cast %277 : vector<16x8xf32> to vector<1x16x8xf32>
    %282 = tpu.concatenate %278, %279, %280, %281 in 0 : vector<1x16x8xf32>, vector<1x16x8xf32>, vector<1x16x8xf32>, vector<1x16x8xf32> -> vector<4x16x8xf32>
    %283 = vector.extract_strided_slice %264 {offsets = [0, 0], sizes = [16, 8], strides = [1, 1]} : vector<16x32xf32> to vector<16x8xf32>
    %284 = vector.extract_strided_slice %264 {offsets = [0, 8], sizes = [16, 8], strides = [1, 1]} : vector<16x32xf32> to vector<16x8xf32>
    %285 = vector.extract_strided_slice %264 {offsets = [0, 16], sizes = [16, 8], strides = [1, 1]} : vector<16x32xf32> to vector<16x8xf32>
    %286 = vector.extract_strided_slice %264 {offsets = [0, 24], sizes = [16, 8], strides = [1, 1]} : vector<16x32xf32> to vector<16x8xf32>
    %287 = vector.shape_cast %283 : vector<16x8xf32> to vector<1x16x8xf32>
    %288 = vector.shape_cast %284 : vector<16x8xf32> to vector<1x16x8xf32>
    %289 = vector.shape_cast %285 : vector<16x8xf32> to vector<1x16x8xf32>
    %290 = vector.shape_cast %286 : vector<16x8xf32> to vector<1x16x8xf32>
    %291 = tpu.concatenate %287, %288, %289, %290 in 0 : vector<1x16x8xf32>, vector<1x16x8xf32>, vector<1x16x8xf32>, vector<1x16x8xf32> -> vector<4x16x8xf32>
    "tpu.trace_start"() <{level = 10 : i32, message = "hqd,hkd->hqk"}> : () -> ()
    %cst_136 = arith.constant dense<0.000000e+00> : vector<4x8x16xf32>
    %292 = tpu.matmul %273, %282, %cst_136 {dimension_numbers = #tpu.dot_dimension_numbers<[2], [2], [1], [1], [0, 0, 0, 1, 1, 1], [0], [0]>} : vector<4x8x8xf32>, vector<4x16x8xf32>, vector<4x8x16xf32> -> vector<4x8x16xf32>
    "tpu.trace_stop"() : () -> ()
    %cst_137 = arith.constant dense<0xFF800000> : vector<4x8xf32>
    %293 = vector.multi_reduction <maximumf>, %292, %cst_137 [2] : vector<4x8x16xf32> to vector<4x8xf32>
    %294 = vector.shape_cast %293 : vector<4x8xf32> to vector<4x8x1xf32>
    %295 = vector.broadcast %294 : vector<4x8x1xf32> to vector<4x8x16xf32>
    %296 = arith.subf %292, %295 : vector<4x8x16xf32>
    %297 = math.exp %296 : vector<4x8x16xf32>
    %cst_138 = arith.constant dense<0.000000e+00> : vector<4x8xf32>
    %298 = vector.multi_reduction <add>, %297, %cst_138 [2] : vector<4x8x16xf32> to vector<4x8xf32>
    %299 = vector.shape_cast %298 : vector<4x8xf32> to vector<4x8x1xf32>
    %300 = tpu.reciprocal %299 {approx = true} : vector<4x8x1xf32> -> vector<4x8x1xf32>
    %301 = vector.broadcast %300 : vector<4x8x1xf32> to vector<4x8x16xf32>
    %302 = arith.mulf %297, %301 : vector<4x8x16xf32>
    "tpu.trace_start"() <{level = 10 : i32, message = "hqk,hkd->hqd"}> : () -> ()
    %cst_139 = arith.constant dense<0.000000e+00> : vector<4x8x8xf32>
    %303 = tpu.matmul %302, %291, %cst_139 {dimension_numbers = #tpu.dot_dimension_numbers<[2], [1], [1], [2], [0, 0, 0, 1, 1, 2], [0], [0]>} : vector<4x8x16xf32>, vector<4x16x8xf32>, vector<4x8x8xf32> -> vector<4x8x8xf32>
    "tpu.trace_stop"() : () -> ()
    %c1_140 = arith.constant 1 : index
    %c0_141 = arith.constant 0 : index
    %c0_142 = arith.constant 0 : index
    %c0_143 = arith.constant 0 : index
    %304 = vector.load %arg11[%c1_140, %c0_141, %c0_142, %c0_143] : memref<2x4x8x32xf32, #tpu.memory_space<vmem>>, vector<1x4x8x32xf32>
    %305 = vector.shape_cast %304 : vector<1x4x8x32xf32> to vector<4x8x32xf32>
    %c1_144 = arith.constant 1 : index
    %c0_145 = arith.constant 0 : index
    %c0_146 = arith.constant 0 : index
    %306 = vector.load %arg12[%c1_144, %c0_145, %c0_146] : memref<2x1x32xf32, #tpu.memory_space<vmem>>, vector<1x1x32xf32>
    %307 = vector.shape_cast %306 : vector<1x1x32xf32> to vector<1x32xf32>
    "tpu.trace_start"() <{level = 10 : i32, message = "htd,hdk->htk"}> : () -> ()
    %cst_147 = arith.constant dense<0.000000e+00> : vector<4x8x32xf32>
    %308 = tpu.matmul %303, %305, %cst_147 {dimension_numbers = #tpu.dot_dimension_numbers<[2], [1], [1], [2], [0, 0, 0, 1, 1, 2], [0], [0]>} : vector<4x8x8xf32>, vector<4x8x32xf32>, vector<4x8x32xf32> -> vector<4x8x32xf32>
    "tpu.trace_stop"() : () -> ()
    %cst_148 = arith.constant dense<0.000000e+00> : vector<8x32xf32>
    %309 = vector.multi_reduction <add>, %308, %cst_148 [0] : vector<4x8x32xf32> to vector<8x32xf32>
    %310 = vector.broadcast %307 : vector<1x32xf32> to vector<8x32xf32>
    %311 = arith.addf %309, %310 : vector<8x32xf32>
    %312 = arith.addf %240, %311 : vector<8x32xf32>
    %c1_149 = arith.constant 1 : index
    %c0_150 = arith.constant 0 : index
    %c0_151 = arith.constant 0 : index
    %313 = vector.load %arg13[%c1_149, %c0_150, %c0_151] : memref<2x1x32xf32, #tpu.memory_space<vmem>>, vector<1x1x32xf32>
    %314 = vector.shape_cast %313 : vector<1x1x32xf32> to vector<1x32xf32>
    %c1_152 = arith.constant 1 : index
    %c0_153 = arith.constant 0 : index
    %c0_154 = arith.constant 0 : index
    %315 = vector.load %arg14[%c1_152, %c0_153, %c0_154] : memref<2x1x32xf32, #tpu.memory_space<vmem>>, vector<1x1x32xf32>
    %316 = vector.shape_cast %315 : vector<1x1x32xf32> to vector<1x32xf32>
    %cst_155 = arith.constant dense<0.000000e+00> : vector<8xf32>
    %317 = vector.multi_reduction <add>, %312, %cst_155 [1] : vector<8x32xf32> to vector<8xf32>
    %318 = vector.shape_cast %317 : vector<8xf32> to vector<8x1xf32>
    %cst_156 = arith.constant 3.200000e+01 : f32
    %319 = vector.broadcast %cst_156 : f32 to vector<8x1xf32>
    %320 = arith.divf %318, %319 : vector<8x1xf32>
    %321 = vector.broadcast %320 : vector<8x1xf32> to vector<8x32xf32>
    %322 = arith.subf %312, %321 : vector<8x32xf32>
    %323 = arith.mulf %322, %322 : vector<8x32xf32>
    %cst_157 = arith.constant dense<0.000000e+00> : vector<8xf32>
    %324 = vector.multi_reduction <add>, %323, %cst_157 [1] : vector<8x32xf32> to vector<8xf32>
    %325 = vector.shape_cast %324 : vector<8xf32> to vector<8x1xf32>
    %cst_158 = arith.constant 3.200000e+01 : f32
    %326 = vector.broadcast %cst_158 : f32 to vector<8x1xf32>
    %327 = arith.divf %325, %326 : vector<8x1xf32>
    %328 = vector.broadcast %320 : vector<8x1xf32> to vector<8x32xf32>
    %329 = arith.subf %312, %328 : vector<8x32xf32>
    %cst_159 = arith.constant 9.99999974E-6 : f32
    %330 = vector.broadcast %cst_159 : f32 to vector<8x1xf32>
    %331 = arith.addf %327, %330 : vector<8x1xf32>
    %332 = math.rsqrt %331 : vector<8x1xf32>
    %333 = vector.broadcast %332 : vector<8x1xf32> to vector<8x32xf32>
    %334 = arith.mulf %329, %333 : vector<8x32xf32>
    %335 = vector.broadcast %314 : vector<1x32xf32> to vector<8x32xf32>
    %336 = arith.mulf %334, %335 : vector<8x32xf32>
    %337 = vector.broadcast %316 : vector<1x32xf32> to vector<8x32xf32>
    %338 = arith.addf %336, %337 : vector<8x32xf32>
    %c1_160 = arith.constant 1 : index
    %c0_161 = arith.constant 0 : index
    %c0_162 = arith.constant 0 : index
    %339 = vector.load %arg15[%c1_160, %c0_161, %c0_162] : memref<2x32x96xf32, #tpu.memory_space<vmem>>, vector<1x32x96xf32>
    %340 = vector.shape_cast %339 : vector<1x32x96xf32> to vector<32x96xf32>
    %cst_163 = arith.constant dense<0.000000e+00> : vector<8x96xf32>
    %341 = tpu.matmul %338, %340, %cst_163 {dimension_numbers = #tpu.dot_dimension_numbers<[1], [0], [0], [1], [0, 0, 1, 1], [], []>} : vector<8x32xf32>, vector<32x96xf32>, vector<8x96xf32> -> vector<8x96xf32>
    %c1_164 = arith.constant 1 : index
    %c0_165 = arith.constant 0 : index
    %c0_166 = arith.constant 0 : index
    %342 = vector.load %arg16[%c1_164, %c0_165, %c0_166] : memref<2x1x96xf32, #tpu.memory_space<vmem>>, vector<1x1x96xf32>
    %343 = vector.shape_cast %342 : vector<1x1x96xf32> to vector<1x96xf32>
    %344 = vector.broadcast %343 : vector<1x96xf32> to vector<8x96xf32>
    %345 = arith.addf %341, %344 : vector<8x96xf32>
    %346 = vector.extract_strided_slice %345 {offsets = [0, 0], sizes = [8, 32], strides = [1, 1]} : vector<8x96xf32> to vector<8x32xf32>
    %347 = vector.extract_strided_slice %345 {offsets = [0, 32], sizes = [8, 32], strides = [1, 1]} : vector<8x96xf32> to vector<8x32xf32>
    %348 = vector.extract_strided_slice %345 {offsets = [0, 64], sizes = [8, 32], strides = [1, 1]} : vector<8x96xf32> to vector<8x32xf32>
    %349 = vector.extract_strided_slice %346 {offsets = [0, 0], sizes = [8, 8], strides = [1, 1]} : vector<8x32xf32> to vector<8x8xf32>
    %350 = vector.extract_strided_slice %346 {offsets = [0, 8], sizes = [8, 8], strides = [1, 1]} : vector<8x32xf32> to vector<8x8xf32>
    %351 = vector.extract_strided_slice %346 {offsets = [0, 16], sizes = [8, 8], strides = [1, 1]} : vector<8x32xf32> to vector<8x8xf32>
    %352 = vector.extract_strided_slice %346 {offsets = [0, 24], sizes = [8, 8], strides = [1, 1]} : vector<8x32xf32> to vector<8x8xf32>
    %353 = vector.shape_cast %349 : vector<8x8xf32> to vector<1x8x8xf32>
    %354 = vector.shape_cast %350 : vector<8x8xf32> to vector<1x8x8xf32>
    %355 = vector.shape_cast %351 : vector<8x8xf32> to vector<1x8x8xf32>
    %356 = vector.shape_cast %352 : vector<8x8xf32> to vector<1x8x8xf32>
    %357 = tpu.concatenate %353, %354, %355, %356 in 0 : vector<1x8x8xf32>, vector<1x8x8xf32>, vector<1x8x8xf32>, vector<1x8x8xf32> -> vector<4x8x8xf32>
    %358 = vector.extract_strided_slice %347 {offsets = [0, 0], sizes = [8, 8], strides = [1, 1]} : vector<8x32xf32> to vector<8x8xf32>
    %359 = vector.extract_strided_slice %347 {offsets = [0, 8], sizes = [8, 8], strides = [1, 1]} : vector<8x32xf32> to vector<8x8xf32>
    %360 = vector.extract_strided_slice %347 {offsets = [0, 16], sizes = [8, 8], strides = [1, 1]} : vector<8x32xf32> to vector<8x8xf32>
    %361 = vector.extract_strided_slice %347 {offsets = [0, 24], sizes = [8, 8], strides = [1, 1]} : vector<8x32xf32> to vector<8x8xf32>
    %362 = vector.shape_cast %358 : vector<8x8xf32> to vector<1x8x8xf32>
    %363 = vector.shape_cast %359 : vector<8x8xf32> to vector<1x8x8xf32>
    %364 = vector.shape_cast %360 : vector<8x8xf32> to vector<1x8x8xf32>
    %365 = vector.shape_cast %361 : vector<8x8xf32> to vector<1x8x8xf32>
    %366 = tpu.concatenate %362, %363, %364, %365 in 0 : vector<1x8x8xf32>, vector<1x8x8xf32>, vector<1x8x8xf32>, vector<1x8x8xf32> -> vector<4x8x8xf32>
    %367 = vector.extract_strided_slice %348 {offsets = [0, 0], sizes = [8, 8], strides = [1, 1]} : vector<8x32xf32> to vector<8x8xf32>
    %368 = vector.extract_strided_slice %348 {offsets = [0, 8], sizes = [8, 8], strides = [1, 1]} : vector<8x32xf32> to vector<8x8xf32>
    %369 = vector.extract_strided_slice %348 {offsets = [0, 16], sizes = [8, 8], strides = [1, 1]} : vector<8x32xf32> to vector<8x8xf32>
    %370 = vector.extract_strided_slice %348 {offsets = [0, 24], sizes = [8, 8], strides = [1, 1]} : vector<8x32xf32> to vector<8x8xf32>
    %371 = vector.shape_cast %367 : vector<8x8xf32> to vector<1x8x8xf32>
    %372 = vector.shape_cast %368 : vector<8x8xf32> to vector<1x8x8xf32>
    %373 = vector.shape_cast %369 : vector<8x8xf32> to vector<1x8x8xf32>
    %374 = vector.shape_cast %370 : vector<8x8xf32> to vector<1x8x8xf32>
    %375 = tpu.concatenate %371, %372, %373, %374 in 0 : vector<1x8x8xf32>, vector<1x8x8xf32>, vector<1x8x8xf32>, vector<1x8x8xf32> -> vector<4x8x8xf32>
    "tpu.trace_start"() <{level = 10 : i32, message = "hqd,hkd->hqk"}> : () -> ()
    %cst_167 = arith.constant dense<0.000000e+00> : vector<4x8x8xf32>
    %376 = tpu.matmul %357, %366, %cst_167 {dimension_numbers = #tpu.dot_dimension_numbers<[2], [2], [1], [1], [0, 0, 0, 1, 1, 1], [0], [0]>} : vector<4x8x8xf32>, vector<4x8x8xf32>, vector<4x8x8xf32> -> vector<4x8x8xf32>
    "tpu.trace_stop"() : () -> ()
    %cst_168 = arith.constant dense<0xFF800000> : vector<4x8xf32>
    %377 = vector.multi_reduction <maximumf>, %376, %cst_168 [2] : vector<4x8x8xf32> to vector<4x8xf32>
    %378 = vector.shape_cast %377 : vector<4x8xf32> to vector<4x8x1xf32>
    %379 = vector.broadcast %378 : vector<4x8x1xf32> to vector<4x8x8xf32>
    %380 = arith.subf %376, %379 : vector<4x8x8xf32>
    %381 = math.exp %380 : vector<4x8x8xf32>
    %cst_169 = arith.constant dense<0.000000e+00> : vector<4x8xf32>
    %382 = vector.multi_reduction <add>, %381, %cst_169 [2] : vector<4x8x8xf32> to vector<4x8xf32>
    %383 = vector.shape_cast %382 : vector<4x8xf32> to vector<4x8x1xf32>
    %384 = tpu.reciprocal %383 {approx = true} : vector<4x8x1xf32> -> vector<4x8x1xf32>
    %385 = vector.broadcast %384 : vector<4x8x1xf32> to vector<4x8x8xf32>
    %386 = arith.mulf %381, %385 : vector<4x8x8xf32>
    "tpu.trace_start"() <{level = 10 : i32, message = "hqk,hkd->hqd"}> : () -> ()
    %cst_170 = arith.constant dense<0.000000e+00> : vector<4x8x8xf32>
    %387 = tpu.matmul %386, %375, %cst_170 {dimension_numbers = #tpu.dot_dimension_numbers<[2], [1], [1], [2], [0, 0, 0, 1, 1, 2], [0], [0]>} : vector<4x8x8xf32>, vector<4x8x8xf32>, vector<4x8x8xf32> -> vector<4x8x8xf32>
    "tpu.trace_stop"() : () -> ()
    %c1_171 = arith.constant 1 : index
    %c0_172 = arith.constant 0 : index
    %c0_173 = arith.constant 0 : index
    %c0_174 = arith.constant 0 : index
    %388 = vector.load %arg17[%c1_171, %c0_172, %c0_173, %c0_174] : memref<2x4x8x32xf32, #tpu.memory_space<vmem>>, vector<1x4x8x32xf32>
    %389 = vector.shape_cast %388 : vector<1x4x8x32xf32> to vector<4x8x32xf32>
    %c1_175 = arith.constant 1 : index
    %c0_176 = arith.constant 0 : index
    %c0_177 = arith.constant 0 : index
    %390 = vector.load %arg18[%c1_175, %c0_176, %c0_177] : memref<2x1x32xf32, #tpu.memory_space<vmem>>, vector<1x1x32xf32>
    %391 = vector.shape_cast %390 : vector<1x1x32xf32> to vector<1x32xf32>
    "tpu.trace_start"() <{level = 10 : i32, message = "htd,hdk->htk"}> : () -> ()
    %cst_178 = arith.constant dense<0.000000e+00> : vector<4x8x32xf32>
    %392 = tpu.matmul %387, %389, %cst_178 {dimension_numbers = #tpu.dot_dimension_numbers<[2], [1], [1], [2], [0, 0, 0, 1, 1, 2], [0], [0]>} : vector<4x8x8xf32>, vector<4x8x32xf32>, vector<4x8x32xf32> -> vector<4x8x32xf32>
    "tpu.trace_stop"() : () -> ()
    %cst_179 = arith.constant dense<0.000000e+00> : vector<8x32xf32>
    %393 = vector.multi_reduction <add>, %392, %cst_179 [0] : vector<4x8x32xf32> to vector<8x32xf32>
    %394 = vector.broadcast %391 : vector<1x32xf32> to vector<8x32xf32>
    %395 = arith.addf %393, %394 : vector<8x32xf32>
    %396 = arith.addf %338, %395 : vector<8x32xf32>
    %c1_180 = arith.constant 1 : index
    %c0_181 = arith.constant 0 : index
    %c0_182 = arith.constant 0 : index
    %397 = vector.load %arg19[%c1_180, %c0_181, %c0_182] : memref<2x1x32xf32, #tpu.memory_space<vmem>>, vector<1x1x32xf32>
    %398 = vector.shape_cast %397 : vector<1x1x32xf32> to vector<1x32xf32>
    %c1_183 = arith.constant 1 : index
    %c0_184 = arith.constant 0 : index
    %c0_185 = arith.constant 0 : index
    %399 = vector.load %arg20[%c1_183, %c0_184, %c0_185] : memref<2x1x32xf32, #tpu.memory_space<vmem>>, vector<1x1x32xf32>
    %400 = vector.shape_cast %399 : vector<1x1x32xf32> to vector<1x32xf32>
    %cst_186 = arith.constant dense<0.000000e+00> : vector<8xf32>
    %401 = vector.multi_reduction <add>, %396, %cst_186 [1] : vector<8x32xf32> to vector<8xf32>
    %402 = vector.shape_cast %401 : vector<8xf32> to vector<8x1xf32>
    %cst_187 = arith.constant 3.200000e+01 : f32
    %403 = vector.broadcast %cst_187 : f32 to vector<8x1xf32>
    %404 = arith.divf %402, %403 : vector<8x1xf32>
    %405 = vector.broadcast %404 : vector<8x1xf32> to vector<8x32xf32>
    %406 = arith.subf %396, %405 : vector<8x32xf32>
    %407 = arith.mulf %406, %406 : vector<8x32xf32>
    %cst_188 = arith.constant dense<0.000000e+00> : vector<8xf32>
    %408 = vector.multi_reduction <add>, %407, %cst_188 [1] : vector<8x32xf32> to vector<8xf32>
    %409 = vector.shape_cast %408 : vector<8xf32> to vector<8x1xf32>
    %cst_189 = arith.constant 3.200000e+01 : f32
    %410 = vector.broadcast %cst_189 : f32 to vector<8x1xf32>
    %411 = arith.divf %409, %410 : vector<8x1xf32>
    %412 = vector.broadcast %404 : vector<8x1xf32> to vector<8x32xf32>
    %413 = arith.subf %396, %412 : vector<8x32xf32>
    %cst_190 = arith.constant 9.99999974E-6 : f32
    %414 = vector.broadcast %cst_190 : f32 to vector<8x1xf32>
    %415 = arith.addf %411, %414 : vector<8x1xf32>
    %416 = math.rsqrt %415 : vector<8x1xf32>
    %417 = vector.broadcast %416 : vector<8x1xf32> to vector<8x32xf32>
    %418 = arith.mulf %413, %417 : vector<8x32xf32>
    %419 = vector.broadcast %398 : vector<1x32xf32> to vector<8x32xf32>
    %420 = arith.mulf %418, %419 : vector<8x32xf32>
    %421 = vector.broadcast %400 : vector<1x32xf32> to vector<8x32xf32>
    %422 = arith.addf %420, %421 : vector<8x32xf32>
    %c1_191 = arith.constant 1 : index
    %c0_192 = arith.constant 0 : index
    %c0_193 = arith.constant 0 : index
    %423 = vector.load %arg21[%c1_191, %c0_192, %c0_193] : memref<2x32x64xf32, #tpu.memory_space<vmem>>, vector<1x32x64xf32>
    %424 = vector.shape_cast %423 : vector<1x32x64xf32> to vector<32x64xf32>
    %cst_194 = arith.constant dense<0.000000e+00> : vector<8x64xf32>
    %425 = tpu.matmul %422, %424, %cst_194 {dimension_numbers = #tpu.dot_dimension_numbers<[1], [0], [0], [1], [0, 0, 1, 1], [], []>} : vector<8x32xf32>, vector<32x64xf32>, vector<8x64xf32> -> vector<8x64xf32>
    %c1_195 = arith.constant 1 : index
    %c0_196 = arith.constant 0 : index
    %c0_197 = arith.constant 0 : index
    %426 = vector.load %arg22[%c1_195, %c0_196, %c0_197] : memref<2x1x64xf32, #tpu.memory_space<vmem>>, vector<1x1x64xf32>
    %427 = vector.shape_cast %426 : vector<1x1x64xf32> to vector<1x64xf32>
    %428 = vector.broadcast %427 : vector<1x64xf32> to vector<8x64xf32>
    %429 = arith.addf %425, %428 : vector<8x64xf32>
    %cst_198 = arith.constant 0.000000e+00 : f32
    %430 = vector.broadcast %cst_198 : f32 to vector<8x64xf32>
    %431 = arith.maximumf %429, %430 : vector<8x64xf32>
    %c1_199 = arith.constant 1 : index
    %c0_200 = arith.constant 0 : index
    %c0_201 = arith.constant 0 : index
    %432 = vector.load %arg23[%c1_199, %c0_200, %c0_201] : memref<2x64x32xf32, #tpu.memory_space<vmem>>, vector<1x64x32xf32>
    %433 = vector.shape_cast %432 : vector<1x64x32xf32> to vector<64x32xf32>
    %cst_202 = arith.constant dense<0.000000e+00> : vector<8x32xf32>
    %434 = tpu.matmul %431, %433, %cst_202 {dimension_numbers = #tpu.dot_dimension_numbers<[1], [0], [0], [1], [0, 0, 1, 1], [], []>} : vector<8x64xf32>, vector<64x32xf32>, vector<8x32xf32> -> vector<8x32xf32>
    %c1_203 = arith.constant 1 : index
    %c0_204 = arith.constant 0 : index
    %c0_205 = arith.constant 0 : index
    %435 = vector.load %arg24[%c1_203, %c0_204, %c0_205] : memref<2x1x32xf32, #tpu.memory_space<vmem>>, vector<1x1x32xf32>
    %436 = vector.shape_cast %435 : vector<1x1x32xf32> to vector<1x32xf32>
    %437 = vector.broadcast %436 : vector<1x32xf32> to vector<8x32xf32>
    %438 = arith.addf %434, %437 : vector<8x32xf32>
    %439 = arith.addf %422, %438 : vector<8x32xf32>
    %c1_206 = arith.constant 1 : index
    %c0_207 = arith.constant 0 : index
    %c0_208 = arith.constant 0 : index
    %440 = vector.load %arg25[%c1_206, %c0_207, %c0_208] : memref<2x1x32xf32, #tpu.memory_space<vmem>>, vector<1x1x32xf32>
    %441 = vector.shape_cast %440 : vector<1x1x32xf32> to vector<1x32xf32>
    %c1_209 = arith.constant 1 : index
    %c0_210 = arith.constant 0 : index
    %c0_211 = arith.constant 0 : index
    %442 = vector.load %arg26[%c1_209, %c0_210, %c0_211] : memref<2x1x32xf32, #tpu.memory_space<vmem>>, vector<1x1x32xf32>
    %443 = vector.shape_cast %442 : vector<1x1x32xf32> to vector<1x32xf32>
    %cst_212 = arith.constant dense<0.000000e+00> : vector<8xf32>
    %444 = vector.multi_reduction <add>, %439, %cst_212 [1] : vector<8x32xf32> to vector<8xf32>
    %445 = vector.shape_cast %444 : vector<8xf32> to vector<8x1xf32>
    %cst_213 = arith.constant 3.200000e+01 : f32
    %446 = vector.broadcast %cst_213 : f32 to vector<8x1xf32>
    %447 = arith.divf %445, %446 : vector<8x1xf32>
    %448 = vector.broadcast %447 : vector<8x1xf32> to vector<8x32xf32>
    %449 = arith.subf %439, %448 : vector<8x32xf32>
    %450 = arith.mulf %449, %449 : vector<8x32xf32>
    %cst_214 = arith.constant dense<0.000000e+00> : vector<8xf32>
    %451 = vector.multi_reduction <add>, %450, %cst_214 [1] : vector<8x32xf32> to vector<8xf32>
    %452 = vector.shape_cast %451 : vector<8xf32> to vector<8x1xf32>
    %cst_215 = arith.constant 3.200000e+01 : f32
    %453 = vector.broadcast %cst_215 : f32 to vector<8x1xf32>
    %454 = arith.divf %452, %453 : vector<8x1xf32>
    %455 = vector.broadcast %447 : vector<8x1xf32> to vector<8x32xf32>
    %456 = arith.subf %439, %455 : vector<8x32xf32>
    %cst_216 = arith.constant 9.99999974E-6 : f32
    %457 = vector.broadcast %cst_216 : f32 to vector<8x1xf32>
    %458 = arith.addf %454, %457 : vector<8x1xf32>
    %459 = math.rsqrt %458 : vector<8x1xf32>
    %460 = vector.broadcast %459 : vector<8x1xf32> to vector<8x32xf32>
    %461 = arith.mulf %456, %460 : vector<8x32xf32>
    %462 = vector.broadcast %441 : vector<1x32xf32> to vector<8x32xf32>
    %463 = arith.mulf %461, %462 : vector<8x32xf32>
    %464 = vector.broadcast %443 : vector<1x32xf32> to vector<8x32xf32>
    %465 = arith.addf %463, %464 : vector<8x32xf32>
    %c0_217 = arith.constant 0 : index
    %c0_218 = arith.constant 0 : index
    %466 = vector.load %arg27[%c0_217, %c0_218] : memref<32x4xf32, #tpu.memory_space<vmem>>, vector<32x4xf32>
    %cst_219 = arith.constant dense<0.000000e+00> : vector<8x4xf32>
    %467 = tpu.matmul %465, %466, %cst_219 {dimension_numbers = #tpu.dot_dimension_numbers<[1], [0], [0], [1], [0, 0, 1, 1], [], []>} : vector<8x32xf32>, vector<32x4xf32>, vector<8x4xf32> -> vector<8x4xf32>
    %c0_220 = arith.constant 0 : index
    %c0_221 = arith.constant 0 : index
    %468 = vector.load %arg28[%c0_220, %c0_221] : memref<1x4xf32, #tpu.memory_space<vmem>>, vector<1x4xf32>
    %469 = vector.broadcast %468 : vector<1x4xf32> to vector<8x4xf32>
    %470 = arith.addf %467, %469 : vector<8x4xf32>
    %c0_222 = arith.constant 0 : index
    %c0_223 = arith.constant 0 : index
    %c0_224 = arith.constant 0 : index
    %471 = vector.load %arg29[%c0_222, %c0_223, %c0_224] : memref<1x8x4xf32, #tpu.memory_space<vmem>>, vector<1x8x4xf32>
    %472 = vector.shape_cast %471 : vector<1x8x4xf32> to vector<8x4xf32>
    %473 = vector.shape_cast %470 : vector<8x4xf32> to vector<1x8x4xf32>
    tpu.vector_store %arg29[%c0_222, %c0_223, %c0_224], %473 {strides = array<i32>} : memref<1x8x4xf32, #tpu.memory_space<vmem>>, vector<1x8x4xf32>,
    return
  }
  func.func @transform_0(%arg0: i32) -> (i32, i32, i32) {
    %c0_i32 = arith.constant 0 : i32
    %c0_i32_0 = arith.constant 0 : i32
    %c0_i32_1 = arith.constant 0 : i32
    return %arg0, %c0_i32, %c0_i32_0 : i32, i32, i32
  }
  func.func @transform_1(%arg0: i32) -> (i32, i32, i32) {
    %c0_i32 = arith.constant 0 : i32
    %c0_i32_0 = arith.constant 0 : i32
    %c0_i32_1 = arith.constant 0 : i32
    return %arg0, %c0_i32, %c0_i32_0 : i32, i32, i32
  }
  func.func @transform_2(%arg0: i32) -> (i32, i32, i32) {
    %c0_i32 = arith.constant 0 : i32
    %c0_i32_0 = arith.constant 0 : i32
    %c0_i32_1 = arith.constant 0 : i32
    return %arg0, %c0_i32, %c0_i32_0 : i32, i32, i32
  }
  func.func @transform_3(%arg0: i32) -> (i32, i32, i32) {
    %c0_i32 = arith.constant 0 : i32
    %c0_i32_0 = arith.constant 0 : i32
    %c0_i32_1 = arith.constant 0 : i32
    return %arg0, %c0_i32, %c0_i32_0 : i32, i32, i32
  }
  func.func @transform_4(%arg0: i32) -> (i32, i32, i32) {
    %c0_i32 = arith.constant 0 : i32
    %c0_i32_0 = arith.constant 0 : i32
    %c0_i32_1 = arith.constant 0 : i32
    %c0_i32_2 = arith.constant 0 : i32
    return %c0_i32, %c0_i32_0, %c0_i32_1 : i32, i32, i32
  }
  func.func @transform_5(%arg0: i32) -> (i32, i32, i32) {
    %c0_i32 = arith.constant 0 : i32
    %c0_i32_0 = arith.constant 0 : i32
    %c0_i32_1 = arith.constant 0 : i32
    %c0_i32_2 = arith.constant 0 : i32
    return %c0_i32, %c0_i32_0, %c0_i32_1 : i32, i32, i32
  }
  func.func @transform_6(%arg0: i32) -> (i32, i32, i32) {
    %c0_i32 = arith.constant 0 : i32
    %c0_i32_0 = arith.constant 0 : i32
    %c0_i32_1 = arith.constant 0 : i32
    %c0_i32_2 = arith.constant 0 : i32
    return %c0_i32, %c0_i32_0, %c0_i32_1 : i32, i32, i32
  }
  func.func @transform_7(%arg0: i32) -> (i32, i32, i32) {
    %c0_i32 = arith.constant 0 : i32
    %c0_i32_0 = arith.constant 0 : i32
    %c0_i32_1 = arith.constant 0 : i32
    %c0_i32_2 = arith.constant 0 : i32
    return %c0_i32, %c0_i32_0, %c0_i32_1 : i32, i32, i32
  }
  func.func @transform_8(%arg0: i32) -> (i32, i32, i32) {
    %c0_i32 = arith.constant 0 : i32
    %c0_i32_0 = arith.constant 0 : i32
    %c0_i32_1 = arith.constant 0 : i32
    %c0_i32_2 = arith.constant 0 : i32
    return %c0_i32, %c0_i32_0, %c0_i32_1 : i32, i32, i32
  }
  func.func @transform_9(%arg0: i32) -> (i32, i32, i32) {
    %c0_i32 = arith.constant 0 : i32
    %c0_i32_0 = arith.constant 0 : i32
    %c0_i32_1 = arith.constant 0 : i32
    %c0_i32_2 = arith.constant 0 : i32
    return %c0_i32, %c0_i32_0, %c0_i32_1 : i32, i32, i32
  }
  func.func @transform_10(%arg0: i32) -> (i32, i32, i32, i32) {
    %c0_i32 = arith.constant 0 : i32
    %c0_i32_0 = arith.constant 0 : i32
    %c0_i32_1 = arith.constant 0 : i32
    %c0_i32_2 = arith.constant 0 : i32
    %c0_i32_3 = arith.constant 0 : i32
    return %c0_i32, %c0_i32_0, %c0_i32_1, %c0_i32_2 : i32, i32, i32, i32
  }
  func.func @transform_11(%arg0: i32) -> (i32, i32, i32) {
    %c0_i32 = arith.constant 0 : i32
    %c0_i32_0 = arith.constant 0 : i32
    %c0_i32_1 = arith.constant 0 : i32
    %c0_i32_2 = arith.constant 0 : i32
    return %c0_i32, %c0_i32_0, %c0_i32_1 : i32, i32, i32
  }
  func.func @transform_12(%arg0: i32) -> (i32, i32, i32) {
    %c0_i32 = arith.constant 0 : i32
    %c0_i32_0 = arith.constant 0 : i32
    %c0_i32_1 = arith.constant 0 : i32
    %c0_i32_2 = arith.constant 0 : i32
    return %c0_i32, %c0_i32_0, %c0_i32_1 : i32, i32, i32
  }
  func.func @transform_13(%arg0: i32) -> (i32, i32, i32) {
    %c0_i32 = arith.constant 0 : i32
    %c0_i32_0 = arith.constant 0 : i32
    %c0_i32_1 = arith.constant 0 : i32
    %c0_i32_2 = arith.constant 0 : i32
    return %c0_i32, %c0_i32_0, %c0_i32_1 : i32, i32, i32
  }
  func.func @transform_14(%arg0: i32) -> (i32, i32, i32) {
    %c0_i32 = arith.constant 0 : i32
    %c0_i32_0 = arith.constant 0 : i32
    %c0_i32_1 = arith.constant 0 : i32
    %c0_i32_2 = arith.constant 0 : i32
    return %c0_i32, %c0_i32_0, %c0_i32_1 : i32, i32, i32
  }
  func.func @transform_15(%arg0: i32) -> (i32, i32, i32) {
    %c0_i32 = arith.constant 0 : i32
    %c0_i32_0 = arith.constant 0 : i32
    %c0_i32_1 = arith.constant 0 : i32
    %c0_i32_2 = arith.constant 0 : i32
    return %c0_i32, %c0_i32_0, %c0_i32_1 : i32, i32, i32
  }
  func.func @transform_16(%arg0: i32) -> (i32, i32, i32, i32) {
    %c0_i32 = arith.constant 0 : i32
    %c0_i32_0 = arith.constant 0 : i32
    %c0_i32_1 = arith.constant 0 : i32
    %c0_i32_2 = arith.constant 0 : i32
    %c0_i32_3 = arith.constant 0 : i32
    return %c0_i32, %c0_i32_0, %c0_i32_1, %c0_i32_2 : i32, i32, i32, i32
  }
  func.func @transform_17(%arg0: i32) -> (i32, i32, i32) {
    %c0_i32 = arith.constant 0 : i32
    %c0_i32_0 = arith.constant 0 : i32
    %c0_i32_1 = arith.constant 0 : i32
    %c0_i32_2 = arith.constant 0 : i32
    return %c0_i32, %c0_i32_0, %c0_i32_1 : i32, i32, i32
  }
  func.func @transform_18(%arg0: i32) -> (i32, i32, i32) {
    %c0_i32 = arith.constant 0 : i32
    %c0_i32_0 = arith.constant 0 : i32
    %c0_i32_1 = arith.constant 0 : i32
    %c0_i32_2 = arith.constant 0 : i32
    return %c0_i32, %c0_i32_0, %c0_i32_1 : i32, i32, i32
  }
  func.func @transform_19(%arg0: i32) -> (i32, i32, i32) {
    %c0_i32 = arith.constant 0 : i32
    %c0_i32_0 = arith.constant 0 : i32
    %c0_i32_1 = arith.constant 0 : i32
    %c0_i32_2 = arith.constant 0 : i32
    return %c0_i32, %c0_i32_0, %c0_i32_1 : i32, i32, i32
  }
  func.func @transform_20(%arg0: i32) -> (i32, i32, i32) {
    %c0_i32 = arith.constant 0 : i32
    %c0_i32_0 = arith.constant 0 : i32
    %c0_i32_1 = arith.constant 0 : i32
    %c0_i32_2 = arith.constant 0 : i32
    return %c0_i32, %c0_i32_0, %c0_i32_1 : i32, i32, i32
  }
  func.func @transform_21(%arg0: i32) -> (i32, i32, i32) {
    %c0_i32 = arith.constant 0 : i32
    %c0_i32_0 = arith.constant 0 : i32
    %c0_i32_1 = arith.constant 0 : i32
    %c0_i32_2 = arith.constant 0 : i32
    return %c0_i32, %c0_i32_0, %c0_i32_1 : i32, i32, i32
  }
  func.func @transform_22(%arg0: i32) -> (i32, i32, i32) {
    %c0_i32 = arith.constant 0 : i32
    %c0_i32_0 = arith.constant 0 : i32
    %c0_i32_1 = arith.constant 0 : i32
    %c0_i32_2 = arith.constant 0 : i32
    return %c0_i32, %c0_i32_0, %c0_i32_1 : i32, i32, i32
  }
  func.func @transform_23(%arg0: i32) -> (i32, i32, i32) {
    %c0_i32 = arith.constant 0 : i32
    %c0_i32_0 = arith.constant 0 : i32
    %c0_i32_1 = arith.constant 0 : i32
    %c0_i32_2 = arith.constant 0 : i32
    return %c0_i32, %c0_i32_0, %c0_i32_1 : i32, i32, i32
  }
  func.func @transform_24(%arg0: i32) -> (i32, i32, i32) {
    %c0_i32 = arith.constant 0 : i32
    %c0_i32_0 = arith.constant 0 : i32
    %c0_i32_1 = arith.constant 0 : i32
    %c0_i32_2 = arith.constant 0 : i32
    return %c0_i32, %c0_i32_0, %c0_i32_1 : i32, i32, i32
  }
  func.func @transform_25(%arg0: i32) -> (i32, i32, i32) {
    %c0_i32 = arith.constant 0 : i32
    %c0_i32_0 = arith.constant 0 : i32
    %c0_i32_1 = arith.constant 0 : i32
    %c0_i32_2 = arith.constant 0 : i32
    return %c0_i32, %c0_i32_0, %c0_i32_1 : i32, i32, i32
  }
  func.func @transform_26(%arg0: i32) -> (i32, i32) {
    %c0_i32 = arith.constant 0 : i32
    %c0_i32_0 = arith.constant 0 : i32
    %c0_i32_1 = arith.constant 0 : i32
    return %c0_i32, %c0_i32_0 : i32, i32
  }
  func.func @transform_27(%arg0: i32) -> (i32, i32) {
    %c0_i32 = arith.constant 0 : i32
    %c0_i32_0 = arith.constant 0 : i32
    %c0_i32_1 = arith.constant 0 : i32
    return %c0_i32, %c0_i32_0 : i32, i32
  }
  func.func @transform_28(%arg0: i32) -> (i32, i32, i32) {
    %c0_i32 = arith.constant 0 : i32
    %c0_i32_0 = arith.constant 0 : i32
    %c0_i32_1 = arith.constant 0 : i32
    return %arg0, %c0_i32, %c0_i32_0 : i32, i32, i32
  }
}

</mosaic_0001>

<llo_original>
// kernel: _lambda_.1
$region0: #{_lambda_.1}
  #allocation0 [shape = 'u32[]', space=smem, size = 0x4, offset = 0x4, fixed_abs, tag = 'smem constant byte address 0x4 - core index']
  #allocation1 [shape = 'u32[144,128]{1,0:T(1,128)}', space=vmem, size = 0x12000, scoped, tag = 'internal scratch']
  %s0 = inlined_call_operand.hbm [shape: f32[2,8,32], index: 0, kind: input, shape index: {}]
  %s1 = inlined_call_operand.hbm [shape: f32[2,16,32], index: 1, kind: input, shape index: {}]
  %s2 = inlined_call_operand.hbm [shape: f32[2,8,32], index: 2, kind: input, shape index: {}]
  %s3 = inlined_call_operand.hbm [shape: f32[2,16,16], index: 3, kind: input, shape index: {}]
  %s4 = inlined_call_operand.hbm [shape: f32[2,32,32], index: 4, kind: input, shape index: {}]
  %s5 = inlined_call_operand.hbm [shape: f32[2,32,32], index: 5, kind: input, shape index: {}]
  %s6 = inlined_call_operand.vmem [shape: f32[2,1,32], index: 6, kind: input, shape index: {}, may-alias: {6,11,13,17,19,23,25}]
  %s7 = inlined_call_operand.hbm [shape: f32[2,32,64], index: 7, kind: input, shape index: {}]
  %s8 = inlined_call_operand.hbm [shape: f32[2,16,64], index: 8, kind: input, shape index: {}]
  %s9 = inlined_call_operand.vmem [shape: f32[2,1,64], index: 9, kind: input, shape index: {}, may-alias: {9,21}]
  %s10 = inlined_call_operand.hbm [shape: f32[2,4,8,32], index: 10, kind: input, shape index: {}]
  %s11 = inlined_call_operand.vmem [shape: f32[2,1,32], index: 11, kind: input, shape index: {}, may-alias: {6,11,13,17,19,23,25}]
  %s12 = inlined_call_operand.vmem [shape: f32[2,1,32], index: 12, kind: input, shape index: {}, may-alias: {12,18,24}]
  %s13 = inlined_call_operand.vmem [shape: f32[2,1,32], index: 13, kind: input, shape index: {}, may-alias: {6,11,13,17,19,23,25}]
  %s14 = inlined_call_operand.hbm [shape: f32[2,32,96], index: 14, kind: input, shape index: {}]
  %s15 = inlined_call_operand.vmem [shape: f32[2,1,96], index: 15, kind: input, shape index: {}]
  %s16 = inlined_call_operand.hbm [shape: f32[2,4,8,32], index: 16, kind: input, shape index: {}]
  %s17 = inlined_call_operand.vmem [shape: f32[2,1,32], index: 17, kind: input, shape index: {}, may-alias: {6,11,13,17,19,23,25}]
  %s18 = inlined_call_operand.vmem [shape: f32[2,1,32], index: 18, kind: input, shape index: {}, may-alias: {12,18,24}]
  %s19 = inlined_call_operand.vmem [shape: f32[2,1,32], index: 19, kind: input, shape index: {}, may-alias: {6,11,13,17,19,23,25}]
  %s20 = inlined_call_operand.vmem [shape: f32[2,32,64], index: 20, kind: input, shape index: {}]
  %s21 = inlined_call_operand.vmem [shape: f32[2,1,64], index: 21, kind: input, shape index: {}, may-alias: {9,21}]
  %s22 = inlined_call_operand.hbm [shape: f32[2,64,32], index: 22, kind: input, shape index: {}]
  %s23 = inlined_call_operand.vmem [shape: f32[2,1,32], index: 23, kind: input, shape index: {}, may-alias: {6,11,13,17,19,23,25}]
  %s24 = inlined_call_operand.vmem [shape: f32[2,1,32], index: 24, kind: input, shape index: {}, may-alias: {12,18,24}]
  %s25 = inlined_call_operand.vmem [shape: f32[2,1,32], index: 25, kind: input, shape index: {}, may-alias: {6,11,13,17,19,23,25}]
  %s26 = inlined_call_operand.hbm [shape: f32[32,4], index: 26, kind: input, shape index: {}]
  %s27 = inlined_call_operand.vmem [shape: f32[1,4], index: 27, kind: input, shape index: {}]
  %s28 = inlined_call_operand.vmem [shape: f32[2,8,4], index: 28, kind: output, shape index: {}]
  %s29 = sld [smem:[#allocation0]]
  $region197: #{_lambda_.1} parent=0
    _
  %s31 = ssub.s32 1, %s29
  %s32 = scalar_select 0, %s31, %s29
  $region1: #{_lambda_.1} parent=0
    #allocation2 [shape = 'u8[8192]{0}', space=vmem, size = 0x2000, scoped, tag = 'input window, operand 0']
    #allocation3 [shape = 's32[2]{0}', space=sflag, size = 0x8, scoped, tag = 'scoped memory for _lambda_.1']
    #allocation4 [shape = 'u8[16384]{0}', space=vmem, size = 0x4000, scoped, tag = 'input window, operand 1']
    #allocation5 [shape = 's32[2]{0}', space=sflag, size = 0x8, scoped, tag = 'scoped memory for _lambda_.1']
    #allocation6 [shape = 'u8[8192]{0}', space=vmem, size = 0x2000, scoped, tag = 'input window, operand 2']
    #allocation7 [shape = 'u8[16384]{0}', space=vmem, size = 0x4000, scoped, tag = 'input window, operand 3']
    #allocation8 [shape = 's32[2]{0}', space=sflag, size = 0x8, scoped, tag = 'scoped memory for _lambda_.1']
    #allocation9 [shape = 'u8[32768]{0}', space=vmem, size = 0x8000, scoped, tag = 'input window, operand 4, single buffered']
    #allocation10 [shape = 'u8[32768]{0}', space=vmem, size = 0x8000, scoped, tag = 'input window, operand 5, single buffered']
    #allocation11 [shape = 's32[1]{0}', space=sflag, size = 0x4, scoped, tag = 'scoped memory for _lambda_.1']
    #allocation12 [shape = 'u8[32768]{0}', space=vmem, size = 0x8000, scoped, tag = 'input window, operand 7, single buffered']
    #allocation13 [shape = 'u8[16384]{0}', space=vmem, size = 0x4000, scoped, tag = 'input window, operand 8, single buffered']
    #allocation14 [shape = 's32[1]{0}', space=sflag, size = 0x4, scoped, tag = 'scoped memory for _lambda_.1']
    #allocation15 [shape = 'u8[32768]{0}', space=vmem, size = 0x8000, scoped, tag = 'input window, operand 10, single buffered']
    #allocation16 [shape = 'u8[32768]{0}', space=vmem, size = 0x8000, scoped, tag = 'input window, operand 14, single buffered']
    #allocation17 [shape = 's32[1]{0}', space=sflag, size = 0x4, scoped, tag = 'scoped memory for _lambda_.1']
    #allocation18 [shape = 'u8[32768]{0}', space=vmem, size = 0x8000, scoped, tag = 'input window, operand 16, single buffered']
    #allocation19 [shape = 'u8[65536]{0}', space=vmem, size = 0x10000, scoped, tag = 'input window, operand 22, single buffered']
    #allocation20 [shape = 's32[1]{0}', space=sflag, size = 0x4, scoped, tag = 'scoped memory for _lambda_.1']
    #allocation21 [shape = 'u8[16384]{0}', space=vmem, size = 0x4000, scoped, tag = 'input window, operand 26, single buffered']
    %33 = vsyncpa [#allocation3], 0
    %s34 = scalar_lea.sflag [#allocation3], 1
    %35 = vsyncpa %s34, 0
    %36 = vsyncpa [#allocation5], 0
    %s37 = scalar_lea.sflag [#allocation5], 1
    %38 = vsyncpa %s37, 0
    %39 = vsyncpa [#allocation8], 0
    %s40 = scalar_lea.sflag [#allocation8], 1
    %41 = vsyncpa %s40, 0
    %42 = vsyncpa [#allocation11], 0
    %43 = vsyncpa [#allocation14], 0
    %44 = vsyncpa [#allocation17], 0
    %45 = vsyncpa [#allocation20], 0
    loop: start=0, step=1, limit=4
    $region2: #{_lambda_.1} parent=1 // loop_pre_header
      _
    $region3: #{_lambda_.1} parent=1 // loop_header
      %s47 = sphi 0, %s51
      %p48 = scmp.ge.s32.totalorder %s47, 4
      %s57 = sphi 0, %s59
      %s60 = sphi 0, %s57
      %s61 = sphi 0, %s60
      %s77 = sphi 0, %s61
      %s83 = sphi 0, %s85
      %s86 = sphi 0, %s83
      %s87 = sphi 0, %s86
      %s103 = sphi 0, %s87
      %s109 = sphi 0, %s111
      %s112 = sphi 0, %s109
      %s113 = sphi 0, %s112
      %s129 = sphi 0, %s113
      %s135 = sphi 0, %s137
      %s138 = sphi 0, %s135
      %s139 = sphi 0, %s138
      %s155 = sphi 0, %s139
      %s159 = sphi 0, %s159
      %s161 = sphi 0, %s159
      %s162 = sphi 0, %s161
      %s176 = sphi 0, %s162
      %s180 = sphi 0, %s180
      %s182 = sphi 0, %s180
      %s183 = sphi 0, %s182
      %s197 = sphi 0, %s183
      %s201 = sphi 0, %s201
      %s203 = sphi 0, %s201
      %s204 = sphi 0, %s203
      %s218 = sphi 0, %s204
      %s222 = sphi 0, %s222
      %s224 = sphi 0, %s222
      %s225 = sphi 0, %s224
      %s239 = sphi 0, %s225
      %s243 = sphi 0, %s243
      %s245 = sphi 0, %s243
      %s246 = sphi 0, %s245
      %s260 = sphi 0, %s246
      %s264 = sphi 0, %s264
      %s266 = sphi 0, %s264
      %s267 = sphi 0, %s266
      %s281 = sphi 0, %s267
      %s285 = sphi 0, %s285
      %s287 = sphi 0, %s285
      %s288 = sphi 0, %s287
      %s302 = sphi 0, %s288
      %s306 = sphi 0, %s306
      %s308 = sphi 0, %s306
      %s309 = sphi 0, %s308
      %s323 = sphi 0, %s309
      %s327 = sphi 0, %s327
      %s329 = sphi 0, %s327
      %s330 = sphi 0, %s329
      %s344 = sphi 0, %s330
      %s348 = sphi 0, %s348
      %s350 = sphi 0, %s348
      %s351 = sphi 0, %s350
      %s365 = sphi 0, %s351
      %s369 = sphi 0, %s369
      %s371 = sphi 0, %s369
      %s372 = sphi 0, %s371
      %s386 = sphi 0, %s372
      %s390 = sphi 0, %s390
      %s392 = sphi 0, %s390
      %s393 = sphi 0, %s392
      %s407 = sphi 0, %s393
      %s411 = sphi 0, %s411
      %s413 = sphi 0, %s411
      %s414 = sphi 0, %s413
      %s428 = sphi 0, %s414
      %s432 = sphi 0, %s432
      %s434 = sphi 0, %s432
      %s435 = sphi 0, %s434
      %s449 = sphi 0, %s435
      %s453 = sphi 0, %s453
      %s455 = sphi 0, %s453
      %s456 = sphi 0, %s455
      %s470 = sphi 0, %s456
      %s474 = sphi 0, %s474
      %s476 = sphi 0, %s474
      %s477 = sphi 0, %s476
      %s491 = sphi 0, %s477
      %s495 = sphi 0, %s495
      %s497 = sphi 0, %s495
      %s498 = sphi 0, %s497
      %s512 = sphi 0, %s498
      %s516 = sphi 0, %s516
      %s518 = sphi 0, %s516
      %s519 = sphi 0, %s518
      %s533 = sphi 0, %s519
      %s537 = sphi 0, %s537
      %s539 = sphi 0, %s537
      %s540 = sphi 0, %s539
      %s554 = sphi 0, %s540
      %s558 = sphi 0, %s558
      %s560 = sphi 0, %s558
      %s561 = sphi 0, %s560
      %s575 = sphi 0, %s561
      %s579 = sphi 0, %s579
      %s581 = sphi 0, %s579
      %s582 = sphi 0, %s581
      %s596 = sphi 0, %s582
      %s600 = sphi 0, %s600
      %s602 = sphi 0, %s600
      %s603 = sphi 0, %s602
      %s617 = sphi 0, %s603
      %s621 = sphi 0, %s621
      %s623 = sphi 0, %s621
      %s624 = sphi 0, %s623
      %s638 = sphi 0, %s624
      %s642 = sphi 0, %s642
      %s644 = sphi 0, %s642
      %s645 = sphi 0, %s644
      %s659 = sphi 0, %s645
      %s665 = sphi 0, %s667
      %s668 = sphi 0, %s665
      %s669 = sphi 0, %s668
      %s685 = sphi 0, %s669
    $region4: #{_lambda_.1} parent=1 // loop_header_branch
      %50 = sbr.rel (%p48) target = $region8
    $region5: #{_lambda_.1} parent=1 // loop_body
      %s52 = ssub.s32 %s47, 1
      %s53 = ssub.s32 %s47, 2
      %s54 = sadd.s32 %s47, 1
      %s55 = ssub.s32 %s47, %s54
      %p56 = scmp.eq.s32.totalorder %s55, 0
      %s58 = sadd.s32 %s57, 1
      %s59 = scalar_select %p56, %s57, %s58
      %p62 = pneg %p56
      %p63 = scmp.eq.s32.totalorder %s47, 1
      %p64 = por %p62, %p63
      %p65 = scmp.ne.s32.totalorder %s57, %s60
      %p66 = scmp.eq.s32.totalorder %s47, 0
      %p67 = por %p65, %p66
      %p68 = scmp.ne.s32.totalorder %s57, %s60
      %p69 = scmp.eq.s32.totalorder %s52, 1
      %p70 = por %p68, %p69
      %p71 = scmp.ne.s32.totalorder %s60, %s61
      %p72 = scmp.eq.s32.totalorder %s52, 0
      %p73 = por %p71, %p72
      %p74 = scmp.ne.s32.totalorder %s60, %s61
      %p75 = scmp.eq.s32.totalorder %s53, 1
      %p76 = por %p74, %p75
      %p78 = scmp.ne.s32.totalorder %s61, %s77
      %p79 = scmp.eq.s32.totalorder %s53, 0
      %p80 = por %p78, %p79
      %s81 = ssub.s32 %s47, %s54
      %p82 = scmp.eq.s32.totalorder %s81, 0
      %s84 = sadd.s32 %s83, 1
      %s85 = scalar_select %p82, %s83, %s84
      %p88 = pneg %p82
      %p89 = scmp.eq.s32.totalorder %s47, 1
      %p90 = por %p88, %p89
      %p91 = scmp.ne.s32.totalorder %s83, %s86
      %p92 = scmp.eq.s32.totalorder %s47, 0
      %p93 = por %p91, %p92
      %p94 = scmp.ne.s32.totalorder %s83, %s86
      %p95 = scmp.eq.s32.totalorder %s52, 1
      %p96 = por %p94, %p95
      %p97 = scmp.ne.s32.totalorder %s86, %s87
      %p98 = scmp.eq.s32.totalorder %s52, 0
      %p99 = por %p97, %p98
      %p100 = scmp.ne.s32.totalorder %s86, %s87
      %p101 = scmp.eq.s32.totalorder %s53, 1
      %p102 = por %p100, %p101
      %p104 = scmp.ne.s32.totalorder %s87, %s103
      %p105 = scmp.eq.s32.totalorder %s53, 0
      %p106 = por %p104, %p105
      %s107 = ssub.s32 %s47, %s54
      %p108 = scmp.eq.s32.totalorder %s107, 0
      %s110 = sadd.s32 %s109, 1
      %s111 = scalar_select %p108, %s109, %s110
      %p114 = pneg %p108
      %p115 = scmp.eq.s32.totalorder %s47, 1
      %p116 = por %p114, %p115
      %p117 = scmp.ne.s32.totalorder %s109, %s112
      %p118 = scmp.eq.s32.totalorder %s47, 0
      %p119 = por %p117, %p118
      %p120 = scmp.ne.s32.totalorder %s109, %s112
      %p121 = scmp.eq.s32.totalorder %s52, 1
      %p122 = por %p120, %p121
      %p123 = scmp.ne.s32.totalorder %s112, %s113
      %p124 = scmp.eq.s32.totalorder %s52, 0
      %p125 = por %p123, %p124
      %p126 = scmp.ne.s32.totalorder %s112, %s113
      %p127 = scmp.eq.s32.totalorder %s53, 1
      %p128 = por %p126, %p127
      %p130 = scmp.ne.s32.totalorder %s113, %s129
      %p131 = scmp.eq.s32.totalorder %s53, 0
      %p132 = por %p130, %p131
      %s133 = ssub.s32 %s47, %s54
      %p134 = scmp.eq.s32.totalorder %s133, 0
      %s136 = sadd.s32 %s135, 1
      %s137 = scalar_select %p134, %s135, %s136
      %p140 = pneg %p134
      %p141 = scmp.eq.s32.totalorder %s47, 1
      %p142 = por %p140, %p141
      %p143 = scmp.ne.s32.totalorder %s135, %s138
      %p144 = scmp.eq.s32.totalorder %s47, 0
      %p145 = por %p143, %p144
      %p146 = scmp.ne.s32.totalorder %s135, %s138
      %p147 = scmp.eq.s32.totalorder %s52, 1
      %p148 = por %p146, %p147
      %p149 = scmp.ne.s32.totalorder %s138, %s139
      %p150 = scmp.eq.s32.totalorder %s52, 0
      %p151 = por %p149, %p150
      %p152 = scmp.ne.s32.totalorder %s138, %s139
      %p153 = scmp.eq.s32.totalorder %s53, 1
      %p154 = por %p152, %p153
      %p156 = scmp.ne.s32.totalorder %s139, %s155
      %p157 = scmp.eq.s32.totalorder %s53, 0
      %p158 = por %p156, %p157
      %s160 = sadd.s32 %s159, 1
      %p163 = scmp.eq.s32.totalorder %s47, 1
      %p164 = scmp.ne.s32.totalorder %s159, %s161
      %p165 = scmp.eq.s32.totalorder %s47, 0
      %p166 = por %p164, %p165
      %p167 = scmp.ne.s32.totalorder %s159, %s161
      %p168 = scmp.eq.s32.totalorder %s52, 1
      %p169 = por %p167, %p168
      %p170 = scmp.ne.s32.totalorder %s161, %s162
      %p171 = scmp.eq.s32.totalorder %s52, 0
      %p172 = por %p170, %p171
      %p173 = scmp.ne.s32.totalorder %s161, %s162
      %p174 = scmp.eq.s32.totalorder %s53, 1
      %p175 = por %p173, %p174
      %p177 = scmp.ne.s32.totalorder %s162, %s176
      %p178 = scmp.eq.s32.totalorder %s53, 0
      %p179 = por %p177, %p178
      %s181 = sadd.s32 %s180, 1
      %p184 = scmp.eq.s32.totalorder %s47, 1
      %p185 = scmp.ne.s32.totalorder %s180, %s182
      %p186 = scmp.eq.s32.totalorder %s47, 0
      %p187 = por %p185, %p186
      %p188 = scmp.ne.s32.totalorder %s180, %s182
      %p189 = scmp.eq.s32.totalorder %s52, 1
      %p190 = por %p188, %p189
      %p191 = scmp.ne.s32.totalorder %s182, %s183
      %p192 = scmp.eq.s32.totalorder %s52, 0
      %p193 = por %p191, %p192
      %p194 = scmp.ne.s32.totalorder %s182, %s183
      %p195 = scmp.eq.s32.totalorder %s53, 1
      %p196 = por %p194, %p195
      %p198 = scmp.ne.s32.totalorder %s183, %s197
      %p199 = scmp.eq.s32.totalorder %s53, 0
      %p200 = por %p198, %p199
      %s202 = sadd.s32 %s201, 1
      %p205 = scmp.eq.s32.totalorder %s47, 1
      %p206 = scmp.ne.s32.totalorder %s201, %s203
      %p207 = scmp.eq.s32.totalorder %s47, 0
      %p208 = por %p206, %p207
      %p209 = scmp.ne.s32.totalorder %s201, %s203
      %p210 = scmp.eq.s32.totalorder %s52, 1
      %p211 = por %p209, %p210
      %p212 = scmp.ne.s32.totalorder %s203, %s204
      %p213 = scmp.eq.s32.totalorder %s52, 0
      %p214 = por %p212, %p213
      %p215 = scmp.ne.s32.totalorder %s203, %s204
      %p216 = scmp.eq.s32.totalorder %s53, 1
      %p217 = por %p215, %p216
      %p219 = scmp.ne.s32.totalorder %s204, %s218
      %p220 = scmp.eq.s32.totalorder %s53, 0
      %p221 = por %p219, %p220
      %s223 = sadd.s32 %s222, 1
      %p226 = scmp.eq.s32.totalorder %s47, 1
      %p227 = scmp.ne.s32.totalorder %s222, %s224
      %p228 = scmp.eq.s32.totalorder %s47, 0
      %p229 = por %p227, %p228
      %p230 = scmp.ne.s32.totalorder %s222, %s224
      %p231 = scmp.eq.s32.totalorder %s52, 1
      %p232 = por %p230, %p231
      %p233 = scmp.ne.s32.totalorder %s224, %s225
      %p234 = scmp.eq.s32.totalorder %s52, 0
      %p235 = por %p233, %p234
      %p236 = scmp.ne.s32.totalorder %s224, %s225
      %p237 = scmp.eq.s32.totalorder %s53, 1
      %p238 = por %p236, %p237
      %p240 = scmp.ne.s32.totalorder %s225, %s239
      %p241 = scmp.eq.s32.totalorder %s53, 0
      %p242 = por %p240, %p241
      %s244 = sadd.s32 %s243, 1
      %p247 = scmp.eq.s32.totalorder %s47, 1
      %p248 = scmp.ne.s32.totalorder %s243, %s245
      %p249 = scmp.eq.s32.totalorder %s47, 0
      %p250 = por %p248, %p249
      %p251 = scmp.ne.s32.totalorder %s243, %s245
      %p252 = scmp.eq.s32.totalorder %s52, 1
      %p253 = por %p251, %p252
      %p254 = scmp.ne.s32.totalorder %s245, %s246
      %p255 = scmp.eq.s32.totalorder %s52, 0
      %p256 = por %p254, %p255
      %p257 = scmp.ne.s32.totalorder %s245, %s246
      %p258 = scmp.eq.s32.totalorder %s53, 1
      %p259 = por %p257, %p258
      %p261 = scmp.ne.s32.totalorder %s246, %s260
      %p262 = scmp.eq.s32.totalorder %s53, 0
      %p263 = por %p261, %p262
      %s265 = sadd.s32 %s264, 1
      %p268 = scmp.eq.s32.totalorder %s47, 1
      %p269 = scmp.ne.s32.totalorder %s264, %s266
      %p270 = scmp.eq.s32.totalorder %s47, 0
      %p271 = por %p269, %p270
      %p272 = scmp.ne.s32.totalorder %s264, %s266
      %p273 = scmp.eq.s32.totalorder %s52, 1
      %p274 = por %p272, %p273
      %p275 = scmp.ne.s32.totalorder %s266, %s267
      %p276 = scmp.eq.s32.totalorder %s52, 0
      %p277 = por %p275, %p276
      %p278 = scmp.ne.s32.totalorder %s266, %s267
      %p279 = scmp.eq.s32.totalorder %s53, 1
      %p280 = por %p278, %p279
      %p282 = scmp.ne.s32.totalorder %s267, %s281
      %p283 = scmp.eq.s32.totalorder %s53, 0
      %p284 = por %p282, %p283
      %s286 = sadd.s32 %s285, 1
      %p289 = scmp.eq.s32.totalorder %s47, 1
      %p290 = scmp.ne.s32.totalorder %s285, %s287
      %p291 = scmp.eq.s32.totalorder %s47, 0
      %p292 = por %p290, %p291
      %p293 = scmp.ne.s32.totalorder %s285, %s287
      %p294 = scmp.eq.s32.totalorder %s52, 1
      %p295 = por %p293, %p294
      %p296 = scmp.ne.s32.totalorder %s287, %s288
      %p297 = scmp.eq.s32.totalorder %s52, 0
      %p298 = por %p296, %p297
      %p299 = scmp.ne.s32.totalorder %s287, %s288
      %p300 = scmp.eq.s32.totalorder %s53, 1
      %p301 = por %p299, %p300
      %p303 = scmp.ne.s32.totalorder %s288, %s302
      %p304 = scmp.eq.s32.totalorder %s53, 0
      %p305 = por %p303, %p304
      %s307 = sadd.s32 %s306, 1
      %p310 = scmp.eq.s32.totalorder %s47, 1
      %p311 = scmp.ne.s32.totalorder %s306, %s308
      %p312 = scmp.eq.s32.totalorder %s47, 0
      %p313 = por %p311, %p312
      %p314 = scmp.ne.s32.totalorder %s306, %s308
      %p315 = scmp.eq.s32.totalorder %s52, 1
      %p316 = por %p314, %p315
      %p317 = scmp.ne.s32.totalorder %s308, %s309
      %p318 = scmp.eq.s32.totalorder %s52, 0
      %p319 = por %p317, %p318
      %p320 = scmp.ne.s32.totalorder %s308, %s309
      %p321 = scmp.eq.s32.totalorder %s53, 1
      %p322 = por %p320, %p321
      %p324 = scmp.ne.s32.totalorder %s309, %s323
      %p325 = scmp.eq.s32.totalorder %s53, 0
      %p326 = por %p324, %p325
      %s328 = sadd.s32 %s327, 1
      %p331 = scmp.eq.s32.totalorder %s47, 1
      %p332 = scmp.ne.s32.totalorder %s327, %s329
      %p333 = scmp.eq.s32.totalorder %s47, 0
      %p334 = por %p332, %p333
      %p335 = scmp.ne.s32.totalorder %s327, %s329
      %p336 = scmp.eq.s32.totalorder %s52, 1
      %p337 = por %p335, %p336
      %p338 = scmp.ne.s32.totalorder %s329, %s330
      %p339 = scmp.eq.s32.totalorder %s52, 0
      %p340 = por %p338, %p339
      %p341 = scmp.ne.s32.totalorder %s329, %s330
      %p342 = scmp.eq.s32.totalorder %s53, 1
      %p343 = por %p341, %p342
      %p345 = scmp.ne.s32.totalorder %s330, %s344
      %p346 = scmp.eq.s32.totalorder %s53, 0
      %p347 = por %p345, %p346
      %s349 = sadd.s32 %s348, 1
      %p352 = scmp.eq.s32.totalorder %s47, 1
      %p353 = scmp.ne.s32.totalorder %s348, %s350
      %p354 = scmp.eq.s32.totalorder %s47, 0
      %p355 = por %p353, %p354
      %p356 = scmp.ne.s32.totalorder %s348, %s350
      %p357 = scmp.eq.s32.totalorder %s52, 1
      %p358 = por %p356, %p357
      %p359 = scmp.ne.s32.totalorder %s350, %s351
      %p360 = scmp.eq.s32.totalorder %s52, 0
      %p361 = por %p359, %p360
      %p362 = scmp.ne.s32.totalorder %s350, %s351
      %p363 = scmp.eq.s32.totalorder %s53, 1
      %p364 = por %p362, %p363
      %p366 = scmp.ne.s32.totalorder %s351, %s365
      %p367 = scmp.eq.s32.totalorder %s53, 0
      %p368 = por %p366, %p367
      %s370 = sadd.s32 %s369, 1
      %p373 = scmp.eq.s32.totalorder %s47, 1
      %p374 = scmp.ne.s32.totalorder %s369, %s371
      %p375 = scmp.eq.s32.totalorder %s47, 0
      %p376 = por %p374, %p375
      %p377 = scmp.ne.s32.totalorder %s369, %s371
      %p378 = scmp.eq.s32.totalorder %s52, 1
      %p379 = por %p377, %p378
      %p380 = scmp.ne.s32.totalorder %s371, %s372
      %p381 = scmp.eq.s32.totalorder %s52, 0
      %p382 = por %p380, %p381
      %p383 = scmp.ne.s32.totalorder %s371, %s372
      %p384 = scmp.eq.s32.totalorder %s53, 1
      %p385 = por %p383, %p384
      %p387 = scmp.ne.s32.totalorder %s372, %s386
      %p388 = scmp.eq.s32.totalorder %s53, 0
      %p389 = por %p387, %p388
      %s391 = sadd.s32 %s390, 1
      %p394 = scmp.eq.s32.totalorder %s47, 1
      %p395 = scmp.ne.s32.totalorder %s390, %s392
      %p396 = scmp.eq.s32.totalorder %s47, 0
      %p397 = por %p395, %p396
      %p398 = scmp.ne.s32.totalorder %s390, %s392
      %p399 = scmp.eq.s32.totalorder %s52, 1
      %p400 = por %p398, %p399
      %p401 = scmp.ne.s32.totalorder %s392, %s393
      %p402 = scmp.eq.s32.totalorder %s52, 0
      %p403 = por %p401, %p402
      %p404 = scmp.ne.s32.totalorder %s392, %s393
      %p405 = scmp.eq.s32.totalorder %s53, 1
      %p406 = por %p404, %p405
      %p408 = scmp.ne.s32.totalorder %s393, %s407
      %p409 = scmp.eq.s32.totalorder %s53, 0
      %p410 = por %p408, %p409
      %s412 = sadd.s32 %s411, 1
      %p415 = scmp.eq.s32.totalorder %s47, 1
      %p416 = scmp.ne.s32.totalorder %s411, %s413
      %p417 = scmp.eq.s32.totalorder %s47, 0
      %p418 = por %p416, %p417
      %p419 = scmp.ne.s32.totalorder %s411, %s413
      %p420 = scmp.eq.s32.totalorder %s52, 1
      %p421 = por %p419, %p420
      %p422 = scmp.ne.s32.totalorder %s413, %s414
      %p423 = scmp.eq.s32.totalorder %s52, 0
      %p424 = por %p422, %p423
      %p425 = scmp.ne.s32.totalorder %s413, %s414
      %p426 = scmp.eq.s32.totalorder %s53, 1
      %p427 = por %p425, %p426
      %p429 = scmp.ne.s32.totalorder %s414, %s428
      %p430 = scmp.eq.s32.totalorder %s53, 0
      %p431 = por %p429, %p430
      %s433 = sadd.s32 %s432, 1
      %p436 = scmp.eq.s32.totalorder %s47, 1
      %p437 = scmp.ne.s32.totalorder %s432, %s434
      %p438 = scmp.eq.s32.totalorder %s47, 0
      %p439 = por %p437, %p438
      %p440 = scmp.ne.s32.totalorder %s432, %s434
      %p441 = scmp.eq.s32.totalorder %s52, 1
      %p442 = por %p440, %p441
      %p443 = scmp.ne.s32.totalorder %s434, %s435
      %p444 = scmp.eq.s32.totalorder %s52, 0
      %p445 = por %p443, %p444
      %p446 = scmp.ne.s32.totalorder %s434, %s435
      %p447 = scmp.eq.s32.totalorder %s53, 1
      %p448 = por %p446, %p447
      %p450 = scmp.ne.s32.totalorder %s435, %s449
      %p451 = scmp.eq.s32.totalorder %s53, 0
      %p452 = por %p450, %p451
      %s454 = sadd.s32 %s453, 1
      %p457 = scmp.eq.s32.totalorder %s47, 1
      %p458 = scmp.ne.s32.totalorder %s453, %s455
      %p459 = scmp.eq.s32.totalorder %s47, 0
      %p460 = por %p458, %p459
      %p461 = scmp.ne.s32.totalorder %s453, %s455
      %p462 = scmp.eq.s32.totalorder %s52, 1
      %p463 = por %p461, %p462
      %p464 = scmp.ne.s32.totalorder %s455, %s456
      %p465 = scmp.eq.s32.totalorder %s52, 0
      %p466 = por %p464, %p465
      %p467 = scmp.ne.s32.totalorder %s455, %s456
      %p468 = scmp.eq.s32.totalorder %s53, 1
      %p469 = por %p467, %p468
      %p471 = scmp.ne.s32.totalorder %s456, %s470
      %p472 = scmp.eq.s32.totalorder %s53, 0
      %p473 = por %p471, %p472
      %s475 = sadd.s32 %s474, 1
      %p478 = scmp.eq.s32.totalorder %s47, 1
      %p479 = scmp.ne.s32.totalorder %s474, %s476
      %p480 = scmp.eq.s32.totalorder %s47, 0
      %p481 = por %p479, %p480
      %p482 = scmp.ne.s32.totalorder %s474, %s476
      %p483 = scmp.eq.s32.totalorder %s52, 1
      %p484 = por %p482, %p483
      %p485 = scmp.ne.s32.totalorder %s476, %s477
      %p486 = scmp.eq.s32.totalorder %s52, 0
      %p487 = por %p485, %p486
      %p488 = scmp.ne.s32.totalorder %s476, %s477
      %p489 = scmp.eq.s32.totalorder %s53, 1
      %p490 = por %p488, %p489
      %p492 = scmp.ne.s32.totalorder %s477, %s491
      %p493 = scmp.eq.s32.totalorder %s53, 0
      %p494 = por %p492, %p493
      %s496 = sadd.s32 %s495, 1
      %p499 = scmp.eq.s32.totalorder %s47, 1
      %p500 = scmp.ne.s32.totalorder %s495, %s497
      %p501 = scmp.eq.s32.totalorder %s47, 0
      %p502 = por %p500, %p501
      %p503 = scmp.ne.s32.totalorder %s495, %s497
      %p504 = scmp.eq.s32.totalorder %s52, 1
      %p505 = por %p503, %p504
      %p506 = scmp.ne.s32.totalorder %s497, %s498
      %p507 = scmp.eq.s32.totalorder %s52, 0
      %p508 = por %p506, %p507
      %p509 = scmp.ne.s32.totalorder %s497, %s498
      %p510 = scmp.eq.s32.totalorder %s53, 1
      %p511 = por %p509, %p510
      %p513 = scmp.ne.s32.totalorder %s498, %s512
      %p514 = scmp.eq.s32.totalorder %s53, 0
      %p515 = por %p513, %p514
      %s517 = sadd.s32 %s516, 1
      %p520 = scmp.eq.s32.totalorder %s47, 1
      %p521 = scmp.ne.s32.totalorder %s516, %s518
      %p522 = scmp.eq.s32.totalorder %s47, 0
      %p523 = por %p521, %p522
      %p524 = scmp.ne.s32.totalorder %s516, %s518
      %p525 = scmp.eq.s32.totalorder %s52, 1
      %p526 = por %p524, %p525
      %p527 = scmp.ne.s32.totalorder %s518, %s519
      %p528 = scmp.eq.s32.totalorder %s52, 0
      %p529 = por %p527, %p528
      %p530 = scmp.ne.s32.totalorder %s518, %s519
      %p531 = scmp.eq.s32.totalorder %s53, 1
      %p532 = por %p530, %p531
      %p534 = scmp.ne.s32.totalorder %s519, %s533
      %p535 = scmp.eq.s32.totalorder %s53, 0
      %p536 = por %p534, %p535
      %s538 = sadd.s32 %s537, 1
      %p541 = scmp.eq.s32.totalorder %s47, 1
      %p542 = scmp.ne.s32.totalorder %s537, %s539
      %p543 = scmp.eq.s32.totalorder %s47, 0
      %p544 = por %p542, %p543
      %p545 = scmp.ne.s32.totalorder %s537, %s539
      %p546 = scmp.eq.s32.totalorder %s52, 1
      %p547 = por %p545, %p546
      %p548 = scmp.ne.s32.totalorder %s539, %s540
      %p549 = scmp.eq.s32.totalorder %s52, 0
      %p550 = por %p548, %p549
      %p551 = scmp.ne.s32.totalorder %s539, %s540
      %p552 = scmp.eq.s32.totalorder %s53, 1
      %p553 = por %p551, %p552
      %p555 = scmp.ne.s32.totalorder %s540, %s554
      %p556 = scmp.eq.s32.totalorder %s53, 0
      %p557 = por %p555, %p556
      %s559 = sadd.s32 %s558, 1
      %p562 = scmp.eq.s32.totalorder %s47, 1
      %p563 = scmp.ne.s32.totalorder %s558, %s560
      %p564 = scmp.eq.s32.totalorder %s47, 0
      %p565 = por %p563, %p564
      %p566 = scmp.ne.s32.totalorder %s558, %s560
      %p567 = scmp.eq.s32.totalorder %s52, 1
      %p568 = por %p566, %p567
      %p569 = scmp.ne.s32.totalorder %s560, %s561
      %p570 = scmp.eq.s32.totalorder %s52, 0
      %p571 = por %p569, %p570
      %p572 = scmp.ne.s32.totalorder %s560, %s561
      %p573 = scmp.eq.s32.totalorder %s53, 1
      %p574 = por %p572, %p573
      %p576 = scmp.ne.s32.totalorder %s561, %s575
      %p577 = scmp.eq.s32.totalorder %s53, 0
      %p578 = por %p576, %p577
      %s580 = sadd.s32 %s579, 1
      %p583 = scmp.eq.s32.totalorder %s47, 1
      %p584 = scmp.ne.s32.totalorder %s579, %s581
      %p585 = scmp.eq.s32.totalorder %s47, 0
      %p586 = por %p584, %p585
      %p587 = scmp.ne.s32.totalorder %s579, %s581
      %p588 = scmp.eq.s32.totalorder %s52, 1
      %p589 = por %p587, %p588
      %p590 = scmp.ne.s32.totalorder %s581, %s582
      %p591 = scmp.eq.s32.totalorder %s52, 0
      %p592 = por %p590, %p591
      %p593 = scmp.ne.s32.totalorder %s581, %s582
      %p594 = scmp.eq.s32.totalorder %s53, 1
      %p595 = por %p593, %p594
      %p597 = scmp.ne.s32.totalorder %s582, %s596
      %p598 = scmp.eq.s32.totalorder %s53, 0
      %p599 = por %p597, %p598
      %s601 = sadd.s32 %s600, 1
      %p604 = scmp.eq.s32.totalorder %s47, 1
      %p605 = scmp.ne.s32.totalorder %s600, %s602
      %p606 = scmp.eq.s32.totalorder %s47, 0
      %p607 = por %p605, %p606
      %p608 = scmp.ne.s32.totalorder %s600, %s602
      %p609 = scmp.eq.s32.totalorder %s52, 1
      %p610 = por %p608, %p609
      %p611 = scmp.ne.s32.totalorder %s602, %s603
      %p612 = scmp.eq.s32.totalorder %s52, 0
      %p613 = por %p611, %p612
      %p614 = scmp.ne.s32.totalorder %s602, %s603
      %p615 = scmp.eq.s32.totalorder %s53, 1
      %p616 = por %p614, %p615
      %p618 = scmp.ne.s32.totalorder %s603, %s617
      %p619 = scmp.eq.s32.totalorder %s53, 0
      %p620 = por %p618, %p619
      %s622 = sadd.s32 %s621, 1
      %p625 = scmp.eq.s32.totalorder %s47, 1
      %p626 = scmp.ne.s32.totalorder %s621, %s623
      %p627 = scmp.eq.s32.totalorder %s47, 0
      %p628 = por %p626, %p627
      %p629 = scmp.ne.s32.totalorder %s621, %s623
      %p630 = scmp.eq.s32.totalorder %s52, 1
      %p631 = por %p629, %p630
      %p632 = scmp.ne.s32.totalorder %s623, %s624
      %p633 = scmp.eq.s32.totalorder %s52, 0
      %p634 = por %p632, %p633
      %p635 = scmp.ne.s32.totalorder %s623, %s624
      %p636 = scmp.eq.s32.totalorder %s53, 1
      %p637 = por %p635, %p636
      %p639 = scmp.ne.s32.totalorder %s624, %s638
      %p640 = scmp.eq.s32.totalorder %s53, 0
      %p641 = por %p639, %p640
      %s643 = sadd.s32 %s642, 1
      %p646 = scmp.eq.s32.totalorder %s47, 1
      %p647 = scmp.ne.s32.totalorder %s642, %s644
      %p648 = scmp.eq.s32.totalorder %s47, 0
      %p649 = por %p647, %p648
      %p650 = scmp.ne.s32.totalorder %s642, %s644
      %p651 = scmp.eq.s32.totalorder %s52, 1
      %p652 = por %p650, %p651
      %p653 = scmp.ne.s32.totalorder %s644, %s645
      %p654 = scmp.eq.s32.totalorder %s52, 0
      %p655 = por %p653, %p654
      %p656 = scmp.ne.s32.totalorder %s644, %s645
      %p657 = scmp.eq.s32.totalorder %s53, 1
      %p658 = por %p656, %p657
      %p660 = scmp.ne.s32.totalorder %s645, %s659
      %p661 = scmp.eq.s32.totalorder %s53, 0
      %p662 = por %p660, %p661
      %s663 = ssub.s32 %s47, %s54
      %p664 = scmp.eq.s32.totalorder %s663, 0
      %s666 = sadd.s32 %s665, 1
      %s667 = scalar_select %p664, %s665, %s666
      %p670 = pneg %p664
      %p671 = scmp.eq.s32.totalorder %s47, 1
      %p672 = por %p670, %p671
      %p673 = scmp.ne.s32.totalorder %s665, %s668
      %p674 = scmp.eq.s32.totalorder %s47, 0
      %p675 = por %p673, %p674
      %p676 = scmp.ne.s32.totalorder %s665, %s668
      %p677 = scmp.eq.s32.totalorder %s52, 1
      %p678 = por %p676, %p677
      %p679 = scmp.ne.s32.totalorder %s668, %s669
      %p680 = scmp.eq.s32.totalorder %s52, 0
      %p681 = por %p679, %p680
      %p682 = scmp.ne.s32.totalorder %s668, %s669
      %p683 = scmp.eq.s32.totalorder %s53, 1
      %p684 = por %p682, %p683
      %p686 = scmp.ne.s32.totalorder %s669, %s685
      %p687 = scmp.eq.s32.totalorder %s53, 0
      %p688 = por %p686, %p687
      %p689 = scmp.le.s32.totalorder 1, %s47
      %p690 = scmp.lt.s32.totalorder %s47, 3
      %p691 = pnand %p689, %p690
      %p692 = pneg %p691
      // Predicated region
      $region9: #{_lambda_.1} parent=5 // pred_check
        _
      $region10: #{_lambda_.1} parent=5 // pred_check_branch
        %694 = sbr.rel (%p691) target = $region12
      $region11: #{_lambda_.1} parent=5 // pred_region
        %s695 = ssub.s32 %s47, 1
        // Predicated region
        $region13: #{_lambda_.1} parent=11 // pred_check
          %p696 = pneg %p172
        $region14: #{_lambda_.1} parent=11 // pred_check_branch
          %698 = sbr.rel (%p696) target = $region16
        $region15: #{_lambda_.1} parent=11 // pred_region
          %s700 = ssub.s32 1024, 1024
          %701 = vsyncadd [#allocation8], %s700
          %s702 = sshll.u32 [#allocation9], 4
          %s703 = int_to_ptr.vmem [resolvable:$true] %s702
          %708 = dma.hbm_to_vmem [thread:$0]  %s4, 1024, %s703, [#allocation8], 128, 128, 8
        $region16: #{_lambda_.1} parent=11 // pred_fallthru
          _
        // Predicated region
        $region17: #{_lambda_.1} parent=11 // pred_check
          %p709 = pneg %p193
        $region18: #{_lambda_.1} parent=11 // pred_check_branch
          %711 = sbr.rel (%p709) target = $region20
        $region19: #{_lambda_.1} parent=11 // pred_region
          %s713 = ssub.s32 1024, 1024
          %714 = vsyncadd [#allocation11], %s713
          %s715 = sshll.u32 [#allocation10], 4
          %s716 = int_to_ptr.vmem [resolvable:$true] %s715
          %721 = dma.hbm_to_vmem [thread:$0]  %s5, 1024, %s716, [#allocation11], 128, 128, 8
        $region20: #{_lambda_.1} parent=11 // pred_fallthru
          _
        // Predicated region
        $region21: #{_lambda_.1} parent=11 // pred_check
          %p722 = pneg %p214
        $region22: #{_lambda_.1} parent=11 // pred_check_branch
          %724 = sbr.rel (%p722) target = $region24
        $region23: #{_lambda_.1} parent=11 // pred_region
          _
        $region24: #{_lambda_.1} parent=11 // pred_fallthru
          _
        // Predicated region
        $region25: #{_lambda_.1} parent=11 // pred_check
          %p725 = pneg %p235
        $region26: #{_lambda_.1} parent=11 // pred_check_branch
          %727 = sbr.rel (%p725) target = $region28
        $region27: #{_lambda_.1} parent=11 // pred_region
          %s729 = ssub.s32 1024, 1024
          %730 = vsyncadd [#allocation11], %s729
          %s731 = sshll.u32 [#allocation12], 4
          %s732 = int_to_ptr.vmem [resolvable:$true] %s731
          %737 = dma.hbm_to_vmem [thread:$0]  %s7, 1024, %s732, [#allocation11], 128, 128, 8
        $region28: #{_lambda_.1} parent=11 // pred_fallthru
          _
        // Predicated region
        $region29: #{_lambda_.1} parent=11 // pred_check
          %p738 = pneg %p256
        $region30: #{_lambda_.1} parent=11 // pred_check_branch
          %740 = sbr.rel (%p738) target = $region32
        $region31: #{_lambda_.1} parent=11 // pred_region
          %s742 = ssub.s32 512, 512
          %743 = vsyncadd [#allocation14], %s742
          %s744 = sshll.u32 [#allocation13], 4
          %s745 = int_to_ptr.vmem [resolvable:$true] %s744
          %750 = dma.hbm_to_vmem [thread:$0]  %s8, 512, %s745, [#allocation14], 128, 128, 8
        $region32: #{_lambda_.1} parent=11 // pred_fallthru
          _
        // Predicated region
        $region33: #{_lambda_.1} parent=11 // pred_check
          %p751 = pneg %p277
        $region34: #{_lambda_.1} parent=11 // pred_check_branch
          %753 = sbr.rel (%p751) target = $region36
        $region35: #{_lambda_.1} parent=11 // pred_region
          _
        $region36: #{_lambda_.1} parent=11 // pred_fallthru
          _
        // Predicated region
        $region37: #{_lambda_.1} parent=11 // pred_check
          %p754 = pneg %p298
        $region38: #{_lambda_.1} parent=11 // pred_check_branch
          %756 = sbr.rel (%p754) target = $region40
        $region39: #{_lambda_.1} parent=11 // pred_region
          %s758 = ssub.s32 1024, 1024
          %759 = vsyncadd [#allocation14], %s758
          %s760 = sshll.u32 [#allocation15], 4
          %s761 = int_to_ptr.vmem [resolvable:$true] %s760
          %766 = dma.hbm_to_vmem [thread:$0]  %s10, 1024, %s761, [#allocation14], 128, 128, 8
        $region40: #{_lambda_.1} parent=11 // pred_fallthru
          _
        // Predicated region
        $region41: #{_lambda_.1} parent=11 // pred_check
          %p767 = pneg %p319
        $region42: #{_lambda_.1} parent=11 // pred_check_branch
          %769 = sbr.rel (%p767) target = $region44
        $region43: #{_lambda_.1} parent=11 // pred_region
          _
        $region44: #{_lambda_.1} parent=11 // pred_fallthru
          _
        // Predicated region
        $region45: #{_lambda_.1} parent=11 // pred_check
          %p770 = pneg %p340
        $region46: #{_lambda_.1} parent=11 // pred_check_branch
          %772 = sbr.rel (%p770) target = $region48
        $region47: #{_lambda_.1} parent=11 // pred_region
          _
        $region48: #{_lambda_.1} parent=11 // pred_fallthru
          _
        // Predicated region
        $region49: #{_lambda_.1} parent=11 // pred_check
          %p773 = pneg %p361
        $region50: #{_lambda_.1} parent=11 // pred_check_branch
          %775 = sbr.rel (%p773) target = $region52
        $region51: #{_lambda_.1} parent=11 // pred_region
          _
        $region52: #{_lambda_.1} parent=11 // pred_fallthru
          _
        // Predicated region
        $region53: #{_lambda_.1} parent=11 // pred_check
          %p776 = pneg %p382
        $region54: #{_lambda_.1} parent=11 // pred_check_branch
          %778 = sbr.rel (%p776) target = $region56
        $region55: #{_lambda_.1} parent=11 // pred_region
          %s780 = ssub.s32 1024, 1024
          %781 = vsyncadd [#allocation17], %s780
          %s782 = sshll.u32 [#allocation16], 4
          %s783 = int_to_ptr.vmem [resolvable:$true] %s782
          %788 = dma.hbm_to_vmem [thread:$0]  %s14, 1024, %s783, [#allocation17], 128, 128, 8
        $region56: #{_lambda_.1} parent=11 // pred_fallthru
          _
        // Predicated region
        $region57: #{_lambda_.1} parent=11 // pred_check
          %p789 = pneg %p403
        $region58: #{_lambda_.1} parent=11 // pred_check_branch
          %791 = sbr.rel (%p789) target = $region60
        $region59: #{_lambda_.1} parent=11 // pred_region
          _
        $region60: #{_lambda_.1} parent=11 // pred_fallthru
          _
        // Predicated region
        $region61: #{_lambda_.1} parent=11 // pred_check
          %p792 = pneg %p424
        $region62: #{_lambda_.1} parent=11 // pred_check_branch
          %794 = sbr.rel (%p792) target = $region64
        $region63: #{_lambda_.1} parent=11 // pred_region
          %s796 = ssub.s32 1024, 1024
          %797 = vsyncadd [#allocation17], %s796
          %s798 = sshll.u32 [#allocation18], 4
          %s799 = int_to_ptr.vmem [resolvable:$true] %s798
          %804 = dma.hbm_to_vmem [thread:$0]  %s16, 1024, %s799, [#allocation17], 128, 128, 8
        $region64: #{_lambda_.1} parent=11 // pred_fallthru
          _
        // Predicated region
        $region65: #{_lambda_.1} parent=11 // pred_check
          %p805 = pneg %p445
        $region66: #{_lambda_.1} parent=11 // pred_check_branch
          %807 = sbr.rel (%p805) target = $region68
        $region67: #{_lambda_.1} parent=11 // pred_region
          _
        $region68: #{_lambda_.1} parent=11 // pred_fallthru
          _
        // Predicated region
        $region69: #{_lambda_.1} parent=11 // pred_check
          %p808 = pneg %p466
        $region70: #{_lambda_.1} parent=11 // pred_check_branch
          %810 = sbr.rel (%p808) target = $region72
        $region71: #{_lambda_.1} parent=11 // pred_region
          _
        $region72: #{_lambda_.1} parent=11 // pred_fallthru
          _
        // Predicated region
        $region73: #{_lambda_.1} parent=11 // pred_check
          %p811 = pneg %p487
        $region74: #{_lambda_.1} parent=11 // pred_check_branch
          %813 = sbr.rel (%p811) target = $region76
        $region75: #{_lambda_.1} parent=11 // pred_region
          _
        $region76: #{_lambda_.1} parent=11 // pred_fallthru
          _
        // Predicated region
        $region77: #{_lambda_.1} parent=11 // pred_check
          %p814 = pneg %p508
        $region78: #{_lambda_.1} parent=11 // pred_check_branch
          %816 = sbr.rel (%p814) target = $region80
        $region79: #{_lambda_.1} parent=11 // pred_region
          _
        $region80: #{_lambda_.1} parent=11 // pred_fallthru
          _
        // Predicated region
        $region81: #{_lambda_.1} parent=11 // pred_check
          %p817 = pneg %p529
        $region82: #{_lambda_.1} parent=11 // pred_check_branch
          %819 = sbr.rel (%p817) target = $region84
        $region83: #{_lambda_.1} parent=11 // pred_region
          _
        $region84: #{_lambda_.1} parent=11 // pred_fallthru
          _
        // Predicated region
        $region85: #{_lambda_.1} parent=11 // pred_check
          %p820 = pneg %p550
        $region86: #{_lambda_.1} parent=11 // pred_check_branch
          %822 = sbr.rel (%p820) target = $region88
        $region87: #{_lambda_.1} parent=11 // pred_region
          %s824 = ssub.s32 2048, 2048
          %825 = vsyncadd [#allocation20], %s824
          %s826 = sshll.u32 [#allocation19], 4
          %s827 = int_to_ptr.vmem [resolvable:$true] %s826
          %832 = dma.hbm_to_vmem [thread:$0]  %s22, 2048, %s827, [#allocation20], 128, 128, 8
        $region88: #{_lambda_.1} parent=11 // pred_fallthru
          _
        // Predicated region
        $region89: #{_lambda_.1} parent=11 // pred_check
          %p833 = pneg %p571
        $region90: #{_lambda_.1} parent=11 // pred_check_branch
          %835 = sbr.rel (%p833) target = $region92
        $region91: #{_lambda_.1} parent=11 // pred_region
          _
        $region92: #{_lambda_.1} parent=11 // pred_fallthru
          _
        // Predicated region
        $region93: #{_lambda_.1} parent=11 // pred_check
          %p836 = pneg %p592
        $region94: #{_lambda_.1} parent=11 // pred_check_branch
          %838 = sbr.rel (%p836) target = $region96
        $region95: #{_lambda_.1} parent=11 // pred_region
          _
        $region96: #{_lambda_.1} parent=11 // pred_fallthru
          _
        // Predicated region
        $region97: #{_lambda_.1} parent=11 // pred_check
          %p839 = pneg %p613
        $region98: #{_lambda_.1} parent=11 // pred_check_branch
          %841 = sbr.rel (%p839) target = $region100
        $region99: #{_lambda_.1} parent=11 // pred_region
          _
        $region100: #{_lambda_.1} parent=11 // pred_fallthru
          _
        // Predicated region
        $region101: #{_lambda_.1} parent=11 // pred_check
          %p842 = pneg %p634
        $region102: #{_lambda_.1} parent=11 // pred_check_branch
          %844 = sbr.rel (%p842) target = $region104
        $region103: #{_lambda_.1} parent=11 // pred_region
          %s846 = ssub.s32 512, 512
          %847 = vsyncadd [#allocation20], %s846
          %s848 = sshll.u32 [#allocation21], 4
          %s849 = int_to_ptr.vmem [resolvable:$true] %s848
          %854 = dma.hbm_to_vmem [thread:$0]  %s26, 512, %s849, [#allocation20], 128, 128, 8
        $region104: #{_lambda_.1} parent=11 // pred_fallthru
          _
        // Predicated region
        $region105: #{_lambda_.1} parent=11 // pred_check
          %p855 = pneg %p655
        $region106: #{_lambda_.1} parent=11 // pred_check_branch
          %857 = sbr.rel (%p855) target = $region108
        $region107: #{_lambda_.1} parent=11 // pred_region
          _
        $region108: #{_lambda_.1} parent=11 // pred_fallthru
          _
      $region12: #{_lambda_.1} parent=5 // pred_fallthru
        _
      %p858 = scmp.lt.s32.totalorder %s47, 2
      // Predicated region
      $region109: #{_lambda_.1} parent=5 // pred_check
        %p859 = pneg %p858
      $region110: #{_lambda_.1} parent=5 // pred_check_branch
        %861 = sbr.rel (%p859) target = $region112
      $region111: #{_lambda_.1} parent=5 // pred_region
        // Predicated region
        $region113: #{_lambda_.1} parent=111 // pred_check
          %p862 = pneg %p67
        $region114: #{_lambda_.1} parent=111 // pred_check_branch
          %864 = sbr.rel (%p862) target = $region116
        $region115: #{_lambda_.1} parent=111 // pred_region
          %s865 = sand.u32 %s57, 1
          %s866 = scalar_lea.sflag [#allocation3], %s865
          %s867 = sand.u32 %s57, 1
          %s868 = smul.addr %s867, 8
          %s869 = scalar_lea.vmem [#allocation2], %s868
          %s871 = ssub.s32 128, 128
          %872 = vsyncadd %s866, %s871
          %s873 = smul.addr %s47, 128
          %s874 = scalar_lea.hbm %s0, %s873
          %s876 = sshll.u32 %s869, 4
          %s877 = int_to_ptr.vmem [resolvable:$true] %s876
          %879 = dma.hbm_to_vmem [thread:$0]  %s874, 128, %s877, %s866
        $region116: #{_lambda_.1} parent=111 // pred_fallthru
          _
        // Predicated region
        $region117: #{_lambda_.1} parent=111 // pred_check
          %p880 = pneg %p93
        $region118: #{_lambda_.1} parent=111 // pred_check_branch
          %882 = sbr.rel (%p880) target = $region120
        $region119: #{_lambda_.1} parent=111 // pred_region
          %s883 = sand.u32 %s47, 1
          %s884 = scalar_lea.sflag [#allocation5], %s883
          %s885 = sand.u32 %s83, 1
          %s886 = smul.addr %s885, 16
          %s887 = scalar_lea.vmem [#allocation4], %s886
          %s889 = ssub.s32 256, 256
          %890 = vsyncadd %s884, %s889
          %s891 = smul.addr %s47, 2
          %s892 = smul.addr %s891, 128
          %s893 = scalar_lea.hbm %s1, %s892
          %s894 = sshll.u32 %s887, 4
          %s895 = int_to_ptr.vmem [resolvable:$true] %s894
          %900 = dma.hbm_to_vmem [thread:$0]  %s893, 256, %s895, %s884, 128, 128, 8
        $region120: #{_lambda_.1} parent=111 // pred_fallthru
          _
        // Predicated region
        $region121: #{_lambda_.1} parent=111 // pred_check
          %p901 = pneg %p119
        $region122: #{_lambda_.1} parent=111 // pred_check_branch
          %903 = sbr.rel (%p901) target = $region124
        $region123: #{_lambda_.1} parent=111 // pred_region
          %s904 = sand.u32 %s47, 1
          %s905 = scalar_lea.sflag [#allocation5], %s904
          %s906 = sand.u32 %s109, 1
          %s907 = smul.addr %s906, 8
          %s908 = scalar_lea.vmem [#allocation6], %s907
          %s910 = ssub.s32 128, 128
          %911 = vsyncadd %s905, %s910
          %s912 = smul.addr %s47, 128
          %s913 = scalar_lea.hbm %s2, %s912
          %s915 = sshll.u32 %s908, 4
          %s916 = int_to_ptr.vmem [resolvable:$true] %s915
          %918 = dma.hbm_to_vmem [thread:$0]  %s913, 128, %s916, %s905
        $region124: #{_lambda_.1} parent=111 // pred_fallthru
          _
        // Predicated region
        $region125: #{_lambda_.1} parent=111 // pred_check
          %p919 = pneg %p145
        $region126: #{_lambda_.1} parent=111 // pred_check_branch
          %921 = sbr.rel (%p919) target = $region128
        $region127: #{_lambda_.1} parent=111 // pred_region
          %s922 = sand.u32 %s47, 1
          %s923 = scalar_lea.sflag [#allocation8], %s922
          %s924 = sand.u32 %s135, 1
          %s925 = smul.addr %s924, 16
          %s926 = scalar_lea.vmem [#allocation7], %s925
          %s928 = ssub.s32 256, 256
          %929 = vsyncadd %s923, %s928
          %s930 = smul.addr %s47, 2
          %s931 = smul.addr %s930, 128
          %s932 = scalar_lea.hbm %s3, %s931
          %s933 = sshll.u32 %s926, 4
          %s934 = int_to_ptr.vmem [resolvable:$true] %s933
          %939 = dma.hbm_to_vmem [thread:$0]  %s932, 256, %s934, %s923, 128, 128, 8
        $region128: #{_lambda_.1} parent=111 // pred_fallthru
          _
      $region112: #{_lambda_.1} parent=5 // pred_fallthru
        _
      %p940 = scmp.le.s32.totalorder 1, %s47
      %p941 = scmp.lt.s32.totalorder %s47, 3
      %p942 = pnand %p940, %p941
      %p943 = pneg %p942
      // Predicated region
      $region129: #{_lambda_.1} parent=5 // pred_check
        _
      $region130: #{_lambda_.1} parent=5 // pred_check_branch
        %945 = sbr.rel (%p942) target = $region132
      $region131: #{_lambda_.1} parent=5 // pred_region
        %s946 = ssub.s32 %s47, 1
        %s947 = sand.u32 %s60, 1
        %s948 = scalar_lea.sflag [#allocation3], %s947
        %s949 = sand.u32 %s60, 1
        %s950 = smul.addr %s949, 8
        %s951 = scalar_lea.vmem [#allocation2], %s950
        // Predicated region
        $region133: #{_lambda_.1} parent=131 // pred_check
          %p952 = pneg %p73
        $region134: #{_lambda_.1} parent=131 // pred_check_branch
          %954 = sbr.rel (%p952) target = $region136
        $region135: #{_lambda_.1} parent=131 // pred_region
          %955 = dma.done %s948, 128
        $region136: #{_lambda_.1} parent=131 // pred_fallthru
          _
        %s956 = sand.u32 %s52, 1
        %s957 = scalar_lea.sflag [#allocation5], %s956
        %s958 = sand.u32 %s86, 1
        %s959 = smul.addr %s958, 16
        %s960 = scalar_lea.vmem [#allocation4], %s959
        // Predicated region
        $region137: #{_lambda_.1} parent=131 // pred_check
          %p961 = pneg %p99
        $region138: #{_lambda_.1} parent=131 // pred_check_branch
          %963 = sbr.rel (%p961) target = $region140
        $region139: #{_lambda_.1} parent=131 // pred_region
          %964 = dma.done %s957, 256
        $region140: #{_lambda_.1} parent=131 // pred_fallthru
          _
        %s965 = sand.u32 %s52, 1
        %s966 = scalar_lea.sflag [#allocation5], %s965
        %s967 = sand.u32 %s112, 1
        %s968 = smul.addr %s967, 8
        %s969 = scalar_lea.vmem [#allocation6], %s968
        // Predicated region
        $region141: #{_lambda_.1} parent=131 // pred_check
          %p970 = pneg %p125
        $region142: #{_lambda_.1} parent=131 // pred_check_branch
          %972 = sbr.rel (%p970) target = $region144
        $region143: #{_lambda_.1} parent=131 // pred_region
          %973 = dma.done %s966, 128
        $region144: #{_lambda_.1} parent=131 // pred_fallthru
          _
        %s974 = sand.u32 %s52, 1
        %s975 = scalar_lea.sflag [#allocation8], %s974
        %s976 = sand.u32 %s138, 1
        %s977 = smul.addr %s976, 16
        %s978 = scalar_lea.vmem [#allocation7], %s977
        // Predicated region
        $region145: #{_lambda_.1} parent=131 // pred_check
          %p979 = pneg %p151
        $region146: #{_lambda_.1} parent=131 // pred_check_branch
          %981 = sbr.rel (%p979) target = $region148
        $region147: #{_lambda_.1} parent=131 // pred_region
          %982 = dma.done %s975, 256
        $region148: #{_lambda_.1} parent=131 // pred_fallthru
          _
        // Predicated region
        $region149: #{_lambda_.1} parent=131 // pred_check
          %p983 = pneg %p172
        $region150: #{_lambda_.1} parent=131 // pred_check_branch
          %985 = sbr.rel (%p983) target = $region152
        $region151: #{_lambda_.1} parent=131 // pred_region
          %986 = dma.done [#allocation8], 1024
        $region152: #{_lambda_.1} parent=131 // pred_fallthru
          _
        // Predicated region
        $region153: #{_lambda_.1} parent=131 // pred_check
          %p987 = pneg %p193
        $region154: #{_lambda_.1} parent=131 // pred_check_branch
          %989 = sbr.rel (%p987) target = $region156
        $region155: #{_lambda_.1} parent=131 // pred_region
          %990 = dma.done [#allocation11], 1024
        $region156: #{_lambda_.1} parent=131 // pred_fallthru
          _
        // Predicated region
        $region157: #{_lambda_.1} parent=131 // pred_check
          %p991 = pneg %p235
        $region158: #{_lambda_.1} parent=131 // pred_check_branch
          %993 = sbr.rel (%p991) target = $region160
        $region159: #{_lambda_.1} parent=131 // pred_region
          %994 = dma.done [#allocation11], 1024
        $region160: #{_lambda_.1} parent=131 // pred_fallthru
          _
        // Predicated region
        $region161: #{_lambda_.1} parent=131 // pred_check
          %p995 = pneg %p256
        $region162: #{_lambda_.1} parent=131 // pred_check_branch
          %997 = sbr.rel (%p995) target = $region164
        $region163: #{_lambda_.1} parent=131 // pred_region
          %998 = dma.done [#allocation14], 512
        $region164: #{_lambda_.1} parent=131 // pred_fallthru
          _
        // Predicated region
        $region165: #{_lambda_.1} parent=131 // pred_check
          %p999 = pneg %p298
        $region166: #{_lambda_.1} parent=131 // pred_check_branch
          %1001 = sbr.rel (%p999) target = $region168
        $region167: #{_lambda_.1} parent=131 // pred_region
          %1002 = dma.done [#allocation14], 1024
        $region168: #{_lambda_.1} parent=131 // pred_fallthru
          _
        // Predicated region
        $region169: #{_lambda_.1} parent=131 // pred_check
          %p1003 = pneg %p382
        $region170: #{_lambda_.1} parent=131 // pred_check_branch
          %1005 = sbr.rel (%p1003) target = $region172
        $region171: #{_lambda_.1} parent=131 // pred_region
          %1006 = dma.done [#allocation17], 1024
        $region172: #{_lambda_.1} parent=131 // pred_fallthru
          _
        // Predicated region
        $region173: #{_lambda_.1} parent=131 // pred_check
          %p1007 = pneg %p424
        $region174: #{_lambda_.1} parent=131 // pred_check_branch
          %1009 = sbr.rel (%p1007) target = $region176
        $region175: #{_lambda_.1} parent=131 // pred_region
          %1010 = dma.done [#allocation17], 1024
        $region176: #{_lambda_.1} parent=131 // pred_fallthru
          _
        // Predicated region
        $region177: #{_lambda_.1} parent=131 // pred_check
          %p1011 = pneg %p550
        $region178: #{_lambda_.1} parent=131 // pred_check_branch
          %1013 = sbr.rel (%p1011) target = $region180
        $region179: #{_lambda_.1} parent=131 // pred_region
          %1014 = dma.done [#allocation20], 2048
        $region180: #{_lambda_.1} parent=131 // pred_fallthru
          _
        // Predicated region
        $region181: #{_lambda_.1} parent=131 // pred_check
          %p1015 = pneg %p634
        $region182: #{_lambda_.1} parent=131 // pred_check_branch
          %1017 = sbr.rel (%p1015) target = $region184
        $region183: #{_lambda_.1} parent=131 // pred_region
          %1018 = dma.done [#allocation20], 512
        $region184: #{_lambda_.1} parent=131 // pred_fallthru
          _
        %s1019 = sand.u32 %s60, 1
        %s1020 = scalar_lea.sflag [#allocation3], %s1019
        %s1021 = sand.u32 %s60, 1
        %s1022 = smul.addr %s1021, 8
        %s1023 = scalar_lea.vmem [#allocation2], %s1022
        %p1024 = pneg %p73
        %p1025 = pneg %p70
        %s1026 = sand.u32 %s52, 1
        %s1027 = scalar_lea.sflag [#allocation5], %s1026
        %s1028 = sand.u32 %s86, 1
        %s1029 = smul.addr %s1028, 16
        %s1030 = scalar_lea.vmem [#allocation4], %s1029
        %p1031 = pneg %p99
        %p1032 = pneg %p96
        %s1033 = sand.u32 %s52, 1
        %s1034 = scalar_lea.sflag [#allocation5], %s1033
        %s1035 = sand.u32 %s112, 1
        %s1036 = smul.addr %s1035, 8
        %s1037 = scalar_lea.vmem [#allocation6], %s1036
        %p1038 = pneg %p125
        %p1039 = pneg %p122
        %s1040 = sand.u32 %s52, 1
        %s1041 = scalar_lea.sflag [#allocation8], %s1040
        %s1042 = sand.u32 %s138, 1
        %s1043 = smul.addr %s1042, 16
        %s1044 = scalar_lea.vmem [#allocation7], %s1043
        %p1045 = pneg %p151
        %p1046 = pneg %p148
        %p1047 = pneg %p172
        %p1048 = pneg %p169
        %p1049 = pneg %p193
        %p1050 = pneg %p190
        %p1051 = pneg %p214
        %p1052 = pneg %p211
        %p1053 = pneg %p235
        %p1054 = pneg %p232
        %p1055 = pneg %p256
        %p1056 = pneg %p253
        %p1057 = pneg %p277
        %p1058 = pneg %p274
        %p1059 = pneg %p298
        %p1060 = pneg %p295
        %p1061 = pneg %p319
        %p1062 = pneg %p316
        %p1063 = pneg %p340
        %p1064 = pneg %p337
        %p1065 = pneg %p361
        %p1066 = pneg %p358
        %p1067 = pneg %p382
        %p1068 = pneg %p379
        %p1069 = pneg %p403
        %p1070 = pneg %p400
        %p1071 = pneg %p424
        %p1072 = pneg %p421
        %p1073 = pneg %p445
        %p1074 = pneg %p442
        %p1075 = pneg %p466
        %p1076 = pneg %p463
        %p1077 = pneg %p487
        %p1078 = pneg %p484
        %p1079 = pneg %p508
        %p1080 = pneg %p505
        %p1081 = pneg %p529
        %p1082 = pneg %p526
        %p1083 = pneg %p550
        %p1084 = pneg %p547
        %p1085 = pneg %p571
        %p1086 = pneg %p568
        %p1087 = pneg %p592
        %p1088 = pneg %p589
        %p1089 = pneg %p613
        %p1090 = pneg %p610
        %p1091 = pneg %p634
        %p1092 = pneg %p631
        %p1093 = pneg %p655
        %p1094 = pneg %p652
        %p1095 = pneg %p681
        %p1096 = pneg %p678
        %p1097 = scmp.lt.s32.totalorder %s52, 1
        %s1098 = scalar_select %p1097, %s52, 1
        %s1099 = smul.addr %s1098, 8
        %s1100 = scalar_lea.vmem %s28, %s1099
        %p1101 = scmp.lt.s32.totalorder %s52, 1
        %s1102 = scalar_select %p1101, %s52, 1
        %s1103 = smul.addr %s1102, 8
        %s1104 = scalar_lea.vmem %s28, %s1103
        %v1105 = vld [vmem:[%s951] sm:$0xff]
        %v1106 = vld [vmem:[%s960] sm:$0xff]
        %v1107 = vld [vmem:[%s960 + $0x8] sm:$0xff]
        %v1108 = vld [vmem:[%s969] sm:$0xff]
        %v1109 = vld [vmem:[%s978] sm:$0xff]
        %v1110 = vld [vmem:[%s978 + $0x8] sm:$0xff]
        %v1111 = vmul.f32 %v1108, %v1108
        %vm1112 = vcmask 261120
        %v1113 = vsel %vm1112, %v1111, 0.0
        %1114 = vadd.xlane.f32.xlu0 %v1113
        %v1115 = vpop.xlane.xlu0 %1114
        %v1116 = vrsqrt.pop %v1115
        %v1117 = vmul.f32 %v1115, %v1116
        %vm1118 = vcmp.eq.f32.partialorder %v1115, inf
        %v1119 = vsel %vm1118, %v1115, %v1117
        %vm1120 = vcmp.eq.f32.partialorder %v1115, 0.0
        %v1121 = vand.u32 %v1115, 2147483648
        %v1122 = vsel %vm1120, %v1121, %v1119
        %v1123 = vmax.f32 %v1122, 1e-12
        %v1124 = vrcp.pop %v1123
        %v1125 = vmul.f32 %v1108, %v1124
        %v1126 = vld [vmem:[#allocation9] sm:$0xff]
        %v1127 = vld [vmem:[#allocation9 + $0x8] sm:$0xff]
        %v1128 = vld [vmem:[#allocation9 + $0x10] sm:$0xff]
        %v1129 = vld [vmem:[#allocation9 + $0x18] sm:$0xff]
        %v1130 = vld [vmem:[#allocation10] sm:$0xff]
        %v1131 = vld [vmem:[#allocation10 + $0x8] sm:$0xff]
        %v1132 = vld [vmem:[#allocation10 + $0x10] sm:$0xff]
        %v1133 = vld [vmem:[#allocation10 + $0x18] sm:$0xff]
        %v1135 = vsel %vm1112, %v1125, 0
        %1137 = vmatprep.subr.mxu0 0.0
        %1138 = vmatpush1.msra.mxu0 %v1130
        %1139 = vmatprep.subr.mxu0 0.0
        %1140 = vmatpush1.msra.mxu0 %v1131
        %1141 = vmatprep.subr.mxu0 0.0
        %1142 = vmatpush1.msra.mxu0 %v1132
        %1143 = vmatprep.subr.mxu0 0.0
        %1144 = vmatpush1.msra.mxu0 %v1133
        %1145 = vmatprep.subr.mxu0 0.0
        %1146 = vmatpush1.msra.mxu0 0.0
        %1147 = vmatprep.subr.mxu0 0.0
        %1148 = vmatpush1.msra.mxu0 0.0
        %1149 = vmatprep.subr.mxu0 0.0
        %1150 = vmatpush1.msra.mxu0 0.0
        %1151 = vmatprep.subr.mxu0 0.0
        %1152 = vmatpush1.msra.mxu0 0.0
        %1153 = vmatprep.subr.mxu0 0.0
        %1154 = vmatpush1.msra.mxu0 0.0
        %1155 = vmatprep.subr.mxu0 0.0
        %1156 = vmatpush1.msra.mxu0 0.0
        %1157 = vmatprep.subr.mxu0 0.0
        %1158 = vmatpush1.msra.mxu0 0.0
        %1159 = vmatprep.subr.mxu0 0.0
        %1160 = vmatpush1.msra.mxu0 0.0
        %1161 = vmatprep.subr.mxu0 0.0
        %1162 = vmatpush1.msra.mxu0 0.0
        %1163 = vmatprep.subr.mxu0 0.0
        %1164 = vmatpush1.msra.mxu0 0.0
        %1165 = vmatprep.subr.mxu0 0.0
        %1166 = vmatpush1.msra.mxu0 0.0
        %1167 = vmatprep.subr.mxu0 0.0
        %1168 = vmatpush1.msra.mxu0 0.0
        %1169 = vmatprep.subr.mxu0 0.0
        %1170 = vmatpush1.msra.mxu0 0.0
        %1171 = vmatprep.subr.mxu0 0.0
        %1172 = vmatpush1.msra.mxu0 0.0
        %1173 = vmatprep.subr.mxu0 0.0
        %1174 = vmatpush1.msra.mxu0 0.0
        %1175 = vmatprep.subr.mxu0 0.0
        %1176 = vmatpush1.msra.mxu0 0.0
        %1177 = vmatprep.subr.mxu0 0.0
        %1178 = vmatpush1.msra.mxu0 0.0
        %1179 = vmatprep.subr.mxu0 0.0
        %1180 = vmatpush1.msra.mxu0 0.0
        %1181 = vmatprep.subr.mxu0 0.0
        %1182 = vmatpush1.msra.mxu0 0.0
        %1183 = vmatprep.subr.mxu0 0.0
        %1184 = vmatpush1.msra.mxu0 0.0
        %1185 = vmatprep.subr.mxu0 0.0
        %1186 = vmatpush1.msra.mxu0 0.0
        %1187 = vmatprep.subr.mxu0 0.0
        %1188 = vmatpush1.msra.mxu0 0.0
        %1189 = vmatprep.subr.mxu0 0.0
        %1190 = vmatpush1.msra.mxu0 0.0
        %1191 = vmatprep.subr.mxu0 0.0
        %1192 = vmatpush1.msra.mxu0 0.0
        %1193 = vmatprep.subr.mxu0 0.0
        %1194 = vmatpush1.msra.mxu0 0.0
        %1195 = vmatprep.subr.mxu0 0.0
        %1196 = vmatpush1.msra.mxu0 0.0
        %1197 = vmatprep.subr.mxu0 0.0
        %1198 = vmatpush1.msra.mxu0 0.0
        %1199 = vmatprep.subr.mxu0 0.0
        %1200 = vmatpush1.msra.mxu0 0.0
        %1201 = vmatprep.mubr.f32.mxu0 0.0
        %1202 = vmatmul.mubr.f32.gmra.mrb[0].mxu0 %v1135
        %v1203 = vpop.f32.mrb[0].mxu0
        %v1204 = vadd.f32 0.0, %v1203
        %v1205 = vpop.f32.mrb[0].mxu0
        %1206 = vdwg.mxu0
        %v1208 = vsel %vm1112, %v1105, 0
        %1210 = vmatprep.subr.mxu0 0.0
        %1211 = vmatpush1.msra.mxu0 %v1126
        %1212 = vmatprep.subr.mxu0 0.0
        %1213 = vmatpush1.msra.mxu0 %v1127
        %1214 = vmatprep.subr.mxu0 0.0
        %1215 = vmatpush1.msra.mxu0 %v1128
        %1216 = vmatprep.subr.mxu0 0.0
        %1217 = vmatpush1.msra.mxu0 %v1129
        %1218 = vmatprep.subr.mxu0 0.0
        %1219 = vmatpush1.msra.mxu0 0.0
        %1220 = vmatprep.subr.mxu0 0.0
        %1221 = vmatpush1.msra.mxu0 0.0
        %1222 = vmatprep.subr.mxu0 0.0
        %1223 = vmatpush1.msra.mxu0 0.0
        %1224 = vmatprep.subr.mxu0 0.0
        %1225 = vmatpush1.msra.mxu0 0.0
        %1226 = vmatprep.subr.mxu0 0.0
        %1227 = vmatpush1.msra.mxu0 0.0
        %1228 = vmatprep.subr.mxu0 0.0
        %1229 = vmatpush1.msra.mxu0 0.0
        %1230 = vmatprep.subr.mxu0 0.0
        %1231 = vmatpush1.msra.mxu0 0.0
        %1232 = vmatprep.subr.mxu0 0.0
        %1233 = vmatpush1.msra.mxu0 0.0
        %1234 = vmatprep.subr.mxu0 0.0
        %1235 = vmatpush1.msra.mxu0 0.0
        %1236 = vmatprep.subr.mxu0 0.0
        %1237 = vmatpush1.msra.mxu0 0.0
        %1238 = vmatprep.subr.mxu0 0.0
        %1239 = vmatpush1.msra.mxu0 0.0
        %1240 = vmatprep.subr.mxu0 0.0
        %1241 = vmatpush1.msra.mxu0 0.0
        %1242 = vmatprep.subr.mxu0 0.0
        %1243 = vmatpush1.msra.mxu0 0.0
        %1244 = vmatprep.subr.mxu0 0.0
        %1245 = vmatpush1.msra.mxu0 0.0
        %1246 = vmatprep.subr.mxu0 0.0
        %1247 = vmatpush1.msra.mxu0 0.0
        %1248 = vmatprep.subr.mxu0 0.0
        %1249 = vmatpush1.msra.mxu0 0.0
        %1250 = vmatprep.subr.mxu0 0.0
        %1251 = vmatpush1.msra.mxu0 0.0
        %1252 = vmatprep.subr.mxu0 0.0
        %1253 = vmatpush1.msra.mxu0 0.0
        %1254 = vmatprep.subr.mxu0 0.0
        %1255 = vmatpush1.msra.mxu0 0.0
        %1256 = vmatprep.subr.mxu0 0.0
        %1257 = vmatpush1.msra.mxu0 0.0
        %1258 = vmatprep.subr.mxu0 0.0
        %1259 = vmatpush1.msra.mxu0 0.0
        %1260 = vmatprep.subr.mxu0 0.0
        %1261 = vmatpush1.msra.mxu0 0.0
        %1262 = vmatprep.subr.mxu0 0.0
        %1263 = vmatpush1.msra.mxu0 0.0
        %1264 = vmatprep.subr.mxu0 0.0
        %1265 = vmatpush1.msra.mxu0 0.0
        %1266 = vmatprep.subr.mxu0 0.0
        %1267 = vmatpush1.msra.mxu0 0.0
        %1268 = vmatprep.subr.mxu0 0.0
        %1269 = vmatpush1.msra.mxu0 0.0
        %1270 = vmatprep.subr.mxu0 0.0
        %1271 = vmatpush1.msra.mxu0 0.0
        %1272 = vmatprep.subr.mxu0 0.0
        %1273 = vmatpush1.msra.mxu0 0.0
        %1274 = vmatprep.mubr.f32.mxu0 0.0
        %1275 = vmatmul.mubr.f32.gmra.mrb[0].mxu0 %v1208
        %v1276 = vpop.f32.mrb[0].mxu0
        %v1277 = vadd.f32 %v1204, %v1276
        %v1278 = vpop.f32.mrb[0].mxu0
        %1279 = vdwg.mxu0
        %v1280 = vld [vmem:[%s6] sm:$0x1]
        %v1282 = vlaneseq
        %v1283 = vshrl.u32 %v1282, 7
        %v1284 = vsub.s32 0, %v1283
        %v1285 = vrot.slane %v1280, %v1284
        %v1287 = vadd.f32 %v1277, %v1285
        %v1288 = vld [vmem:[#allocation12] sm:$0xff]
        %v1289 = vld [vmem:[#allocation12 + $0x8] sm:$0xff]
        %v1290 = vld [vmem:[#allocation12 + $0x10] sm:$0xff]
        %v1291 = vld [vmem:[#allocation12 + $0x18] sm:$0xff]
        %v1292 = vld [vmem:[#allocation13] sm:$0xff]
        %v1293 = vld [vmem:[#allocation13 + $0x8] sm:$0xff]
        %vm1294 = vcmask 130048
        %v1296 = vsel %vm1294, %v1109, 0
        %v1299 = vsel %vm1294, %v1110, 0
        %1301 = vmatprep.subr.mxu0 0.0
        %1302 = vmatpush1.msra.mxu0 %v1292
        %1303 = vmatprep.subr.mxu0 0.0
        %1304 = vmatpush1.msra.mxu0 %v1293
        %1305 = vmatprep.subr.mxu0 0.0
        %1306 = vmatpush1.msra.mxu0 0.0
        %1307 = vmatprep.subr.mxu0 0.0
        %1308 = vmatpush1.msra.mxu0 0.0
        %1309 = vmatprep.subr.mxu0 0.0
        %1310 = vmatpush1.msra.mxu0 0.0
        %1311 = vmatprep.subr.mxu0 0.0
        %1312 = vmatpush1.msra.mxu0 0.0
        %1313 = vmatprep.subr.mxu0 0.0
        %1314 = vmatpush1.msra.mxu0 0.0
        %1315 = vmatprep.subr.mxu0 0.0
        %1316 = vmatpush1.msra.mxu0 0.0
        %1317 = vmatprep.subr.mxu0 0.0
        %1318 = vmatpush1.msra.mxu0 0.0
        %1319 = vmatprep.subr.mxu0 0.0
        %1320 = vmatpush1.msra.mxu0 0.0
        %1321 = vmatprep.subr.mxu0 0.0
        %1322 = vmatpush1.msra.mxu0 0.0
        %1323 = vmatprep.subr.mxu0 0.0
        %1324 = vmatpush1.msra.mxu0 0.0
        %1325 = vmatprep.subr.mxu0 0.0
        %1326 = vmatpush1.msra.mxu0 0.0
        %1327 = vmatprep.subr.mxu0 0.0
        %1328 = vmatpush1.msra.mxu0 0.0
        %1329 = vmatprep.subr.mxu0 0.0
        %1330 = vmatpush1.msra.mxu0 0.0
        %1331 = vmatprep.subr.mxu0 0.0
        %1332 = vmatpush1.msra.mxu0 0.0
        %1333 = vmatprep.subr.mxu0 0.0
        %1334 = vmatpush1.msra.mxu0 0.0
        %1335 = vmatprep.subr.mxu0 0.0
        %1336 = vmatpush1.msra.mxu0 0.0
        %1337 = vmatprep.subr.mxu0 0.0
        %1338 = vmatpush1.msra.mxu0 0.0
        %1339 = vmatprep.subr.mxu0 0.0
        %1340 = vmatpush1.msra.mxu0 0.0
        %1341 = vmatprep.subr.mxu0 0.0
        %1342 = vmatpush1.msra.mxu0 0.0
        %1343 = vmatprep.subr.mxu0 0.0
        %1344 = vmatpush1.msra.mxu0 0.0
        %1345 = vmatprep.subr.mxu0 0.0
        %1346 = vmatpush1.msra.mxu0 0.0
        %1347 = vmatprep.subr.mxu0 0.0
        %1348 = vmatpush1.msra.mxu0 0.0
        %1349 = vmatprep.subr.mxu0 0.0
        %1350 = vmatpush1.msra.mxu0 0.0
        %1351 = vmatprep.subr.mxu0 0.0
        %1352 = vmatpush1.msra.mxu0 0.0
        %1353 = vmatprep.subr.mxu0 0.0
        %1354 = vmatpush1.msra.mxu0 0.0
        %1355 = vmatprep.subr.mxu0 0.0
        %1356 = vmatpush1.msra.mxu0 0.0
        %1357 = vmatprep.subr.mxu0 0.0
        %1358 = vmatpush1.msra.mxu0 0.0
        %1359 = vmatprep.subr.mxu0 0.0
        %1360 = vmatpush1.msra.mxu0 0.0
        %1361 = vmatprep.subr.mxu0 0.0
        %1362 = vmatpush1.msra.mxu0 0.0
        %1363 = vmatprep.subr.mxu0 0.0
        %1364 = vmatpush1.msra.mxu0 0.0
        %1365 = vmatprep.mubr.f32.mxu0 0.0
        %1366 = vmatmul.mubr.f32.gmra.mrb[0].mxu0 %v1296
        %v1367 = vpop.f32.mrb[0].mxu0
        %v1368 = vadd.f32 0.0, %v1367
        %v1369 = vpop.f32.mrb[0].mxu0
        %1370 = vmatprep.mubr.f32.mxu0 0.0
        %1371 = vmatmul.mubr.f32.gmra.mrb[0].mxu0 %v1299
        %v1372 = vpop.f32.mrb[0].mxu0
        %v1373 = vadd.f32 0.0, %v1372
        %v1374 = vpop.f32.mrb[0].mxu0
        %1375 = vdwg.mxu0
        %v1377 = vsel %vm1112, %v1106, 0
        %v1380 = vsel %vm1112, %v1107, 0
        %1382 = vmatprep.subr.mxu0 0.0
        %1383 = vmatpush1.msra.mxu0 %v1288
        %1384 = vmatprep.subr.mxu0 0.0
        %1385 = vmatpush1.msra.mxu0 %v1289
        %1386 = vmatprep.subr.mxu0 0.0
        %1387 = vmatpush1.msra.mxu0 %v1290
        %1388 = vmatprep.subr.mxu0 0.0
        %1389 = vmatpush1.msra.mxu0 %v1291
        %1390 = vmatprep.subr.mxu0 0.0
        %1391 = vmatpush1.msra.mxu0 0.0
        %1392 = vmatprep.subr.mxu0 0.0
        %1393 = vmatpush1.msra.mxu0 0.0
        %1394 = vmatprep.subr.mxu0 0.0
        %1395 = vmatpush1.msra.mxu0 0.0
        %1396 = vmatprep.subr.mxu0 0.0
        %1397 = vmatpush1.msra.mxu0 0.0
        %1398 = vmatprep.subr.mxu0 0.0
        %1399 = vmatpush1.msra.mxu0 0.0
        %1400 = vmatprep.subr.mxu0 0.0
        %1401 = vmatpush1.msra.mxu0 0.0
        %1402 = vmatprep.subr.mxu0 0.0
        %1403 = vmatpush1.msra.mxu0 0.0
        %1404 = vmatprep.subr.mxu0 0.0
        %1405 = vmatpush1.msra.mxu0 0.0
        %1406 = vmatprep.subr.mxu0 0.0
        %1407 = vmatpush1.msra.mxu0 0.0
        %1408 = vmatprep.subr.mxu0 0.0
        %1409 = vmatpush1.msra.mxu0 0.0
        %1410 = vmatprep.subr.mxu0 0.0
        %1411 = vmatpush1.msra.mxu0 0.0
        %1412 = vmatprep.subr.mxu0 0.0
        %1413 = vmatpush1.msra.mxu0 0.0
        %1414 = vmatprep.subr.mxu0 0.0
        %1415 = vmatpush1.msra.mxu0 0.0
        %1416 = vmatprep.subr.mxu0 0.0
        %1417 = vmatpush1.msra.mxu0 0.0
        %1418 = vmatprep.subr.mxu0 0.0
        %1419 = vmatpush1.msra.mxu0 0.0
        %1420 = vmatprep.subr.mxu0 0.0
        %1421 = vmatpush1.msra.mxu0 0.0
        %1422 = vmatprep.subr.mxu0 0.0
        %1423 = vmatpush1.msra.mxu0 0.0
        %1424 = vmatprep.subr.mxu0 0.0
        %1425 = vmatpush1.msra.mxu0 0.0
        %1426 = vmatprep.subr.mxu0 0.0
        %1427 = vmatpush1.msra.mxu0 0.0
        %1428 = vmatprep.subr.mxu0 0.0
        %1429 = vmatpush1.msra.mxu0 0.0
        %1430 = vmatprep.subr.mxu0 0.0
        %1431 = vmatpush1.msra.mxu0 0.0
        %1432 = vmatprep.subr.mxu0 0.0
        %1433 = vmatpush1.msra.mxu0 0.0
        %1434 = vmatprep.subr.mxu0 0.0
        %1435 = vmatpush1.msra.mxu0 0.0
        %1436 = vmatprep.subr.mxu0 0.0
        %1437 = vmatpush1.msra.mxu0 0.0
        %1438 = vmatprep.subr.mxu0 0.0
        %1439 = vmatpush1.msra.mxu0 0.0
        %1440 = vmatprep.subr.mxu0 0.0
        %1441 = vmatpush1.msra.mxu0 0.0
        %1442 = vmatprep.subr.mxu0 0.0
        %1443 = vmatpush1.msra.mxu0 0.0
        %1444 = vmatprep.subr.mxu0 0.0
        %1445 = vmatpush1.msra.mxu0 0.0
        %1446 = vmatprep.mubr.f32.mxu0 0.0
        %1447 = vmatmul.mubr.f32.gmra.mrb[0].mxu0 %v1377
        %v1448 = vpop.f32.mrb[0].mxu0
        %v1449 = vadd.f32 %v1368, %v1448
        %v1450 = vpop.f32.mrb[0].mxu0
        %1451 = vmatprep.mubr.f32.mxu0 0.0
        %1452 = vmatmul.mubr.f32.gmra.mrb[0].mxu0 %v1380
        %v1453 = vpop.f32.mrb[0].mxu0
        %v1454 = vadd.f32 %v1373, %v1453
        %v1455 = vpop.f32.mrb[0].mxu0
        %1456 = vdwg.mxu0
        %v1457 = vld [vmem:[%s9] sm:$0x1]
        %v1459 = vlaneseq
        %v1460 = vshrl.u32 %v1459, 7
        %v1461 = vsub.s32 0, %v1460
        %v1462 = vrot.slane %v1457, %v1461
        %v1464 = vadd.f32 %v1449, %v1462
        %v1465 = vadd.f32 %v1454, %v1462
        %1467 = vrot.lane.b32.xlu0 %v1287, 120
        %v1468 = vpop.permute.xlu0 %1467
        %1469 = vrot.lane.b32.xlu0 %v1287, 112
        %v1470 = vpop.permute.xlu0 %1469
        %1471 = vrot.lane.b32.xlu0 %v1287, 104
        %v1472 = vpop.permute.xlu0 %1471
        %1475 = vrot.lane.b32.xlu0 %v1464, 120
        %v1476 = vpop.permute.xlu0 %1475
        %1477 = vrot.lane.b32.xlu0 %v1465, 120
        %v1478 = vpop.permute.xlu0 %1477
        %1479 = vrot.lane.b32.xlu0 %v1464, 112
        %v1480 = vpop.permute.xlu0 %1479
        %1481 = vrot.lane.b32.xlu0 %v1465, 112
        %v1482 = vpop.permute.xlu0 %1481
        %1483 = vrot.lane.b32.xlu0 %v1464, 104
        %v1484 = vpop.permute.xlu0 %1483
        %1485 = vrot.lane.b32.xlu0 %v1465, 104
        %v1486 = vpop.permute.xlu0 %1485
        %vm1487 = vcmask 64512
        %v1488 = vsel %vm1487, %v1287, 0
        %v1490 = vsel %vm1487, %v1464, 0
        %v1492 = vsel %vm1487, %v1465, 0
        %1494 = vmatprep.subr.mxu0 0.0
        %1495 = vmatpush1.xpose.msra.mxu0 %v1490
        %1496 = vmatprep.subr.mxu0 0.0
        %1497 = vmatpush1.xpose.msra.mxu0 %v1492
        %1498 = vmatprep.subr.mxu0 0.0
        %1499 = vmatpush1.xpose.msra.mxu0 0.0
        %1500 = vmatprep.subr.mxu0 0.0
        %1501 = vmatpush1.xpose.msra.mxu0 0.0
        %1502 = vmatprep.subr.mxu0 0.0
        %1503 = vmatpush1.xpose.msra.mxu0 0.0
        %1504 = vmatprep.subr.mxu0 0.0
        %1505 = vmatpush1.xpose.msra.mxu0 0.0
        %1506 = vmatprep.subr.mxu0 0.0
        %1507 = vmatpush1.xpose.msra.mxu0 0.0
        %1508 = vmatprep.subr.mxu0 0.0
        %1509 = vmatpush1.xpose.msra.mxu0 0.0
        %1510 = vmatprep.subr.mxu0 0.0
        %1511 = vmatpush1.xpose.msra.mxu0 0.0
        %1512 = vmatprep.subr.mxu0 0.0
        %1513 = vmatpush1.xpose.msra.mxu0 0.0
        %1514 = vmatprep.subr.mxu0 0.0
        %1515 = vmatpush1.xpose.msra.mxu0 0.0
        %1516 = vmatprep.subr.mxu0 0.0
        %1517 = vmatpush1.xpose.msra.mxu0 0.0
        %1518 = vmatprep.subr.mxu0 0.0
        %1519 = vmatpush1.xpose.msra.mxu0 0.0
        %1520 = vmatprep.subr.mxu0 0.0
        %1521 = vmatpush1.xpose.msra.mxu0 0.0
        %1522 = vmatprep.subr.mxu0 0.0
        %1523 = vmatpush1.xpose.msra.mxu0 0.0
        %1524 = vmatprep.subr.mxu0 0.0
        %1525 = vmatpush1.xpose.msra.mxu0 0.0
        %1526 = vmatprep.subr.mxu0 0.0
        %1527 = vmatpush1.xpose.msra.mxu0 0.0
        %1528 = vmatprep.subr.mxu0 0.0
        %1529 = vmatpush1.xpose.msra.mxu0 0.0
        %1530 = vmatprep.subr.mxu0 0.0
        %1531 = vmatpush1.xpose.msra.mxu0 0.0
        %1532 = vmatprep.subr.mxu0 0.0
        %1533 = vmatpush1.xpose.msra.mxu0 0.0
        %1534 = vmatprep.subr.mxu0 0.0
        %1535 = vmatpush1.xpose.msra.mxu0 0.0
        %1536 = vmatprep.subr.mxu0 0.0
        %1537 = vmatpush1.xpose.msra.mxu0 0.0
        %1538 = vmatprep.subr.mxu0 0.0
        %1539 = vmatpush1.xpose.msra.mxu0 0.0
        %1540 = vmatprep.subr.mxu0 0.0
        %1541 = vmatpush1.xpose.msra.mxu0 0.0
        %1542 = vmatprep.subr.mxu0 0.0
        %1543 = vmatpush1.xpose.msra.mxu0 0.0
        %1544 = vmatprep.subr.mxu0 0.0
        %1545 = vmatpush1.xpose.msra.mxu0 0.0
        %1546 = vmatprep.subr.mxu0 0.0
        %1547 = vmatpush1.xpose.msra.mxu0 0.0
        %1548 = vmatprep.subr.mxu0 0.0
        %1549 = vmatpush1.xpose.msra.mxu0 0.0
        %1550 = vmatprep.subr.mxu0 0.0
        %1551 = vmatpush1.xpose.msra.mxu0 0.0
        %1552 = vmatprep.subr.mxu0 0.0
        %1553 = vmatpush1.xpose.msra.mxu0 0.0
        %1554 = vmatprep.subr.mxu0 0.0
        %1555 = vmatpush1.xpose.msra.mxu0 0.0
        %1556 = vmatprep.subr.mxu0 0.0
        %1557 = vmatpush1.xpose.msra.mxu0 0.0
        %1558 = vmatprep.mubr.f32.mxu0 0.0
        %1559 = vmatmul.mubr.f32.gmra.mrb[0].mxu0 %v1488
        %v1560 = vpop.f32.mrb[0].mxu0
        %v1561 = vadd.f32 0.0, %v1560
        %v1562 = vpop.f32.mrb[0].mxu0
        %1563 = vdwg.mxu0
        %v1564 = vsel %vm1487, %v1468, 0
        %v1566 = vsel %vm1487, %v1476, 0
        %v1568 = vsel %vm1487, %v1478, 0
        %1570 = vmatprep.subr.mxu0 0.0
        %1571 = vmatpush1.xpose.msra.mxu0 %v1566
        %1572 = vmatprep.subr.mxu0 0.0
        %1573 = vmatpush1.xpose.msra.mxu0 %v1568
        %1574 = vmatprep.subr.mxu0 0.0
        %1575 = vmatpush1.xpose.msra.mxu0 0.0
        %1576 = vmatprep.subr.mxu0 0.0
        %1577 = vmatpush1.xpose.msra.mxu0 0.0
        %1578 = vmatprep.subr.mxu0 0.0
        %1579 = vmatpush1.xpose.msra.mxu0 0.0
        %1580 = vmatprep.subr.mxu0 0.0
        %1581 = vmatpush1.xpose.msra.mxu0 0.0
        %1582 = vmatprep.subr.mxu0 0.0
        %1583 = vmatpush1.xpose.msra.mxu0 0.0
        %1584 = vmatprep.subr.mxu0 0.0
        %1585 = vmatpush1.xpose.msra.mxu0 0.0
        %1586 = vmatprep.subr.mxu0 0.0
        %1587 = vmatpush1.xpose.msra.mxu0 0.0
        %1588 = vmatprep.subr.mxu0 0.0
        %1589 = vmatpush1.xpose.msra.mxu0 0.0
        %1590 = vmatprep.subr.mxu0 0.0
        %1591 = vmatpush1.xpose.msra.mxu0 0.0
        %1592 = vmatprep.subr.mxu0 0.0
        %1593 = vmatpush1.xpose.msra.mxu0 0.0
        %1594 = vmatprep.subr.mxu0 0.0
        %1595 = vmatpush1.xpose.msra.mxu0 0.0
        %1596 = vmatprep.subr.mxu0 0.0
        %1597 = vmatpush1.xpose.msra.mxu0 0.0
        %1598 = vmatprep.subr.mxu0 0.0
        %1599 = vmatpush1.xpose.msra.mxu0 0.0
        %1600 = vmatprep.subr.mxu0 0.0
        %1601 = vmatpush1.xpose.msra.mxu0 0.0
        %1602 = vmatprep.subr.mxu0 0.0
        %1603 = vmatpush1.xpose.msra.mxu0 0.0
        %1604 = vmatprep.subr.mxu0 0.0
        %1605 = vmatpush1.xpose.msra.mxu0 0.0
        %1606 = vmatprep.subr.mxu0 0.0
        %1607 = vmatpush1.xpose.msra.mxu0 0.0
        %1608 = vmatprep.subr.mxu0 0.0
        %1609 = vmatpush1.xpose.msra.mxu0 0.0
        %1610 = vmatprep.subr.mxu0 0.0
        %1611 = vmatpush1.xpose.msra.mxu0 0.0
        %1612 = vmatprep.subr.mxu0 0.0
        %1613 = vmatpush1.xpose.msra.mxu0 0.0
        %1614 = vmatprep.subr.mxu0 0.0
        %1615 = vmatpush1.xpose.msra.mxu0 0.0
        %1616 = vmatprep.subr.mxu0 0.0
        %1617 = vmatpush1.xpose.msra.mxu0 0.0
        %1618 = vmatprep.subr.mxu0 0.0
        %1619 = vmatpush1.xpose.msra.mxu0 0.0
        %1620 = vmatprep.subr.mxu0 0.0
        %1621 = vmatpush1.xpose.msra.mxu0 0.0
        %1622 = vmatprep.subr.mxu0 0.0
        %1623 = vmatpush1.xpose.msra.mxu0 0.0
        %1624 = vmatprep.subr.mxu0 0.0
        %1625 = vmatpush1.xpose.msra.mxu0 0.0
        %1626 = vmatprep.subr.mxu0 0.0
        %1627 = vmatpush1.xpose.msra.mxu0 0.0
        %1628 = vmatprep.subr.mxu0 0.0
        %1629 = vmatpush1.xpose.msra.mxu0 0.0
        %1630 = vmatprep.subr.mxu0 0.0
        %1631 = vmatpush1.xpose.msra.mxu0 0.0
        %1632 = vmatprep.subr.mxu0 0.0
        %1633 = vmatpush1.xpose.msra.mxu0 0.0
        %1634 = vmatprep.mubr.f32.mxu0 0.0
        %1635 = vmatmul.mubr.f32.gmra.mrb[0].mxu0 %v1564
        %v1636 = vpop.f32.mrb[0].mxu0
        %v1637 = vadd.f32 0.0, %v1636
        %v1638 = vpop.f32.mrb[0].mxu0
        %1639 = vdwg.mxu0
        %v1640 = vsel %vm1487, %v1470, 0
        %v1642 = vsel %vm1487, %v1480, 0
        %v1644 = vsel %vm1487, %v1482, 0
        %1646 = vmatprep.subr.mxu0 0.0
        %1647 = vmatpush1.xpose.msra.mxu0 %v1642
        %1648 = vmatprep.subr.mxu0 0.0
        %1649 = vmatpush1.xpose.msra.mxu0 %v1644
        %1650 = vmatprep.subr.mxu0 0.0
        %1651 = vmatpush1.xpose.msra.mxu0 0.0
        %1652 = vmatprep.subr.mxu0 0.0
        %1653 = vmatpush1.xpose.msra.mxu0 0.0
        %1654 = vmatprep.subr.mxu0 0.0
        %1655 = vmatpush1.xpose.msra.mxu0 0.0
        %1656 = vmatprep.subr.mxu0 0.0
        %1657 = vmatpush1.xpose.msra.mxu0 0.0
        %1658 = vmatprep.subr.mxu0 0.0
        %1659 = vmatpush1.xpose.msra.mxu0 0.0
        %1660 = vmatprep.subr.mxu0 0.0
        %1661 = vmatpush1.xpose.msra.mxu0 0.0
        %1662 = vmatprep.subr.mxu0 0.0
        %1663 = vmatpush1.xpose.msra.mxu0 0.0
        %1664 = vmatprep.subr.mxu0 0.0
        %1665 = vmatpush1.xpose.msra.mxu0 0.0
        %1666 = vmatprep.subr.mxu0 0.0
        %1667 = vmatpush1.xpose.msra.mxu0 0.0
        %1668 = vmatprep.subr.mxu0 0.0
        %1669 = vmatpush1.xpose.msra.mxu0 0.0
        %1670 = vmatprep.subr.mxu0 0.0
        %1671 = vmatpush1.xpose.msra.mxu0 0.0
        %1672 = vmatprep.subr.mxu0 0.0
        %1673 = vmatpush1.xpose.msra.mxu0 0.0
        %1674 = vmatprep.subr.mxu0 0.0
        %1675 = vmatpush1.xpose.msra.mxu0 0.0
        %1676 = vmatprep.subr.mxu0 0.0
        %1677 = vmatpush1.xpose.msra.mxu0 0.0
        %1678 = vmatprep.subr.mxu0 0.0
        %1679 = vmatpush1.xpose.msra.mxu0 0.0
        %1680 = vmatprep.subr.mxu0 0.0
        %1681 = vmatpush1.xpose.msra.mxu0 0.0
        %1682 = vmatprep.subr.mxu0 0.0
        %1683 = vmatpush1.xpose.msra.mxu0 0.0
        %1684 = vmatprep.subr.mxu0 0.0
        %1685 = vmatpush1.xpose.msra.mxu0 0.0
        %1686 = vmatprep.subr.mxu0 0.0
        %1687 = vmatpush1.xpose.msra.mxu0 0.0
        %1688 = vmatprep.subr.mxu0 0.0
        %1689 = vmatpush1.xpose.msra.mxu0 0.0
        %1690 = vmatprep.subr.mxu0 0.0
        %1691 = vmatpush1.xpose.msra.mxu0 0.0
        %1692 = vmatprep.subr.mxu0 0.0
        %1693 = vmatpush1.xpose.msra.mxu0 0.0
        %1694 = vmatprep.subr.mxu0 0.0
        %1695 = vmatpush1.xpose.msra.mxu0 0.0
        %1696 = vmatprep.subr.mxu0 0.0
        %1697 = vmatpush1.xpose.msra.mxu0 0.0
        %1698 = vmatprep.subr.mxu0 0.0
        %1699 = vmatpush1.xpose.msra.mxu0 0.0
        %1700 = vmatprep.subr.mxu0 0.0
        %1701 = vmatpush1.xpose.msra.mxu0 0.0
        %1702 = vmatprep.subr.mxu0 0.0
        %1703 = vmatpush1.xpose.msra.mxu0 0.0
        %1704 = vmatprep.subr.mxu0 0.0
        %1705 = vmatpush1.xpose.msra.mxu0 0.0
        %1706 = vmatprep.subr.mxu0 0.0
        %1707 = vmatpush1.xpose.msra.mxu0 0.0
        %1708 = vmatprep.subr.mxu0 0.0
        %1709 = vmatpush1.xpose.msra.mxu0 0.0
        %1710 = vmatprep.mubr.f32.mxu0 0.0
        %1711 = vmatmul.mubr.f32.gmra.mrb[0].mxu0 %v1640
        %v1712 = vpop.f32.mrb[0].mxu0
        %v1713 = vadd.f32 0.0, %v1712
        %v1714 = vpop.f32.mrb[0].mxu0
        %1715 = vdwg.mxu0
        %v1716 = vsel %vm1487, %v1472, 0
        %v1718 = vsel %vm1487, %v1484, 0
        %v1720 = vsel %vm1487, %v1486, 0
        %1722 = vmatprep.subr.mxu0 0.0
        %1723 = vmatpush1.xpose.msra.mxu0 %v1718
        %1724 = vmatprep.subr.mxu0 0.0
        %1725 = vmatpush1.xpose.msra.mxu0 %v1720
        %1726 = vmatprep.subr.mxu0 0.0
        %1727 = vmatpush1.xpose.msra.mxu0 0.0
        %1728 = vmatprep.subr.mxu0 0.0
        %1729 = vmatpush1.xpose.msra.mxu0 0.0
        %1730 = vmatprep.subr.mxu0 0.0
        %1731 = vmatpush1.xpose.msra.mxu0 0.0
        %1732 = vmatprep.subr.mxu0 0.0
        %1733 = vmatpush1.xpose.msra.mxu0 0.0
        %1734 = vmatprep.subr.mxu0 0.0
        %1735 = vmatpush1.xpose.msra.mxu0 0.0
        %1736 = vmatprep.subr.mxu0 0.0
        %1737 = vmatpush1.xpose.msra.mxu0 0.0
        %1738 = vmatprep.subr.mxu0 0.0
        %1739 = vmatpush1.xpose.msra.mxu0 0.0
        %1740 = vmatprep.subr.mxu0 0.0
        %1741 = vmatpush1.xpose.msra.mxu0 0.0
        %1742 = vmatprep.subr.mxu0 0.0
        %1743 = vmatpush1.xpose.msra.mxu0 0.0
        %1744 = vmatprep.subr.mxu0 0.0
        %1745 = vmatpush1.xpose.msra.mxu0 0.0
        %1746 = vmatprep.subr.mxu0 0.0
        %1747 = vmatpush1.xpose.msra.mxu0 0.0
        %1748 = vmatprep.subr.mxu0 0.0
        %1749 = vmatpush1.xpose.msra.mxu0 0.0
        %1750 = vmatprep.subr.mxu0 0.0
        %1751 = vmatpush1.xpose.msra.mxu0 0.0
        %1752 = vmatprep.subr.mxu0 0.0
        %1753 = vmatpush1.xpose.msra.mxu0 0.0
        %1754 = vmatprep.subr.mxu0 0.0
        %1755 = vmatpush1.xpose.msra.mxu0 0.0
        %1756 = vmatprep.subr.mxu0 0.0
        %1757 = vmatpush1.xpose.msra.mxu0 0.0
        %1758 = vmatprep.subr.mxu0 0.0
        %1759 = vmatpush1.xpose.msra.mxu0 0.0
        %1760 = vmatprep.subr.mxu0 0.0
        %1761 = vmatpush1.xpose.msra.mxu0 0.0
        %1762 = vmatprep.subr.mxu0 0.0
        %1763 = vmatpush1.xpose.msra.mxu0 0.0
        %1764 = vmatprep.subr.mxu0 0.0
        %1765 = vmatpush1.xpose.msra.mxu0 0.0
        %1766 = vmatprep.subr.mxu0 0.0
        %1767 = vmatpush1.xpose.msra.mxu0 0.0
        %1768 = vmatprep.subr.mxu0 0.0
        %1769 = vmatpush1.xpose.msra.mxu0 0.0
        %1770 = vmatprep.subr.mxu0 0.0
        %1771 = vmatpush1.xpose.msra.mxu0 0.0
        %1772 = vmatprep.subr.mxu0 0.0
        %1773 = vmatpush1.xpose.msra.mxu0 0.0
        %1774 = vmatprep.subr.mxu0 0.0
        %1775 = vmatpush1.xpose.msra.mxu0 0.0
        %1776 = vmatprep.subr.mxu0 0.0
        %1777 = vmatpush1.xpose.msra.mxu0 0.0
        %1778 = vmatprep.subr.mxu0 0.0
        %1779 = vmatpush1.xpose.msra.mxu0 0.0
        %1780 = vmatprep.subr.mxu0 0.0
        %1781 = vmatpush1.xpose.msra.mxu0 0.0
        %1782 = vmatprep.subr.mxu0 0.0
        %1783 = vmatpush1.xpose.msra.mxu0 0.0
        %1784 = vmatprep.subr.mxu0 0.0
        %1785 = vmatpush1.xpose.msra.mxu0 0.0
        %1786 = vmatprep.mubr.f32.mxu0 0.0
        %1787 = vmatmul.mubr.f32.gmra.mrb[0].mxu0 %v1716
        %v1788 = vpop.f32.mrb[0].mxu0
        %v1789 = vadd.f32 0.0, %v1788
        %v1790 = vpop.f32.mrb[0].mxu0
        %1791 = vdwg.mxu0
        %v1792 = vsel %vm1294, %v1561, -inf
        %1793 = vmax.xlane.f32.xlu0 %v1792
        %v1794 = vpop.xlane.xlu0 %1793
        %v1795 = vsel %vm1294, %v1637, -inf
        %1796 = vmax.xlane.f32.xlu0 %v1795
        %v1797 = vpop.xlane.xlu0 %1796
        %v1798 = vsel %vm1294, %v1713, -inf
        %1799 = vmax.xlane.f32.xlu0 %v1798
        %v1800 = vpop.xlane.xlu0 %1799
        %v1801 = vsel %vm1294, %v1789, -inf
        %1802 = vmax.xlane.f32.xlu0 %v1801
        %v1803 = vpop.xlane.xlu0 %1802
        %v1804 = vsub.f32 %v1561, %v1794
        %v1805 = vsub.f32 %v1637, %v1797
        %v1806 = vsub.f32 %v1713, %v1800
        %v1807 = vsub.f32 %v1789, %v1803
        %v1808 = vmul.f32 %v1804, 1.442695
        %v1809 = vpow.pop %v1808
        %v1810 = vmul.f32 %v1805, 1.442695
        %v1811 = vpow.pop %v1810
        %v1812 = vmul.f32 %v1806, 1.442695
        %v1813 = vpow.pop %v1812
        %v1814 = vmul.f32 %v1807, 1.442695
        %v1815 = vpow.pop %v1814
        %v1816 = vsel %vm1294, %v1809, 0.0
        %1817 = vadd.xlane.f32.xlu0 %v1816
        %v1818 = vpop.xlane.xlu0 %1817
        %v1819 = vsel %vm1294, %v1811, 0.0
        %1820 = vadd.xlane.f32.xlu0 %v1819
        %v1821 = vpop.xlane.xlu0 %1820
        %v1822 = vsel %vm1294, %v1813, 0.0
        %1823 = vadd.xlane.f32.xlu0 %v1822
        %v1824 = vpop.xlane.xlu0 %1823
        %v1825 = vsel %vm1294, %v1815, 0.0
        %1826 = vadd.xlane.f32.xlu0 %v1825
        %v1827 = vpop.xlane.xlu0 %1826
        %v1828 = vrcp.pop %v1818
        %v1829 = vrcp.pop %v1821
        %v1830 = vrcp.pop %v1824
        %v1831 = vrcp.pop %v1827
        %v1832 = vmul.f32 %v1809, %v1828
        %v1833 = vmul.f32 %v1811, %v1829
        %v1834 = vmul.f32 %v1813, %v1830
        %v1835 = vmul.f32 %v1815, %v1831
        %1836 = vrot.lane.b32.xlu0 %v1464, 96
        %v1837 = vpop.permute.xlu0 %1836
        %1838 = vrot.lane.b32.xlu0 %v1465, 96
        %v1839 = vpop.permute.xlu0 %1838
        %v1843 = vsel %vm1294, %v1832, 0
        %1845 = vmatprep.subr.mxu0 0.0
        %1846 = vmatpush1.msra.mxu0 %v1837
        %1847 = vmatprep.subr.mxu0 0.0
        %1848 = vmatpush1.msra.mxu0 %v1839
        %1849 = vmatprep.subr.mxu0 0.0
        %1850 = vmatpush1.msra.mxu0 0.0
        %1851 = vmatprep.subr.mxu0 0.0
        %1852 = vmatpush1.msra.mxu0 0.0
        %1853 = vmatprep.subr.mxu0 0.0
        %1854 = vmatpush1.msra.mxu0 0.0
        %1855 = vmatprep.subr.mxu0 0.0
        %1856 = vmatpush1.msra.mxu0 0.0
        %1857 = vmatprep.subr.mxu0 0.0
        %1858 = vmatpush1.msra.mxu0 0.0
        %1859 = vmatprep.subr.mxu0 0.0
        %1860 = vmatpush1.msra.mxu0 0.0
        %1861 = vmatprep.subr.mxu0 0.0
        %1862 = vmatpush1.msra.mxu0 0.0
        %1863 = vmatprep.subr.mxu0 0.0
        %1864 = vmatpush1.msra.mxu0 0.0
        %1865 = vmatprep.subr.mxu0 0.0
        %1866 = vmatpush1.msra.mxu0 0.0
        %1867 = vmatprep.subr.mxu0 0.0
        %1868 = vmatpush1.msra.mxu0 0.0
        %1869 = vmatprep.subr.mxu0 0.0
        %1870 = vmatpush1.msra.mxu0 0.0
        %1871 = vmatprep.subr.mxu0 0.0
        %1872 = vmatpush1.msra.mxu0 0.0
        %1873 = vmatprep.subr.mxu0 0.0
        %1874 = vmatpush1.msra.mxu0 0.0
        %1875 = vmatprep.subr.mxu0 0.0
        %1876 = vmatpush1.msra.mxu0 0.0
        %1877 = vmatprep.subr.mxu0 0.0
        %1878 = vmatpush1.msra.mxu0 0.0
        %1879 = vmatprep.subr.mxu0 0.0
        %1880 = vmatpush1.msra.mxu0 0.0
        %1881 = vmatprep.subr.mxu0 0.0
        %1882 = vmatpush1.msra.mxu0 0.0
        %1883 = vmatprep.subr.mxu0 0.0
        %1884 = vmatpush1.msra.mxu0 0.0
        %1885 = vmatprep.subr.mxu0 0.0
        %1886 = vmatpush1.msra.mxu0 0.0
        %1887 = vmatprep.subr.mxu0 0.0
        %1888 = vmatpush1.msra.mxu0 0.0
        %1889 = vmatprep.subr.mxu0 0.0
        %1890 = vmatpush1.msra.mxu0 0.0
        %1891 = vmatprep.subr.mxu0 0.0
        %1892 = vmatpush1.msra.mxu0 0.0
        %1893 = vmatprep.subr.mxu0 0.0
        %1894 = vmatpush1.msra.mxu0 0.0
        %1895 = vmatprep.subr.mxu0 0.0
        %1896 = vmatpush1.msra.mxu0 0.0
        %1897 = vmatprep.subr.mxu0 0.0
        %1898 = vmatpush1.msra.mxu0 0.0
        %1899 = vmatprep.subr.mxu0 0.0
        %1900 = vmatpush1.msra.mxu0 0.0
        %1901 = vmatprep.subr.mxu0 0.0
        %1902 = vmatpush1.msra.mxu0 0.0
        %1903 = vmatprep.subr.mxu0 0.0
        %1904 = vmatpush1.msra.mxu0 0.0
        %1905 = vmatprep.subr.mxu0 0.0
        %1906 = vmatpush1.msra.mxu0 0.0
        %1907 = vmatprep.subr.mxu0 0.0
        %1908 = vmatpush1.msra.mxu0 0.0
        %1909 = vmatprep.mubr.f32.mxu0 0.0
        %1910 = vmatmul.mubr.f32.gmra.mrb[0].mxu0 %v1843
        %v1911 = vpop.f32.mrb[0].mxu0
        %v1912 = vadd.f32 0.0, %v1911
        %v1913 = vpop.f32.mrb[0].mxu0
        %1914 = vdwg.mxu0
        %1915 = vrot.lane.b32.xlu0 %v1476, 96
        %v1916 = vpop.permute.xlu0 %1915
        %1917 = vrot.lane.b32.xlu0 %v1478, 96
        %v1918 = vpop.permute.xlu0 %1917
        %v1922 = vsel %vm1294, %v1833, 0
        %1924 = vmatprep.subr.mxu0 0.0
        %1925 = vmatpush1.msra.mxu0 %v1916
        %1926 = vmatprep.subr.mxu0 0.0
        %1927 = vmatpush1.msra.mxu0 %v1918
        %1928 = vmatprep.subr.mxu0 0.0
        %1929 = vmatpush1.msra.mxu0 0.0
        %1930 = vmatprep.subr.mxu0 0.0
        %1931 = vmatpush1.msra.mxu0 0.0
        %1932 = vmatprep.subr.mxu0 0.0
        %1933 = vmatpush1.msra.mxu0 0.0
        %1934 = vmatprep.subr.mxu0 0.0
        %1935 = vmatpush1.msra.mxu0 0.0
        %1936 = vmatprep.subr.mxu0 0.0
        %1937 = vmatpush1.msra.mxu0 0.0
        %1938 = vmatprep.subr.mxu0 0.0
        %1939 = vmatpush1.msra.mxu0 0.0
        %1940 = vmatprep.subr.mxu0 0.0
        %1941 = vmatpush1.msra.mxu0 0.0
        %1942 = vmatprep.subr.mxu0 0.0
        %1943 = vmatpush1.msra.mxu0 0.0
        %1944 = vmatprep.subr.mxu0 0.0
        %1945 = vmatpush1.msra.mxu0 0.0
        %1946 = vmatprep.subr.mxu0 0.0
        %1947 = vmatpush1.msra.mxu0 0.0
        %1948 = vmatprep.subr.mxu0 0.0
        %1949 = vmatpush1.msra.mxu0 0.0
        %1950 = vmatprep.subr.mxu0 0.0
        %1951 = vmatpush1.msra.mxu0 0.0
        %1952 = vmatprep.subr.mxu0 0.0
        %1953 = vmatpush1.msra.mxu0 0.0
        %1954 = vmatprep.subr.mxu0 0.0
        %1955 = vmatpush1.msra.mxu0 0.0
        %1956 = vmatprep.subr.mxu0 0.0
        %1957 = vmatpush1.msra.mxu0 0.0
        %1958 = vmatprep.subr.mxu0 0.0
        %1959 = vmatpush1.msra.mxu0 0.0
        %1960 = vmatprep.subr.mxu0 0.0
        %1961 = vmatpush1.msra.mxu0 0.0
        %1962 = vmatprep.subr.mxu0 0.0
        %1963 = vmatpush1.msra.mxu0 0.0
        %1964 = vmatprep.subr.mxu0 0.0
        %1965 = vmatpush1.msra.mxu0 0.0
        %1966 = vmatprep.subr.mxu0 0.0
        %1967 = vmatpush1.msra.mxu0 0.0
        %1968 = vmatprep.subr.mxu0 0.0
        %1969 = vmatpush1.msra.mxu0 0.0
        %1970 = vmatprep.subr.mxu0 0.0
        %1971 = vmatpush1.msra.mxu0 0.0
        %1972 = vmatprep.subr.mxu0 0.0
        %1973 = vmatpush1.msra.mxu0 0.0
        %1974 = vmatprep.subr.mxu0 0.0
        %1975 = vmatpush1.msra.mxu0 0.0
        %1976 = vmatprep.subr.mxu0 0.0
        %1977 = vmatpush1.msra.mxu0 0.0
        %1978 = vmatprep.subr.mxu0 0.0
        %1979 = vmatpush1.msra.mxu0 0.0
        %1980 = vmatprep.subr.mxu0 0.0
        %1981 = vmatpush1.msra.mxu0 0.0
        %1982 = vmatprep.subr.mxu0 0.0
        %1983 = vmatpush1.msra.mxu0 0.0
        %1984 = vmatprep.subr.mxu0 0.0
        %1985 = vmatpush1.msra.mxu0 0.0
        %1986 = vmatprep.subr.mxu0 0.0
        %1987 = vmatpush1.msra.mxu0 0.0
        %1988 = vmatprep.mubr.f32.mxu0 0.0
        %1989 = vmatmul.mubr.f32.gmra.mrb[0].mxu0 %v1922
        %v1990 = vpop.f32.mrb[0].mxu0
        %v1991 = vadd.f32 0.0, %v1990
        %v1992 = vpop.f32.mrb[0].mxu0
        %1993 = vdwg.mxu0
        %1994 = vrot.lane.b32.xlu0 %v1480, 96
        %v1995 = vpop.permute.xlu0 %1994
        %1996 = vrot.lane.b32.xlu0 %v1482, 96
        %v1997 = vpop.permute.xlu0 %1996
        %v2001 = vsel %vm1294, %v1834, 0
        %2003 = vmatprep.subr.mxu0 0.0
        %2004 = vmatpush1.msra.mxu0 %v1995
        %2005 = vmatprep.subr.mxu0 0.0
        %2006 = vmatpush1.msra.mxu0 %v1997
        %2007 = vmatprep.subr.mxu0 0.0
        %2008 = vmatpush1.msra.mxu0 0.0
        %2009 = vmatprep.subr.mxu0 0.0
        %2010 = vmatpush1.msra.mxu0 0.0
        %2011 = vmatprep.subr.mxu0 0.0
        %2012 = vmatpush1.msra.mxu0 0.0
        %2013 = vmatprep.subr.mxu0 0.0
        %2014 = vmatpush1.msra.mxu0 0.0
        %2015 = vmatprep.subr.mxu0 0.0
        %2016 = vmatpush1.msra.mxu0 0.0
        %2017 = vmatprep.subr.mxu0 0.0
        %2018 = vmatpush1.msra.mxu0 0.0
        %2019 = vmatprep.subr.mxu0 0.0
        %2020 = vmatpush1.msra.mxu0 0.0
        %2021 = vmatprep.subr.mxu0 0.0
        %2022 = vmatpush1.msra.mxu0 0.0
        %2023 = vmatprep.subr.mxu0 0.0
        %2024 = vmatpush1.msra.mxu0 0.0
        %2025 = vmatprep.subr.mxu0 0.0
        %2026 = vmatpush1.msra.mxu0 0.0
        %2027 = vmatprep.subr.mxu0 0.0
        %2028 = vmatpush1.msra.mxu0 0.0
        %2029 = vmatprep.subr.mxu0 0.0
        %2030 = vmatpush1.msra.mxu0 0.0
        %2031 = vmatprep.subr.mxu0 0.0
        %2032 = vmatpush1.msra.mxu0 0.0
        %2033 = vmatprep.subr.mxu0 0.0
        %2034 = vmatpush1.msra.mxu0 0.0
        %2035 = vmatprep.subr.mxu0 0.0
        %2036 = vmatpush1.msra.mxu0 0.0
        %2037 = vmatprep.subr.mxu0 0.0
        %2038 = vmatpush1.msra.mxu0 0.0
        %2039 = vmatprep.subr.mxu0 0.0
        %2040 = vmatpush1.msra.mxu0 0.0
        %2041 = vmatprep.subr.mxu0 0.0
        %2042 = vmatpush1.msra.mxu0 0.0
        %2043 = vmatprep.subr.mxu0 0.0
        %2044 = vmatpush1.msra.mxu0 0.0
        %2045 = vmatprep.subr.mxu0 0.0
        %2046 = vmatpush1.msra.mxu0 0.0
        %2047 = vmatprep.subr.mxu0 0.0
        %2048 = vmatpush1.msra.mxu0 0.0
        %2049 = vmatprep.subr.mxu0 0.0
        %2050 = vmatpush1.msra.mxu0 0.0
        %2051 = vmatprep.subr.mxu0 0.0
        %2052 = vmatpush1.msra.mxu0 0.0
        %2053 = vmatprep.subr.mxu0 0.0
        %2054 = vmatpush1.msra.mxu0 0.0
        %2055 = vmatprep.subr.mxu0 0.0
        %2056 = vmatpush1.msra.mxu0 0.0
        %2057 = vmatprep.subr.mxu0 0.0
        %2058 = vmatpush1.msra.mxu0 0.0
        %2059 = vmatprep.subr.mxu0 0.0
        %2060 = vmatpush1.msra.mxu0 0.0
        %2061 = vmatprep.subr.mxu0 0.0
        %2062 = vmatpush1.msra.mxu0 0.0
        %2063 = vmatprep.subr.mxu0 0.0
        %2064 = vmatpush1.msra.mxu0 0.0
        %2065 = vmatprep.subr.mxu0 0.0
        %2066 = vmatpush1.msra.mxu0 0.0
        %2067 = vmatprep.mubr.f32.mxu0 0.0
        %2068 = vmatmul.mubr.f32.gmra.mrb[0].mxu0 %v2001
        %v2069 = vpop.f32.mrb[0].mxu0
        %v2070 = vadd.f32 0.0, %v2069
        %v2071 = vpop.f32.mrb[0].mxu0
        %2072 = vdwg.mxu0
        %2073 = vrot.lane.b32.xlu0 %v1484, 96
        %v2074 = vpop.permute.xlu0 %2073
        %2075 = vrot.lane.b32.xlu0 %v1486, 96
        %v2076 = vpop.permute.xlu0 %2075
        %v2080 = vsel %vm1294, %v1835, 0
        %2082 = vmatprep.subr.mxu0 0.0
        %2083 = vmatpush1.msra.mxu0 %v2074
        %2084 = vmatprep.subr.mxu0 0.0
        %2085 = vmatpush1.msra.mxu0 %v2076
        %2086 = vmatprep.subr.mxu0 0.0
        %2087 = vmatpush1.msra.mxu0 0.0
        %2088 = vmatprep.subr.mxu0 0.0
        %2089 = vmatpush1.msra.mxu0 0.0
        %2090 = vmatprep.subr.mxu0 0.0
        %2091 = vmatpush1.msra.mxu0 0.0
        %2092 = vmatprep.subr.mxu0 0.0
        %2093 = vmatpush1.msra.mxu0 0.0
        %2094 = vmatprep.subr.mxu0 0.0
        %2095 = vmatpush1.msra.mxu0 0.0
        %2096 = vmatprep.subr.mxu0 0.0
        %2097 = vmatpush1.msra.mxu0 0.0
        %2098 = vmatprep.subr.mxu0 0.0
        %2099 = vmatpush1.msra.mxu0 0.0
        %2100 = vmatprep.subr.mxu0 0.0
        %2101 = vmatpush1.msra.mxu0 0.0
        %2102 = vmatprep.subr.mxu0 0.0
        %2103 = vmatpush1.msra.mxu0 0.0
        %2104 = vmatprep.subr.mxu0 0.0
        %2105 = vmatpush1.msra.mxu0 0.0
        %2106 = vmatprep.subr.mxu0 0.0
        %2107 = vmatpush1.msra.mxu0 0.0
        %2108 = vmatprep.subr.mxu0 0.0
        %2109 = vmatpush1.msra.mxu0 0.0
        %2110 = vmatprep.subr.mxu0 0.0
        %2111 = vmatpush1.msra.mxu0 0.0
        %2112 = vmatprep.subr.mxu0 0.0
        %2113 = vmatpush1.msra.mxu0 0.0
        %2114 = vmatprep.subr.mxu0 0.0
        %2115 = vmatpush1.msra.mxu0 0.0
        %2116 = vmatprep.subr.mxu0 0.0
        %2117 = vmatpush1.msra.mxu0 0.0
        %2118 = vmatprep.subr.mxu0 0.0
        %2119 = vmatpush1.msra.mxu0 0.0
        %2120 = vmatprep.subr.mxu0 0.0
        %2121 = vmatpush1.msra.mxu0 0.0
        %2122 = vmatprep.subr.mxu0 0.0
        %2123 = vmatpush1.msra.mxu0 0.0
        %2124 = vmatprep.subr.mxu0 0.0
        %2125 = vmatpush1.msra.mxu0 0.0
        %2126 = vmatprep.subr.mxu0 0.0
        %2127 = vmatpush1.msra.mxu0 0.0
        %2128 = vmatprep.subr.mxu0 0.0
        %2129 = vmatpush1.msra.mxu0 0.0
        %2130 = vmatprep.subr.mxu0 0.0
        %2131 = vmatpush1.msra.mxu0 0.0
        %2132 = vmatprep.subr.mxu0 0.0
        %2133 = vmatpush1.msra.mxu0 0.0
        %2134 = vmatprep.subr.mxu0 0.0
        %2135 = vmatpush1.msra.mxu0 0.0
        %2136 = vmatprep.subr.mxu0 0.0
        %2137 = vmatpush1.msra.mxu0 0.0
        %2138 = vmatprep.subr.mxu0 0.0
        %2139 = vmatpush1.msra.mxu0 0.0
        %2140 = vmatprep.subr.mxu0 0.0
        %2141 = vmatpush1.msra.mxu0 0.0
        %2142 = vmatprep.subr.mxu0 0.0
        %2143 = vmatpush1.msra.mxu0 0.0
        %2144 = vmatprep.subr.mxu0 0.0
        %2145 = vmatpush1.msra.mxu0 0.0
        %2146 = vmatprep.mubr.f32.mxu0 0.0
        %2147 = vmatmul.mubr.f32.gmra.mrb[0].mxu0 %v2080
        %v2148 = vpop.f32.mrb[0].mxu0
        %v2149 = vadd.f32 0.0, %v2148
        %v2150 = vpop.f32.mrb[0].mxu0
        %2151 = vdwg.mxu0
        %v2152 = vld [vmem:[#allocation15] sm:$0xff]
        %v2153 = vld [vmem:[#allocation15 + $0x8] sm:$0xff]
        %v2154 = vld [vmem:[#allocation15 + $0x10] sm:$0xff]
        %v2155 = vld [vmem:[#allocation15 + $0x18] sm:$0xff]
        %v2156 = vld [vmem:[%s11] sm:$0x1]
        %v2158 = vsel %vm1487, %v1912, 0
        %2160 = vmatprep.subr.mxu0 0.0
        %2161 = vmatpush1.msra.mxu0 %v2152
        %2162 = vmatprep.subr.mxu0 0.0
        %2163 = vmatpush1.msra.mxu0 0.0
        %2164 = vmatprep.subr.mxu0 0.0
        %2165 = vmatpush1.msra.mxu0 0.0
        %2166 = vmatprep.subr.mxu0 0.0
        %2167 = vmatpush1.msra.mxu0 0.0
        %2168 = vmatprep.subr.mxu0 0.0
        %2169 = vmatpush1.msra.mxu0 0.0
        %2170 = vmatprep.subr.mxu0 0.0
        %2171 = vmatpush1.msra.mxu0 0.0
        %2172 = vmatprep.subr.mxu0 0.0
        %2173 = vmatpush1.msra.mxu0 0.0
        %2174 = vmatprep.subr.mxu0 0.0
        %2175 = vmatpush1.msra.mxu0 0.0
        %2176 = vmatprep.subr.mxu0 0.0
        %2177 = vmatpush1.msra.mxu0 0.0
        %2178 = vmatprep.subr.mxu0 0.0
        %2179 = vmatpush1.msra.mxu0 0.0
        %2180 = vmatprep.subr.mxu0 0.0
        %2181 = vmatpush1.msra.mxu0 0.0
        %2182 = vmatprep.subr.mxu0 0.0
        %2183 = vmatpush1.msra.mxu0 0.0
        %2184 = vmatprep.subr.mxu0 0.0
        %2185 = vmatpush1.msra.mxu0 0.0
        %2186 = vmatprep.subr.mxu0 0.0
        %2187 = vmatpush1.msra.mxu0 0.0
        %2188 = vmatprep.subr.mxu0 0.0
        %2189 = vmatpush1.msra.mxu0 0.0
        %2190 = vmatprep.subr.mxu0 0.0
        %2191 = vmatpush1.msra.mxu0 0.0
        %2192 = vmatprep.subr.mxu0 0.0
        %2193 = vmatpush1.msra.mxu0 0.0
        %2194 = vmatprep.subr.mxu0 0.0
        %2195 = vmatpush1.msra.mxu0 0.0
        %2196 = vmatprep.subr.mxu0 0.0
        %2197 = vmatpush1.msra.mxu0 0.0
        %2198 = vmatprep.subr.mxu0 0.0
        %2199 = vmatpush1.msra.mxu0 0.0
        %2200 = vmatprep.subr.mxu0 0.0
        %2201 = vmatpush1.msra.mxu0 0.0
        %2202 = vmatprep.subr.mxu0 0.0
        %2203 = vmatpush1.msra.mxu0 0.0
        %2204 = vmatprep.subr.mxu0 0.0
        %2205 = vmatpush1.msra.mxu0 0.0
        %2206 = vmatprep.subr.mxu0 0.0
        %2207 = vmatpush1.msra.mxu0 0.0
        %2208 = vmatprep.subr.mxu0 0.0
        %2209 = vmatpush1.msra.mxu0 0.0
        %2210 = vmatprep.subr.mxu0 0.0
        %2211 = vmatpush1.msra.mxu0 0.0
        %2212 = vmatprep.subr.mxu0 0.0
        %2213 = vmatpush1.msra.mxu0 0.0
        %2214 = vmatprep.subr.mxu0 0.0
        %2215 = vmatpush1.msra.mxu0 0.0
        %2216 = vmatprep.subr.mxu0 0.0
        %2217 = vmatpush1.msra.mxu0 0.0
        %2218 = vmatprep.subr.mxu0 0.0
        %2219 = vmatpush1.msra.mxu0 0.0
        %2220 = vmatprep.subr.mxu0 0.0
        %2221 = vmatpush1.msra.mxu0 0.0
        %2222 = vmatprep.subr.mxu0 0.0
        %2223 = vmatpush1.msra.mxu0 0.0
        %2224 = vmatprep.mubr.f32.mxu0 0.0
        %2225 = vmatmul.mubr.f32.gmra.mrb[0].mxu0 %v2158
        %v2226 = vpop.f32.mrb[0].mxu0
        %v2227 = vadd.f32 0.0, %v2226
        %v2228 = vpop.f32.mrb[0].mxu0
        %2229 = vdwg.mxu0
        %v2231 = vsel %vm1487, %v1991, 0
        %2233 = vmatprep.subr.mxu0 0.0
        %2234 = vmatpush1.msra.mxu0 %v2153
        %2235 = vmatprep.subr.mxu0 0.0
        %2236 = vmatpush1.msra.mxu0 0.0
        %2237 = vmatprep.subr.mxu0 0.0
        %2238 = vmatpush1.msra.mxu0 0.0
        %2239 = vmatprep.subr.mxu0 0.0
        %2240 = vmatpush1.msra.mxu0 0.0
        %2241 = vmatprep.subr.mxu0 0.0
        %2242 = vmatpush1.msra.mxu0 0.0
        %2243 = vmatprep.subr.mxu0 0.0
        %2244 = vmatpush1.msra.mxu0 0.0
        %2245 = vmatprep.subr.mxu0 0.0
        %2246 = vmatpush1.msra.mxu0 0.0
        %2247 = vmatprep.subr.mxu0 0.0
        %2248 = vmatpush1.msra.mxu0 0.0
        %2249 = vmatprep.subr.mxu0 0.0
        %2250 = vmatpush1.msra.mxu0 0.0
        %2251 = vmatprep.subr.mxu0 0.0
        %2252 = vmatpush1.msra.mxu0 0.0
        %2253 = vmatprep.subr.mxu0 0.0
        %2254 = vmatpush1.msra.mxu0 0.0
        %2255 = vmatprep.subr.mxu0 0.0
        %2256 = vmatpush1.msra.mxu0 0.0
        %2257 = vmatprep.subr.mxu0 0.0
        %2258 = vmatpush1.msra.mxu0 0.0
        %2259 = vmatprep.subr.mxu0 0.0
        %2260 = vmatpush1.msra.mxu0 0.0
        %2261 = vmatprep.subr.mxu0 0.0
        %2262 = vmatpush1.msra.mxu0 0.0
        %2263 = vmatprep.subr.mxu0 0.0
        %2264 = vmatpush1.msra.mxu0 0.0
        %2265 = vmatprep.subr.mxu0 0.0
        %2266 = vmatpush1.msra.mxu0 0.0
        %2267 = vmatprep.subr.mxu0 0.0
        %2268 = vmatpush1.msra.mxu0 0.0
        %2269 = vmatprep.subr.mxu0 0.0
        %2270 = vmatpush1.msra.mxu0 0.0
        %2271 = vmatprep.subr.mxu0 0.0
        %2272 = vmatpush1.msra.mxu0 0.0
        %2273 = vmatprep.subr.mxu0 0.0
        %2274 = vmatpush1.msra.mxu0 0.0
        %2275 = vmatprep.subr.mxu0 0.0
        %2276 = vmatpush1.msra.mxu0 0.0
        %2277 = vmatprep.subr.mxu0 0.0
        %2278 = vmatpush1.msra.mxu0 0.0
        %2279 = vmatprep.subr.mxu0 0.0
        %2280 = vmatpush1.msra.mxu0 0.0
        %2281 = vmatprep.subr.mxu0 0.0
        %2282 = vmatpush1.msra.mxu0 0.0
        %2283 = vmatprep.subr.mxu0 0.0
        %2284 = vmatpush1.msra.mxu0 0.0
        %2285 = vmatprep.subr.mxu0 0.0
        %2286 = vmatpush1.msra.mxu0 0.0
        %2287 = vmatprep.subr.mxu0 0.0
        %2288 = vmatpush1.msra.mxu0 0.0
        %2289 = vmatprep.subr.mxu0 0.0
        %2290 = vmatpush1.msra.mxu0 0.0
        %2291 = vmatprep.subr.mxu0 0.0
        %2292 = vmatpush1.msra.mxu0 0.0
        %2293 = vmatprep.subr.mxu0 0.0
        %2294 = vmatpush1.msra.mxu0 0.0
        %2295 = vmatprep.subr.mxu0 0.0
        %2296 = vmatpush1.msra.mxu0 0.0
        %2297 = vmatprep.mubr.f32.mxu0 0.0
        %2298 = vmatmul.mubr.f32.gmra.mrb[0].mxu0 %v2231
        %v2299 = vpop.f32.mrb[0].mxu0
        %v2300 = vadd.f32 0.0, %v2299
        %v2301 = vpop.f32.mrb[0].mxu0
        %2302 = vdwg.mxu0
        %v2304 = vsel %vm1487, %v2070, 0
        %2306 = vmatprep.subr.mxu0 0.0
        %2307 = vmatpush1.msra.mxu0 %v2154
        %2308 = vmatprep.subr.mxu0 0.0
        %2309 = vmatpush1.msra.mxu0 0.0
        %2310 = vmatprep.subr.mxu0 0.0
        %2311 = vmatpush1.msra.mxu0 0.0
        %2312 = vmatprep.subr.mxu0 0.0
        %2313 = vmatpush1.msra.mxu0 0.0
        %2314 = vmatprep.subr.mxu0 0.0
        %2315 = vmatpush1.msra.mxu0 0.0
        %2316 = vmatprep.subr.mxu0 0.0
        %2317 = vmatpush1.msra.mxu0 0.0
        %2318 = vmatprep.subr.mxu0 0.0
        %2319 = vmatpush1.msra.mxu0 0.0
        %2320 = vmatprep.subr.mxu0 0.0
        %2321 = vmatpush1.msra.mxu0 0.0
        %2322 = vmatprep.subr.mxu0 0.0
        %2323 = vmatpush1.msra.mxu0 0.0
        %2324 = vmatprep.subr.mxu0 0.0
        %2325 = vmatpush1.msra.mxu0 0.0
        %2326 = vmatprep.subr.mxu0 0.0
        %2327 = vmatpush1.msra.mxu0 0.0
        %2328 = vmatprep.subr.mxu0 0.0
        %2329 = vmatpush1.msra.mxu0 0.0
        %2330 = vmatprep.subr.mxu0 0.0
        %2331 = vmatpush1.msra.mxu0 0.0
        %2332 = vmatprep.subr.mxu0 0.0
        %2333 = vmatpush1.msra.mxu0 0.0
        %2334 = vmatprep.subr.mxu0 0.0
        %2335 = vmatpush1.msra.mxu0 0.0
        %2336 = vmatprep.subr.mxu0 0.0
        %2337 = vmatpush1.msra.mxu0 0.0
        %2338 = vmatprep.subr.mxu0 0.0
        %2339 = vmatpush1.msra.mxu0 0.0
        %2340 = vmatprep.subr.mxu0 0.0
        %2341 = vmatpush1.msra.mxu0 0.0
        %2342 = vmatprep.subr.mxu0 0.0
        %2343 = vmatpush1.msra.mxu0 0.0
        %2344 = vmatprep.subr.mxu0 0.0
        %2345 = vmatpush1.msra.mxu0 0.0
        %2346 = vmatprep.subr.mxu0 0.0
        %2347 = vmatpush1.msra.mxu0 0.0
        %2348 = vmatprep.subr.mxu0 0.0
        %2349 = vmatpush1.msra.mxu0 0.0
        %2350 = vmatprep.subr.mxu0 0.0
        %2351 = vmatpush1.msra.mxu0 0.0
        %2352 = vmatprep.subr.mxu0 0.0
        %2353 = vmatpush1.msra.mxu0 0.0
        %2354 = vmatprep.subr.mxu0 0.0
        %2355 = vmatpush1.msra.mxu0 0.0
        %2356 = vmatprep.subr.mxu0 0.0
        %2357 = vmatpush1.msra.mxu0 0.0
        %2358 = vmatprep.subr.mxu0 0.0
        %2359 = vmatpush1.msra.mxu0 0.0
        %2360 = vmatprep.subr.mxu0 0.0
        %2361 = vmatpush1.msra.mxu0 0.0
        %2362 = vmatprep.subr.mxu0 0.0
        %2363 = vmatpush1.msra.mxu0 0.0
        %2364 = vmatprep.subr.mxu0 0.0
        %2365 = vmatpush1.msra.mxu0 0.0
        %2366 = vmatprep.subr.mxu0 0.0
        %2367 = vmatpush1.msra.mxu0 0.0
        %2368 = vmatprep.subr.mxu0 0.0
        %2369 = vmatpush1.msra.mxu0 0.0
        %2370 = vmatprep.mubr.f32.mxu0 0.0
        %2371 = vmatmul.mubr.f32.gmra.mrb[0].mxu0 %v2304
        %v2372 = vpop.f32.mrb[0].mxu0
        %v2373 = vadd.f32 0.0, %v2372
        %v2374 = vpop.f32.mrb[0].mxu0
        %2375 = vdwg.mxu0
        %v2377 = vsel %vm1487, %v2149, 0
        %2379 = vmatprep.subr.mxu0 0.0
        %2380 = vmatpush1.msra.mxu0 %v2155
        %2381 = vmatprep.subr.mxu0 0.0
        %2382 = vmatpush1.msra.mxu0 0.0
        %2383 = vmatprep.subr.mxu0 0.0
        %2384 = vmatpush1.msra.mxu0 0.0
        %2385 = vmatprep.subr.mxu0 0.0
        %2386 = vmatpush1.msra.mxu0 0.0
        %2387 = vmatprep.subr.mxu0 0.0
        %2388 = vmatpush1.msra.mxu0 0.0
        %2389 = vmatprep.subr.mxu0 0.0
        %2390 = vmatpush1.msra.mxu0 0.0
        %2391 = vmatprep.subr.mxu0 0.0
        %2392 = vmatpush1.msra.mxu0 0.0
        %2393 = vmatprep.subr.mxu0 0.0
        %2394 = vmatpush1.msra.mxu0 0.0
        %2395 = vmatprep.subr.mxu0 0.0
        %2396 = vmatpush1.msra.mxu0 0.0
        %2397 = vmatprep.subr.mxu0 0.0
        %2398 = vmatpush1.msra.mxu0 0.0
        %2399 = vmatprep.subr.mxu0 0.0
        %2400 = vmatpush1.msra.mxu0 0.0
        %2401 = vmatprep.subr.mxu0 0.0
        %2402 = vmatpush1.msra.mxu0 0.0
        %2403 = vmatprep.subr.mxu0 0.0
        %2404 = vmatpush1.msra.mxu0 0.0
        %2405 = vmatprep.subr.mxu0 0.0
        %2406 = vmatpush1.msra.mxu0 0.0
        %2407 = vmatprep.subr.mxu0 0.0
        %2408 = vmatpush1.msra.mxu0 0.0
        %2409 = vmatprep.subr.mxu0 0.0
        %2410 = vmatpush1.msra.mxu0 0.0
        %2411 = vmatprep.subr.mxu0 0.0
        %2412 = vmatpush1.msra.mxu0 0.0
        %2413 = vmatprep.subr.mxu0 0.0
        %2414 = vmatpush1.msra.mxu0 0.0
        %2415 = vmatprep.subr.mxu0 0.0
        %2416 = vmatpush1.msra.mxu0 0.0
        %2417 = vmatprep.subr.mxu0 0.0
        %2418 = vmatpush1.msra.mxu0 0.0
        %2419 = vmatprep.subr.mxu0 0.0
        %2420 = vmatpush1.msra.mxu0 0.0
        %2421 = vmatprep.subr.mxu0 0.0
        %2422 = vmatpush1.msra.mxu0 0.0
        %2423 = vmatprep.subr.mxu0 0.0
        %2424 = vmatpush1.msra.mxu0 0.0
        %2425 = vmatprep.subr.mxu0 0.0
        %2426 = vmatpush1.msra.mxu0 0.0
        %2427 = vmatprep.subr.mxu0 0.0
        %2428 = vmatpush1.msra.mxu0 0.0
        %2429 = vmatprep.subr.mxu0 0.0
        %2430 = vmatpush1.msra.mxu0 0.0
        %2431 = vmatprep.subr.mxu0 0.0
        %2432 = vmatpush1.msra.mxu0 0.0
        %2433 = vmatprep.subr.mxu0 0.0
        %2434 = vmatpush1.msra.mxu0 0.0
        %2435 = vmatprep.subr.mxu0 0.0
        %2436 = vmatpush1.msra.mxu0 0.0
        %2437 = vmatprep.subr.mxu0 0.0
        %2438 = vmatpush1.msra.mxu0 0.0
        %2439 = vmatprep.subr.mxu0 0.0
        %2440 = vmatpush1.msra.mxu0 0.0
        %2441 = vmatprep.subr.mxu0 0.0
        %2442 = vmatpush1.msra.mxu0 0.0
        %2443 = vmatprep.mubr.f32.mxu0 0.0
        %2444 = vmatmul.mubr.f32.gmra.mrb[0].mxu0 %v2377
        %v2445 = vpop.f32.mrb[0].mxu0
        %v2446 = vadd.f32 0.0, %v2445
        %v2447 = vpop.f32.mrb[0].mxu0
        %2448 = vdwg.mxu0
        %v2449 = vsel %vm1112, %v2227, 0.0
        %v2450 = vsel %vm1112, %v2300, 0.0
        %v2451 = vadd.f32 %v2449, %v2450
        %v2452 = vsel %vm1112, %v2373, 0.0
        %v2453 = vadd.f32 %v2451, %v2452
        %v2454 = vsel %vm1112, %v2446, 0.0
        %v2455 = vadd.f32 %v2453, %v2454
        %v2457 = vlaneseq
        %v2458 = vshrl.u32 %v2457, 7
        %v2459 = vsub.s32 0, %v2458
        %v2460 = vrot.slane %v2156, %v2459
        %v2462 = vadd.f32 %v2455, %v2460
        %v2463 = vadd.f32 %v1105, %v2462
        %v2464 = vld [vmem:[%s12] sm:$0x1]
        %v2465 = vld [vmem:[%s13] sm:$0x1]
        %v2466 = vsel %vm1112, %v2463, 0.0
        %2467 = vadd.xlane.f32.xlu0 %v2466
        %v2468 = vpop.xlane.xlu0 %2467
        %v2469 = vrcp.pop 32.0
        %v2470 = vmul.f32 %v2468, %v2469
        %v2471 = vsub.f32 %v2463, %v2470
        %v2472 = vmul.f32 %v2471, %v2471
        %v2473 = vsel %vm1112, %v2472, 0.0
        %2474 = vadd.xlane.f32.xlu0 %v2473
        %v2475 = vpop.xlane.xlu0 %2474
        %v2476 = vmul.f32 %v2475, %v2469
        %v2477 = vadd.f32 %v2476, 1e-05
        %v2478 = vrsqrt.pop %v2477
        %v2479 = vmul.f32 %v2471, %v2478
        %v2481 = vlaneseq
        %v2482 = vshrl.u32 %v2481, 7
        %v2483 = vsub.s32 0, %v2482
        %v2484 = vrot.slane %v2464, %v2483
        %v2486 = vmul.f32 %v2479, %v2484
        %v2488 = vlaneseq
        %v2489 = vshrl.u32 %v2488, 7
        %v2490 = vsub.s32 0, %v2489
        %v2491 = vrot.slane %v2465, %v2490
        %v2493 = vadd.f32 %v2486, %v2491
        %v2494 = vld [vmem:[#allocation16] sm:$0xff]
        %v2495 = vld [vmem:[#allocation16 + $0x8] sm:$0xff]
        %v2496 = vld [vmem:[#allocation16 + $0x10] sm:$0xff]
        %v2497 = vld [vmem:[#allocation16 + $0x18] sm:$0xff]
        %v2498 = vld [vmem:[%s15] sm:$0x1]
        %v2500 = vlaneseq
        %v2501 = vshrl.u32 %v2500, 7
        %v2502 = vsub.s32 0, %v2501
        %v2503 = vrot.slane %v2498, %v2502
        %v2506 = vsel %vm1112, %v2493, 0
        %2508 = vmatprep.subr.mxu0 0.0
        %2509 = vmatpush1.msra.mxu0 %v2494
        %2510 = vmatprep.subr.mxu0 0.0
        %2511 = vmatpush1.msra.mxu0 %v2495
        %2512 = vmatprep.subr.mxu0 0.0
        %2513 = vmatpush1.msra.mxu0 %v2496
        %2514 = vmatprep.subr.mxu0 0.0
        %2515 = vmatpush1.msra.mxu0 %v2497
        %2516 = vmatprep.subr.mxu0 0.0
        %2517 = vmatpush1.msra.mxu0 0.0
        %2518 = vmatprep.subr.mxu0 0.0
        %2519 = vmatpush1.msra.mxu0 0.0
        %2520 = vmatprep.subr.mxu0 0.0
        %2521 = vmatpush1.msra.mxu0 0.0
        %2522 = vmatprep.subr.mxu0 0.0
        %2523 = vmatpush1.msra.mxu0 0.0
        %2524 = vmatprep.subr.mxu0 0.0
        %2525 = vmatpush1.msra.mxu0 0.0
        %2526 = vmatprep.subr.mxu0 0.0
        %2527 = vmatpush1.msra.mxu0 0.0
        %2528 = vmatprep.subr.mxu0 0.0
        %2529 = vmatpush1.msra.mxu0 0.0
        %2530 = vmatprep.subr.mxu0 0.0
        %2531 = vmatpush1.msra.mxu0 0.0
        %2532 = vmatprep.subr.mxu0 0.0
        %2533 = vmatpush1.msra.mxu0 0.0
        %2534 = vmatprep.subr.mxu0 0.0
        %2535 = vmatpush1.msra.mxu0 0.0
        %2536 = vmatprep.subr.mxu0 0.0
        %2537 = vmatpush1.msra.mxu0 0.0
        %2538 = vmatprep.subr.mxu0 0.0
        %2539 = vmatpush1.msra.mxu0 0.0
        %2540 = vmatprep.subr.mxu0 0.0
        %2541 = vmatpush1.msra.mxu0 0.0
        %2542 = vmatprep.subr.mxu0 0.0
        %2543 = vmatpush1.msra.mxu0 0.0
        %2544 = vmatprep.subr.mxu0 0.0
        %2545 = vmatpush1.msra.mxu0 0.0
        %2546 = vmatprep.subr.mxu0 0.0
        %2547 = vmatpush1.msra.mxu0 0.0
        %2548 = vmatprep.subr.mxu0 0.0
        %2549 = vmatpush1.msra.mxu0 0.0
        %2550 = vmatprep.subr.mxu0 0.0
        %2551 = vmatpush1.msra.mxu0 0.0
        %2552 = vmatprep.subr.mxu0 0.0
        %2553 = vmatpush1.msra.mxu0 0.0
        %2554 = vmatprep.subr.mxu0 0.0
        %2555 = vmatpush1.msra.mxu0 0.0
        %2556 = vmatprep.subr.mxu0 0.0
        %2557 = vmatpush1.msra.mxu0 0.0
        %2558 = vmatprep.subr.mxu0 0.0
        %2559 = vmatpush1.msra.mxu0 0.0
        %2560 = vmatprep.subr.mxu0 0.0
        %2561 = vmatpush1.msra.mxu0 0.0
        %2562 = vmatprep.subr.mxu0 0.0
        %2563 = vmatpush1.msra.mxu0 0.0
        %2564 = vmatprep.subr.mxu0 0.0
        %2565 = vmatpush1.msra.mxu0 0.0
        %2566 = vmatprep.subr.mxu0 0.0
        %2567 = vmatpush1.msra.mxu0 0.0
        %2568 = vmatprep.subr.mxu0 0.0
        %2569 = vmatpush1.msra.mxu0 0.0
        %2570 = vmatprep.subr.mxu0 0.0
        %2571 = vmatpush1.msra.mxu0 0.0
        %2572 = vmatprep.mubr.f32.mxu0 0.0
        %2573 = vmatmul.mubr.f32.gmra.mrb[0].mxu0 %v2506
        %v2574 = vpop.f32.mrb[0].mxu0
        %v2575 = vadd.f32 %v2503, %v2574
        %v2576 = vpop.f32.mrb[0].mxu0
        %2577 = vdwg.mxu0
        %2579 = vrot.lane.b32.xlu0 %v2575, 120
        %v2580 = vpop.permute.xlu0 %2579
        %2581 = vrot.lane.b32.xlu0 %v2575, 112
        %v2582 = vpop.permute.xlu0 %2581
        %2583 = vrot.lane.b32.xlu0 %v2575, 104
        %v2584 = vpop.permute.xlu0 %2583
        %2585 = vrot.lane.b32.xlu0 %v2575, 96
        %v2586 = vpop.permute.xlu0 %2585
        %v2587 = vsel %vm1487, %v2575, 0
        %v2589 = vsel %vm1487, %v2586, 0
        %2591 = vmatprep.subr.mxu0 0.0
        %2592 = vmatpush1.xpose.msra.mxu0 %v2589
        %2593 = vmatprep.subr.mxu0 0.0
        %2594 = vmatpush1.xpose.msra.mxu0 0.0
        %2595 = vmatprep.subr.mxu0 0.0
        %2596 = vmatpush1.xpose.msra.mxu0 0.0
        %2597 = vmatprep.subr.mxu0 0.0
        %2598 = vmatpush1.xpose.msra.mxu0 0.0
        %2599 = vmatprep.subr.mxu0 0.0
        %2600 = vmatpush1.xpose.msra.mxu0 0.0
        %2601 = vmatprep.subr.mxu0 0.0
        %2602 = vmatpush1.xpose.msra.mxu0 0.0
        %2603 = vmatprep.subr.mxu0 0.0
        %2604 = vmatpush1.xpose.msra.mxu0 0.0
        %2605 = vmatprep.subr.mxu0 0.0
        %2606 = vmatpush1.xpose.msra.mxu0 0.0
        %2607 = vmatprep.subr.mxu0 0.0
        %2608 = vmatpush1.xpose.msra.mxu0 0.0
        %2609 = vmatprep.subr.mxu0 0.0
        %2610 = vmatpush1.xpose.msra.mxu0 0.0
        %2611 = vmatprep.subr.mxu0 0.0
        %2612 = vmatpush1.xpose.msra.mxu0 0.0
        %2613 = vmatprep.subr.mxu0 0.0
        %2614 = vmatpush1.xpose.msra.mxu0 0.0
        %2615 = vmatprep.subr.mxu0 0.0
        %2616 = vmatpush1.xpose.msra.mxu0 0.0
        %2617 = vmatprep.subr.mxu0 0.0
        %2618 = vmatpush1.xpose.msra.mxu0 0.0
        %2619 = vmatprep.subr.mxu0 0.0
        %2620 = vmatpush1.xpose.msra.mxu0 0.0
        %2621 = vmatprep.subr.mxu0 0.0
        %2622 = vmatpush1.xpose.msra.mxu0 0.0
        %2623 = vmatprep.subr.mxu0 0.0
        %2624 = vmatpush1.xpose.msra.mxu0 0.0
        %2625 = vmatprep.subr.mxu0 0.0
        %2626 = vmatpush1.xpose.msra.mxu0 0.0
        %2627 = vmatprep.subr.mxu0 0.0
        %2628 = vmatpush1.xpose.msra.mxu0 0.0
        %2629 = vmatprep.subr.mxu0 0.0
        %2630 = vmatpush1.xpose.msra.mxu0 0.0
        %2631 = vmatprep.subr.mxu0 0.0
        %2632 = vmatpush1.xpose.msra.mxu0 0.0
        %2633 = vmatprep.subr.mxu0 0.0
        %2634 = vmatpush1.xpose.msra.mxu0 0.0
        %2635 = vmatprep.subr.mxu0 0.0
        %2636 = vmatpush1.xpose.msra.mxu0 0.0
        %2637 = vmatprep.subr.mxu0 0.0
        %2638 = vmatpush1.xpose.msra.mxu0 0.0
        %2639 = vmatprep.subr.mxu0 0.0
        %2640 = vmatpush1.xpose.msra.mxu0 0.0
        %2641 = vmatprep.subr.mxu0 0.0
        %2642 = vmatpush1.xpose.msra.mxu0 0.0
        %2643 = vmatprep.subr.mxu0 0.0
        %2644 = vmatpush1.xpose.msra.mxu0 0.0
        %2645 = vmatprep.subr.mxu0 0.0
        %2646 = vmatpush1.xpose.msra.mxu0 0.0
        %2647 = vmatprep.subr.mxu0 0.0
        %2648 = vmatpush1.xpose.msra.mxu0 0.0
        %2649 = vmatprep.subr.mxu0 0.0
        %2650 = vmatpush1.xpose.msra.mxu0 0.0
        %2651 = vmatprep.subr.mxu0 0.0
        %2652 = vmatpush1.xpose.msra.mxu0 0.0
        %2653 = vmatprep.subr.mxu0 0.0
        %2654 = vmatpush1.xpose.msra.mxu0 0.0
        %2655 = vmatprep.mubr.f32.mxu0 0.0
        %2656 = vmatmul.mubr.f32.gmra.mrb[0].mxu0 %v2587
        %v2657 = vpop.f32.mrb[0].mxu0
        %v2658 = vadd.f32 0.0, %v2657
        %v2659 = vpop.f32.mrb[0].mxu0
        %2660 = vdwg.mxu0
        %2661 = vrot.lane.b32.xlu0 %v2580, 96
        %v2662 = vpop.permute.xlu0 %2661
        %v2663 = vsel %vm1487, %v2580, 0
        %v2665 = vsel %vm1487, %v2662, 0
        %2667 = vmatprep.subr.mxu0 0.0
        %2668 = vmatpush1.xpose.msra.mxu0 %v2665
        %2669 = vmatprep.subr.mxu0 0.0
        %2670 = vmatpush1.xpose.msra.mxu0 0.0
        %2671 = vmatprep.subr.mxu0 0.0
        %2672 = vmatpush1.xpose.msra.mxu0 0.0
        %2673 = vmatprep.subr.mxu0 0.0
        %2674 = vmatpush1.xpose.msra.mxu0 0.0
        %2675 = vmatprep.subr.mxu0 0.0
        %2676 = vmatpush1.xpose.msra.mxu0 0.0
        %2677 = vmatprep.subr.mxu0 0.0
        %2678 = vmatpush1.xpose.msra.mxu0 0.0
        %2679 = vmatprep.subr.mxu0 0.0
        %2680 = vmatpush1.xpose.msra.mxu0 0.0
        %2681 = vmatprep.subr.mxu0 0.0
        %2682 = vmatpush1.xpose.msra.mxu0 0.0
        %2683 = vmatprep.subr.mxu0 0.0
        %2684 = vmatpush1.xpose.msra.mxu0 0.0
        %2685 = vmatprep.subr.mxu0 0.0
        %2686 = vmatpush1.xpose.msra.mxu0 0.0
        %2687 = vmatprep.subr.mxu0 0.0
        %2688 = vmatpush1.xpose.msra.mxu0 0.0
        %2689 = vmatprep.subr.mxu0 0.0
        %2690 = vmatpush1.xpose.msra.mxu0 0.0
        %2691 = vmatprep.subr.mxu0 0.0
        %2692 = vmatpush1.xpose.msra.mxu0 0.0
        %2693 = vmatprep.subr.mxu0 0.0
        %2694 = vmatpush1.xpose.msra.mxu0 0.0
        %2695 = vmatprep.subr.mxu0 0.0
        %2696 = vmatpush1.xpose.msra.mxu0 0.0
        %2697 = vmatprep.subr.mxu0 0.0
        %2698 = vmatpush1.xpose.msra.mxu0 0.0
        %2699 = vmatprep.subr.mxu0 0.0
        %2700 = vmatpush1.xpose.msra.mxu0 0.0
        %2701 = vmatprep.subr.mxu0 0.0
        %2702 = vmatpush1.xpose.msra.mxu0 0.0
        %2703 = vmatprep.subr.mxu0 0.0
        %2704 = vmatpush1.xpose.msra.mxu0 0.0
        %2705 = vmatprep.subr.mxu0 0.0
        %2706 = vmatpush1.xpose.msra.mxu0 0.0
        %2707 = vmatprep.subr.mxu0 0.0
        %2708 = vmatpush1.xpose.msra.mxu0 0.0
        %2709 = vmatprep.subr.mxu0 0.0
        %2710 = vmatpush1.xpose.msra.mxu0 0.0
        %2711 = vmatprep.subr.mxu0 0.0
        %2712 = vmatpush1.xpose.msra.mxu0 0.0
        %2713 = vmatprep.subr.mxu0 0.0
        %2714 = vmatpush1.xpose.msra.mxu0 0.0
        %2715 = vmatprep.subr.mxu0 0.0
        %2716 = vmatpush1.xpose.msra.mxu0 0.0
        %2717 = vmatprep.subr.mxu0 0.0
        %2718 = vmatpush1.xpose.msra.mxu0 0.0
        %2719 = vmatprep.subr.mxu0 0.0
        %2720 = vmatpush1.xpose.msra.mxu0 0.0
        %2721 = vmatprep.subr.mxu0 0.0
        %2722 = vmatpush1.xpose.msra.mxu0 0.0
        %2723 = vmatprep.subr.mxu0 0.0
        %2724 = vmatpush1.xpose.msra.mxu0 0.0
        %2725 = vmatprep.subr.mxu0 0.0
        %2726 = vmatpush1.xpose.msra.mxu0 0.0
        %2727 = vmatprep.subr.mxu0 0.0
        %2728 = vmatpush1.xpose.msra.mxu0 0.0
        %2729 = vmatprep.subr.mxu0 0.0
        %2730 = vmatpush1.xpose.msra.mxu0 0.0
        %2731 = vmatprep.mubr.f32.mxu0 0.0
        %2732 = vmatmul.mubr.f32.gmra.mrb[0].mxu0 %v2663
        %v2733 = vpop.f32.mrb[0].mxu0
        %v2734 = vadd.f32 0.0, %v2733
        %v2735 = vpop.f32.mrb[0].mxu0
        %2736 = vdwg.mxu0
        %2737 = vrot.lane.b32.xlu0 %v2582, 96
        %v2738 = vpop.permute.xlu0 %2737
        %v2739 = vsel %vm1487, %v2582, 0
        %v2741 = vsel %vm1487, %v2738, 0
        %2743 = vmatprep.subr.mxu0 0.0
        %2744 = vmatpush1.xpose.msra.mxu0 %v2741
        %2745 = vmatprep.subr.mxu0 0.0
        %2746 = vmatpush1.xpose.msra.mxu0 0.0
        %2747 = vmatprep.subr.mxu0 0.0
        %2748 = vmatpush1.xpose.msra.mxu0 0.0
        %2749 = vmatprep.subr.mxu0 0.0
        %2750 = vmatpush1.xpose.msra.mxu0 0.0
        %2751 = vmatprep.subr.mxu0 0.0
        %2752 = vmatpush1.xpose.msra.mxu0 0.0
        %2753 = vmatprep.subr.mxu0 0.0
        %2754 = vmatpush1.xpose.msra.mxu0 0.0
        %2755 = vmatprep.subr.mxu0 0.0
        %2756 = vmatpush1.xpose.msra.mxu0 0.0
        %2757 = vmatprep.subr.mxu0 0.0
        %2758 = vmatpush1.xpose.msra.mxu0 0.0
        %2759 = vmatprep.subr.mxu0 0.0
        %2760 = vmatpush1.xpose.msra.mxu0 0.0
        %2761 = vmatprep.subr.mxu0 0.0
        %2762 = vmatpush1.xpose.msra.mxu0 0.0
        %2763 = vmatprep.subr.mxu0 0.0
        %2764 = vmatpush1.xpose.msra.mxu0 0.0
        %2765 = vmatprep.subr.mxu0 0.0
        %2766 = vmatpush1.xpose.msra.mxu0 0.0
        %2767 = vmatprep.subr.mxu0 0.0
        %2768 = vmatpush1.xpose.msra.mxu0 0.0
        %2769 = vmatprep.subr.mxu0 0.0
        %2770 = vmatpush1.xpose.msra.mxu0 0.0
        %2771 = vmatprep.subr.mxu0 0.0
        %2772 = vmatpush1.xpose.msra.mxu0 0.0
        %2773 = vmatprep.subr.mxu0 0.0
        %2774 = vmatpush1.xpose.msra.mxu0 0.0
        %2775 = vmatprep.subr.mxu0 0.0
        %2776 = vmatpush1.xpose.msra.mxu0 0.0
        %2777 = vmatprep.subr.mxu0 0.0
        %2778 = vmatpush1.xpose.msra.mxu0 0.0
        %2779 = vmatprep.subr.mxu0 0.0
        %2780 = vmatpush1.xpose.msra.mxu0 0.0
        %2781 = vmatprep.subr.mxu0 0.0
        %2782 = vmatpush1.xpose.msra.mxu0 0.0
        %2783 = vmatprep.subr.mxu0 0.0
        %2784 = vmatpush1.xpose.msra.mxu0 0.0
        %2785 = vmatprep.subr.mxu0 0.0
        %2786 = vmatpush1.xpose.msra.mxu0 0.0
        %2787 = vmatprep.subr.mxu0 0.0
        %2788 = vmatpush1.xpose.msra.mxu0 0.0
        %2789 = vmatprep.subr.mxu0 0.0
        %2790 = vmatpush1.xpose.msra.mxu0 0.0
        %2791 = vmatprep.subr.mxu0 0.0
        %2792 = vmatpush1.xpose.msra.mxu0 0.0
        %2793 = vmatprep.subr.mxu0 0.0
        %2794 = vmatpush1.xpose.msra.mxu0 0.0
        %2795 = vmatprep.subr.mxu0 0.0
        %2796 = vmatpush1.xpose.msra.mxu0 0.0
        %2797 = vmatprep.subr.mxu0 0.0
        %2798 = vmatpush1.xpose.msra.mxu0 0.0
        %2799 = vmatprep.subr.mxu0 0.0
        %2800 = vmatpush1.xpose.msra.mxu0 0.0
        %2801 = vmatprep.subr.mxu0 0.0
        %2802 = vmatpush1.xpose.msra.mxu0 0.0
        %2803 = vmatprep.subr.mxu0 0.0
        %2804 = vmatpush1.xpose.msra.mxu0 0.0
        %2805 = vmatprep.subr.mxu0 0.0
        %2806 = vmatpush1.xpose.msra.mxu0 0.0
        %2807 = vmatprep.mubr.f32.mxu0 0.0
        %2808 = vmatmul.mubr.f32.gmra.mrb[0].mxu0 %v2739
        %v2809 = vpop.f32.mrb[0].mxu0
        %v2810 = vadd.f32 0.0, %v2809
        %v2811 = vpop.f32.mrb[0].mxu0
        %2812 = vdwg.mxu0
        %2813 = vrot.lane.b32.xlu0 %v2584, 96
        %v2814 = vpop.permute.xlu0 %2813
        %v2815 = vsel %vm1487, %v2584, 0
        %v2817 = vsel %vm1487, %v2814, 0
        %2819 = vmatprep.subr.mxu0 0.0
        %2820 = vmatpush1.xpose.msra.mxu0 %v2817
        %2821 = vmatprep.subr.mxu0 0.0
        %2822 = vmatpush1.xpose.msra.mxu0 0.0
        %2823 = vmatprep.subr.mxu0 0.0
        %2824 = vmatpush1.xpose.msra.mxu0 0.0
        %2825 = vmatprep.subr.mxu0 0.0
        %2826 = vmatpush1.xpose.msra.mxu0 0.0
        %2827 = vmatprep.subr.mxu0 0.0
        %2828 = vmatpush1.xpose.msra.mxu0 0.0
        %2829 = vmatprep.subr.mxu0 0.0
        %2830 = vmatpush1.xpose.msra.mxu0 0.0
        %2831 = vmatprep.subr.mxu0 0.0
        %2832 = vmatpush1.xpose.msra.mxu0 0.0
        %2833 = vmatprep.subr.mxu0 0.0
        %2834 = vmatpush1.xpose.msra.mxu0 0.0
        %2835 = vmatprep.subr.mxu0 0.0
        %2836 = vmatpush1.xpose.msra.mxu0 0.0
        %2837 = vmatprep.subr.mxu0 0.0
        %2838 = vmatpush1.xpose.msra.mxu0 0.0
        %2839 = vmatprep.subr.mxu0 0.0
        %2840 = vmatpush1.xpose.msra.mxu0 0.0
        %2841 = vmatprep.subr.mxu0 0.0
        %2842 = vmatpush1.xpose.msra.mxu0 0.0
        %2843 = vmatprep.subr.mxu0 0.0
        %2844 = vmatpush1.xpose.msra.mxu0 0.0
        %2845 = vmatprep.subr.mxu0 0.0
        %2846 = vmatpush1.xpose.msra.mxu0 0.0
        %2847 = vmatprep.subr.mxu0 0.0
        %2848 = vmatpush1.xpose.msra.mxu0 0.0
        %2849 = vmatprep.subr.mxu0 0.0
        %2850 = vmatpush1.xpose.msra.mxu0 0.0
        %2851 = vmatprep.subr.mxu0 0.0
        %2852 = vmatpush1.xpose.msra.mxu0 0.0
        %2853 = vmatprep.subr.mxu0 0.0
        %2854 = vmatpush1.xpose.msra.mxu0 0.0
        %2855 = vmatprep.subr.mxu0 0.0
        %2856 = vmatpush1.xpose.msra.mxu0 0.0
        %2857 = vmatprep.subr.mxu0 0.0
        %2858 = vmatpush1.xpose.msra.mxu0 0.0
        %2859 = vmatprep.subr.mxu0 0.0
        %2860 = vmatpush1.xpose.msra.mxu0 0.0
        %2861 = vmatprep.subr.mxu0 0.0
        %2862 = vmatpush1.xpose.msra.mxu0 0.0
        %2863 = vmatprep.subr.mxu0 0.0
        %2864 = vmatpush1.xpose.msra.mxu0 0.0
        %2865 = vmatprep.subr.mxu0 0.0
        %2866 = vmatpush1.xpose.msra.mxu0 0.0
        %2867 = vmatprep.subr.mxu0 0.0
        %2868 = vmatpush1.xpose.msra.mxu0 0.0
        %2869 = vmatprep.subr.mxu0 0.0
        %2870 = vmatpush1.xpose.msra.mxu0 0.0
        %2871 = vmatprep.subr.mxu0 0.0
        %2872 = vmatpush1.xpose.msra.mxu0 0.0
        %2873 = vmatprep.subr.mxu0 0.0
        %2874 = vmatpush1.xpose.msra.mxu0 0.0
        %2875 = vmatprep.subr.mxu0 0.0
        %2876 = vmatpush1.xpose.msra.mxu0 0.0
        %2877 = vmatprep.subr.mxu0 0.0
        %2878 = vmatpush1.xpose.msra.mxu0 0.0
        %2879 = vmatprep.subr.mxu0 0.0
        %2880 = vmatpush1.xpose.msra.mxu0 0.0
        %2881 = vmatprep.subr.mxu0 0.0
        %2882 = vmatpush1.xpose.msra.mxu0 0.0
        %2883 = vmatprep.mubr.f32.mxu0 0.0
        %2884 = vmatmul.mubr.f32.gmra.mrb[0].mxu0 %v2815
        %v2885 = vpop.f32.mrb[0].mxu0
        %v2886 = vadd.f32 0.0, %v2885
        %v2887 = vpop.f32.mrb[0].mxu0
        %2888 = vdwg.mxu0
        %v2889 = vsel %vm1487, %v2658, -inf
        %2890 = vmax.xlane.f32.xlu0 %v2889
        %v2891 = vpop.xlane.xlu0 %2890
        %v2892 = vsel %vm1487, %v2734, -inf
        %2893 = vmax.xlane.f32.xlu0 %v2892
        %v2894 = vpop.xlane.xlu0 %2893
        %v2895 = vsel %vm1487, %v2810, -inf
        %2896 = vmax.xlane.f32.xlu0 %v2895
        %v2897 = vpop.xlane.xlu0 %2896
        %v2898 = vsel %vm1487, %v2886, -inf
        %2899 = vmax.xlane.f32.xlu0 %v2898
        %v2900 = vpop.xlane.xlu0 %2899
        %v2901 = vsub.f32 %v2658, %v2891
        %v2902 = vsub.f32 %v2734, %v2894
        %v2903 = vsub.f32 %v2810, %v2897
        %v2904 = vsub.f32 %v2886, %v2900
        %v2905 = vmul.f32 %v2901, 1.442695
        %v2906 = vpow.pop %v2905
        %v2907 = vmul.f32 %v2902, 1.442695
        %v2908 = vpow.pop %v2907
        %v2909 = vmul.f32 %v2903, 1.442695
        %v2910 = vpow.pop %v2909
        %v2911 = vmul.f32 %v2904, 1.442695
        %v2912 = vpow.pop %v2911
        %v2913 = vsel %vm1487, %v2906, 0.0
        %2914 = vadd.xlane.f32.xlu0 %v2913
        %v2915 = vpop.xlane.xlu0 %2914
        %v2916 = vsel %vm1487, %v2908, 0.0
        %2917 = vadd.xlane.f32.xlu0 %v2916
        %v2918 = vpop.xlane.xlu0 %2917
        %v2919 = vsel %vm1487, %v2910, 0.0
        %2920 = vadd.xlane.f32.xlu0 %v2919
        %v2921 = vpop.xlane.xlu0 %2920
        %v2922 = vsel %vm1487, %v2912, 0.0
        %2923 = vadd.xlane.f32.xlu0 %v2922
        %v2924 = vpop.xlane.xlu0 %2923
        %v2925 = vrcp.pop %v2915
        %v2926 = vrcp.pop %v2918
        %v2927 = vrcp.pop %v2921
        %v2928 = vrcp.pop %v2924
        %v2929 = vmul.f32 %v2906, %v2925
        %v2930 = vmul.f32 %v2908, %v2926
        %v2931 = vmul.f32 %v2910, %v2927
        %v2932 = vmul.f32 %v2912, %v2928
        %2933 = vrot.lane.b32.xlu0 %v2575, 64
        %v2934 = vpop.permute.xlu0 %2933
        %v2937 = vsel %vm1487, %v2929, 0
        %2939 = vmatprep.subr.mxu0 0.0
        %2940 = vmatpush1.msra.mxu0 %v2934
        %2941 = vmatprep.subr.mxu0 0.0
        %2942 = vmatpush1.msra.mxu0 0.0
        %2943 = vmatprep.subr.mxu0 0.0
        %2944 = vmatpush1.msra.mxu0 0.0
        %2945 = vmatprep.subr.mxu0 0.0
        %2946 = vmatpush1.msra.mxu0 0.0
        %2947 = vmatprep.subr.mxu0 0.0
        %2948 = vmatpush1.msra.mxu0 0.0
        %2949 = vmatprep.subr.mxu0 0.0
        %2950 = vmatpush1.msra.mxu0 0.0
        %2951 = vmatprep.subr.mxu0 0.0
        %2952 = vmatpush1.msra.mxu0 0.0
        %2953 = vmatprep.subr.mxu0 0.0
        %2954 = vmatpush1.msra.mxu0 0.0
        %2955 = vmatprep.subr.mxu0 0.0
        %2956 = vmatpush1.msra.mxu0 0.0
        %2957 = vmatprep.subr.mxu0 0.0
        %2958 = vmatpush1.msra.mxu0 0.0
        %2959 = vmatprep.subr.mxu0 0.0
        %2960 = vmatpush1.msra.mxu0 0.0
        %2961 = vmatprep.subr.mxu0 0.0
        %2962 = vmatpush1.msra.mxu0 0.0
        %2963 = vmatprep.subr.mxu0 0.0
        %2964 = vmatpush1.msra.mxu0 0.0
        %2965 = vmatprep.subr.mxu0 0.0
        %2966 = vmatpush1.msra.mxu0 0.0
        %2967 = vmatprep.subr.mxu0 0.0
        %2968 = vmatpush1.msra.mxu0 0.0
        %2969 = vmatprep.subr.mxu0 0.0
        %2970 = vmatpush1.msra.mxu0 0.0
        %2971 = vmatprep.subr.mxu0 0.0
        %2972 = vmatpush1.msra.mxu0 0.0
        %2973 = vmatprep.subr.mxu0 0.0
        %2974 = vmatpush1.msra.mxu0 0.0
        %2975 = vmatprep.subr.mxu0 0.0
        %2976 = vmatpush1.msra.mxu0 0.0
        %2977 = vmatprep.subr.mxu0 0.0
        %2978 = vmatpush1.msra.mxu0 0.0
        %2979 = vmatprep.subr.mxu0 0.0
        %2980 = vmatpush1.msra.mxu0 0.0
        %2981 = vmatprep.subr.mxu0 0.0
        %2982 = vmatpush1.msra.mxu0 0.0
        %2983 = vmatprep.subr.mxu0 0.0
        %2984 = vmatpush1.msra.mxu0 0.0
        %2985 = vmatprep.subr.mxu0 0.0
        %2986 = vmatpush1.msra.mxu0 0.0
        %2987 = vmatprep.subr.mxu0 0.0
        %2988 = vmatpush1.msra.mxu0 0.0
        %2989 = vmatprep.subr.mxu0 0.0
        %2990 = vmatpush1.msra.mxu0 0.0
        %2991 = vmatprep.subr.mxu0 0.0
        %2992 = vmatpush1.msra.mxu0 0.0
        %2993 = vmatprep.subr.mxu0 0.0
        %2994 = vmatpush1.msra.mxu0 0.0
        %2995 = vmatprep.subr.mxu0 0.0
        %2996 = vmatpush1.msra.mxu0 0.0
        %2997 = vmatprep.subr.mxu0 0.0
        %2998 = vmatpush1.msra.mxu0 0.0
        %2999 = vmatprep.subr.mxu0 0.0
        %3000 = vmatpush1.msra.mxu0 0.0
        %3001 = vmatprep.subr.mxu0 0.0
        %3002 = vmatpush1.msra.mxu0 0.0
        %3003 = vmatprep.mubr.f32.mxu0 0.0
        %3004 = vmatmul.mubr.f32.gmra.mrb[0].mxu0 %v2937
        %v3005 = vpop.f32.mrb[0].mxu0
        %v3006 = vadd.f32 0.0, %v3005
        %v3007 = vpop.f32.mrb[0].mxu0
        %3008 = vdwg.mxu0
        %3009 = vrot.lane.b32.xlu0 %v2580, 64
        %v3010 = vpop.permute.xlu0 %3009
        %v3013 = vsel %vm1487, %v2930, 0
        %3015 = vmatprep.subr.mxu0 0.0
        %3016 = vmatpush1.msra.mxu0 %v3010
        %3017 = vmatprep.subr.mxu0 0.0
        %3018 = vmatpush1.msra.mxu0 0.0
        %3019 = vmatprep.subr.mxu0 0.0
        %3020 = vmatpush1.msra.mxu0 0.0
        %3021 = vmatprep.subr.mxu0 0.0
        %3022 = vmatpush1.msra.mxu0 0.0
        %3023 = vmatprep.subr.mxu0 0.0
        %3024 = vmatpush1.msra.mxu0 0.0
        %3025 = vmatprep.subr.mxu0 0.0
        %3026 = vmatpush1.msra.mxu0 0.0
        %3027 = vmatprep.subr.mxu0 0.0
        %3028 = vmatpush1.msra.mxu0 0.0
        %3029 = vmatprep.subr.mxu0 0.0
        %3030 = vmatpush1.msra.mxu0 0.0
        %3031 = vmatprep.subr.mxu0 0.0
        %3032 = vmatpush1.msra.mxu0 0.0
        %3033 = vmatprep.subr.mxu0 0.0
        %3034 = vmatpush1.msra.mxu0 0.0
        %3035 = vmatprep.subr.mxu0 0.0
        %3036 = vmatpush1.msra.mxu0 0.0
        %3037 = vmatprep.subr.mxu0 0.0
        %3038 = vmatpush1.msra.mxu0 0.0
        %3039 = vmatprep.subr.mxu0 0.0
        %3040 = vmatpush1.msra.mxu0 0.0
        %3041 = vmatprep.subr.mxu0 0.0
        %3042 = vmatpush1.msra.mxu0 0.0
        %3043 = vmatprep.subr.mxu0 0.0
        %3044 = vmatpush1.msra.mxu0 0.0
        %3045 = vmatprep.subr.mxu0 0.0
        %3046 = vmatpush1.msra.mxu0 0.0
        %3047 = vmatprep.subr.mxu0 0.0
        %3048 = vmatpush1.msra.mxu0 0.0
        %3049 = vmatprep.subr.mxu0 0.0
        %3050 = vmatpush1.msra.mxu0 0.0
        %3051 = vmatprep.subr.mxu0 0.0
        %3052 = vmatpush1.msra.mxu0 0.0
        %3053 = vmatprep.subr.mxu0 0.0
        %3054 = vmatpush1.msra.mxu0 0.0
        %3055 = vmatprep.subr.mxu0 0.0
        %3056 = vmatpush1.msra.mxu0 0.0
        %3057 = vmatprep.subr.mxu0 0.0
        %3058 = vmatpush1.msra.mxu0 0.0
        %3059 = vmatprep.subr.mxu0 0.0
        %3060 = vmatpush1.msra.mxu0 0.0
        %3061 = vmatprep.subr.mxu0 0.0
        %3062 = vmatpush1.msra.mxu0 0.0
        %3063 = vmatprep.subr.mxu0 0.0
        %3064 = vmatpush1.msra.mxu0 0.0
        %3065 = vmatprep.subr.mxu0 0.0
        %3066 = vmatpush1.msra.mxu0 0.0
        %3067 = vmatprep.subr.mxu0 0.0
        %3068 = vmatpush1.msra.mxu0 0.0
        %3069 = vmatprep.subr.mxu0 0.0
        %3070 = vmatpush1.msra.mxu0 0.0
        %3071 = vmatprep.subr.mxu0 0.0
        %3072 = vmatpush1.msra.mxu0 0.0
        %3073 = vmatprep.subr.mxu0 0.0
        %3074 = vmatpush1.msra.mxu0 0.0
        %3075 = vmatprep.subr.mxu0 0.0
        %3076 = vmatpush1.msra.mxu0 0.0
        %3077 = vmatprep.subr.mxu0 0.0
        %3078 = vmatpush1.msra.mxu0 0.0
        %3079 = vmatprep.mubr.f32.mxu0 0.0
        %3080 = vmatmul.mubr.f32.gmra.mrb[0].mxu0 %v3013
        %v3081 = vpop.f32.mrb[0].mxu0
        %v3082 = vadd.f32 0.0, %v3081
        %v3083 = vpop.f32.mrb[0].mxu0
        %3084 = vdwg.mxu0
        %3085 = vrot.lane.b32.xlu0 %v2582, 64
        %v3086 = vpop.permute.xlu0 %3085
        %v3089 = vsel %vm1487, %v2931, 0
        %3091 = vmatprep.subr.mxu0 0.0
        %3092 = vmatpush1.msra.mxu0 %v3086
        %3093 = vmatprep.subr.mxu0 0.0
        %3094 = vmatpush1.msra.mxu0 0.0
        %3095 = vmatprep.subr.mxu0 0.0
        %3096 = vmatpush1.msra.mxu0 0.0
        %3097 = vmatprep.subr.mxu0 0.0
        %3098 = vmatpush1.msra.mxu0 0.0
        %3099 = vmatprep.subr.mxu0 0.0
        %3100 = vmatpush1.msra.mxu0 0.0
        %3101 = vmatprep.subr.mxu0 0.0
        %3102 = vmatpush1.msra.mxu0 0.0
        %3103 = vmatprep.subr.mxu0 0.0
        %3104 = vmatpush1.msra.mxu0 0.0
        %3105 = vmatprep.subr.mxu0 0.0
        %3106 = vmatpush1.msra.mxu0 0.0
        %3107 = vmatprep.subr.mxu0 0.0
        %3108 = vmatpush1.msra.mxu0 0.0
        %3109 = vmatprep.subr.mxu0 0.0
        %3110 = vmatpush1.msra.mxu0 0.0
        %3111 = vmatprep.subr.mxu0 0.0
        %3112 = vmatpush1.msra.mxu0 0.0
        %3113 = vmatprep.subr.mxu0 0.0
        %3114 = vmatpush1.msra.mxu0 0.0
        %3115 = vmatprep.subr.mxu0 0.0
        %3116 = vmatpush1.msra.mxu0 0.0
        %3117 = vmatprep.subr.mxu0 0.0
        %3118 = vmatpush1.msra.mxu0 0.0
        %3119 = vmatprep.subr.mxu0 0.0
        %3120 = vmatpush1.msra.mxu0 0.0
        %3121 = vmatprep.subr.mxu0 0.0
        %3122 = vmatpush1.msra.mxu0 0.0
        %3123 = vmatprep.subr.mxu0 0.0
        %3124 = vmatpush1.msra.mxu0 0.0
        %3125 = vmatprep.subr.mxu0 0.0
        %3126 = vmatpush1.msra.mxu0 0.0
        %3127 = vmatprep.subr.mxu0 0.0
        %3128 = vmatpush1.msra.mxu0 0.0
        %3129 = vmatprep.subr.mxu0 0.0
        %3130 = vmatpush1.msra.mxu0 0.0
        %3131 = vmatprep.subr.mxu0 0.0
        %3132 = vmatpush1.msra.mxu0 0.0
        %3133 = vmatprep.subr.mxu0 0.0
        %3134 = vmatpush1.msra.mxu0 0.0
        %3135 = vmatprep.subr.mxu0 0.0
        %3136 = vmatpush1.msra.mxu0 0.0
        %3137 = vmatprep.subr.mxu0 0.0
        %3138 = vmatpush1.msra.mxu0 0.0
        %3139 = vmatprep.subr.mxu0 0.0
        %3140 = vmatpush1.msra.mxu0 0.0
        %3141 = vmatprep.subr.mxu0 0.0
        %3142 = vmatpush1.msra.mxu0 0.0
        %3143 = vmatprep.subr.mxu0 0.0
        %3144 = vmatpush1.msra.mxu0 0.0
        %3145 = vmatprep.subr.mxu0 0.0
        %3146 = vmatpush1.msra.mxu0 0.0
        %3147 = vmatprep.subr.mxu0 0.0
        %3148 = vmatpush1.msra.mxu0 0.0
        %3149 = vmatprep.subr.mxu0 0.0
        %3150 = vmatpush1.msra.mxu0 0.0
        %3151 = vmatprep.subr.mxu0 0.0
        %3152 = vmatpush1.msra.mxu0 0.0
        %3153 = vmatprep.subr.mxu0 0.0
        %3154 = vmatpush1.msra.mxu0 0.0
        %3155 = vmatprep.mubr.f32.mxu0 0.0
        %3156 = vmatmul.mubr.f32.gmra.mrb[0].mxu0 %v3089
        %v3157 = vpop.f32.mrb[0].mxu0
        %v3158 = vadd.f32 0.0, %v3157
        %v3159 = vpop.f32.mrb[0].mxu0
        %3160 = vdwg.mxu0
        %3161 = vrot.lane.b32.xlu0 %v2584, 64
        %v3162 = vpop.permute.xlu0 %3161
        %v3165 = vsel %vm1487, %v2932, 0
        %3167 = vmatprep.subr.mxu0 0.0
        %3168 = vmatpush1.msra.mxu0 %v3162
        %3169 = vmatprep.subr.mxu0 0.0
        %3170 = vmatpush1.msra.mxu0 0.0
        %3171 = vmatprep.subr.mxu0 0.0
        %3172 = vmatpush1.msra.mxu0 0.0
        %3173 = vmatprep.subr.mxu0 0.0
        %3174 = vmatpush1.msra.mxu0 0.0
        %3175 = vmatprep.subr.mxu0 0.0
        %3176 = vmatpush1.msra.mxu0 0.0
        %3177 = vmatprep.subr.mxu0 0.0
        %3178 = vmatpush1.msra.mxu0 0.0
        %3179 = vmatprep.subr.mxu0 0.0
        %3180 = vmatpush1.msra.mxu0 0.0
        %3181 = vmatprep.subr.mxu0 0.0
        %3182 = vmatpush1.msra.mxu0 0.0
        %3183 = vmatprep.subr.mxu0 0.0
        %3184 = vmatpush1.msra.mxu0 0.0
        %3185 = vmatprep.subr.mxu0 0.0
        %3186 = vmatpush1.msra.mxu0 0.0
        %3187 = vmatprep.subr.mxu0 0.0
        %3188 = vmatpush1.msra.mxu0 0.0
        %3189 = vmatprep.subr.mxu0 0.0
        %3190 = vmatpush1.msra.mxu0 0.0
        %3191 = vmatprep.subr.mxu0 0.0
        %3192 = vmatpush1.msra.mxu0 0.0
        %3193 = vmatprep.subr.mxu0 0.0
        %3194 = vmatpush1.msra.mxu0 0.0
        %3195 = vmatprep.subr.mxu0 0.0
        %3196 = vmatpush1.msra.mxu0 0.0
        %3197 = vmatprep.subr.mxu0 0.0
        %3198 = vmatpush1.msra.mxu0 0.0
        %3199 = vmatprep.subr.mxu0 0.0
        %3200 = vmatpush1.msra.mxu0 0.0
        %3201 = vmatprep.subr.mxu0 0.0
        %3202 = vmatpush1.msra.mxu0 0.0
        %3203 = vmatprep.subr.mxu0 0.0
        %3204 = vmatpush1.msra.mxu0 0.0
        %3205 = vmatprep.subr.mxu0 0.0
        %3206 = vmatpush1.msra.mxu0 0.0
        %3207 = vmatprep.subr.mxu0 0.0
        %3208 = vmatpush1.msra.mxu0 0.0
        %3209 = vmatprep.subr.mxu0 0.0
        %3210 = vmatpush1.msra.mxu0 0.0
        %3211 = vmatprep.subr.mxu0 0.0
        %3212 = vmatpush1.msra.mxu0 0.0
        %3213 = vmatprep.subr.mxu0 0.0
        %3214 = vmatpush1.msra.mxu0 0.0
        %3215 = vmatprep.subr.mxu0 0.0
        %3216 = vmatpush1.msra.mxu0 0.0
        %3217 = vmatprep.subr.mxu0 0.0
        %3218 = vmatpush1.msra.mxu0 0.0
        %3219 = vmatprep.subr.mxu0 0.0
        %3220 = vmatpush1.msra.mxu0 0.0
        %3221 = vmatprep.subr.mxu0 0.0
        %3222 = vmatpush1.msra.mxu0 0.0
        %3223 = vmatprep.subr.mxu0 0.0
        %3224 = vmatpush1.msra.mxu0 0.0
        %3225 = vmatprep.subr.mxu0 0.0
        %3226 = vmatpush1.msra.mxu0 0.0
        %3227 = vmatprep.subr.mxu0 0.0
        %3228 = vmatpush1.msra.mxu0 0.0
        %3229 = vmatprep.subr.mxu0 0.0
        %3230 = vmatpush1.msra.mxu0 0.0
        %3231 = vmatprep.mubr.f32.mxu0 0.0
        %3232 = vmatmul.mubr.f32.gmra.mrb[0].mxu0 %v3165
        %v3233 = vpop.f32.mrb[0].mxu0
        %v3234 = vadd.f32 0.0, %v3233
        %v3235 = vpop.f32.mrb[0].mxu0
        %3236 = vdwg.mxu0
        %v3237 = vld [vmem:[#allocation18] sm:$0xff]
        %v3238 = vld [vmem:[#allocation18 + $0x8] sm:$0xff]
        %v3239 = vld [vmem:[#allocation18 + $0x10] sm:$0xff]
        %v3240 = vld [vmem:[#allocation18 + $0x18] sm:$0xff]
        %v3241 = vld [vmem:[%s17] sm:$0x1]
        %v3243 = vsel %vm1487, %v3006, 0
        %3245 = vmatprep.subr.mxu0 0.0
        %3246 = vmatpush1.msra.mxu0 %v3237
        %3247 = vmatprep.subr.mxu0 0.0
        %3248 = vmatpush1.msra.mxu0 0.0
        %3249 = vmatprep.subr.mxu0 0.0
        %3250 = vmatpush1.msra.mxu0 0.0
        %3251 = vmatprep.subr.mxu0 0.0
        %3252 = vmatpush1.msra.mxu0 0.0
        %3253 = vmatprep.subr.mxu0 0.0
        %3254 = vmatpush1.msra.mxu0 0.0
        %3255 = vmatprep.subr.mxu0 0.0
        %3256 = vmatpush1.msra.mxu0 0.0
        %3257 = vmatprep.subr.mxu0 0.0
        %3258 = vmatpush1.msra.mxu0 0.0
        %3259 = vmatprep.subr.mxu0 0.0
        %3260 = vmatpush1.msra.mxu0 0.0
        %3261 = vmatprep.subr.mxu0 0.0
        %3262 = vmatpush1.msra.mxu0 0.0
        %3263 = vmatprep.subr.mxu0 0.0
        %3264 = vmatpush1.msra.mxu0 0.0
        %3265 = vmatprep.subr.mxu0 0.0
        %3266 = vmatpush1.msra.mxu0 0.0
        %3267 = vmatprep.subr.mxu0 0.0
        %3268 = vmatpush1.msra.mxu0 0.0
        %3269 = vmatprep.subr.mxu0 0.0
        %3270 = vmatpush1.msra.mxu0 0.0
        %3271 = vmatprep.subr.mxu0 0.0
        %3272 = vmatpush1.msra.mxu0 0.0
        %3273 = vmatprep.subr.mxu0 0.0
        %3274 = vmatpush1.msra.mxu0 0.0
        %3275 = vmatprep.subr.mxu0 0.0
        %3276 = vmatpush1.msra.mxu0 0.0
        %3277 = vmatprep.subr.mxu0 0.0
        %3278 = vmatpush1.msra.mxu0 0.0
        %3279 = vmatprep.subr.mxu0 0.0
        %3280 = vmatpush1.msra.mxu0 0.0
        %3281 = vmatprep.subr.mxu0 0.0
        %3282 = vmatpush1.msra.mxu0 0.0
        %3283 = vmatprep.subr.mxu0 0.0
        %3284 = vmatpush1.msra.mxu0 0.0
        %3285 = vmatprep.subr.mxu0 0.0
        %3286 = vmatpush1.msra.mxu0 0.0
        %3287 = vmatprep.subr.mxu0 0.0
        %3288 = vmatpush1.msra.mxu0 0.0
        %3289 = vmatprep.subr.mxu0 0.0
        %3290 = vmatpush1.msra.mxu0 0.0
        %3291 = vmatprep.subr.mxu0 0.0
        %3292 = vmatpush1.msra.mxu0 0.0
        %3293 = vmatprep.subr.mxu0 0.0
        %3294 = vmatpush1.msra.mxu0 0.0
        %3295 = vmatprep.subr.mxu0 0.0
        %3296 = vmatpush1.msra.mxu0 0.0
        %3297 = vmatprep.subr.mxu0 0.0
        %3298 = vmatpush1.msra.mxu0 0.0
        %3299 = vmatprep.subr.mxu0 0.0
        %3300 = vmatpush1.msra.mxu0 0.0
        %3301 = vmatprep.subr.mxu0 0.0
        %3302 = vmatpush1.msra.mxu0 0.0
        %3303 = vmatprep.subr.mxu0 0.0
        %3304 = vmatpush1.msra.mxu0 0.0
        %3305 = vmatprep.subr.mxu0 0.0
        %3306 = vmatpush1.msra.mxu0 0.0
        %3307 = vmatprep.subr.mxu0 0.0
        %3308 = vmatpush1.msra.mxu0 0.0
        %3309 = vmatprep.mubr.f32.mxu0 0.0
        %3310 = vmatmul.mubr.f32.gmra.mrb[0].mxu0 %v3243
        %v3311 = vpop.f32.mrb[0].mxu0
        %v3312 = vadd.f32 0.0, %v3311
        %v3313 = vpop.f32.mrb[0].mxu0
        %3314 = vdwg.mxu0
        %v3316 = vsel %vm1487, %v3082, 0
        %3318 = vmatprep.subr.mxu0 0.0
        %3319 = vmatpush1.msra.mxu0 %v3238
        %3320 = vmatprep.subr.mxu0 0.0
        %3321 = vmatpush1.msra.mxu0 0.0
        %3322 = vmatprep.subr.mxu0 0.0
        %3323 = vmatpush1.msra.mxu0 0.0
        %3324 = vmatprep.subr.mxu0 0.0
        %3325 = vmatpush1.msra.mxu0 0.0
        %3326 = vmatprep.subr.mxu0 0.0
        %3327 = vmatpush1.msra.mxu0 0.0
        %3328 = vmatprep.subr.mxu0 0.0
        %3329 = vmatpush1.msra.mxu0 0.0
        %3330 = vmatprep.subr.mxu0 0.0
        %3331 = vmatpush1.msra.mxu0 0.0
        %3332 = vmatprep.subr.mxu0 0.0
        %3333 = vmatpush1.msra.mxu0 0.0
        %3334 = vmatprep.subr.mxu0 0.0
        %3335 = vmatpush1.msra.mxu0 0.0
        %3336 = vmatprep.subr.mxu0 0.0
        %3337 = vmatpush1.msra.mxu0 0.0
        %3338 = vmatprep.subr.mxu0 0.0
        %3339 = vmatpush1.msra.mxu0 0.0
        %3340 = vmatprep.subr.mxu0 0.0
        %3341 = vmatpush1.msra.mxu0 0.0
        %3342 = vmatprep.subr.mxu0 0.0
        %3343 = vmatpush1.msra.mxu0 0.0
        %3344 = vmatprep.subr.mxu0 0.0
        %3345 = vmatpush1.msra.mxu0 0.0
        %3346 = vmatprep.subr.mxu0 0.0
        %3347 = vmatpush1.msra.mxu0 0.0
        %3348 = vmatprep.subr.mxu0 0.0
        %3349 = vmatpush1.msra.mxu0 0.0
        %3350 = vmatprep.subr.mxu0 0.0
        %3351 = vmatpush1.msra.mxu0 0.0
        %3352 = vmatprep.subr.mxu0 0.0
        %3353 = vmatpush1.msra.mxu0 0.0
        %3354 = vmatprep.subr.mxu0 0.0
        %3355 = vmatpush1.msra.mxu0 0.0
        %3356 = vmatprep.subr.mxu0 0.0
        %3357 = vmatpush1.msra.mxu0 0.0
        %3358 = vmatprep.subr.mxu0 0.0
        %3359 = vmatpush1.msra.mxu0 0.0
        %3360 = vmatprep.subr.mxu0 0.0
        %3361 = vmatpush1.msra.mxu0 0.0
        %3362 = vmatprep.subr.mxu0 0.0
        %3363 = vmatpush1.msra.mxu0 0.0
        %3364 = vmatprep.subr.mxu0 0.0
        %3365 = vmatpush1.msra.mxu0 0.0
        %3366 = vmatprep.subr.mxu0 0.0
        %3367 = vmatpush1.msra.mxu0 0.0
        %3368 = vmatprep.subr.mxu0 0.0
        %3369 = vmatpush1.msra.mxu0 0.0
        %3370 = vmatprep.subr.mxu0 0.0
        %3371 = vmatpush1.msra.mxu0 0.0
        %3372 = vmatprep.subr.mxu0 0.0
        %3373 = vmatpush1.msra.mxu0 0.0
        %3374 = vmatprep.subr.mxu0 0.0
        %3375 = vmatpush1.msra.mxu0 0.0
        %3376 = vmatprep.subr.mxu0 0.0
        %3377 = vmatpush1.msra.mxu0 0.0
        %3378 = vmatprep.subr.mxu0 0.0
        %3379 = vmatpush1.msra.mxu0 0.0
        %3380 = vmatprep.subr.mxu0 0.0
        %3381 = vmatpush1.msra.mxu0 0.0
        %3382 = vmatprep.mubr.f32.mxu0 0.0
        %3383 = vmatmul.mubr.f32.gmra.mrb[0].mxu0 %v3316
        %v3384 = vpop.f32.mrb[0].mxu0
        %v3385 = vadd.f32 0.0, %v3384
        %v3386 = vpop.f32.mrb[0].mxu0
        %3387 = vdwg.mxu0
        %v3389 = vsel %vm1487, %v3158, 0
        %3391 = vmatprep.subr.mxu0 0.0
        %3392 = vmatpush1.msra.mxu0 %v3239
        %3393 = vmatprep.subr.mxu0 0.0
        %3394 = vmatpush1.msra.mxu0 0.0
        %3395 = vmatprep.subr.mxu0 0.0
        %3396 = vmatpush1.msra.mxu0 0.0
        %3397 = vmatprep.subr.mxu0 0.0
        %3398 = vmatpush1.msra.mxu0 0.0
        %3399 = vmatprep.subr.mxu0 0.0
        %3400 = vmatpush1.msra.mxu0 0.0
        %3401 = vmatprep.subr.mxu0 0.0
        %3402 = vmatpush1.msra.mxu0 0.0
        %3403 = vmatprep.subr.mxu0 0.0
        %3404 = vmatpush1.msra.mxu0 0.0
        %3405 = vmatprep.subr.mxu0 0.0
        %3406 = vmatpush1.msra.mxu0 0.0
        %3407 = vmatprep.subr.mxu0 0.0
        %3408 = vmatpush1.msra.mxu0 0.0
        %3409 = vmatprep.subr.mxu0 0.0
        %3410 = vmatpush1.msra.mxu0 0.0
        %3411 = vmatprep.subr.mxu0 0.0
        %3412 = vmatpush1.msra.mxu0 0.0
        %3413 = vmatprep.subr.mxu0 0.0
        %3414 = vmatpush1.msra.mxu0 0.0
        %3415 = vmatprep.subr.mxu0 0.0
        %3416 = vmatpush1.msra.mxu0 0.0
        %3417 = vmatprep.subr.mxu0 0.0
        %3418 = vmatpush1.msra.mxu0 0.0
        %3419 = vmatprep.subr.mxu0 0.0
        %3420 = vmatpush1.msra.mxu0 0.0
        %3421 = vmatprep.subr.mxu0 0.0
        %3422 = vmatpush1.msra.mxu0 0.0
        %3423 = vmatprep.subr.mxu0 0.0
        %3424 = vmatpush1.msra.mxu0 0.0
        %3425 = vmatprep.subr.mxu0 0.0
        %3426 = vmatpush1.msra.mxu0 0.0
        %3427 = vmatprep.subr.mxu0 0.0
        %3428 = vmatpush1.msra.mxu0 0.0
        %3429 = vmatprep.subr.mxu0 0.0
        %3430 = vmatpush1.msra.mxu0 0.0
        %3431 = vmatprep.subr.mxu0 0.0
        %3432 = vmatpush1.msra.mxu0 0.0
        %3433 = vmatprep.subr.mxu0 0.0
        %3434 = vmatpush1.msra.mxu0 0.0
        %3435 = vmatprep.subr.mxu0 0.0
        %3436 = vmatpush1.msra.mxu0 0.0
        %3437 = vmatprep.subr.mxu0 0.0
        %3438 = vmatpush1.msra.mxu0 0.0
        %3439 = vmatprep.subr.mxu0 0.0
        %3440 = vmatpush1.msra.mxu0 0.0
        %3441 = vmatprep.subr.mxu0 0.0
        %3442 = vmatpush1.msra.mxu0 0.0
        %3443 = vmatprep.subr.mxu0 0.0
        %3444 = vmatpush1.msra.mxu0 0.0
        %3445 = vmatprep.subr.mxu0 0.0
        %3446 = vmatpush1.msra.mxu0 0.0
        %3447 = vmatprep.subr.mxu0 0.0
        %3448 = vmatpush1.msra.mxu0 0.0
        %3449 = vmatprep.subr.mxu0 0.0
        %3450 = vmatpush1.msra.mxu0 0.0
        %3451 = vmatprep.subr.mxu0 0.0
        %3452 = vmatpush1.msra.mxu0 0.0
        %3453 = vmatprep.subr.mxu0 0.0
        %3454 = vmatpush1.msra.mxu0 0.0
        %3455 = vmatprep.mubr.f32.mxu0 0.0
        %3456 = vmatmul.mubr.f32.gmra.mrb[0].mxu0 %v3389
        %v3457 = vpop.f32.mrb[0].mxu0
        %v3458 = vadd.f32 0.0, %v3457
        %v3459 = vpop.f32.mrb[0].mxu0
        %3460 = vdwg.mxu0
        %v3462 = vsel %vm1487, %v3234, 0
        %3464 = vmatprep.subr.mxu0 0.0
        %3465 = vmatpush1.msra.mxu0 %v3240
        %3466 = vmatprep.subr.mxu0 0.0
        %3467 = vmatpush1.msra.mxu0 0.0
        %3468 = vmatprep.subr.mxu0 0.0
        %3469 = vmatpush1.msra.mxu0 0.0
        %3470 = vmatprep.subr.mxu0 0.0
        %3471 = vmatpush1.msra.mxu0 0.0
        %3472 = vmatprep.subr.mxu0 0.0
        %3473 = vmatpush1.msra.mxu0 0.0
        %3474 = vmatprep.subr.mxu0 0.0
        %3475 = vmatpush1.msra.mxu0 0.0
        %3476 = vmatprep.subr.mxu0 0.0
        %3477 = vmatpush1.msra.mxu0 0.0
        %3478 = vmatprep.subr.mxu0 0.0
        %3479 = vmatpush1.msra.mxu0 0.0
        %3480 = vmatprep.subr.mxu0 0.0
        %3481 = vmatpush1.msra.mxu0 0.0
        %3482 = vmatprep.subr.mxu0 0.0
        %3483 = vmatpush1.msra.mxu0 0.0
        %3484 = vmatprep.subr.mxu0 0.0
        %3485 = vmatpush1.msra.mxu0 0.0
        %3486 = vmatprep.subr.mxu0 0.0
        %3487 = vmatpush1.msra.mxu0 0.0
        %3488 = vmatprep.subr.mxu0 0.0
        %3489 = vmatpush1.msra.mxu0 0.0
        %3490 = vmatprep.subr.mxu0 0.0
        %3491 = vmatpush1.msra.mxu0 0.0
        %3492 = vmatprep.subr.mxu0 0.0
        %3493 = vmatpush1.msra.mxu0 0.0
        %3494 = vmatprep.subr.mxu0 0.0
        %3495 = vmatpush1.msra.mxu0 0.0
        %3496 = vmatprep.subr.mxu0 0.0
        %3497 = vmatpush1.msra.mxu0 0.0
        %3498 = vmatprep.subr.mxu0 0.0
        %3499 = vmatpush1.msra.mxu0 0.0
        %3500 = vmatprep.subr.mxu0 0.0
        %3501 = vmatpush1.msra.mxu0 0.0
        %3502 = vmatprep.subr.mxu0 0.0
        %3503 = vmatpush1.msra.mxu0 0.0
        %3504 = vmatprep.subr.mxu0 0.0
        %3505 = vmatpush1.msra.mxu0 0.0
        %3506 = vmatprep.subr.mxu0 0.0
        %3507 = vmatpush1.msra.mxu0 0.0
        %3508 = vmatprep.subr.mxu0 0.0
        %3509 = vmatpush1.msra.mxu0 0.0
        %3510 = vmatprep.subr.mxu0 0.0
        %3511 = vmatpush1.msra.mxu0 0.0
        %3512 = vmatprep.subr.mxu0 0.0
        %3513 = vmatpush1.msra.mxu0 0.0
        %3514 = vmatprep.subr.mxu0 0.0
        %3515 = vmatpush1.msra.mxu0 0.0
        %3516 = vmatprep.subr.mxu0 0.0
        %3517 = vmatpush1.msra.mxu0 0.0
        %3518 = vmatprep.subr.mxu0 0.0
        %3519 = vmatpush1.msra.mxu0 0.0
        %3520 = vmatprep.subr.mxu0 0.0
        %3521 = vmatpush1.msra.mxu0 0.0
        %3522 = vmatprep.subr.mxu0 0.0
        %3523 = vmatpush1.msra.mxu0 0.0
        %3524 = vmatprep.subr.mxu0 0.0
        %3525 = vmatpush1.msra.mxu0 0.0
        %3526 = vmatprep.subr.mxu0 0.0
        %3527 = vmatpush1.msra.mxu0 0.0
        %3528 = vmatprep.mubr.f32.mxu0 0.0
        %3529 = vmatmul.mubr.f32.gmra.mrb[0].mxu0 %v3462
        %v3530 = vpop.f32.mrb[0].mxu0
        %v3531 = vadd.f32 0.0, %v3530
        %v3532 = vpop.f32.mrb[0].mxu0
        %3533 = vdwg.mxu0
        %v3534 = vsel %vm1112, %v3312, 0.0
        %v3535 = vsel %vm1112, %v3385, 0.0
        %v3536 = vadd.f32 %v3534, %v3535
        %v3537 = vsel %vm1112, %v3458, 0.0
        %v3538 = vadd.f32 %v3536, %v3537
        %v3539 = vsel %vm1112, %v3531, 0.0
        %v3540 = vadd.f32 %v3538, %v3539
        %v3542 = vlaneseq
        %v3543 = vshrl.u32 %v3542, 7
        %v3544 = vsub.s32 0, %v3543
        %v3545 = vrot.slane %v3241, %v3544
        %v3547 = vadd.f32 %v3540, %v3545
        %v3548 = vadd.f32 %v2493, %v3547
        %v3549 = vld [vmem:[%s18] sm:$0x1]
        %v3550 = vld [vmem:[%s19] sm:$0x1]
        %v3551 = vsel %vm1112, %v3548, 0.0
        %3552 = vadd.xlane.f32.xlu0 %v3551
        %v3553 = vpop.xlane.xlu0 %3552
        %v3554 = vmul.f32 %v3553, %v2469
        %v3555 = vsub.f32 %v3548, %v3554
        %v3556 = vmul.f32 %v3555, %v3555
        %v3557 = vsel %vm1112, %v3556, 0.0
        %3558 = vadd.xlane.f32.xlu0 %v3557
        %v3559 = vpop.xlane.xlu0 %3558
        %v3560 = vmul.f32 %v3559, %v2469
        %v3561 = vadd.f32 %v3560, 1e-05
        %v3562 = vrsqrt.pop %v3561
        %v3563 = vmul.f32 %v3555, %v3562
        %v3565 = vlaneseq
        %v3566 = vshrl.u32 %v3565, 7
        %v3567 = vsub.s32 0, %v3566
        %v3568 = vrot.slane %v3549, %v3567
        %v3570 = vmul.f32 %v3563, %v3568
        %v3572 = vlaneseq
        %v3573 = vshrl.u32 %v3572, 7
        %v3574 = vsub.s32 0, %v3573
        %v3575 = vrot.slane %v3550, %v3574
        %v3577 = vadd.f32 %v3570, %v3575
        %v3578 = vld [vmem:[%s20] sm:$0xff]
        %v3579 = vld [vmem:[%s20 + $0x8] sm:$0xff]
        %v3580 = vld [vmem:[%s20 + $0x10] sm:$0xff]
        %v3581 = vld [vmem:[%s20 + $0x18] sm:$0xff]
        %v3582 = vld [vmem:[%s21] sm:$0x1]
        %v3584 = vlaneseq
        %v3585 = vshrl.u32 %v3584, 7
        %v3586 = vsub.s32 0, %v3585
        %v3587 = vrot.slane %v3582, %v3586
        %v3590 = vsel %vm1112, %v3577, 0
        %3592 = vmatprep.subr.mxu0 0.0
        %3593 = vmatpush1.msra.mxu0 %v3578
        %3594 = vmatprep.subr.mxu0 0.0
        %3595 = vmatpush1.msra.mxu0 %v3579
        %3596 = vmatprep.subr.mxu0 0.0
        %3597 = vmatpush1.msra.mxu0 %v3580
        %3598 = vmatprep.subr.mxu0 0.0
        %3599 = vmatpush1.msra.mxu0 %v3581
        %3600 = vmatprep.subr.mxu0 0.0
        %3601 = vmatpush1.msra.mxu0 0.0
        %3602 = vmatprep.subr.mxu0 0.0
        %3603 = vmatpush1.msra.mxu0 0.0
        %3604 = vmatprep.subr.mxu0 0.0
        %3605 = vmatpush1.msra.mxu0 0.0
        %3606 = vmatprep.subr.mxu0 0.0
        %3607 = vmatpush1.msra.mxu0 0.0
        %3608 = vmatprep.subr.mxu0 0.0
        %3609 = vmatpush1.msra.mxu0 0.0
        %3610 = vmatprep.subr.mxu0 0.0
        %3611 = vmatpush1.msra.mxu0 0.0
        %3612 = vmatprep.subr.mxu0 0.0
        %3613 = vmatpush1.msra.mxu0 0.0
        %3614 = vmatprep.subr.mxu0 0.0
        %3615 = vmatpush1.msra.mxu0 0.0
        %3616 = vmatprep.subr.mxu0 0.0
        %3617 = vmatpush1.msra.mxu0 0.0
        %3618 = vmatprep.subr.mxu0 0.0
        %3619 = vmatpush1.msra.mxu0 0.0
        %3620 = vmatprep.subr.mxu0 0.0
        %3621 = vmatpush1.msra.mxu0 0.0
        %3622 = vmatprep.subr.mxu0 0.0
        %3623 = vmatpush1.msra.mxu0 0.0
        %3624 = vmatprep.subr.mxu0 0.0
        %3625 = vmatpush1.msra.mxu0 0.0
        %3626 = vmatprep.subr.mxu0 0.0
        %3627 = vmatpush1.msra.mxu0 0.0
        %3628 = vmatprep.subr.mxu0 0.0
        %3629 = vmatpush1.msra.mxu0 0.0
        %3630 = vmatprep.subr.mxu0 0.0
        %3631 = vmatpush1.msra.mxu0 0.0
        %3632 = vmatprep.subr.mxu0 0.0
        %3633 = vmatpush1.msra.mxu0 0.0
        %3634 = vmatprep.subr.mxu0 0.0
        %3635 = vmatpush1.msra.mxu0 0.0
        %3636 = vmatprep.subr.mxu0 0.0
        %3637 = vmatpush1.msra.mxu0 0.0
        %3638 = vmatprep.subr.mxu0 0.0
        %3639 = vmatpush1.msra.mxu0 0.0
        %3640 = vmatprep.subr.mxu0 0.0
        %3641 = vmatpush1.msra.mxu0 0.0
        %3642 = vmatprep.subr.mxu0 0.0
        %3643 = vmatpush1.msra.mxu0 0.0
        %3644 = vmatprep.subr.mxu0 0.0
        %3645 = vmatpush1.msra.mxu0 0.0
        %3646 = vmatprep.subr.mxu0 0.0
        %3647 = vmatpush1.msra.mxu0 0.0
        %3648 = vmatprep.subr.mxu0 0.0
        %3649 = vmatpush1.msra.mxu0 0.0
        %3650 = vmatprep.subr.mxu0 0.0
        %3651 = vmatpush1.msra.mxu0 0.0
        %3652 = vmatprep.subr.mxu0 0.0
        %3653 = vmatpush1.msra.mxu0 0.0
        %3654 = vmatprep.subr.mxu0 0.0
        %3655 = vmatpush1.msra.mxu0 0.0
        %3656 = vmatprep.mubr.f32.mxu0 0.0
        %3657 = vmatmul.mubr.f32.gmra.mrb[0].mxu0 %v3590
        %v3658 = vpop.f32.mrb[0].mxu0
        %v3659 = vadd.f32 %v3587, %v3658
        %v3660 = vpop.f32.mrb[0].mxu0
        %3661 = vdwg.mxu0
        %v3662 = vmax.f32 %v3659, 0.0
        %v3663 = vld [vmem:[#allocation19] sm:$0xff]
        %v3664 = vld [vmem:[#allocation19 + $0x8] sm:$0xff]
        %v3665 = vld [vmem:[#allocation19 + $0x10] sm:$0xff]
        %v3666 = vld [vmem:[#allocation19 + $0x18] sm:$0xff]
        %v3667 = vld [vmem:[#allocation19 + $0x20] sm:$0xff]
        %v3668 = vld [vmem:[#allocation19 + $0x28] sm:$0xff]
        %v3669 = vld [vmem:[#allocation19 + $0x30] sm:$0xff]
        %v3670 = vld [vmem:[#allocation19 + $0x38] sm:$0xff]
        %v3671 = vld [vmem:[%s23] sm:$0x1]
        %v3673 = vlaneseq
        %v3674 = vshrl.u32 %v3673, 7
        %v3675 = vsub.s32 0, %v3674
        %v3676 = vrot.slane %v3671, %v3675
        %vm3678 = vcmask 523264
        %v3680 = vsel %vm3678, %v3662, 0
        %3682 = vmatprep.subr.mxu0 0.0
        %3683 = vmatpush1.msra.mxu0 %v3663
        %3684 = vmatprep.subr.mxu0 0.0
        %3685 = vmatpush1.msra.mxu0 %v3664
        %3686 = vmatprep.subr.mxu0 0.0
        %3687 = vmatpush1.msra.mxu0 %v3665
        %3688 = vmatprep.subr.mxu0 0.0
        %3689 = vmatpush1.msra.mxu0 %v3666
        %3690 = vmatprep.subr.mxu0 0.0
        %3691 = vmatpush1.msra.mxu0 %v3667
        %3692 = vmatprep.subr.mxu0 0.0
        %3693 = vmatpush1.msra.mxu0 %v3668
        %3694 = vmatprep.subr.mxu0 0.0
        %3695 = vmatpush1.msra.mxu0 %v3669
        %3696 = vmatprep.subr.mxu0 0.0
        %3697 = vmatpush1.msra.mxu0 %v3670
        %3698 = vmatprep.subr.mxu0 0.0
        %3699 = vmatpush1.msra.mxu0 0.0
        %3700 = vmatprep.subr.mxu0 0.0
        %3701 = vmatpush1.msra.mxu0 0.0
        %3702 = vmatprep.subr.mxu0 0.0
        %3703 = vmatpush1.msra.mxu0 0.0
        %3704 = vmatprep.subr.mxu0 0.0
        %3705 = vmatpush1.msra.mxu0 0.0
        %3706 = vmatprep.subr.mxu0 0.0
        %3707 = vmatpush1.msra.mxu0 0.0
        %3708 = vmatprep.subr.mxu0 0.0
        %3709 = vmatpush1.msra.mxu0 0.0
        %3710 = vmatprep.subr.mxu0 0.0
        %3711 = vmatpush1.msra.mxu0 0.0
        %3712 = vmatprep.subr.mxu0 0.0
        %3713 = vmatpush1.msra.mxu0 0.0
        %3714 = vmatprep.subr.mxu0 0.0
        %3715 = vmatpush1.msra.mxu0 0.0
        %3716 = vmatprep.subr.mxu0 0.0
        %3717 = vmatpush1.msra.mxu0 0.0
        %3718 = vmatprep.subr.mxu0 0.0
        %3719 = vmatpush1.msra.mxu0 0.0
        %3720 = vmatprep.subr.mxu0 0.0
        %3721 = vmatpush1.msra.mxu0 0.0
        %3722 = vmatprep.subr.mxu0 0.0
        %3723 = vmatpush1.msra.mxu0 0.0
        %3724 = vmatprep.subr.mxu0 0.0
        %3725 = vmatpush1.msra.mxu0 0.0
        %3726 = vmatprep.subr.mxu0 0.0
        %3727 = vmatpush1.msra.mxu0 0.0
        %3728 = vmatprep.subr.mxu0 0.0
        %3729 = vmatpush1.msra.mxu0 0.0
        %3730 = vmatprep.subr.mxu0 0.0
        %3731 = vmatpush1.msra.mxu0 0.0
        %3732 = vmatprep.subr.mxu0 0.0
        %3733 = vmatpush1.msra.mxu0 0.0
        %3734 = vmatprep.subr.mxu0 0.0
        %3735 = vmatpush1.msra.mxu0 0.0
        %3736 = vmatprep.subr.mxu0 0.0
        %3737 = vmatpush1.msra.mxu0 0.0
        %3738 = vmatprep.subr.mxu0 0.0
        %3739 = vmatpush1.msra.mxu0 0.0
        %3740 = vmatprep.subr.mxu0 0.0
        %3741 = vmatpush1.msra.mxu0 0.0
        %3742 = vmatprep.subr.mxu0 0.0
        %3743 = vmatpush1.msra.mxu0 0.0
        %3744 = vmatprep.subr.mxu0 0.0
        %3745 = vmatpush1.msra.mxu0 0.0
        %3746 = vmatprep.mubr.f32.mxu0 0.0
        %3747 = vmatmul.mubr.f32.gmra.mrb[0].mxu0 %v3680
        %v3748 = vpop.f32.mrb[0].mxu0
        %v3749 = vadd.f32 %v3676, %v3748
        %v3750 = vpop.f32.mrb[0].mxu0
        %3751 = vdwg.mxu0
        %v3752 = vadd.f32 %v3577, %v3749
        %v3753 = vld [vmem:[%s24] sm:$0x1]
        %v3754 = vld [vmem:[%s25] sm:$0x1]
        %v3755 = vsel %vm1112, %v3752, 0.0
        %3756 = vadd.xlane.f32.xlu0 %v3755
        %v3757 = vpop.xlane.xlu0 %3756
        %v3758 = vmul.f32 %v3757, %v2469
        %v3759 = vsub.f32 %v3752, %v3758
        %v3760 = vmul.f32 %v3759, %v3759
        %v3761 = vsel %vm1112, %v3760, 0.0
        %3762 = vadd.xlane.f32.xlu0 %v3761
        %v3763 = vpop.xlane.xlu0 %3762
        %v3764 = vmul.f32 %v3763, %v2469
        %v3765 = vadd.f32 %v3764, 1e-05
        %v3766 = vrsqrt.pop %v3765
        %v3767 = vmul.f32 %v3759, %v3766
        %v3769 = vlaneseq
        %v3770 = vshrl.u32 %v3769, 7
        %v3771 = vsub.s32 0, %v3770
        %v3772 = vrot.slane %v3753, %v3771
        %v3774 = vmul.f32 %v3767, %v3772
        %v3776 = vlaneseq
        %v3777 = vshrl.u32 %v3776, 7
        %v3778 = vsub.s32 0, %v3777
        %v3779 = vrot.slane %v3754, %v3778
        %v3781 = vadd.f32 %v3774, %v3779
        %s3782 = scalar_lea.vmem [#allocation9], 32
        %v3783 = vld [vmem:[%s3782] sm:$0xff]
        %v3784 = vld [vmem:[%s3782 + $0x8] sm:$0xff]
        %v3785 = vld [vmem:[%s3782 + $0x10] sm:$0xff]
        %v3786 = vld [vmem:[%s3782 + $0x18] sm:$0xff]
        %s3787 = scalar_lea.vmem [#allocation10], 32
        %v3788 = vld [vmem:[%s3787] sm:$0xff]
        %v3789 = vld [vmem:[%s3787 + $0x8] sm:$0xff]
        %v3790 = vld [vmem:[%s3787 + $0x10] sm:$0xff]
        %v3791 = vld [vmem:[%s3787 + $0x18] sm:$0xff]
        %3792 = vmatprep.subr.mxu0 0.0
        %3793 = vmatpush1.msra.mxu0 %v3788
        %3794 = vmatprep.subr.mxu0 0.0
        %3795 = vmatpush1.msra.mxu0 %v3789
        %3796 = vmatprep.subr.mxu0 0.0
        %3797 = vmatpush1.msra.mxu0 %v3790
        %3798 = vmatprep.subr.mxu0 0.0
        %3799 = vmatpush1.msra.mxu0 %v3791
        %3800 = vmatprep.subr.mxu0 0.0
        %3801 = vmatpush1.msra.mxu0 0.0
        %3802 = vmatprep.subr.mxu0 0.0
        %3803 = vmatpush1.msra.mxu0 0.0
        %3804 = vmatprep.subr.mxu0 0.0
        %3805 = vmatpush1.msra.mxu0 0.0
        %3806 = vmatprep.subr.mxu0 0.0
        %3807 = vmatpush1.msra.mxu0 0.0
        %3808 = vmatprep.subr.mxu0 0.0
        %3809 = vmatpush1.msra.mxu0 0.0
        %3810 = vmatprep.subr.mxu0 0.0
        %3811 = vmatpush1.msra.mxu0 0.0
        %3812 = vmatprep.subr.mxu0 0.0
        %3813 = vmatpush1.msra.mxu0 0.0
        %3814 = vmatprep.subr.mxu0 0.0
        %3815 = vmatpush1.msra.mxu0 0.0
        %3816 = vmatprep.subr.mxu0 0.0
        %3817 = vmatpush1.msra.mxu0 0.0
        %3818 = vmatprep.subr.mxu0 0.0
        %3819 = vmatpush1.msra.mxu0 0.0
        %3820 = vmatprep.subr.mxu0 0.0
        %3821 = vmatpush1.msra.mxu0 0.0
        %3822 = vmatprep.subr.mxu0 0.0
        %3823 = vmatpush1.msra.mxu0 0.0
        %3824 = vmatprep.subr.mxu0 0.0
        %3825 = vmatpush1.msra.mxu0 0.0
        %3826 = vmatprep.subr.mxu0 0.0
        %3827 = vmatpush1.msra.mxu0 0.0
        %3828 = vmatprep.subr.mxu0 0.0
        %3829 = vmatpush1.msra.mxu0 0.0
        %3830 = vmatprep.subr.mxu0 0.0
        %3831 = vmatpush1.msra.mxu0 0.0
        %3832 = vmatprep.subr.mxu0 0.0
        %3833 = vmatpush1.msra.mxu0 0.0
        %3834 = vmatprep.subr.mxu0 0.0
        %3835 = vmatpush1.msra.mxu0 0.0
        %3836 = vmatprep.subr.mxu0 0.0
        %3837 = vmatpush1.msra.mxu0 0.0
        %3838 = vmatprep.subr.mxu0 0.0
        %3839 = vmatpush1.msra.mxu0 0.0
        %3840 = vmatprep.subr.mxu0 0.0
        %3841 = vmatpush1.msra.mxu0 0.0
        %3842 = vmatprep.subr.mxu0 0.0
        %3843 = vmatpush1.msra.mxu0 0.0
        %3844 = vmatprep.subr.mxu0 0.0
        %3845 = vmatpush1.msra.mxu0 0.0
        %3846 = vmatprep.subr.mxu0 0.0
        %3847 = vmatpush1.msra.mxu0 0.0
        %3848 = vmatprep.subr.mxu0 0.0
        %3849 = vmatpush1.msra.mxu0 0.0
        %3850 = vmatprep.subr.mxu0 0.0
        %3851 = vmatpush1.msra.mxu0 0.0
        %3852 = vmatprep.subr.mxu0 0.0
        %3853 = vmatpush1.msra.mxu0 0.0
        %3854 = vmatprep.subr.mxu0 0.0
        %3855 = vmatpush1.msra.mxu0 0.0
        %3856 = vmatprep.mubr.f32.mxu0 0.0
        %3857 = vmatmul.mubr.f32.gmra.mrb[0].mxu0 %v1135
        %v3858 = vpop.f32.mrb[0].mxu0
        %v3859 = vadd.f32 0.0, %v3858
        %v3860 = vpop.f32.mrb[0].mxu0
        %3861 = vdwg.mxu0
        %v3863 = vsel %vm1112, %v3781, 0
        %3865 = vmatprep.subr.mxu0 0.0
        %3866 = vmatpush1.msra.mxu0 %v3783
        %3867 = vmatprep.subr.mxu0 0.0
        %3868 = vmatpush1.msra.mxu0 %v3784
        %3869 = vmatprep.subr.mxu0 0.0
        %3870 = vmatpush1.msra.mxu0 %v3785
        %3871 = vmatprep.subr.mxu0 0.0
        %3872 = vmatpush1.msra.mxu0 %v3786
        %3873 = vmatprep.subr.mxu0 0.0
        %3874 = vmatpush1.msra.mxu0 0.0
        %3875 = vmatprep.subr.mxu0 0.0
        %3876 = vmatpush1.msra.mxu0 0.0
        %3877 = vmatprep.subr.mxu0 0.0
        %3878 = vmatpush1.msra.mxu0 0.0
        %3879 = vmatprep.subr.mxu0 0.0
        %3880 = vmatpush1.msra.mxu0 0.0
        %3881 = vmatprep.subr.mxu0 0.0
        %3882 = vmatpush1.msra.mxu0 0.0
        %3883 = vmatprep.subr.mxu0 0.0
        %3884 = vmatpush1.msra.mxu0 0.0
        %3885 = vmatprep.subr.mxu0 0.0
        %3886 = vmatpush1.msra.mxu0 0.0
        %3887 = vmatprep.subr.mxu0 0.0
        %3888 = vmatpush1.msra.mxu0 0.0
        %3889 = vmatprep.subr.mxu0 0.0
        %3890 = vmatpush1.msra.mxu0 0.0
        %3891 = vmatprep.subr.mxu0 0.0
        %3892 = vmatpush1.msra.mxu0 0.0
        %3893 = vmatprep.subr.mxu0 0.0
        %3894 = vmatpush1.msra.mxu0 0.0
        %3895 = vmatprep.subr.mxu0 0.0
        %3896 = vmatpush1.msra.mxu0 0.0
        %3897 = vmatprep.subr.mxu0 0.0
        %3898 = vmatpush1.msra.mxu0 0.0
        %3899 = vmatprep.subr.mxu0 0.0
        %3900 = vmatpush1.msra.mxu0 0.0
        %3901 = vmatprep.subr.mxu0 0.0
        %3902 = vmatpush1.msra.mxu0 0.0
        %3903 = vmatprep.subr.mxu0 0.0
        %3904 = vmatpush1.msra.mxu0 0.0
        %3905 = vmatprep.subr.mxu0 0.0
        %3906 = vmatpush1.msra.mxu0 0.0
        %3907 = vmatprep.subr.mxu0 0.0
        %3908 = vmatpush1.msra.mxu0 0.0
        %3909 = vmatprep.subr.mxu0 0.0
        %3910 = vmatpush1.msra.mxu0 0.0
        %3911 = vmatprep.subr.mxu0 0.0
        %3912 = vmatpush1.msra.mxu0 0.0
        %3913 = vmatprep.subr.mxu0 0.0
        %3914 = vmatpush1.msra.mxu0 0.0
        %3915 = vmatprep.subr.mxu0 0.0
        %3916 = vmatpush1.msra.mxu0 0.0
        %3917 = vmatprep.subr.mxu0 0.0
        %3918 = vmatpush1.msra.mxu0 0.0
        %3919 = vmatprep.subr.mxu0 0.0
        %3920 = vmatpush1.msra.mxu0 0.0
        %3921 = vmatprep.subr.mxu0 0.0
        %3922 = vmatpush1.msra.mxu0 0.0
        %3923 = vmatprep.subr.mxu0 0.0
        %3924 = vmatpush1.msra.mxu0 0.0
        %3925 = vmatprep.subr.mxu0 0.0
        %3926 = vmatpush1.msra.mxu0 0.0
        %3927 = vmatprep.subr.mxu0 0.0
        %3928 = vmatpush1.msra.mxu0 0.0
        %3929 = vmatprep.mubr.f32.mxu0 0.0
        %3930 = vmatmul.mubr.f32.gmra.mrb[0].mxu0 %v3863
        %v3931 = vpop.f32.mrb[0].mxu0
        %v3932 = vadd.f32 %v3859, %v3931
        %v3933 = vpop.f32.mrb[0].mxu0
        %3934 = vdwg.mxu0
        %s3935 = scalar_lea.vmem %s6, 1
        %v3936 = vld [vmem:[%s3935] sm:$0x1]
        %v3938 = vlaneseq
        %v3939 = vshrl.u32 %v3938, 7
        %v3940 = vsub.s32 0, %v3939
        %v3941 = vrot.slane %v3936, %v3940
        %v3943 = vadd.f32 %v3932, %v3941
        %s3944 = scalar_lea.vmem [#allocation12], 32
        %v3945 = vld [vmem:[%s3944] sm:$0xff]
        %v3946 = vld [vmem:[%s3944 + $0x8] sm:$0xff]
        %v3947 = vld [vmem:[%s3944 + $0x10] sm:$0xff]
        %v3948 = vld [vmem:[%s3944 + $0x18] sm:$0xff]
        %s3949 = scalar_lea.vmem [#allocation13], 16
        %v3950 = vld [vmem:[%s3949] sm:$0xff]
        %v3951 = vld [vmem:[%s3949 + $0x8] sm:$0xff]
        %3952 = vmatprep.subr.mxu0 0.0
        %3953 = vmatpush1.msra.mxu0 %v3950
        %3954 = vmatprep.subr.mxu0 0.0
        %3955 = vmatpush1.msra.mxu0 %v3951
        %3956 = vmatprep.subr.mxu0 0.0
        %3957 = vmatpush1.msra.mxu0 0.0
        %3958 = vmatprep.subr.mxu0 0.0
        %3959 = vmatpush1.msra.mxu0 0.0
        %3960 = vmatprep.subr.mxu0 0.0
        %3961 = vmatpush1.msra.mxu0 0.0
        %3962 = vmatprep.subr.mxu0 0.0
        %3963 = vmatpush1.msra.mxu0 0.0
        %3964 = vmatprep.subr.mxu0 0.0
        %3965 = vmatpush1.msra.mxu0 0.0
        %3966 = vmatprep.subr.mxu0 0.0
        %3967 = vmatpush1.msra.mxu0 0.0
        %3968 = vmatprep.subr.mxu0 0.0
        %3969 = vmatpush1.msra.mxu0 0.0
        %3970 = vmatprep.subr.mxu0 0.0
        %3971 = vmatpush1.msra.mxu0 0.0
        %3972 = vmatprep.subr.mxu0 0.0
        %3973 = vmatpush1.msra.mxu0 0.0
        %3974 = vmatprep.subr.mxu0 0.0
        %3975 = vmatpush1.msra.mxu0 0.0
        %3976 = vmatprep.subr.mxu0 0.0
        %3977 = vmatpush1.msra.mxu0 0.0
        %3978 = vmatprep.subr.mxu0 0.0
        %3979 = vmatpush1.msra.mxu0 0.0
        %3980 = vmatprep.subr.mxu0 0.0
        %3981 = vmatpush1.msra.mxu0 0.0
        %3982 = vmatprep.subr.mxu0 0.0
        %3983 = vmatpush1.msra.mxu0 0.0
        %3984 = vmatprep.subr.mxu0 0.0
        %3985 = vmatpush1.msra.mxu0 0.0
        %3986 = vmatprep.subr.mxu0 0.0
        %3987 = vmatpush1.msra.mxu0 0.0
        %3988 = vmatprep.subr.mxu0 0.0
        %3989 = vmatpush1.msra.mxu0 0.0
        %3990 = vmatprep.subr.mxu0 0.0
        %3991 = vmatpush1.msra.mxu0 0.0
        %3992 = vmatprep.subr.mxu0 0.0
        %3993 = vmatpush1.msra.mxu0 0.0
        %3994 = vmatprep.subr.mxu0 0.0
        %3995 = vmatpush1.msra.mxu0 0.0
        %3996 = vmatprep.subr.mxu0 0.0
        %3997 = vmatpush1.msra.mxu0 0.0
        %3998 = vmatprep.subr.mxu0 0.0
        %3999 = vmatpush1.msra.mxu0 0.0
        %4000 = vmatprep.subr.mxu0 0.0
        %4001 = vmatpush1.msra.mxu0 0.0
        %4002 = vmatprep.subr.mxu0 0.0
        %4003 = vmatpush1.msra.mxu0 0.0
        %4004 = vmatprep.subr.mxu0 0.0
        %4005 = vmatpush1.msra.mxu0 0.0
        %4006 = vmatprep.subr.mxu0 0.0
        %4007 = vmatpush1.msra.mxu0 0.0
        %4008 = vmatprep.subr.mxu0 0.0
        %4009 = vmatpush1.msra.mxu0 0.0
        %4010 = vmatprep.subr.mxu0 0.0
        %4011 = vmatpush1.msra.mxu0 0.0
        %4012 = vmatprep.subr.mxu0 0.0
        %4013 = vmatpush1.msra.mxu0 0.0
        %4014 = vmatprep.subr.mxu0 0.0
        %4015 = vmatpush1.msra.mxu0 0.0
        %4016 = vmatprep.mubr.f32.mxu0 0.0
        %4017 = vmatmul.mubr.f32.gmra.mrb[0].mxu0 %v1296
        %v4018 = vpop.f32.mrb[0].mxu0
        %v4019 = vadd.f32 0.0, %v4018
        %v4020 = vpop.f32.mrb[0].mxu0
        %4021 = vmatprep.mubr.f32.mxu0 0.0
        %4022 = vmatmul.mubr.f32.gmra.mrb[0].mxu0 %v1299
        %v4023 = vpop.f32.mrb[0].mxu0
        %v4024 = vadd.f32 0.0, %v4023
        %v4025 = vpop.f32.mrb[0].mxu0
        %4026 = vdwg.mxu0
        %4027 = vmatprep.subr.mxu0 0.0
        %4028 = vmatpush1.msra.mxu0 %v3945
        %4029 = vmatprep.subr.mxu0 0.0
        %4030 = vmatpush1.msra.mxu0 %v3946
        %4031 = vmatprep.subr.mxu0 0.0
        %4032 = vmatpush1.msra.mxu0 %v3947
        %4033 = vmatprep.subr.mxu0 0.0
        %4034 = vmatpush1.msra.mxu0 %v3948
        %4035 = vmatprep.subr.mxu0 0.0
        %4036 = vmatpush1.msra.mxu0 0.0
        %4037 = vmatprep.subr.mxu0 0.0
        %4038 = vmatpush1.msra.mxu0 0.0
        %4039 = vmatprep.subr.mxu0 0.0
        %4040 = vmatpush1.msra.mxu0 0.0
        %4041 = vmatprep.subr.mxu0 0.0
        %4042 = vmatpush1.msra.mxu0 0.0
        %4043 = vmatprep.subr.mxu0 0.0
        %4044 = vmatpush1.msra.mxu0 0.0
        %4045 = vmatprep.subr.mxu0 0.0
        %4046 = vmatpush1.msra.mxu0 0.0
        %4047 = vmatprep.subr.mxu0 0.0
        %4048 = vmatpush1.msra.mxu0 0.0
        %4049 = vmatprep.subr.mxu0 0.0
        %4050 = vmatpush1.msra.mxu0 0.0
        %4051 = vmatprep.subr.mxu0 0.0
        %4052 = vmatpush1.msra.mxu0 0.0
        %4053 = vmatprep.subr.mxu0 0.0
        %4054 = vmatpush1.msra.mxu0 0.0
        %4055 = vmatprep.subr.mxu0 0.0
        %4056 = vmatpush1.msra.mxu0 0.0
        %4057 = vmatprep.subr.mxu0 0.0
        %4058 = vmatpush1.msra.mxu0 0.0
        %4059 = vmatprep.subr.mxu0 0.0
        %4060 = vmatpush1.msra.mxu0 0.0
        %4061 = vmatprep.subr.mxu0 0.0
        %4062 = vmatpush1.msra.mxu0 0.0
        %4063 = vmatprep.subr.mxu0 0.0
        %4064 = vmatpush1.msra.mxu0 0.0
        %4065 = vmatprep.subr.mxu0 0.0
        %4066 = vmatpush1.msra.mxu0 0.0
        %4067 = vmatprep.subr.mxu0 0.0
        %4068 = vmatpush1.msra.mxu0 0.0
        %4069 = vmatprep.subr.mxu0 0.0
        %4070 = vmatpush1.msra.mxu0 0.0
        %4071 = vmatprep.subr.mxu0 0.0
        %4072 = vmatpush1.msra.mxu0 0.0
        %4073 = vmatprep.subr.mxu0 0.0
        %4074 = vmatpush1.msra.mxu0 0.0
        %4075 = vmatprep.subr.mxu0 0.0
        %4076 = vmatpush1.msra.mxu0 0.0
        %4077 = vmatprep.subr.mxu0 0.0
        %4078 = vmatpush1.msra.mxu0 0.0
        %4079 = vmatprep.subr.mxu0 0.0
        %4080 = vmatpush1.msra.mxu0 0.0
        %4081 = vmatprep.subr.mxu0 0.0
        %4082 = vmatpush1.msra.mxu0 0.0
        %4083 = vmatprep.subr.mxu0 0.0
        %4084 = vmatpush1.msra.mxu0 0.0
        %4085 = vmatprep.subr.mxu0 0.0
        %4086 = vmatpush1.msra.mxu0 0.0
        %4087 = vmatprep.subr.mxu0 0.0
        %4088 = vmatpush1.msra.mxu0 0.0
        %4089 = vmatprep.subr.mxu0 0.0
        %4090 = vmatpush1.msra.mxu0 0.0
        %4091 = vmatprep.mubr.f32.mxu0 0.0
        %4092 = vmatmul.mubr.f32.gmra.mrb[0].mxu0 %v1377
        %v4093 = vpop.f32.mrb[0].mxu0
        %v4094 = vadd.f32 %v4019, %v4093
        %v4095 = vpop.f32.mrb[0].mxu0
        %4096 = vmatprep.mubr.f32.mxu0 0.0
        %4097 = vmatmul.mubr.f32.gmra.mrb[0].mxu0 %v1380
        %v4098 = vpop.f32.mrb[0].mxu0
        %v4099 = vadd.f32 %v4024, %v4098
        %v4100 = vpop.f32.mrb[0].mxu0
        %4101 = vdwg.mxu0
        %s4102 = scalar_lea.vmem %s9, 1
        %v4103 = vld [vmem:[%s4102] sm:$0x1]
        %v4105 = vlaneseq
        %v4106 = vshrl.u32 %v4105, 7
        %v4107 = vsub.s32 0, %v4106
        %v4108 = vrot.slane %v4103, %v4107
        %v4110 = vadd.f32 %v4094, %v4108
        %v4111 = vadd.f32 %v4099, %v4108
        %4113 = vrot.lane.b32.xlu0 %v3943, 120
        %v4114 = vpop.permute.xlu0 %4113
        %4115 = vrot.lane.b32.xlu0 %v3943, 112
        %v4116 = vpop.permute.xlu0 %4115
        %4117 = vrot.lane.b32.xlu0 %v3943, 104
        %v4118 = vpop.permute.xlu0 %4117
        %4121 = vrot.lane.b32.xlu0 %v4110, 120
        %v4122 = vpop.permute.xlu0 %4121
        %4123 = vrot.lane.b32.xlu0 %v4111, 120
        %v4124 = vpop.permute.xlu0 %4123
        %4125 = vrot.lane.b32.xlu0 %v4110, 112
        %v4126 = vpop.permute.xlu0 %4125
        %4127 = vrot.lane.b32.xlu0 %v4111, 112
        %v4128 = vpop.permute.xlu0 %4127
        %4129 = vrot.lane.b32.xlu0 %v4110, 104
        %v4130 = vpop.permute.xlu0 %4129
        %4131 = vrot.lane.b32.xlu0 %v4111, 104
        %v4132 = vpop.permute.xlu0 %4131
        %v4133 = vsel %vm1487, %v3943, 0
        %v4135 = vsel %vm1487, %v4110, 0
        %v4137 = vsel %vm1487, %v4111, 0
        %4139 = vmatprep.subr.mxu0 0.0
        %4140 = vmatpush1.xpose.msra.mxu0 %v4135
        %4141 = vmatprep.subr.mxu0 0.0
        %4142 = vmatpush1.xpose.msra.mxu0 %v4137
        %4143 = vmatprep.subr.mxu0 0.0
        %4144 = vmatpush1.xpose.msra.mxu0 0.0
        %4145 = vmatprep.subr.mxu0 0.0
        %4146 = vmatpush1.xpose.msra.mxu0 0.0
        %4147 = vmatprep.subr.mxu0 0.0
        %4148 = vmatpush1.xpose.msra.mxu0 0.0
        %4149 = vmatprep.subr.mxu0 0.0
        %4150 = vmatpush1.xpose.msra.mxu0 0.0
        %4151 = vmatprep.subr.mxu0 0.0
        %4152 = vmatpush1.xpose.msra.mxu0 0.0
        %4153 = vmatprep.subr.mxu0 0.0
        %4154 = vmatpush1.xpose.msra.mxu0 0.0
        %4155 = vmatprep.subr.mxu0 0.0
        %4156 = vmatpush1.xpose.msra.mxu0 0.0
        %4157 = vmatprep.subr.mxu0 0.0
        %4158 = vmatpush1.xpose.msra.mxu0 0.0
        %4159 = vmatprep.subr.mxu0 0.0
        %4160 = vmatpush1.xpose.msra.mxu0 0.0
        %4161 = vmatprep.subr.mxu0 0.0
        %4162 = vmatpush1.xpose.msra.mxu0 0.0
        %4163 = vmatprep.subr.mxu0 0.0
        %4164 = vmatpush1.xpose.msra.mxu0 0.0
        %4165 = vmatprep.subr.mxu0 0.0
        %4166 = vmatpush1.xpose.msra.mxu0 0.0
        %4167 = vmatprep.subr.mxu0 0.0
        %4168 = vmatpush1.xpose.msra.mxu0 0.0
        %4169 = vmatprep.subr.mxu0 0.0
        %4170 = vmatpush1.xpose.msra.mxu0 0.0
        %4171 = vmatprep.subr.mxu0 0.0
        %4172 = vmatpush1.xpose.msra.mxu0 0.0
        %4173 = vmatprep.subr.mxu0 0.0
        %4174 = vmatpush1.xpose.msra.mxu0 0.0
        %4175 = vmatprep.subr.mxu0 0.0
        %4176 = vmatpush1.xpose.msra.mxu0 0.0
        %4177 = vmatprep.subr.mxu0 0.0
        %4178 = vmatpush1.xpose.msra.mxu0 0.0
        %4179 = vmatprep.subr.mxu0 0.0
        %4180 = vmatpush1.xpose.msra.mxu0 0.0
        %4181 = vmatprep.subr.mxu0 0.0
        %4182 = vmatpush1.xpose.msra.mxu0 0.0
        %4183 = vmatprep.subr.mxu0 0.0
        %4184 = vmatpush1.xpose.msra.mxu0 0.0
        %4185 = vmatprep.subr.mxu0 0.0
        %4186 = vmatpush1.xpose.msra.mxu0 0.0
        %4187 = vmatprep.subr.mxu0 0.0
        %4188 = vmatpush1.xpose.msra.mxu0 0.0
        %4189 = vmatprep.subr.mxu0 0.0
        %4190 = vmatpush1.xpose.msra.mxu0 0.0
        %4191 = vmatprep.subr.mxu0 0.0
        %4192 = vmatpush1.xpose.msra.mxu0 0.0
        %4193 = vmatprep.subr.mxu0 0.0
        %4194 = vmatpush1.xpose.msra.mxu0 0.0
        %4195 = vmatprep.subr.mxu0 0.0
        %4196 = vmatpush1.xpose.msra.mxu0 0.0
        %4197 = vmatprep.subr.mxu0 0.0
        %4198 = vmatpush1.xpose.msra.mxu0 0.0
        %4199 = vmatprep.subr.mxu0 0.0
        %4200 = vmatpush1.xpose.msra.mxu0 0.0
        %4201 = vmatprep.subr.mxu0 0.0
        %4202 = vmatpush1.xpose.msra.mxu0 0.0
        %4203 = vmatprep.mubr.f32.mxu0 0.0
        %4204 = vmatmul.mubr.f32.gmra.mrb[0].mxu0 %v4133
        %v4205 = vpop.f32.mrb[0].mxu0
        %v4206 = vadd.f32 0.0, %v4205
        %v4207 = vpop.f32.mrb[0].mxu0
        %4208 = vdwg.mxu0
        %v4209 = vsel %vm1487, %v4114, 0
        %v4211 = vsel %vm1487, %v4122, 0
        %v4213 = vsel %vm1487, %v4124, 0
        %4215 = vmatprep.subr.mxu0 0.0
        %4216 = vmatpush1.xpose.msra.mxu0 %v4211
        %4217 = vmatprep.subr.mxu0 0.0
        %4218 = vmatpush1.xpose.msra.mxu0 %v4213
        %4219 = vmatprep.subr.mxu0 0.0
        %4220 = vmatpush1.xpose.msra.mxu0 0.0
        %4221 = vmatprep.subr.mxu0 0.0
        %4222 = vmatpush1.xpose.msra.mxu0 0.0
        %4223 = vmatprep.subr.mxu0 0.0
        %4224 = vmatpush1.xpose.msra.mxu0 0.0
        %4225 = vmatprep.subr.mxu0 0.0
        %4226 = vmatpush1.xpose.msra.mxu0 0.0
        %4227 = vmatprep.subr.mxu0 0.0
        %4228 = vmatpush1.xpose.msra.mxu0 0.0
        %4229 = vmatprep.subr.mxu0 0.0
        %4230 = vmatpush1.xpose.msra.mxu0 0.0
        %4231 = vmatprep.subr.mxu0 0.0
        %4232 = vmatpush1.xpose.msra.mxu0 0.0
        %4233 = vmatprep.subr.mxu0 0.0
        %4234 = vmatpush1.xpose.msra.mxu0 0.0
        %4235 = vmatprep.subr.mxu0 0.0
        %4236 = vmatpush1.xpose.msra.mxu0 0.0
        %4237 = vmatprep.subr.mxu0 0.0
        %4238 = vmatpush1.xpose.msra.mxu0 0.0
        %4239 = vmatprep.subr.mxu0 0.0
        %4240 = vmatpush1.xpose.msra.mxu0 0.0
        %4241 = vmatprep.subr.mxu0 0.0
        %4242 = vmatpush1.xpose.msra.mxu0 0.0
        %4243 = vmatprep.subr.mxu0 0.0
        %4244 = vmatpush1.xpose.msra.mxu0 0.0
        %4245 = vmatprep.subr.mxu0 0.0
        %4246 = vmatpush1.xpose.msra.mxu0 0.0
        %4247 = vmatprep.subr.mxu0 0.0
        %4248 = vmatpush1.xpose.msra.mxu0 0.0
        %4249 = vmatprep.subr.mxu0 0.0
        %4250 = vmatpush1.xpose.msra.mxu0 0.0
        %4251 = vmatprep.subr.mxu0 0.0
        %4252 = vmatpush1.xpose.msra.mxu0 0.0
        %4253 = vmatprep.subr.mxu0 0.0
        %4254 = vmatpush1.xpose.msra.mxu0 0.0
        %4255 = vmatprep.subr.mxu0 0.0
        %4256 = vmatpush1.xpose.msra.mxu0 0.0
        %4257 = vmatprep.subr.mxu0 0.0
        %4258 = vmatpush1.xpose.msra.mxu0 0.0
        %4259 = vmatprep.subr.mxu0 0.0
        %4260 = vmatpush1.xpose.msra.mxu0 0.0
        %4261 = vmatprep.subr.mxu0 0.0
        %4262 = vmatpush1.xpose.msra.mxu0 0.0
        %4263 = vmatprep.subr.mxu0 0.0
        %4264 = vmatpush1.xpose.msra.mxu0 0.0
        %4265 = vmatprep.subr.mxu0 0.0
        %4266 = vmatpush1.xpose.msra.mxu0 0.0
        %4267 = vmatprep.subr.mxu0 0.0
        %4268 = vmatpush1.xpose.msra.mxu0 0.0
        %4269 = vmatprep.subr.mxu0 0.0
        %4270 = vmatpush1.xpose.msra.mxu0 0.0
        %4271 = vmatprep.subr.mxu0 0.0
        %4272 = vmatpush1.xpose.msra.mxu0 0.0
        %4273 = vmatprep.subr.mxu0 0.0
        %4274 = vmatpush1.xpose.msra.mxu0 0.0
        %4275 = vmatprep.subr.mxu0 0.0
        %4276 = vmatpush1.xpose.msra.mxu0 0.0
        %4277 = vmatprep.subr.mxu0 0.0
        %4278 = vmatpush1.xpose.msra.mxu0 0.0
        %4279 = vmatprep.mubr.f32.mxu0 0.0
        %4280 = vmatmul.mubr.f32.gmra.mrb[0].mxu0 %v4209
        %v4281 = vpop.f32.mrb[0].mxu0
        %v4282 = vadd.f32 0.0, %v4281
        %v4283 = vpop.f32.mrb[0].mxu0
        %4284 = vdwg.mxu0
        %v4285 = vsel %vm1487, %v4116, 0
        %v4287 = vsel %vm1487, %v4126, 0
        %v4289 = vsel %vm1487, %v4128, 0
        %4291 = vmatprep.subr.mxu0 0.0
        %4292 = vmatpush1.xpose.msra.mxu0 %v4287
        %4293 = vmatprep.subr.mxu0 0.0
        %4294 = vmatpush1.xpose.msra.mxu0 %v4289
        %4295 = vmatprep.subr.mxu0 0.0
        %4296 = vmatpush1.xpose.msra.mxu0 0.0
        %4297 = vmatprep.subr.mxu0 0.0
        %4298 = vmatpush1.xpose.msra.mxu0 0.0
        %4299 = vmatprep.subr.mxu0 0.0
        %4300 = vmatpush1.xpose.msra.mxu0 0.0
        %4301 = vmatprep.subr.mxu0 0.0
        %4302 = vmatpush1.xpose.msra.mxu0 0.0
        %4303 = vmatprep.subr.mxu0 0.0
        %4304 = vmatpush1.xpose.msra.mxu0 0.0
        %4305 = vmatprep.subr.mxu0 0.0
        %4306 = vmatpush1.xpose.msra.mxu0 0.0
        %4307 = vmatprep.subr.mxu0 0.0
        %4308 = vmatpush1.xpose.msra.mxu0 0.0
        %4309 = vmatprep.subr.mxu0 0.0
        %4310 = vmatpush1.xpose.msra.mxu0 0.0
        %4311 = vmatprep.subr.mxu0 0.0
        %4312 = vmatpush1.xpose.msra.mxu0 0.0
        %4313 = vmatprep.subr.mxu0 0.0
        %4314 = vmatpush1.xpose.msra.mxu0 0.0
        %4315 = vmatprep.subr.mxu0 0.0
        %4316 = vmatpush1.xpose.msra.mxu0 0.0
        %4317 = vmatprep.subr.mxu0 0.0
        %4318 = vmatpush1.xpose.msra.mxu0 0.0
        %4319 = vmatprep.subr.mxu0 0.0
        %4320 = vmatpush1.xpose.msra.mxu0 0.0
        %4321 = vmatprep.subr.mxu0 0.0
        %4322 = vmatpush1.xpose.msra.mxu0 0.0
        %4323 = vmatprep.subr.mxu0 0.0
        %4324 = vmatpush1.xpose.msra.mxu0 0.0
        %4325 = vmatprep.subr.mxu0 0.0
        %4326 = vmatpush1.xpose.msra.mxu0 0.0
        %4327 = vmatprep.subr.mxu0 0.0
        %4328 = vmatpush1.xpose.msra.mxu0 0.0
        %4329 = vmatprep.subr.mxu0 0.0
        %4330 = vmatpush1.xpose.msra.mxu0 0.0
        %4331 = vmatprep.subr.mxu0 0.0
        %4332 = vmatpush1.xpose.msra.mxu0 0.0
        %4333 = vmatprep.subr.mxu0 0.0
        %4334 = vmatpush1.xpose.msra.mxu0 0.0
        %4335 = vmatprep.subr.mxu0 0.0
        %4336 = vmatpush1.xpose.msra.mxu0 0.0
        %4337 = vmatprep.subr.mxu0 0.0
        %4338 = vmatpush1.xpose.msra.mxu0 0.0
        %4339 = vmatprep.subr.mxu0 0.0
        %4340 = vmatpush1.xpose.msra.mxu0 0.0
        %4341 = vmatprep.subr.mxu0 0.0
        %4342 = vmatpush1.xpose.msra.mxu0 0.0
        %4343 = vmatprep.subr.mxu0 0.0
        %4344 = vmatpush1.xpose.msra.mxu0 0.0
        %4345 = vmatprep.subr.mxu0 0.0
        %4346 = vmatpush1.xpose.msra.mxu0 0.0
        %4347 = vmatprep.subr.mxu0 0.0
        %4348 = vmatpush1.xpose.msra.mxu0 0.0
        %4349 = vmatprep.subr.mxu0 0.0
        %4350 = vmatpush1.xpose.msra.mxu0 0.0
        %4351 = vmatprep.subr.mxu0 0.0
        %4352 = vmatpush1.xpose.msra.mxu0 0.0
        %4353 = vmatprep.subr.mxu0 0.0
        %4354 = vmatpush1.xpose.msra.mxu0 0.0
        %4355 = vmatprep.mubr.f32.mxu0 0.0
        %4356 = vmatmul.mubr.f32.gmra.mrb[0].mxu0 %v4285
        %v4357 = vpop.f32.mrb[0].mxu0
        %v4358 = vadd.f32 0.0, %v4357
        %v4359 = vpop.f32.mrb[0].mxu0
        %4360 = vdwg.mxu0
        %v4361 = vsel %vm1487, %v4118, 0
        %v4363 = vsel %vm1487, %v4130, 0
        %v4365 = vsel %vm1487, %v4132, 0
        %4367 = vmatprep.subr.mxu0 0.0
        %4368 = vmatpush1.xpose.msra.mxu0 %v4363
        %4369 = vmatprep.subr.mxu0 0.0
        %4370 = vmatpush1.xpose.msra.mxu0 %v4365
        %4371 = vmatprep.subr.mxu0 0.0
        %4372 = vmatpush1.xpose.msra.mxu0 0.0
        %4373 = vmatprep.subr.mxu0 0.0
        %4374 = vmatpush1.xpose.msra.mxu0 0.0
        %4375 = vmatprep.subr.mxu0 0.0
        %4376 = vmatpush1.xpose.msra.mxu0 0.0
        %4377 = vmatprep.subr.mxu0 0.0
        %4378 = vmatpush1.xpose.msra.mxu0 0.0
        %4379 = vmatprep.subr.mxu0 0.0
        %4380 = vmatpush1.xpose.msra.mxu0 0.0
        %4381 = vmatprep.subr.mxu0 0.0
        %4382 = vmatpush1.xpose.msra.mxu0 0.0
        %4383 = vmatprep.subr.mxu0 0.0
        %4384 = vmatpush1.xpose.msra.mxu0 0.0
        %4385 = vmatprep.subr.mxu0 0.0
        %4386 = vmatpush1.xpose.msra.mxu0 0.0
        %4387 = vmatprep.subr.mxu0 0.0
        %4388 = vmatpush1.xpose.msra.mxu0 0.0
        %4389 = vmatprep.subr.mxu0 0.0
        %4390 = vmatpush1.xpose.msra.mxu0 0.0
        %4391 = vmatprep.subr.mxu0 0.0
        %4392 = vmatpush1.xpose.msra.mxu0 0.0
        %4393 = vmatprep.subr.mxu0 0.0
        %4394 = vmatpush1.xpose.msra.mxu0 0.0
        %4395 = vmatprep.subr.mxu0 0.0
        %4396 = vmatpush1.xpose.msra.mxu0 0.0
        %4397 = vmatprep.subr.mxu0 0.0
        %4398 = vmatpush1.xpose.msra.mxu0 0.0
        %4399 = vmatprep.subr.mxu0 0.0
        %4400 = vmatpush1.xpose.msra.mxu0 0.0
        %4401 = vmatprep.subr.mxu0 0.0
        %4402 = vmatpush1.xpose.msra.mxu0 0.0
        %4403 = vmatprep.subr.mxu0 0.0
        %4404 = vmatpush1.xpose.msra.mxu0 0.0
        %4405 = vmatprep.subr.mxu0 0.0
        %4406 = vmatpush1.xpose.msra.mxu0 0.0
        %4407 = vmatprep.subr.mxu0 0.0
        %4408 = vmatpush1.xpose.msra.mxu0 0.0
        %4409 = vmatprep.subr.mxu0 0.0
        %4410 = vmatpush1.xpose.msra.mxu0 0.0
        %4411 = vmatprep.subr.mxu0 0.0
        %4412 = vmatpush1.xpose.msra.mxu0 0.0
        %4413 = vmatprep.subr.mxu0 0.0
        %4414 = vmatpush1.xpose.msra.mxu0 0.0
        %4415 = vmatprep.subr.mxu0 0.0
        %4416 = vmatpush1.xpose.msra.mxu0 0.0
        %4417 = vmatprep.subr.mxu0 0.0
        %4418 = vmatpush1.xpose.msra.mxu0 0.0
        %4419 = vmatprep.subr.mxu0 0.0
        %4420 = vmatpush1.xpose.msra.mxu0 0.0
        %4421 = vmatprep.subr.mxu0 0.0
        %4422 = vmatpush1.xpose.msra.mxu0 0.0
        %4423 = vmatprep.subr.mxu0 0.0
        %4424 = vmatpush1.xpose.msra.mxu0 0.0
        %4425 = vmatprep.subr.mxu0 0.0
        %4426 = vmatpush1.xpose.msra.mxu0 0.0
        %4427 = vmatprep.subr.mxu0 0.0
        %4428 = vmatpush1.xpose.msra.mxu0 0.0
        %4429 = vmatprep.subr.mxu0 0.0
        %4430 = vmatpush1.xpose.msra.mxu0 0.0
        %4431 = vmatprep.mubr.f32.mxu0 0.0
        %4432 = vmatmul.mubr.f32.gmra.mrb[0].mxu0 %v4361
        %v4433 = vpop.f32.mrb[0].mxu0
        %v4434 = vadd.f32 0.0, %v4433
        %v4435 = vpop.f32.mrb[0].mxu0
        %4436 = vdwg.mxu0
        %v4437 = vsel %vm1294, %v4206, -inf
        %4438 = vmax.xlane.f32.xlu0 %v4437
        %v4439 = vpop.xlane.xlu0 %4438
        %v4440 = vsel %vm1294, %v4282, -inf
        %4441 = vmax.xlane.f32.xlu0 %v4440
        %v4442 = vpop.xlane.xlu0 %4441
        %v4443 = vsel %vm1294, %v4358, -inf
        %4444 = vmax.xlane.f32.xlu0 %v4443
        %v4445 = vpop.xlane.xlu0 %4444
        %v4446 = vsel %vm1294, %v4434, -inf
        %4447 = vmax.xlane.f32.xlu0 %v4446
        %v4448 = vpop.xlane.xlu0 %4447
        %v4449 = vsub.f32 %v4206, %v4439
        %v4450 = vsub.f32 %v4282, %v4442
        %v4451 = vsub.f32 %v4358, %v4445
        %v4452 = vsub.f32 %v4434, %v4448
        %v4453 = vmul.f32 %v4449, 1.442695
        %v4454 = vpow.pop %v4453
        %v4455 = vmul.f32 %v4450, 1.442695
        %v4456 = vpow.pop %v4455
        %v4457 = vmul.f32 %v4451, 1.442695
        %v4458 = vpow.pop %v4457
        %v4459 = vmul.f32 %v4452, 1.442695
        %v4460 = vpow.pop %v4459
        %v4461 = vsel %vm1294, %v4454, 0.0
        %4462 = vadd.xlane.f32.xlu0 %v4461
        %v4463 = vpop.xlane.xlu0 %4462
        %v4464 = vsel %vm1294, %v4456, 0.0
        %4465 = vadd.xlane.f32.xlu0 %v4464
        %v4466 = vpop.xlane.xlu0 %4465
        %v4467 = vsel %vm1294, %v4458, 0.0
        %4468 = vadd.xlane.f32.xlu0 %v4467
        %v4469 = vpop.xlane.xlu0 %4468
        %v4470 = vsel %vm1294, %v4460, 0.0
        %4471 = vadd.xlane.f32.xlu0 %v4470
        %v4472 = vpop.xlane.xlu0 %4471
        %v4473 = vrcp.pop %v4463
        %v4474 = vrcp.pop %v4466
        %v4475 = vrcp.pop %v4469
        %v4476 = vrcp.pop %v4472
        %v4477 = vmul.f32 %v4454, %v4473
        %v4478 = vmul.f32 %v4456, %v4474
        %v4479 = vmul.f32 %v4458, %v4475
        %v4480 = vmul.f32 %v4460, %v4476
        %4481 = vrot.lane.b32.xlu0 %v4110, 96
        %v4482 = vpop.permute.xlu0 %4481
        %4483 = vrot.lane.b32.xlu0 %v4111, 96
        %v4484 = vpop.permute.xlu0 %4483
        %v4488 = vsel %vm1294, %v4477, 0
        %4490 = vmatprep.subr.mxu0 0.0
        %4491 = vmatpush1.msra.mxu0 %v4482
        %4492 = vmatprep.subr.mxu0 0.0
        %4493 = vmatpush1.msra.mxu0 %v4484
        %4494 = vmatprep.subr.mxu0 0.0
        %4495 = vmatpush1.msra.mxu0 0.0
        %4496 = vmatprep.subr.mxu0 0.0
        %4497 = vmatpush1.msra.mxu0 0.0
        %4498 = vmatprep.subr.mxu0 0.0
        %4499 = vmatpush1.msra.mxu0 0.0
        %4500 = vmatprep.subr.mxu0 0.0
        %4501 = vmatpush1.msra.mxu0 0.0
        %4502 = vmatprep.subr.mxu0 0.0
        %4503 = vmatpush1.msra.mxu0 0.0
        %4504 = vmatprep.subr.mxu0 0.0
        %4505 = vmatpush1.msra.mxu0 0.0
        %4506 = vmatprep.subr.mxu0 0.0
        %4507 = vmatpush1.msra.mxu0 0.0
        %4508 = vmatprep.subr.mxu0 0.0
        %4509 = vmatpush1.msra.mxu0 0.0
        %4510 = vmatprep.subr.mxu0 0.0
        %4511 = vmatpush1.msra.mxu0 0.0
        %4512 = vmatprep.subr.mxu0 0.0
        %4513 = vmatpush1.msra.mxu0 0.0
        %4514 = vmatprep.subr.mxu0 0.0
        %4515 = vmatpush1.msra.mxu0 0.0
        %4516 = vmatprep.subr.mxu0 0.0
        %4517 = vmatpush1.msra.mxu0 0.0
        %4518 = vmatprep.subr.mxu0 0.0
        %4519 = vmatpush1.msra.mxu0 0.0
        %4520 = vmatprep.subr.mxu0 0.0
        %4521 = vmatpush1.msra.mxu0 0.0
        %4522 = vmatprep.subr.mxu0 0.0
        %4523 = vmatpush1.msra.mxu0 0.0
        %4524 = vmatprep.subr.mxu0 0.0
        %4525 = vmatpush1.msra.mxu0 0.0
        %4526 = vmatprep.subr.mxu0 0.0
        %4527 = vmatpush1.msra.mxu0 0.0
        %4528 = vmatprep.subr.mxu0 0.0
        %4529 = vmatpush1.msra.mxu0 0.0
        %4530 = vmatprep.subr.mxu0 0.0
        %4531 = vmatpush1.msra.mxu0 0.0
        %4532 = vmatprep.subr.mxu0 0.0
        %4533 = vmatpush1.msra.mxu0 0.0
        %4534 = vmatprep.subr.mxu0 0.0
        %4535 = vmatpush1.msra.mxu0 0.0
        %4536 = vmatprep.subr.mxu0 0.0
        %4537 = vmatpush1.msra.mxu0 0.0
        %4538 = vmatprep.subr.mxu0 0.0
        %4539 = vmatpush1.msra.mxu0 0.0
        %4540 = vmatprep.subr.mxu0 0.0
        %4541 = vmatpush1.msra.mxu0 0.0
        %4542 = vmatprep.subr.mxu0 0.0
        %4543 = vmatpush1.msra.mxu0 0.0
        %4544 = vmatprep.subr.mxu0 0.0
        %4545 = vmatpush1.msra.mxu0 0.0
        %4546 = vmatprep.subr.mxu0 0.0
        %4547 = vmatpush1.msra.mxu0 0.0
        %4548 = vmatprep.subr.mxu0 0.0
        %4549 = vmatpush1.msra.mxu0 0.0
        %4550 = vmatprep.subr.mxu0 0.0
        %4551 = vmatpush1.msra.mxu0 0.0
        %4552 = vmatprep.subr.mxu0 0.0
        %4553 = vmatpush1.msra.mxu0 0.0
        %4554 = vmatprep.mubr.f32.mxu0 0.0
        %4555 = vmatmul.mubr.f32.gmra.mrb[0].mxu0 %v4488
        %v4556 = vpop.f32.mrb[0].mxu0
        %v4557 = vadd.f32 0.0, %v4556
        %v4558 = vpop.f32.mrb[0].mxu0
        %4559 = vdwg.mxu0
        %4560 = vrot.lane.b32.xlu0 %v4122, 96
        %v4561 = vpop.permute.xlu0 %4560
        %4562 = vrot.lane.b32.xlu0 %v4124, 96
        %v4563 = vpop.permute.xlu0 %4562
        %v4567 = vsel %vm1294, %v4478, 0
        %4569 = vmatprep.subr.mxu0 0.0
        %4570 = vmatpush1.msra.mxu0 %v4561
        %4571 = vmatprep.subr.mxu0 0.0
        %4572 = vmatpush1.msra.mxu0 %v4563
        %4573 = vmatprep.subr.mxu0 0.0
        %4574 = vmatpush1.msra.mxu0 0.0
        %4575 = vmatprep.subr.mxu0 0.0
        %4576 = vmatpush1.msra.mxu0 0.0
        %4577 = vmatprep.subr.mxu0 0.0
        %4578 = vmatpush1.msra.mxu0 0.0
        %4579 = vmatprep.subr.mxu0 0.0
        %4580 = vmatpush1.msra.mxu0 0.0
        %4581 = vmatprep.subr.mxu0 0.0
        %4582 = vmatpush1.msra.mxu0 0.0
        %4583 = vmatprep.subr.mxu0 0.0
        %4584 = vmatpush1.msra.mxu0 0.0
        %4585 = vmatprep.subr.mxu0 0.0
        %4586 = vmatpush1.msra.mxu0 0.0
        %4587 = vmatprep.subr.mxu0 0.0
        %4588 = vmatpush1.msra.mxu0 0.0
        %4589 = vmatprep.subr.mxu0 0.0
        %4590 = vmatpush1.msra.mxu0 0.0
        %4591 = vmatprep.subr.mxu0 0.0
        %4592 = vmatpush1.msra.mxu0 0.0
        %4593 = vmatprep.subr.mxu0 0.0
        %4594 = vmatpush1.msra.mxu0 0.0
        %4595 = vmatprep.subr.mxu0 0.0
        %4596 = vmatpush1.msra.mxu0 0.0
        %4597 = vmatprep.subr.mxu0 0.0
        %4598 = vmatpush1.msra.mxu0 0.0
        %4599 = vmatprep.subr.mxu0 0.0
        %4600 = vmatpush1.msra.mxu0 0.0
        %4601 = vmatprep.subr.mxu0 0.0
        %4602 = vmatpush1.msra.mxu0 0.0
        %4603 = vmatprep.subr.mxu0 0.0
        %4604 = vmatpush1.msra.mxu0 0.0
        %4605 = vmatprep.subr.mxu0 0.0
        %4606 = vmatpush1.msra.mxu0 0.0
        %4607 = vmatprep.subr.mxu0 0.0
        %4608 = vmatpush1.msra.mxu0 0.0
        %4609 = vmatprep.subr.mxu0 0.0
        %4610 = vmatpush1.msra.mxu0 0.0
        %4611 = vmatprep.subr.mxu0 0.0
        %4612 = vmatpush1.msra.mxu0 0.0
        %4613 = vmatprep.subr.mxu0 0.0
        %4614 = vmatpush1.msra.mxu0 0.0
        %4615 = vmatprep.subr.mxu0 0.0
        %4616 = vmatpush1.msra.mxu0 0.0
        %4617 = vmatprep.subr.mxu0 0.0
        %4618 = vmatpush1.msra.mxu0 0.0
        %4619 = vmatprep.subr.mxu0 0.0
        %4620 = vmatpush1.msra.mxu0 0.0
        %4621 = vmatprep.subr.mxu0 0.0
        %4622 = vmatpush1.msra.mxu0 0.0
        %4623 = vmatprep.subr.mxu0 0.0
        %4624 = vmatpush1.msra.mxu0 0.0
        %4625 = vmatprep.subr.mxu0 0.0
        %4626 = vmatpush1.msra.mxu0 0.0
        %4627 = vmatprep.subr.mxu0 0.0
        %4628 = vmatpush1.msra.mxu0 0.0
        %4629 = vmatprep.subr.mxu0 0.0
        %4630 = vmatpush1.msra.mxu0 0.0
        %4631 = vmatprep.subr.mxu0 0.0
        %4632 = vmatpush1.msra.mxu0 0.0
        %4633 = vmatprep.mubr.f32.mxu0 0.0
        %4634 = vmatmul.mubr.f32.gmra.mrb[0].mxu0 %v4567
        %v4635 = vpop.f32.mrb[0].mxu0
        %v4636 = vadd.f32 0.0, %v4635
        %v4637 = vpop.f32.mrb[0].mxu0
        %4638 = vdwg.mxu0
        %4639 = vrot.lane.b32.xlu0 %v4126, 96
        %v4640 = vpop.permute.xlu0 %4639
        %4641 = vrot.lane.b32.xlu0 %v4128, 96
        %v4642 = vpop.permute.xlu0 %4641
        %v4646 = vsel %vm1294, %v4479, 0
        %4648 = vmatprep.subr.mxu0 0.0
        %4649 = vmatpush1.msra.mxu0 %v4640
        %4650 = vmatprep.subr.mxu0 0.0
        %4651 = vmatpush1.msra.mxu0 %v4642
        %4652 = vmatprep.subr.mxu0 0.0
        %4653 = vmatpush1.msra.mxu0 0.0
        %4654 = vmatprep.subr.mxu0 0.0
        %4655 = vmatpush1.msra.mxu0 0.0
        %4656 = vmatprep.subr.mxu0 0.0
        %4657 = vmatpush1.msra.mxu0 0.0
        %4658 = vmatprep.subr.mxu0 0.0
        %4659 = vmatpush1.msra.mxu0 0.0
        %4660 = vmatprep.subr.mxu0 0.0
        %4661 = vmatpush1.msra.mxu0 0.0
        %4662 = vmatprep.subr.mxu0 0.0
        %4663 = vmatpush1.msra.mxu0 0.0
        %4664 = vmatprep.subr.mxu0 0.0
        %4665 = vmatpush1.msra.mxu0 0.0
        %4666 = vmatprep.subr.mxu0 0.0
        %4667 = vmatpush1.msra.mxu0 0.0
        %4668 = vmatprep.subr.mxu0 0.0
        %4669 = vmatpush1.msra.mxu0 0.0
        %4670 = vmatprep.subr.mxu0 0.0
        %4671 = vmatpush1.msra.mxu0 0.0
        %4672 = vmatprep.subr.mxu0 0.0
        %4673 = vmatpush1.msra.mxu0 0.0
        %4674 = vmatprep.subr.mxu0 0.0
        %4675 = vmatpush1.msra.mxu0 0.0
        %4676 = vmatprep.subr.mxu0 0.0
        %4677 = vmatpush1.msra.mxu0 0.0
        %4678 = vmatprep.subr.mxu0 0.0
        %4679 = vmatpush1.msra.mxu0 0.0
        %4680 = vmatprep.subr.mxu0 0.0
        %4681 = vmatpush1.msra.mxu0 0.0
        %4682 = vmatprep.subr.mxu0 0.0
        %4683 = vmatpush1.msra.mxu0 0.0
        %4684 = vmatprep.subr.mxu0 0.0
        %4685 = vmatpush1.msra.mxu0 0.0
        %4686 = vmatprep.subr.mxu0 0.0
        %4687 = vmatpush1.msra.mxu0 0.0
        %4688 = vmatprep.subr.mxu0 0.0
        %4689 = vmatpush1.msra.mxu0 0.0
        %4690 = vmatprep.subr.mxu0 0.0
        %4691 = vmatpush1.msra.mxu0 0.0
        %4692 = vmatprep.subr.mxu0 0.0
        %4693 = vmatpush1.msra.mxu0 0.0
        %4694 = vmatprep.subr.mxu0 0.0
        %4695 = vmatpush1.msra.mxu0 0.0
        %4696 = vmatprep.subr.mxu0 0.0
        %4697 = vmatpush1.msra.mxu0 0.0
        %4698 = vmatprep.subr.mxu0 0.0
        %4699 = vmatpush1.msra.mxu0 0.0
        %4700 = vmatprep.subr.mxu0 0.0
        %4701 = vmatpush1.msra.mxu0 0.0
        %4702 = vmatprep.subr.mxu0 0.0
        %4703 = vmatpush1.msra.mxu0 0.0
        %4704 = vmatprep.subr.mxu0 0.0
        %4705 = vmatpush1.msra.mxu0 0.0
        %4706 = vmatprep.subr.mxu0 0.0
        %4707 = vmatpush1.msra.mxu0 0.0
        %4708 = vmatprep.subr.mxu0 0.0
        %4709 = vmatpush1.msra.mxu0 0.0
        %4710 = vmatprep.subr.mxu0 0.0
        %4711 = vmatpush1.msra.mxu0 0.0
        %4712 = vmatprep.mubr.f32.mxu0 0.0
        %4713 = vmatmul.mubr.f32.gmra.mrb[0].mxu0 %v4646
        %v4714 = vpop.f32.mrb[0].mxu0
        %v4715 = vadd.f32 0.0, %v4714
        %v4716 = vpop.f32.mrb[0].mxu0
        %4717 = vdwg.mxu0
        %4718 = vrot.lane.b32.xlu0 %v4130, 96
        %v4719 = vpop.permute.xlu0 %4718
        %4720 = vrot.lane.b32.xlu0 %v4132, 96
        %v4721 = vpop.permute.xlu0 %4720
        %v4725 = vsel %vm1294, %v4480, 0
        %4727 = vmatprep.subr.mxu0 0.0
        %4728 = vmatpush1.msra.mxu0 %v4719
        %4729 = vmatprep.subr.mxu0 0.0
        %4730 = vmatpush1.msra.mxu0 %v4721
        %4731 = vmatprep.subr.mxu0 0.0
        %4732 = vmatpush1.msra.mxu0 0.0
        %4733 = vmatprep.subr.mxu0 0.0
        %4734 = vmatpush1.msra.mxu0 0.0
        %4735 = vmatprep.subr.mxu0 0.0
        %4736 = vmatpush1.msra.mxu0 0.0
        %4737 = vmatprep.subr.mxu0 0.0
        %4738 = vmatpush1.msra.mxu0 0.0
        %4739 = vmatprep.subr.mxu0 0.0
        %4740 = vmatpush1.msra.mxu0 0.0
        %4741 = vmatprep.subr.mxu0 0.0
        %4742 = vmatpush1.msra.mxu0 0.0
        %4743 = vmatprep.subr.mxu0 0.0
        %4744 = vmatpush1.msra.mxu0 0.0
        %4745 = vmatprep.subr.mxu0 0.0
        %4746 = vmatpush1.msra.mxu0 0.0
        %4747 = vmatprep.subr.mxu0 0.0
        %4748 = vmatpush1.msra.mxu0 0.0
        %4749 = vmatprep.subr.mxu0 0.0
        %4750 = vmatpush1.msra.mxu0 0.0
        %4751 = vmatprep.subr.mxu0 0.0
        %4752 = vmatpush1.msra.mxu0 0.0
        %4753 = vmatprep.subr.mxu0 0.0
        %4754 = vmatpush1.msra.mxu0 0.0
        %4755 = vmatprep.subr.mxu0 0.0
        %4756 = vmatpush1.msra.mxu0 0.0
        %4757 = vmatprep.subr.mxu0 0.0
        %4758 = vmatpush1.msra.mxu0 0.0
        %4759 = vmatprep.subr.mxu0 0.0
        %4760 = vmatpush1.msra.mxu0 0.0
        %4761 = vmatprep.subr.mxu0 0.0
        %4762 = vmatpush1.msra.mxu0 0.0
        %4763 = vmatprep.subr.mxu0 0.0
        %4764 = vmatpush1.msra.mxu0 0.0
        %4765 = vmatprep.subr.mxu0 0.0
        %4766 = vmatpush1.msra.mxu0 0.0
        %4767 = vmatprep.subr.mxu0 0.0
        %4768 = vmatpush1.msra.mxu0 0.0
        %4769 = vmatprep.subr.mxu0 0.0
        %4770 = vmatpush1.msra.mxu0 0.0
        %4771 = vmatprep.subr.mxu0 0.0
        %4772 = vmatpush1.msra.mxu0 0.0
        %4773 = vmatprep.subr.mxu0 0.0
        %4774 = vmatpush1.msra.mxu0 0.0
        %4775 = vmatprep.subr.mxu0 0.0
        %4776 = vmatpush1.msra.mxu0 0.0
        %4777 = vmatprep.subr.mxu0 0.0
        %4778 = vmatpush1.msra.mxu0 0.0
        %4779 = vmatprep.subr.mxu0 0.0
        %4780 = vmatpush1.msra.mxu0 0.0
        %4781 = vmatprep.subr.mxu0 0.0
        %4782 = vmatpush1.msra.mxu0 0.0
        %4783 = vmatprep.subr.mxu0 0.0
        %4784 = vmatpush1.msra.mxu0 0.0
        %4785 = vmatprep.subr.mxu0 0.0
        %4786 = vmatpush1.msra.mxu0 0.0
        %4787 = vmatprep.subr.mxu0 0.0
        %4788 = vmatpush1.msra.mxu0 0.0
        %4789 = vmatprep.subr.mxu0 0.0
        %4790 = vmatpush1.msra.mxu0 0.0
        %4791 = vmatprep.mubr.f32.mxu0 0.0
        %4792 = vmatmul.mubr.f32.gmra.mrb[0].mxu0 %v4725
        %v4793 = vpop.f32.mrb[0].mxu0
        %v4794 = vadd.f32 0.0, %v4793
        %v4795 = vpop.f32.mrb[0].mxu0
        %4796 = vdwg.mxu0
        %s4797 = scalar_lea.vmem [#allocation15], 32
        %v4798 = vld [vmem:[%s4797] sm:$0xff]
        %v4799 = vld [vmem:[%s4797 + $0x8] sm:$0xff]
        %v4800 = vld [vmem:[%s4797 + $0x10] sm:$0xff]
        %v4801 = vld [vmem:[%s4797 + $0x18] sm:$0xff]
        %s4802 = scalar_lea.vmem %s11, 1
        %v4803 = vld [vmem:[%s4802] sm:$0x1]
        %v4805 = vsel %vm1487, %v4557, 0
        %4807 = vmatprep.subr.mxu0 0.0
        %4808 = vmatpush1.msra.mxu0 %v4798
        %4809 = vmatprep.subr.mxu0 0.0
        %4810 = vmatpush1.msra.mxu0 0.0
        %4811 = vmatprep.subr.mxu0 0.0
        %4812 = vmatpush1.msra.mxu0 0.0
        %4813 = vmatprep.subr.mxu0 0.0
        %4814 = vmatpush1.msra.mxu0 0.0
        %4815 = vmatprep.subr.mxu0 0.0
        %4816 = vmatpush1.msra.mxu0 0.0
        %4817 = vmatprep.subr.mxu0 0.0
        %4818 = vmatpush1.msra.mxu0 0.0
        %4819 = vmatprep.subr.mxu0 0.0
        %4820 = vmatpush1.msra.mxu0 0.0
        %4821 = vmatprep.subr.mxu0 0.0
        %4822 = vmatpush1.msra.mxu0 0.0
        %4823 = vmatprep.subr.mxu0 0.0
        %4824 = vmatpush1.msra.mxu0 0.0
        %4825 = vmatprep.subr.mxu0 0.0
        %4826 = vmatpush1.msra.mxu0 0.0
        %4827 = vmatprep.subr.mxu0 0.0
        %4828 = vmatpush1.msra.mxu0 0.0
        %4829 = vmatprep.subr.mxu0 0.0
        %4830 = vmatpush1.msra.mxu0 0.0
        %4831 = vmatprep.subr.mxu0 0.0
        %4832 = vmatpush1.msra.mxu0 0.0
        %4833 = vmatprep.subr.mxu0 0.0
        %4834 = vmatpush1.msra.mxu0 0.0
        %4835 = vmatprep.subr.mxu0 0.0
        %4836 = vmatpush1.msra.mxu0 0.0
        %4837 = vmatprep.subr.mxu0 0.0
        %4838 = vmatpush1.msra.mxu0 0.0
        %4839 = vmatprep.subr.mxu0 0.0
        %4840 = vmatpush1.msra.mxu0 0.0
        %4841 = vmatprep.subr.mxu0 0.0
        %4842 = vmatpush1.msra.mxu0 0.0
        %4843 = vmatprep.subr.mxu0 0.0
        %4844 = vmatpush1.msra.mxu0 0.0
        %4845 = vmatprep.subr.mxu0 0.0
        %4846 = vmatpush1.msra.mxu0 0.0
        %4847 = vmatprep.subr.mxu0 0.0
        %4848 = vmatpush1.msra.mxu0 0.0
        %4849 = vmatprep.subr.mxu0 0.0
        %4850 = vmatpush1.msra.mxu0 0.0
        %4851 = vmatprep.subr.mxu0 0.0
        %4852 = vmatpush1.msra.mxu0 0.0
        %4853 = vmatprep.subr.mxu0 0.0
        %4854 = vmatpush1.msra.mxu0 0.0
        %4855 = vmatprep.subr.mxu0 0.0
        %4856 = vmatpush1.msra.mxu0 0.0
        %4857 = vmatprep.subr.mxu0 0.0
        %4858 = vmatpush1.msra.mxu0 0.0
        %4859 = vmatprep.subr.mxu0 0.0
        %4860 = vmatpush1.msra.mxu0 0.0
        %4861 = vmatprep.subr.mxu0 0.0
        %4862 = vmatpush1.msra.mxu0 0.0
        %4863 = vmatprep.subr.mxu0 0.0
        %4864 = vmatpush1.msra.mxu0 0.0
        %4865 = vmatprep.subr.mxu0 0.0
        %4866 = vmatpush1.msra.mxu0 0.0
        %4867 = vmatprep.subr.mxu0 0.0
        %4868 = vmatpush1.msra.mxu0 0.0
        %4869 = vmatprep.subr.mxu0 0.0
        %4870 = vmatpush1.msra.mxu0 0.0
        %4871 = vmatprep.mubr.f32.mxu0 0.0
        %4872 = vmatmul.mubr.f32.gmra.mrb[0].mxu0 %v4805
        %v4873 = vpop.f32.mrb[0].mxu0
        %v4874 = vadd.f32 0.0, %v4873
        %v4875 = vpop.f32.mrb[0].mxu0
        %4876 = vdwg.mxu0
        %v4878 = vsel %vm1487, %v4636, 0
        %4880 = vmatprep.subr.mxu0 0.0
        %4881 = vmatpush1.msra.mxu0 %v4799
        %4882 = vmatprep.subr.mxu0 0.0
        %4883 = vmatpush1.msra.mxu0 0.0
        %4884 = vmatprep.subr.mxu0 0.0
        %4885 = vmatpush1.msra.mxu0 0.0
        %4886 = vmatprep.subr.mxu0 0.0
        %4887 = vmatpush1.msra.mxu0 0.0
        %4888 = vmatprep.subr.mxu0 0.0
        %4889 = vmatpush1.msra.mxu0 0.0
        %4890 = vmatprep.subr.mxu0 0.0
        %4891 = vmatpush1.msra.mxu0 0.0
        %4892 = vmatprep.subr.mxu0 0.0
        %4893 = vmatpush1.msra.mxu0 0.0
        %4894 = vmatprep.subr.mxu0 0.0
        %4895 = vmatpush1.msra.mxu0 0.0
        %4896 = vmatprep.subr.mxu0 0.0
        %4897 = vmatpush1.msra.mxu0 0.0
        %4898 = vmatprep.subr.mxu0 0.0
        %4899 = vmatpush1.msra.mxu0 0.0
        %4900 = vmatprep.subr.mxu0 0.0
        %4901 = vmatpush1.msra.mxu0 0.0
        %4902 = vmatprep.subr.mxu0 0.0
        %4903 = vmatpush1.msra.mxu0 0.0
        %4904 = vmatprep.subr.mxu0 0.0
        %4905 = vmatpush1.msra.mxu0 0.0
        %4906 = vmatprep.subr.mxu0 0.0
        %4907 = vmatpush1.msra.mxu0 0.0
        %4908 = vmatprep.subr.mxu0 0.0
        %4909 = vmatpush1.msra.mxu0 0.0
        %4910 = vmatprep.subr.mxu0 0.0
        %4911 = vmatpush1.msra.mxu0 0.0
        %4912 = vmatprep.subr.mxu0 0.0
        %4913 = vmatpush1.msra.mxu0 0.0
        %4914 = vmatprep.subr.mxu0 0.0
        %4915 = vmatpush1.msra.mxu0 0.0
        %4916 = vmatprep.subr.mxu0 0.0
        %4917 = vmatpush1.msra.mxu0 0.0
        %4918 = vmatprep.subr.mxu0 0.0
        %4919 = vmatpush1.msra.mxu0 0.0
        %4920 = vmatprep.subr.mxu0 0.0
        %4921 = vmatpush1.msra.mxu0 0.0
        %4922 = vmatprep.subr.mxu0 0.0
        %4923 = vmatpush1.msra.mxu0 0.0
        %4924 = vmatprep.subr.mxu0 0.0
        %4925 = vmatpush1.msra.mxu0 0.0
        %4926 = vmatprep.subr.mxu0 0.0
        %4927 = vmatpush1.msra.mxu0 0.0
        %4928 = vmatprep.subr.mxu0 0.0
        %4929 = vmatpush1.msra.mxu0 0.0
        %4930 = vmatprep.subr.mxu0 0.0
        %4931 = vmatpush1.msra.mxu0 0.0
        %4932 = vmatprep.subr.mxu0 0.0
        %4933 = vmatpush1.msra.mxu0 0.0
        %4934 = vmatprep.subr.mxu0 0.0
        %4935 = vmatpush1.msra.mxu0 0.0
        %4936 = vmatprep.subr.mxu0 0.0
        %4937 = vmatpush1.msra.mxu0 0.0
        %4938 = vmatprep.subr.mxu0 0.0
        %4939 = vmatpush1.msra.mxu0 0.0
        %4940 = vmatprep.subr.mxu0 0.0
        %4941 = vmatpush1.msra.mxu0 0.0
        %4942 = vmatprep.subr.mxu0 0.0
        %4943 = vmatpush1.msra.mxu0 0.0
        %4944 = vmatprep.mubr.f32.mxu0 0.0
        %4945 = vmatmul.mubr.f32.gmra.mrb[0].mxu0 %v4878
        %v4946 = vpop.f32.mrb[0].mxu0
        %v4947 = vadd.f32 0.0, %v4946
        %v4948 = vpop.f32.mrb[0].mxu0
        %4949 = vdwg.mxu0
        %v4951 = vsel %vm1487, %v4715, 0
        %4953 = vmatprep.subr.mxu0 0.0
        %4954 = vmatpush1.msra.mxu0 %v4800
        %4955 = vmatprep.subr.mxu0 0.0
        %4956 = vmatpush1.msra.mxu0 0.0
        %4957 = vmatprep.subr.mxu0 0.0
        %4958 = vmatpush1.msra.mxu0 0.0
        %4959 = vmatprep.subr.mxu0 0.0
        %4960 = vmatpush1.msra.mxu0 0.0
        %4961 = vmatprep.subr.mxu0 0.0
        %4962 = vmatpush1.msra.mxu0 0.0
        %4963 = vmatprep.subr.mxu0 0.0
        %4964 = vmatpush1.msra.mxu0 0.0
        %4965 = vmatprep.subr.mxu0 0.0
        %4966 = vmatpush1.msra.mxu0 0.0
        %4967 = vmatprep.subr.mxu0 0.0
        %4968 = vmatpush1.msra.mxu0 0.0
        %4969 = vmatprep.subr.mxu0 0.0
        %4970 = vmatpush1.msra.mxu0 0.0
        %4971 = vmatprep.subr.mxu0 0.0
        %4972 = vmatpush1.msra.mxu0 0.0
        %4973 = vmatprep.subr.mxu0 0.0
        %4974 = vmatpush1.msra.mxu0 0.0
        %4975 = vmatprep.subr.mxu0 0.0
        %4976 = vmatpush1.msra.mxu0 0.0
        %4977 = vmatprep.subr.mxu0 0.0
        %4978 = vmatpush1.msra.mxu0 0.0
        %4979 = vmatprep.subr.mxu0 0.0
        %4980 = vmatpush1.msra.mxu0 0.0
        %4981 = vmatprep.subr.mxu0 0.0
        %4982 = vmatpush1.msra.mxu0 0.0
        %4983 = vmatprep.subr.mxu0 0.0
        %4984 = vmatpush1.msra.mxu0 0.0
        %4985 = vmatprep.subr.mxu0 0.0
        %4986 = vmatpush1.msra.mxu0 0.0
        %4987 = vmatprep.subr.mxu0 0.0
        %4988 = vmatpush1.msra.mxu0 0.0
        %4989 = vmatprep.subr.mxu0 0.0
        %4990 = vmatpush1.msra.mxu0 0.0
        %4991 = vmatprep.subr.mxu0 0.0
        %4992 = vmatpush1.msra.mxu0 0.0
        %4993 = vmatprep.subr.mxu0 0.0
        %4994 = vmatpush1.msra.mxu0 0.0
        %4995 = vmatprep.subr.mxu0 0.0
        %4996 = vmatpush1.msra.mxu0 0.0
        %4997 = vmatprep.subr.mxu0 0.0
        %4998 = vmatpush1.msra.mxu0 0.0
        %4999 = vmatprep.subr.mxu0 0.0
        %5000 = vmatpush1.msra.mxu0 0.0
        %5001 = vmatprep.subr.mxu0 0.0
        %5002 = vmatpush1.msra.mxu0 0.0
        %5003 = vmatprep.subr.mxu0 0.0
        %5004 = vmatpush1.msra.mxu0 0.0
        %5005 = vmatprep.subr.mxu0 0.0
        %5006 = vmatpush1.msra.mxu0 0.0
        %5007 = vmatprep.subr.mxu0 0.0
        %5008 = vmatpush1.msra.mxu0 0.0
        %5009 = vmatprep.subr.mxu0 0.0
        %5010 = vmatpush1.msra.mxu0 0.0
        %5011 = vmatprep.subr.mxu0 0.0
        %5012 = vmatpush1.msra.mxu0 0.0
        %5013 = vmatprep.subr.mxu0 0.0
        %5014 = vmatpush1.msra.mxu0 0.0
        %5015 = vmatprep.subr.mxu0 0.0
        %5016 = vmatpush1.msra.mxu0 0.0
        %5017 = vmatprep.mubr.f32.mxu0 0.0
        %5018 = vmatmul.mubr.f32.gmra.mrb[0].mxu0 %v4951
        %v5019 = vpop.f32.mrb[0].mxu0
        %v5020 = vadd.f32 0.0, %v5019
        %v5021 = vpop.f32.mrb[0].mxu0
        %5022 = vdwg.mxu0
        %v5024 = vsel %vm1487, %v4794, 0
        %5026 = vmatprep.subr.mxu0 0.0
        %5027 = vmatpush1.msra.mxu0 %v4801
        %5028 = vmatprep.subr.mxu0 0.0
        %5029 = vmatpush1.msra.mxu0 0.0
        %5030 = vmatprep.subr.mxu0 0.0
        %5031 = vmatpush1.msra.mxu0 0.0
        %5032 = vmatprep.subr.mxu0 0.0
        %5033 = vmatpush1.msra.mxu0 0.0
        %5034 = vmatprep.subr.mxu0 0.0
        %5035 = vmatpush1.msra.mxu0 0.0
        %5036 = vmatprep.subr.mxu0 0.0
        %5037 = vmatpush1.msra.mxu0 0.0
        %5038 = vmatprep.subr.mxu0 0.0
        %5039 = vmatpush1.msra.mxu0 0.0
        %5040 = vmatprep.subr.mxu0 0.0
        %5041 = vmatpush1.msra.mxu0 0.0
        %5042 = vmatprep.subr.mxu0 0.0
        %5043 = vmatpush1.msra.mxu0 0.0
        %5044 = vmatprep.subr.mxu0 0.0
        %5045 = vmatpush1.msra.mxu0 0.0
        %5046 = vmatprep.subr.mxu0 0.0
        %5047 = vmatpush1.msra.mxu0 0.0
        %5048 = vmatprep.subr.mxu0 0.0
        %5049 = vmatpush1.msra.mxu0 0.0
        %5050 = vmatprep.subr.mxu0 0.0
        %5051 = vmatpush1.msra.mxu0 0.0
        %5052 = vmatprep.subr.mxu0 0.0
        %5053 = vmatpush1.msra.mxu0 0.0
        %5054 = vmatprep.subr.mxu0 0.0
        %5055 = vmatpush1.msra.mxu0 0.0
        %5056 = vmatprep.subr.mxu0 0.0
        %5057 = vmatpush1.msra.mxu0 0.0
        %5058 = vmatprep.subr.mxu0 0.0
        %5059 = vmatpush1.msra.mxu0 0.0
        %5060 = vmatprep.subr.mxu0 0.0
        %5061 = vmatpush1.msra.mxu0 0.0
        %5062 = vmatprep.subr.mxu0 0.0
        %5063 = vmatpush1.msra.mxu0 0.0
        %5064 = vmatprep.subr.mxu0 0.0
        %5065 = vmatpush1.msra.mxu0 0.0
        %5066 = vmatprep.subr.mxu0 0.0
        %5067 = vmatpush1.msra.mxu0 0.0
        %5068 = vmatprep.subr.mxu0 0.0
        %5069 = vmatpush1.msra.mxu0 0.0
        %5070 = vmatprep.subr.mxu0 0.0
        %5071 = vmatpush1.msra.mxu0 0.0
        %5072 = vmatprep.subr.mxu0 0.0
        %5073 = vmatpush1.msra.mxu0 0.0
        %5074 = vmatprep.subr.mxu0 0.0
        %5075 = vmatpush1.msra.mxu0 0.0
        %5076 = vmatprep.subr.mxu0 0.0
        %5077 = vmatpush1.msra.mxu0 0.0
        %5078 = vmatprep.subr.mxu0 0.0
        %5079 = vmatpush1.msra.mxu0 0.0
        %5080 = vmatprep.subr.mxu0 0.0
        %5081 = vmatpush1.msra.mxu0 0.0
        %5082 = vmatprep.subr.mxu0 0.0
        %5083 = vmatpush1.msra.mxu0 0.0
        %5084 = vmatprep.subr.mxu0 0.0
        %5085 = vmatpush1.msra.mxu0 0.0
        %5086 = vmatprep.subr.mxu0 0.0
        %5087 = vmatpush1.msra.mxu0 0.0
        %5088 = vmatprep.subr.mxu0 0.0
        %5089 = vmatpush1.msra.mxu0 0.0
        %5090 = vmatprep.mubr.f32.mxu0 0.0
        %5091 = vmatmul.mubr.f32.gmra.mrb[0].mxu0 %v5024
        %v5092 = vpop.f32.mrb[0].mxu0
        %v5093 = vadd.f32 0.0, %v5092
        %v5094 = vpop.f32.mrb[0].mxu0
        %5095 = vdwg.mxu0
        %v5096 = vsel %vm1112, %v4874, 0.0
        %v5097 = vsel %vm1112, %v4947, 0.0
        %v5098 = vadd.f32 %v5096, %v5097
        %v5099 = vsel %vm1112, %v5020, 0.0
        %v5100 = vadd.f32 %v5098, %v5099
        %v5101 = vsel %vm1112, %v5093, 0.0
        %v5102 = vadd.f32 %v5100, %v5101
        %v5104 = vlaneseq
        %v5105 = vshrl.u32 %v5104, 7
        %v5106 = vsub.s32 0, %v5105
        %v5107 = vrot.slane %v4803, %v5106
        %v5109 = vadd.f32 %v5102, %v5107
        %v5110 = vadd.f32 %v3781, %v5109
        %s5111 = scalar_lea.vmem %s12, 1
        %v5112 = vld [vmem:[%s5111] sm:$0x1]
        %s5113 = scalar_lea.vmem %s13, 1
        %v5114 = vld [vmem:[%s5113] sm:$0x1]
        %v5115 = vsel %vm1112, %v5110, 0.0
        %5116 = vadd.xlane.f32.xlu0 %v5115
        %v5117 = vpop.xlane.xlu0 %5116
        %v5118 = vmul.f32 %v5117, %v2469
        %v5119 = vsub.f32 %v5110, %v5118
        %v5120 = vmul.f32 %v5119, %v5119
        %v5121 = vsel %vm1112, %v5120, 0.0
        %5122 = vadd.xlane.f32.xlu0 %v5121
        %v5123 = vpop.xlane.xlu0 %5122
        %v5124 = vmul.f32 %v5123, %v2469
        %v5125 = vadd.f32 %v5124, 1e-05
        %v5126 = vrsqrt.pop %v5125
        %v5127 = vmul.f32 %v5119, %v5126
        %v5129 = vlaneseq
        %v5130 = vshrl.u32 %v5129, 7
        %v5131 = vsub.s32 0, %v5130
        %v5132 = vrot.slane %v5112, %v5131
        %v5134 = vmul.f32 %v5127, %v5132
        %v5136 = vlaneseq
        %v5137 = vshrl.u32 %v5136, 7
        %v5138 = vsub.s32 0, %v5137
        %v5139 = vrot.slane %v5114, %v5138
        %v5141 = vadd.f32 %v5134, %v5139
        %s5142 = scalar_lea.vmem [#allocation16], 32
        %v5143 = vld [vmem:[%s5142] sm:$0xff]
        %v5144 = vld [vmem:[%s5142 + $0x8] sm:$0xff]
        %v5145 = vld [vmem:[%s5142 + $0x10] sm:$0xff]
        %v5146 = vld [vmem:[%s5142 + $0x18] sm:$0xff]
        %s5147 = scalar_lea.vmem %s15, 1
        %v5148 = vld [vmem:[%s5147] sm:$0x1]
        %v5150 = vlaneseq
        %v5151 = vshrl.u32 %v5150, 7
        %v5152 = vsub.s32 0, %v5151
        %v5153 = vrot.slane %v5148, %v5152
        %v5156 = vsel %vm1112, %v5141, 0
        %5158 = vmatprep.subr.mxu0 0.0
        %5159 = vmatpush1.msra.mxu0 %v5143
        %5160 = vmatprep.subr.mxu0 0.0
        %5161 = vmatpush1.msra.mxu0 %v5144
        %5162 = vmatprep.subr.mxu0 0.0
        %5163 = vmatpush1.msra.mxu0 %v5145
        %5164 = vmatprep.subr.mxu0 0.0
        %5165 = vmatpush1.msra.mxu0 %v5146
        %5166 = vmatprep.subr.mxu0 0.0
        %5167 = vmatpush1.msra.mxu0 0.0
        %5168 = vmatprep.subr.mxu0 0.0
        %5169 = vmatpush1.msra.mxu0 0.0
        %5170 = vmatprep.subr.mxu0 0.0
        %5171 = vmatpush1.msra.mxu0 0.0
        %5172 = vmatprep.subr.mxu0 0.0
        %5173 = vmatpush1.msra.mxu0 0.0
        %5174 = vmatprep.subr.mxu0 0.0
        %5175 = vmatpush1.msra.mxu0 0.0
        %5176 = vmatprep.subr.mxu0 0.0
        %5177 = vmatpush1.msra.mxu0 0.0
        %5178 = vmatprep.subr.mxu0 0.0
        %5179 = vmatpush1.msra.mxu0 0.0
        %5180 = vmatprep.subr.mxu0 0.0
        %5181 = vmatpush1.msra.mxu0 0.0
        %5182 = vmatprep.subr.mxu0 0.0
        %5183 = vmatpush1.msra.mxu0 0.0
        %5184 = vmatprep.subr.mxu0 0.0
        %5185 = vmatpush1.msra.mxu0 0.0
        %5186 = vmatprep.subr.mxu0 0.0
        %5187 = vmatpush1.msra.mxu0 0.0
        %5188 = vmatprep.subr.mxu0 0.0
        %5189 = vmatpush1.msra.mxu0 0.0
        %5190 = vmatprep.subr.mxu0 0.0
        %5191 = vmatpush1.msra.mxu0 0.0
        %5192 = vmatprep.subr.mxu0 0.0
        %5193 = vmatpush1.msra.mxu0 0.0
        %5194 = vmatprep.subr.mxu0 0.0
        %5195 = vmatpush1.msra.mxu0 0.0
        %5196 = vmatprep.subr.mxu0 0.0
        %5197 = vmatpush1.msra.mxu0 0.0
        %5198 = vmatprep.subr.mxu0 0.0
        %5199 = vmatpush1.msra.mxu0 0.0
        %5200 = vmatprep.subr.mxu0 0.0
        %5201 = vmatpush1.msra.mxu0 0.0
        %5202 = vmatprep.subr.mxu0 0.0
        %5203 = vmatpush1.msra.mxu0 0.0
        %5204 = vmatprep.subr.mxu0 0.0
        %5205 = vmatpush1.msra.mxu0 0.0
        %5206 = vmatprep.subr.mxu0 0.0
        %5207 = vmatpush1.msra.mxu0 0.0
        %5208 = vmatprep.subr.mxu0 0.0
        %5209 = vmatpush1.msra.mxu0 0.0
        %5210 = vmatprep.subr.mxu0 0.0
        %5211 = vmatpush1.msra.mxu0 0.0
        %5212 = vmatprep.subr.mxu0 0.0
        %5213 = vmatpush1.msra.mxu0 0.0
        %5214 = vmatprep.subr.mxu0 0.0
        %5215 = vmatpush1.msra.mxu0 0.0
        %5216 = vmatprep.subr.mxu0 0.0
        %5217 = vmatpush1.msra.mxu0 0.0
        %5218 = vmatprep.subr.mxu0 0.0
        %5219 = vmatpush1.msra.mxu0 0.0
        %5220 = vmatprep.subr.mxu0 0.0
        %5221 = vmatpush1.msra.mxu0 0.0
        %5222 = vmatprep.mubr.f32.mxu0 0.0
        %5223 = vmatmul.mubr.f32.gmra.mrb[0].mxu0 %v5156
        %v5224 = vpop.f32.mrb[0].mxu0
        %v5225 = vadd.f32 %v5153, %v5224
        %v5226 = vpop.f32.mrb[0].mxu0
        %5227 = vdwg.mxu0
        %5229 = vrot.lane.b32.xlu0 %v5225, 120
        %v5230 = vpop.permute.xlu0 %5229
        %5231 = vrot.lane.b32.xlu0 %v5225, 112
        %v5232 = vpop.permute.xlu0 %5231
        %5233 = vrot.lane.b32.xlu0 %v5225, 104
        %v5234 = vpop.permute.xlu0 %5233
        %5235 = vrot.lane.b32.xlu0 %v5225, 96
        %v5236 = vpop.permute.xlu0 %5235
        %v5237 = vsel %vm1487, %v5225, 0
        %v5239 = vsel %vm1487, %v5236, 0
        %5241 = vmatprep.subr.mxu0 0.0
        %5242 = vmatpush1.xpose.msra.mxu0 %v5239
        %5243 = vmatprep.subr.mxu0 0.0
        %5244 = vmatpush1.xpose.msra.mxu0 0.0
        %5245 = vmatprep.subr.mxu0 0.0
        %5246 = vmatpush1.xpose.msra.mxu0 0.0
        %5247 = vmatprep.subr.mxu0 0.0
        %5248 = vmatpush1.xpose.msra.mxu0 0.0
        %5249 = vmatprep.subr.mxu0 0.0
        %5250 = vmatpush1.xpose.msra.mxu0 0.0
        %5251 = vmatprep.subr.mxu0 0.0
        %5252 = vmatpush1.xpose.msra.mxu0 0.0
        %5253 = vmatprep.subr.mxu0 0.0
        %5254 = vmatpush1.xpose.msra.mxu0 0.0
        %5255 = vmatprep.subr.mxu0 0.0
        %5256 = vmatpush1.xpose.msra.mxu0 0.0
        %5257 = vmatprep.subr.mxu0 0.0
        %5258 = vmatpush1.xpose.msra.mxu0 0.0
        %5259 = vmatprep.subr.mxu0 0.0
        %5260 = vmatpush1.xpose.msra.mxu0 0.0
        %5261 = vmatprep.subr.mxu0 0.0
        %5262 = vmatpush1.xpose.msra.mxu0 0.0
        %5263 = vmatprep.subr.mxu0 0.0
        %5264 = vmatpush1.xpose.msra.mxu0 0.0
        %5265 = vmatprep.subr.mxu0 0.0
        %5266 = vmatpush1.xpose.msra.mxu0 0.0
        %5267 = vmatprep.subr.mxu0 0.0
        %5268 = vmatpush1.xpose.msra.mxu0 0.0
        %5269 = vmatprep.subr.mxu0 0.0
        %5270 = vmatpush1.xpose.msra.mxu0 0.0
        %5271 = vmatprep.subr.mxu0 0.0
        %5272 = vmatpush1.xpose.msra.mxu0 0.0
        %5273 = vmatprep.subr.mxu0 0.0
        %5274 = vmatpush1.xpose.msra.mxu0 0.0
        %5275 = vmatprep.subr.mxu0 0.0
        %5276 = vmatpush1.xpose.msra.mxu0 0.0
        %5277 = vmatprep.subr.mxu0 0.0
        %5278 = vmatpush1.xpose.msra.mxu0 0.0
        %5279 = vmatprep.subr.mxu0 0.0
        %5280 = vmatpush1.xpose.msra.mxu0 0.0
        %5281 = vmatprep.subr.mxu0 0.0
        %5282 = vmatpush1.xpose.msra.mxu0 0.0
        %5283 = vmatprep.subr.mxu0 0.0
        %5284 = vmatpush1.xpose.msra.mxu0 0.0
        %5285 = vmatprep.subr.mxu0 0.0
        %5286 = vmatpush1.xpose.msra.mxu0 0.0
        %5287 = vmatprep.subr.mxu0 0.0
        %5288 = vmatpush1.xpose.msra.mxu0 0.0
        %5289 = vmatprep.subr.mxu0 0.0
        %5290 = vmatpush1.xpose.msra.mxu0 0.0
        %5291 = vmatprep.subr.mxu0 0.0
        %5292 = vmatpush1.xpose.msra.mxu0 0.0
        %5293 = vmatprep.subr.mxu0 0.0
        %5294 = vmatpush1.xpose.msra.mxu0 0.0
        %5295 = vmatprep.subr.mxu0 0.0
        %5296 = vmatpush1.xpose.msra.mxu0 0.0
        %5297 = vmatprep.subr.mxu0 0.0
        %5298 = vmatpush1.xpose.msra.mxu0 0.0
        %5299 = vmatprep.subr.mxu0 0.0
        %5300 = vmatpush1.xpose.msra.mxu0 0.0
        %5301 = vmatprep.subr.mxu0 0.0
        %5302 = vmatpush1.xpose.msra.mxu0 0.0
        %5303 = vmatprep.subr.mxu0 0.0
        %5304 = vmatpush1.xpose.msra.mxu0 0.0
        %5305 = vmatprep.mubr.f32.mxu0 0.0
        %5306 = vmatmul.mubr.f32.gmra.mrb[0].mxu0 %v5237
        %v5307 = vpop.f32.mrb[0].mxu0
        %v5308 = vadd.f32 0.0, %v5307
        %v5309 = vpop.f32.mrb[0].mxu0
        %5310 = vdwg.mxu0
        %5311 = vrot.lane.b32.xlu0 %v5230, 96
        %v5312 = vpop.permute.xlu0 %5311
        %v5313 = vsel %vm1487, %v5230, 0
        %v5315 = vsel %vm1487, %v5312, 0
        %5317 = vmatprep.subr.mxu0 0.0
        %5318 = vmatpush1.xpose.msra.mxu0 %v5315
        %5319 = vmatprep.subr.mxu0 0.0
        %5320 = vmatpush1.xpose.msra.mxu0 0.0
        %5321 = vmatprep.subr.mxu0 0.0
        %5322 = vmatpush1.xpose.msra.mxu0 0.0
        %5323 = vmatprep.subr.mxu0 0.0
        %5324 = vmatpush1.xpose.msra.mxu0 0.0
        %5325 = vmatprep.subr.mxu0 0.0
        %5326 = vmatpush1.xpose.msra.mxu0 0.0
        %5327 = vmatprep.subr.mxu0 0.0
        %5328 = vmatpush1.xpose.msra.mxu0 0.0
        %5329 = vmatprep.subr.mxu0 0.0
        %5330 = vmatpush1.xpose.msra.mxu0 0.0
        %5331 = vmatprep.subr.mxu0 0.0
        %5332 = vmatpush1.xpose.msra.mxu0 0.0
        %5333 = vmatprep.subr.mxu0 0.0
        %5334 = vmatpush1.xpose.msra.mxu0 0.0
        %5335 = vmatprep.subr.mxu0 0.0
        %5336 = vmatpush1.xpose.msra.mxu0 0.0
        %5337 = vmatprep.subr.mxu0 0.0
        %5338 = vmatpush1.xpose.msra.mxu0 0.0
        %5339 = vmatprep.subr.mxu0 0.0
        %5340 = vmatpush1.xpose.msra.mxu0 0.0
        %5341 = vmatprep.subr.mxu0 0.0
        %5342 = vmatpush1.xpose.msra.mxu0 0.0
        %5343 = vmatprep.subr.mxu0 0.0
        %5344 = vmatpush1.xpose.msra.mxu0 0.0
        %5345 = vmatprep.subr.mxu0 0.0
        %5346 = vmatpush1.xpose.msra.mxu0 0.0
        %5347 = vmatprep.subr.mxu0 0.0
        %5348 = vmatpush1.xpose.msra.mxu0 0.0
        %5349 = vmatprep.subr.mxu0 0.0
        %5350 = vmatpush1.xpose.msra.mxu0 0.0
        %5351 = vmatprep.subr.mxu0 0.0
        %5352 = vmatpush1.xpose.msra.mxu0 0.0
        %5353 = vmatprep.subr.mxu0 0.0
        %5354 = vmatpush1.xpose.msra.mxu0 0.0
        %5355 = vmatprep.subr.mxu0 0.0
        %5356 = vmatpush1.xpose.msra.mxu0 0.0
        %5357 = vmatprep.subr.mxu0 0.0
        %5358 = vmatpush1.xpose.msra.mxu0 0.0
        %5359 = vmatprep.subr.mxu0 0.0
        %5360 = vmatpush1.xpose.msra.mxu0 0.0
        %5361 = vmatprep.subr.mxu0 0.0
        %5362 = vmatpush1.xpose.msra.mxu0 0.0
        %5363 = vmatprep.subr.mxu0 0.0
        %5364 = vmatpush1.xpose.msra.mxu0 0.0
        %5365 = vmatprep.subr.mxu0 0.0
        %5366 = vmatpush1.xpose.msra.mxu0 0.0
        %5367 = vmatprep.subr.mxu0 0.0
        %5368 = vmatpush1.xpose.msra.mxu0 0.0
        %5369 = vmatprep.subr.mxu0 0.0
        %5370 = vmatpush1.xpose.msra.mxu0 0.0
        %5371 = vmatprep.subr.mxu0 0.0
        %5372 = vmatpush1.xpose.msra.mxu0 0.0
        %5373 = vmatprep.subr.mxu0 0.0
        %5374 = vmatpush1.xpose.msra.mxu0 0.0
        %5375 = vmatprep.subr.mxu0 0.0
        %5376 = vmatpush1.xpose.msra.mxu0 0.0
        %5377 = vmatprep.subr.mxu0 0.0
        %5378 = vmatpush1.xpose.msra.mxu0 0.0
        %5379 = vmatprep.subr.mxu0 0.0
        %5380 = vmatpush1.xpose.msra.mxu0 0.0
        %5381 = vmatprep.mubr.f32.mxu0 0.0
        %5382 = vmatmul.mubr.f32.gmra.mrb[0].mxu0 %v5313
        %v5383 = vpop.f32.mrb[0].mxu0
        %v5384 = vadd.f32 0.0, %v5383
        %v5385 = vpop.f32.mrb[0].mxu0
        %5386 = vdwg.mxu0
        %5387 = vrot.lane.b32.xlu0 %v5232, 96
        %v5388 = vpop.permute.xlu0 %5387
        %v5389 = vsel %vm1487, %v5232, 0
        %v5391 = vsel %vm1487, %v5388, 0
        %5393 = vmatprep.subr.mxu0 0.0
        %5394 = vmatpush1.xpose.msra.mxu0 %v5391
        %5395 = vmatprep.subr.mxu0 0.0
        %5396 = vmatpush1.xpose.msra.mxu0 0.0
        %5397 = vmatprep.subr.mxu0 0.0
        %5398 = vmatpush1.xpose.msra.mxu0 0.0
        %5399 = vmatprep.subr.mxu0 0.0
        %5400 = vmatpush1.xpose.msra.mxu0 0.0
        %5401 = vmatprep.subr.mxu0 0.0
        %5402 = vmatpush1.xpose.msra.mxu0 0.0
        %5403 = vmatprep.subr.mxu0 0.0
        %5404 = vmatpush1.xpose.msra.mxu0 0.0
        %5405 = vmatprep.subr.mxu0 0.0
        %5406 = vmatpush1.xpose.msra.mxu0 0.0
        %5407 = vmatprep.subr.mxu0 0.0
        %5408 = vmatpush1.xpose.msra.mxu0 0.0
        %5409 = vmatprep.subr.mxu0 0.0
        %5410 = vmatpush1.xpose.msra.mxu0 0.0
        %5411 = vmatprep.subr.mxu0 0.0
        %5412 = vmatpush1.xpose.msra.mxu0 0.0
        %5413 = vmatprep.subr.mxu0 0.0
        %5414 = vmatpush1.xpose.msra.mxu0 0.0
        %5415 = vmatprep.subr.mxu0 0.0
        %5416 = vmatpush1.xpose.msra.mxu0 0.0
        %5417 = vmatprep.subr.mxu0 0.0
        %5418 = vmatpush1.xpose.msra.mxu0 0.0
        %5419 = vmatprep.subr.mxu0 0.0
        %5420 = vmatpush1.xpose.msra.mxu0 0.0
        %5421 = vmatprep.subr.mxu0 0.0
        %5422 = vmatpush1.xpose.msra.mxu0 0.0
        %5423 = vmatprep.subr.mxu0 0.0
        %5424 = vmatpush1.xpose.msra.mxu0 0.0
        %5425 = vmatprep.subr.mxu0 0.0
        %5426 = vmatpush1.xpose.msra.mxu0 0.0
        %5427 = vmatprep.subr.mxu0 0.0
        %5428 = vmatpush1.xpose.msra.mxu0 0.0
        %5429 = vmatprep.subr.mxu0 0.0
        %5430 = vmatpush1.xpose.msra.mxu0 0.0
        %5431 = vmatprep.subr.mxu0 0.0
        %5432 = vmatpush1.xpose.msra.mxu0 0.0
        %5433 = vmatprep.subr.mxu0 0.0
        %5434 = vmatpush1.xpose.msra.mxu0 0.0
        %5435 = vmatprep.subr.mxu0 0.0
        %5436 = vmatpush1.xpose.msra.mxu0 0.0
        %5437 = vmatprep.subr.mxu0 0.0
        %5438 = vmatpush1.xpose.msra.mxu0 0.0
        %5439 = vmatprep.subr.mxu0 0.0
        %5440 = vmatpush1.xpose.msra.mxu0 0.0
        %5441 = vmatprep.subr.mxu0 0.0
        %5442 = vmatpush1.xpose.msra.mxu0 0.0
        %5443 = vmatprep.subr.mxu0 0.0
        %5444 = vmatpush1.xpose.msra.mxu0 0.0
        %5445 = vmatprep.subr.mxu0 0.0
        %5446 = vmatpush1.xpose.msra.mxu0 0.0
        %5447 = vmatprep.subr.mxu0 0.0
        %5448 = vmatpush1.xpose.msra.mxu0 0.0
        %5449 = vmatprep.subr.mxu0 0.0
        %5450 = vmatpush1.xpose.msra.mxu0 0.0
        %5451 = vmatprep.subr.mxu0 0.0
        %5452 = vmatpush1.xpose.msra.mxu0 0.0
        %5453 = vmatprep.subr.mxu0 0.0
        %5454 = vmatpush1.xpose.msra.mxu0 0.0
        %5455 = vmatprep.subr.mxu0 0.0
        %5456 = vmatpush1.xpose.msra.mxu0 0.0
        %5457 = vmatprep.mubr.f32.mxu0 0.0
        %5458 = vmatmul.mubr.f32.gmra.mrb[0].mxu0 %v5389
        %v5459 = vpop.f32.mrb[0].mxu0
        %v5460 = vadd.f32 0.0, %v5459
        %v5461 = vpop.f32.mrb[0].mxu0
        %5462 = vdwg.mxu0
        %5463 = vrot.lane.b32.xlu0 %v5234, 96
        %v5464 = vpop.permute.xlu0 %5463
        %v5465 = vsel %vm1487, %v5234, 0
        %v5467 = vsel %vm1487, %v5464, 0
        %5469 = vmatprep.subr.mxu0 0.0
        %5470 = vmatpush1.xpose.msra.mxu0 %v5467
        %5471 = vmatprep.subr.mxu0 0.0
        %5472 = vmatpush1.xpose.msra.mxu0 0.0
        %5473 = vmatprep.subr.mxu0 0.0
        %5474 = vmatpush1.xpose.msra.mxu0 0.0
        %5475 = vmatprep.subr.mxu0 0.0
        %5476 = vmatpush1.xpose.msra.mxu0 0.0
        %5477 = vmatprep.subr.mxu0 0.0
        %5478 = vmatpush1.xpose.msra.mxu0 0.0
        %5479 = vmatprep.subr.mxu0 0.0
        %5480 = vmatpush1.xpose.msra.mxu0 0.0
        %5481 = vmatprep.subr.mxu0 0.0
        %5482 = vmatpush1.xpose.msra.mxu0 0.0
        %5483 = vmatprep.subr.mxu0 0.0
        %5484 = vmatpush1.xpose.msra.mxu0 0.0
        %5485 = vmatprep.subr.mxu0 0.0
        %5486 = vmatpush1.xpose.msra.mxu0 0.0
        %5487 = vmatprep.subr.mxu0 0.0
        %5488 = vmatpush1.xpose.msra.mxu0 0.0
        %5489 = vmatprep.subr.mxu0 0.0
        %5490 = vmatpush1.xpose.msra.mxu0 0.0
        %5491 = vmatprep.subr.mxu0 0.0
        %5492 = vmatpush1.xpose.msra.mxu0 0.0
        %5493 = vmatprep.subr.mxu0 0.0
        %5494 = vmatpush1.xpose.msra.mxu0 0.0
        %5495 = vmatprep.subr.mxu0 0.0
        %5496 = vmatpush1.xpose.msra.mxu0 0.0
        %5497 = vmatprep.subr.mxu0 0.0
        %5498 = vmatpush1.xpose.msra.mxu0 0.0
        %5499 = vmatprep.subr.mxu0 0.0
        %5500 = vmatpush1.xpose.msra.mxu0 0.0
        %5501 = vmatprep.subr.mxu0 0.0
        %5502 = vmatpush1.xpose.msra.mxu0 0.0
        %5503 = vmatprep.subr.mxu0 0.0
        %5504 = vmatpush1.xpose.msra.mxu0 0.0
        %5505 = vmatprep.subr.mxu0 0.0
        %5506 = vmatpush1.xpose.msra.mxu0 0.0
        %5507 = vmatprep.subr.mxu0 0.0
        %5508 = vmatpush1.xpose.msra.mxu0 0.0
        %5509 = vmatprep.subr.mxu0 0.0
        %5510 = vmatpush1.xpose.msra.mxu0 0.0
        %5511 = vmatprep.subr.mxu0 0.0
        %5512 = vmatpush1.xpose.msra.mxu0 0.0
        %5513 = vmatprep.subr.mxu0 0.0
        %5514 = vmatpush1.xpose.msra.mxu0 0.0
        %5515 = vmatprep.subr.mxu0 0.0
        %5516 = vmatpush1.xpose.msra.mxu0 0.0
        %5517 = vmatprep.subr.mxu0 0.0
        %5518 = vmatpush1.xpose.msra.mxu0 0.0
        %5519 = vmatprep.subr.mxu0 0.0
        %5520 = vmatpush1.xpose.msra.mxu0 0.0
        %5521 = vmatprep.subr.mxu0 0.0
        %5522 = vmatpush1.xpose.msra.mxu0 0.0
        %5523 = vmatprep.subr.mxu0 0.0
        %5524 = vmatpush1.xpose.msra.mxu0 0.0
        %5525 = vmatprep.subr.mxu0 0.0
        %5526 = vmatpush1.xpose.msra.mxu0 0.0
        %5527 = vmatprep.subr.mxu0 0.0
        %5528 = vmatpush1.xpose.msra.mxu0 0.0
        %5529 = vmatprep.subr.mxu0 0.0
        %5530 = vmatpush1.xpose.msra.mxu0 0.0
        %5531 = vmatprep.subr.mxu0 0.0
        %5532 = vmatpush1.xpose.msra.mxu0 0.0
        %5533 = vmatprep.mubr.f32.mxu0 0.0
        %5534 = vmatmul.mubr.f32.gmra.mrb[0].mxu0 %v5465
        %v5535 = vpop.f32.mrb[0].mxu0
        %v5536 = vadd.f32 0.0, %v5535
        %v5537 = vpop.f32.mrb[0].mxu0
        %5538 = vdwg.mxu0
        %v5539 = vsel %vm1487, %v5308, -inf
        %5540 = vmax.xlane.f32.xlu0 %v5539
        %v5541 = vpop.xlane.xlu0 %5540
        %v5542 = vsel %vm1487, %v5384, -inf
        %5543 = vmax.xlane.f32.xlu0 %v5542
        %v5544 = vpop.xlane.xlu0 %5543
        %v5545 = vsel %vm1487, %v5460, -inf
        %5546 = vmax.xlane.f32.xlu0 %v5545
        %v5547 = vpop.xlane.xlu0 %5546
        %v5548 = vsel %vm1487, %v5536, -inf
        %5549 = vmax.xlane.f32.xlu0 %v5548
        %v5550 = vpop.xlane.xlu0 %5549
        %v5551 = vsub.f32 %v5308, %v5541
        %v5552 = vsub.f32 %v5384, %v5544
        %v5553 = vsub.f32 %v5460, %v5547
        %v5554 = vsub.f32 %v5536, %v5550
        %v5555 = vmul.f32 %v5551, 1.442695
        %v5556 = vpow.pop %v5555
        %v5557 = vmul.f32 %v5552, 1.442695
        %v5558 = vpow.pop %v5557
        %v5559 = vmul.f32 %v5553, 1.442695
        %v5560 = vpow.pop %v5559
        %v5561 = vmul.f32 %v5554, 1.442695
        %v5562 = vpow.pop %v5561
        %v5563 = vsel %vm1487, %v5556, 0.0
        %5564 = vadd.xlane.f32.xlu0 %v5563
        %v5565 = vpop.xlane.xlu0 %5564
        %v5566 = vsel %vm1487, %v5558, 0.0
        %5567 = vadd.xlane.f32.xlu0 %v5566
        %v5568 = vpop.xlane.xlu0 %5567
        %v5569 = vsel %vm1487, %v5560, 0.0
        %5570 = vadd.xlane.f32.xlu0 %v5569
        %v5571 = vpop.xlane.xlu0 %5570
        %v5572 = vsel %vm1487, %v5562, 0.0
        %5573 = vadd.xlane.f32.xlu0 %v5572
        %v5574 = vpop.xlane.xlu0 %5573
        %v5575 = vrcp.pop %v5565
        %v5576 = vrcp.pop %v5568
        %v5577 = vrcp.pop %v5571
        %v5578 = vrcp.pop %v5574
        %v5579 = vmul.f32 %v5556, %v5575
        %v5580 = vmul.f32 %v5558, %v5576
        %v5581 = vmul.f32 %v5560, %v5577
        %v5582 = vmul.f32 %v5562, %v5578
        %5583 = vrot.lane.b32.xlu0 %v5225, 64
        %v5584 = vpop.permute.xlu0 %5583
        %v5587 = vsel %vm1487, %v5579, 0
        %5589 = vmatprep.subr.mxu0 0.0
        %5590 = vmatpush1.msra.mxu0 %v5584
        %5591 = vmatprep.subr.mxu0 0.0
        %5592 = vmatpush1.msra.mxu0 0.0
        %5593 = vmatprep.subr.mxu0 0.0
        %5594 = vmatpush1.msra.mxu0 0.0
        %5595 = vmatprep.subr.mxu0 0.0
        %5596 = vmatpush1.msra.mxu0 0.0
        %5597 = vmatprep.subr.mxu0 0.0
        %5598 = vmatpush1.msra.mxu0 0.0
        %5599 = vmatprep.subr.mxu0 0.0
        %5600 = vmatpush1.msra.mxu0 0.0
        %5601 = vmatprep.subr.mxu0 0.0
        %5602 = vmatpush1.msra.mxu0 0.0
        %5603 = vmatprep.subr.mxu0 0.0
        %5604 = vmatpush1.msra.mxu0 0.0
        %5605 = vmatprep.subr.mxu0 0.0
        %5606 = vmatpush1.msra.mxu0 0.0
        %5607 = vmatprep.subr.mxu0 0.0
        %5608 = vmatpush1.msra.mxu0 0.0
        %5609 = vmatprep.subr.mxu0 0.0
        %5610 = vmatpush1.msra.mxu0 0.0
        %5611 = vmatprep.subr.mxu0 0.0
        %5612 = vmatpush1.msra.mxu0 0.0
        %5613 = vmatprep.subr.mxu0 0.0
        %5614 = vmatpush1.msra.mxu0 0.0
        %5615 = vmatprep.subr.mxu0 0.0
        %5616 = vmatpush1.msra.mxu0 0.0
        %5617 = vmatprep.subr.mxu0 0.0
        %5618 = vmatpush1.msra.mxu0 0.0
        %5619 = vmatprep.subr.mxu0 0.0
        %5620 = vmatpush1.msra.mxu0 0.0
        %5621 = vmatprep.subr.mxu0 0.0
        %5622 = vmatpush1.msra.mxu0 0.0
        %5623 = vmatprep.subr.mxu0 0.0
        %5624 = vmatpush1.msra.mxu0 0.0
        %5625 = vmatprep.subr.mxu0 0.0
        %5626 = vmatpush1.msra.mxu0 0.0
        %5627 = vmatprep.subr.mxu0 0.0
        %5628 = vmatpush1.msra.mxu0 0.0
        %5629 = vmatprep.subr.mxu0 0.0
        %5630 = vmatpush1.msra.mxu0 0.0
        %5631 = vmatprep.subr.mxu0 0.0
        %5632 = vmatpush1.msra.mxu0 0.0
        %5633 = vmatprep.subr.mxu0 0.0
        %5634 = vmatpush1.msra.mxu0 0.0
        %5635 = vmatprep.subr.mxu0 0.0
        %5636 = vmatpush1.msra.mxu0 0.0
        %5637 = vmatprep.subr.mxu0 0.0
        %5638 = vmatpush1.msra.mxu0 0.0
        %5639 = vmatprep.subr.mxu0 0.0
        %5640 = vmatpush1.msra.mxu0 0.0
        %5641 = vmatprep.subr.mxu0 0.0
        %5642 = vmatpush1.msra.mxu0 0.0
        %5643 = vmatprep.subr.mxu0 0.0
        %5644 = vmatpush1.msra.mxu0 0.0
        %5645 = vmatprep.subr.mxu0 0.0
        %5646 = vmatpush1.msra.mxu0 0.0
        %5647 = vmatprep.subr.mxu0 0.0
        %5648 = vmatpush1.msra.mxu0 0.0
        %5649 = vmatprep.subr.mxu0 0.0
        %5650 = vmatpush1.msra.mxu0 0.0
        %5651 = vmatprep.subr.mxu0 0.0
        %5652 = vmatpush1.msra.mxu0 0.0
        %5653 = vmatprep.mubr.f32.mxu0 0.0
        %5654 = vmatmul.mubr.f32.gmra.mrb[0].mxu0 %v5587
        %v5655 = vpop.f32.mrb[0].mxu0
        %v5656 = vadd.f32 0.0, %v5655
        %v5657 = vpop.f32.mrb[0].mxu0
        %5658 = vdwg.mxu0
        %5659 = vrot.lane.b32.xlu0 %v5230, 64
        %v5660 = vpop.permute.xlu0 %5659
        %v5663 = vsel %vm1487, %v5580, 0
        %5665 = vmatprep.subr.mxu0 0.0
        %5666 = vmatpush1.msra.mxu0 %v5660
        %5667 = vmatprep.subr.mxu0 0.0
        %5668 = vmatpush1.msra.mxu0 0.0
        %5669 = vmatprep.subr.mxu0 0.0
        %5670 = vmatpush1.msra.mxu0 0.0
        %5671 = vmatprep.subr.mxu0 0.0
        %5672 = vmatpush1.msra.mxu0 0.0
        %5673 = vmatprep.subr.mxu0 0.0
        %5674 = vmatpush1.msra.mxu0 0.0
        %5675 = vmatprep.subr.mxu0 0.0
        %5676 = vmatpush1.msra.mxu0 0.0
        %5677 = vmatprep.subr.mxu0 0.0
        %5678 = vmatpush1.msra.mxu0 0.0
        %5679 = vmatprep.subr.mxu0 0.0
        %5680 = vmatpush1.msra.mxu0 0.0
        %5681 = vmatprep.subr.mxu0 0.0
        %5682 = vmatpush1.msra.mxu0 0.0
        %5683 = vmatprep.subr.mxu0 0.0
        %5684 = vmatpush1.msra.mxu0 0.0
        %5685 = vmatprep.subr.mxu0 0.0
        %5686 = vmatpush1.msra.mxu0 0.0
        %5687 = vmatprep.subr.mxu0 0.0
        %5688 = vmatpush1.msra.mxu0 0.0
        %5689 = vmatprep.subr.mxu0 0.0
        %5690 = vmatpush1.msra.mxu0 0.0
        %5691 = vmatprep.subr.mxu0 0.0
        %5692 = vmatpush1.msra.mxu0 0.0
        %5693 = vmatprep.subr.mxu0 0.0
        %5694 = vmatpush1.msra.mxu0 0.0
        %5695 = vmatprep.subr.mxu0 0.0
        %5696 = vmatpush1.msra.mxu0 0.0
        %5697 = vmatprep.subr.mxu0 0.0
        %5698 = vmatpush1.msra.mxu0 0.0
        %5699 = vmatprep.subr.mxu0 0.0
        %5700 = vmatpush1.msra.mxu0 0.0
        %5701 = vmatprep.subr.mxu0 0.0
        %5702 = vmatpush1.msra.mxu0 0.0
        %5703 = vmatprep.subr.mxu0 0.0
        %5704 = vmatpush1.msra.mxu0 0.0
        %5705 = vmatprep.subr.mxu0 0.0
        %5706 = vmatpush1.msra.mxu0 0.0
        %5707 = vmatprep.subr.mxu0 0.0
        %5708 = vmatpush1.msra.mxu0 0.0
        %5709 = vmatprep.subr.mxu0 0.0
        %5710 = vmatpush1.msra.mxu0 0.0
        %5711 = vmatprep.subr.mxu0 0.0
        %5712 = vmatpush1.msra.mxu0 0.0
        %5713 = vmatprep.subr.mxu0 0.0
        %5714 = vmatpush1.msra.mxu0 0.0
        %5715 = vmatprep.subr.mxu0 0.0
        %5716 = vmatpush1.msra.mxu0 0.0
        %5717 = vmatprep.subr.mxu0 0.0
        %5718 = vmatpush1.msra.mxu0 0.0
        %5719 = vmatprep.subr.mxu0 0.0
        %5720 = vmatpush1.msra.mxu0 0.0
        %5721 = vmatprep.subr.mxu0 0.0
        %5722 = vmatpush1.msra.mxu0 0.0
        %5723 = vmatprep.subr.mxu0 0.0
        %5724 = vmatpush1.msra.mxu0 0.0
        %5725 = vmatprep.subr.mxu0 0.0
        %5726 = vmatpush1.msra.mxu0 0.0
        %5727 = vmatprep.subr.mxu0 0.0
        %5728 = vmatpush1.msra.mxu0 0.0
        %5729 = vmatprep.mubr.f32.mxu0 0.0
        %5730 = vmatmul.mubr.f32.gmra.mrb[0].mxu0 %v5663
        %v5731 = vpop.f32.mrb[0].mxu0
        %v5732 = vadd.f32 0.0, %v5731
        %v5733 = vpop.f32.mrb[0].mxu0
        %5734 = vdwg.mxu0
        %5735 = vrot.lane.b32.xlu0 %v5232, 64
        %v5736 = vpop.permute.xlu0 %5735
        %v5739 = vsel %vm1487, %v5581, 0
        %5741 = vmatprep.subr.mxu0 0.0
        %5742 = vmatpush1.msra.mxu0 %v5736
        %5743 = vmatprep.subr.mxu0 0.0
        %5744 = vmatpush1.msra.mxu0 0.0
        %5745 = vmatprep.subr.mxu0 0.0
        %5746 = vmatpush1.msra.mxu0 0.0
        %5747 = vmatprep.subr.mxu0 0.0
        %5748 = vmatpush1.msra.mxu0 0.0
        %5749 = vmatprep.subr.mxu0 0.0
        %5750 = vmatpush1.msra.mxu0 0.0
        %5751 = vmatprep.subr.mxu0 0.0
        %5752 = vmatpush1.msra.mxu0 0.0
        %5753 = vmatprep.subr.mxu0 0.0
        %5754 = vmatpush1.msra.mxu0 0.0
        %5755 = vmatprep.subr.mxu0 0.0
        %5756 = vmatpush1.msra.mxu0 0.0
        %5757 = vmatprep.subr.mxu0 0.0
        %5758 = vmatpush1.msra.mxu0 0.0
        %5759 = vmatprep.subr.mxu0 0.0
        %5760 = vmatpush1.msra.mxu0 0.0
        %5761 = vmatprep.subr.mxu0 0.0
        %5762 = vmatpush1.msra.mxu0 0.0
        %5763 = vmatprep.subr.mxu0 0.0
        %5764 = vmatpush1.msra.mxu0 0.0
        %5765 = vmatprep.subr.mxu0 0.0
        %5766 = vmatpush1.msra.mxu0 0.0
        %5767 = vmatprep.subr.mxu0 0.0
        %5768 = vmatpush1.msra.mxu0 0.0
        %5769 = vmatprep.subr.mxu0 0.0
        %5770 = vmatpush1.msra.mxu0 0.0
        %5771 = vmatprep.subr.mxu0 0.0
        %5772 = vmatpush1.msra.mxu0 0.0
        %5773 = vmatprep.subr.mxu0 0.0
        %5774 = vmatpush1.msra.mxu0 0.0
        %5775 = vmatprep.subr.mxu0 0.0
        %5776 = vmatpush1.msra.mxu0 0.0
        %5777 = vmatprep.subr.mxu0 0.0
        %5778 = vmatpush1.msra.mxu0 0.0
        %5779 = vmatprep.subr.mxu0 0.0
        %5780 = vmatpush1.msra.mxu0 0.0
        %5781 = vmatprep.subr.mxu0 0.0
        %5782 = vmatpush1.msra.mxu0 0.0
        %5783 = vmatprep.subr.mxu0 0.0
        %5784 = vmatpush1.msra.mxu0 0.0
        %5785 = vmatprep.subr.mxu0 0.0
        %5786 = vmatpush1.msra.mxu0 0.0
        %5787 = vmatprep.subr.mxu0 0.0
        %5788 = vmatpush1.msra.mxu0 0.0
        %5789 = vmatprep.subr.mxu0 0.0
        %5790 = vmatpush1.msra.mxu0 0.0
        %5791 = vmatprep.subr.mxu0 0.0
        %5792 = vmatpush1.msra.mxu0 0.0
        %5793 = vmatprep.subr.mxu0 0.0
        %5794 = vmatpush1.msra.mxu0 0.0
        %5795 = vmatprep.subr.mxu0 0.0
        %5796 = vmatpush1.msra.mxu0 0.0
        %5797 = vmatprep.subr.mxu0 0.0
        %5798 = vmatpush1.msra.mxu0 0.0
        %5799 = vmatprep.subr.mxu0 0.0
        %5800 = vmatpush1.msra.mxu0 0.0
        %5801 = vmatprep.subr.mxu0 0.0
        %5802 = vmatpush1.msra.mxu0 0.0
        %5803 = vmatprep.subr.mxu0 0.0
        %5804 = vmatpush1.msra.mxu0 0.0
        %5805 = vmatprep.mubr.f32.mxu0 0.0
        %5806 = vmatmul.mubr.f32.gmra.mrb[0].mxu0 %v5739
        %v5807 = vpop.f32.mrb[0].mxu0
        %v5808 = vadd.f32 0.0, %v5807
        %v5809 = vpop.f32.mrb[0].mxu0
        %5810 = vdwg.mxu0
        %5811 = vrot.lane.b32.xlu0 %v5234, 64
        %v5812 = vpop.permute.xlu0 %5811
        %v5815 = vsel %vm1487, %v5582, 0
        %5817 = vmatprep.subr.mxu0 0.0
        %5818 = vmatpush1.msra.mxu0 %v5812
        %5819 = vmatprep.subr.mxu0 0.0
        %5820 = vmatpush1.msra.mxu0 0.0
        %5821 = vmatprep.subr.mxu0 0.0
        %5822 = vmatpush1.msra.mxu0 0.0
        %5823 = vmatprep.subr.mxu0 0.0
        %5824 = vmatpush1.msra.mxu0 0.0
        %5825 = vmatprep.subr.mxu0 0.0
        %5826 = vmatpush1.msra.mxu0 0.0
        %5827 = vmatprep.subr.mxu0 0.0
        %5828 = vmatpush1.msra.mxu0 0.0
        %5829 = vmatprep.subr.mxu0 0.0
        %5830 = vmatpush1.msra.mxu0 0.0
        %5831 = vmatprep.subr.mxu0 0.0
        %5832 = vmatpush1.msra.mxu0 0.0
        %5833 = vmatprep.subr.mxu0 0.0
        %5834 = vmatpush1.msra.mxu0 0.0
        %5835 = vmatprep.subr.mxu0 0.0
        %5836 = vmatpush1.msra.mxu0 0.0
        %5837 = vmatprep.subr.mxu0 0.0
        %5838 = vmatpush1.msra.mxu0 0.0
        %5839 = vmatprep.subr.mxu0 0.0
        %5840 = vmatpush1.msra.mxu0 0.0
        %5841 = vmatprep.subr.mxu0 0.0
        %5842 = vmatpush1.msra.mxu0 0.0
        %5843 = vmatprep.subr.mxu0 0.0
        %5844 = vmatpush1.msra.mxu0 0.0
        %5845 = vmatprep.subr.mxu0 0.0
        %5846 = vmatpush1.msra.mxu0 0.0
        %5847 = vmatprep.subr.mxu0 0.0
        %5848 = vmatpush1.msra.mxu0 0.0
        %5849 = vmatprep.subr.mxu0 0.0
        %5850 = vmatpush1.msra.mxu0 0.0
        %5851 = vmatprep.subr.mxu0 0.0
        %5852 = vmatpush1.msra.mxu0 0.0
        %5853 = vmatprep.subr.mxu0 0.0
        %5854 = vmatpush1.msra.mxu0 0.0
        %5855 = vmatprep.subr.mxu0 0.0
        %5856 = vmatpush1.msra.mxu0 0.0
        %5857 = vmatprep.subr.mxu0 0.0
        %5858 = vmatpush1.msra.mxu0 0.0
        %5859 = vmatprep.subr.mxu0 0.0
        %5860 = vmatpush1.msra.mxu0 0.0
        %5861 = vmatprep.subr.mxu0 0.0
        %5862 = vmatpush1.msra.mxu0 0.0
        %5863 = vmatprep.subr.mxu0 0.0
        %5864 = vmatpush1.msra.mxu0 0.0
        %5865 = vmatprep.subr.mxu0 0.0
        %5866 = vmatpush1.msra.mxu0 0.0
        %5867 = vmatprep.subr.mxu0 0.0
        %5868 = vmatpush1.msra.mxu0 0.0
        %5869 = vmatprep.subr.mxu0 0.0
        %5870 = vmatpush1.msra.mxu0 0.0
        %5871 = vmatprep.subr.mxu0 0.0
        %5872 = vmatpush1.msra.mxu0 0.0
        %5873 = vmatprep.subr.mxu0 0.0
        %5874 = vmatpush1.msra.mxu0 0.0
        %5875 = vmatprep.subr.mxu0 0.0
        %5876 = vmatpush1.msra.mxu0 0.0
        %5877 = vmatprep.subr.mxu0 0.0
        %5878 = vmatpush1.msra.mxu0 0.0
        %5879 = vmatprep.subr.mxu0 0.0
        %5880 = vmatpush1.msra.mxu0 0.0
        %5881 = vmatprep.mubr.f32.mxu0 0.0
        %5882 = vmatmul.mubr.f32.gmra.mrb[0].mxu0 %v5815
        %v5883 = vpop.f32.mrb[0].mxu0
        %v5884 = vadd.f32 0.0, %v5883
        %v5885 = vpop.f32.mrb[0].mxu0
        %5886 = vdwg.mxu0
        %s5887 = scalar_lea.vmem [#allocation18], 32
        %v5888 = vld [vmem:[%s5887] sm:$0xff]
        %v5889 = vld [vmem:[%s5887 + $0x8] sm:$0xff]
        %v5890 = vld [vmem:[%s5887 + $0x10] sm:$0xff]
        %v5891 = vld [vmem:[%s5887 + $0x18] sm:$0xff]
        %s5892 = scalar_lea.vmem %s17, 1
        %v5893 = vld [vmem:[%s5892] sm:$0x1]
        %v5895 = vsel %vm1487, %v5656, 0
        %5897 = vmatprep.subr.mxu0 0.0
        %5898 = vmatpush1.msra.mxu0 %v5888
        %5899 = vmatprep.subr.mxu0 0.0
        %5900 = vmatpush1.msra.mxu0 0.0
        %5901 = vmatprep.subr.mxu0 0.0
        %5902 = vmatpush1.msra.mxu0 0.0
        %5903 = vmatprep.subr.mxu0 0.0
        %5904 = vmatpush1.msra.mxu0 0.0
        %5905 = vmatprep.subr.mxu0 0.0
        %5906 = vmatpush1.msra.mxu0 0.0
        %5907 = vmatprep.subr.mxu0 0.0
        %5908 = vmatpush1.msra.mxu0 0.0
        %5909 = vmatprep.subr.mxu0 0.0
        %5910 = vmatpush1.msra.mxu0 0.0
        %5911 = vmatprep.subr.mxu0 0.0
        %5912 = vmatpush1.msra.mxu0 0.0
        %5913 = vmatprep.subr.mxu0 0.0
        %5914 = vmatpush1.msra.mxu0 0.0
        %5915 = vmatprep.subr.mxu0 0.0
        %5916 = vmatpush1.msra.mxu0 0.0
        %5917 = vmatprep.subr.mxu0 0.0
        %5918 = vmatpush1.msra.mxu0 0.0
        %5919 = vmatprep.subr.mxu0 0.0
        %5920 = vmatpush1.msra.mxu0 0.0
        %5921 = vmatprep.subr.mxu0 0.0
        %5922 = vmatpush1.msra.mxu0 0.0
        %5923 = vmatprep.subr.mxu0 0.0
        %5924 = vmatpush1.msra.mxu0 0.0
        %5925 = vmatprep.subr.mxu0 0.0
        %5926 = vmatpush1.msra.mxu0 0.0
        %5927 = vmatprep.subr.mxu0 0.0
        %5928 = vmatpush1.msra.mxu0 0.0
        %5929 = vmatprep.subr.mxu0 0.0
        %5930 = vmatpush1.msra.mxu0 0.0
        %5931 = vmatprep.subr.mxu0 0.0
        %5932 = vmatpush1.msra.mxu0 0.0
        %5933 = vmatprep.subr.mxu0 0.0
        %5934 = vmatpush1.msra.mxu0 0.0
        %5935 = vmatprep.subr.mxu0 0.0
        %5936 = vmatpush1.msra.mxu0 0.0
        %5937 = vmatprep.subr.mxu0 0.0
        %5938 = vmatpush1.msra.mxu0 0.0
        %5939 = vmatprep.subr.mxu0 0.0
        %5940 = vmatpush1.msra.mxu0 0.0
        %5941 = vmatprep.subr.mxu0 0.0
        %5942 = vmatpush1.msra.mxu0 0.0
        %5943 = vmatprep.subr.mxu0 0.0
        %5944 = vmatpush1.msra.mxu0 0.0
        %5945 = vmatprep.subr.mxu0 0.0
        %5946 = vmatpush1.msra.mxu0 0.0
        %5947 = vmatprep.subr.mxu0 0.0
        %5948 = vmatpush1.msra.mxu0 0.0
        %5949 = vmatprep.subr.mxu0 0.0
        %5950 = vmatpush1.msra.mxu0 0.0
        %5951 = vmatprep.subr.mxu0 0.0
        %5952 = vmatpush1.msra.mxu0 0.0
        %5953 = vmatprep.subr.mxu0 0.0
        %5954 = vmatpush1.msra.mxu0 0.0
        %5955 = vmatprep.subr.mxu0 0.0
        %5956 = vmatpush1.msra.mxu0 0.0
        %5957 = vmatprep.subr.mxu0 0.0
        %5958 = vmatpush1.msra.mxu0 0.0
        %5959 = vmatprep.subr.mxu0 0.0
        %5960 = vmatpush1.msra.mxu0 0.0
        %5961 = vmatprep.mubr.f32.mxu0 0.0
        %5962 = vmatmul.mubr.f32.gmra.mrb[0].mxu0 %v5895
        %v5963 = vpop.f32.mrb[0].mxu0
        %v5964 = vadd.f32 0.0, %v5963
        %v5965 = vpop.f32.mrb[0].mxu0
        %5966 = vdwg.mxu0
        %v5968 = vsel %vm1487, %v5732, 0
        %5970 = vmatprep.subr.mxu0 0.0
        %5971 = vmatpush1.msra.mxu0 %v5889
        %5972 = vmatprep.subr.mxu0 0.0
        %5973 = vmatpush1.msra.mxu0 0.0
        %5974 = vmatprep.subr.mxu0 0.0
        %5975 = vmatpush1.msra.mxu0 0.0
        %5976 = vmatprep.subr.mxu0 0.0
        %5977 = vmatpush1.msra.mxu0 0.0
        %5978 = vmatprep.subr.mxu0 0.0
        %5979 = vmatpush1.msra.mxu0 0.0
        %5980 = vmatprep.subr.mxu0 0.0
        %5981 = vmatpush1.msra.mxu0 0.0
        %5982 = vmatprep.subr.mxu0 0.0
        %5983 = vmatpush1.msra.mxu0 0.0
        %5984 = vmatprep.subr.mxu0 0.0
        %5985 = vmatpush1.msra.mxu0 0.0
        %5986 = vmatprep.subr.mxu0 0.0
        %5987 = vmatpush1.msra.mxu0 0.0
        %5988 = vmatprep.subr.mxu0 0.0
        %5989 = vmatpush1.msra.mxu0 0.0
        %5990 = vmatprep.subr.mxu0 0.0
        %5991 = vmatpush1.msra.mxu0 0.0
        %5992 = vmatprep.subr.mxu0 0.0
        %5993 = vmatpush1.msra.mxu0 0.0
        %5994 = vmatprep.subr.mxu0 0.0
        %5995 = vmatpush1.msra.mxu0 0.0
        %5996 = vmatprep.subr.mxu0 0.0
        %5997 = vmatpush1.msra.mxu0 0.0
        %5998 = vmatprep.subr.mxu0 0.0
        %5999 = vmatpush1.msra.mxu0 0.0
        %6000 = vmatprep.subr.mxu0 0.0
        %6001 = vmatpush1.msra.mxu0 0.0
        %6002 = vmatprep.subr.mxu0 0.0
        %6003 = vmatpush1.msra.mxu0 0.0
        %6004 = vmatprep.subr.mxu0 0.0
        %6005 = vmatpush1.msra.mxu0 0.0
        %6006 = vmatprep.subr.mxu0 0.0
        %6007 = vmatpush1.msra.mxu0 0.0
        %6008 = vmatprep.subr.mxu0 0.0
        %6009 = vmatpush1.msra.mxu0 0.0
        %6010 = vmatprep.subr.mxu0 0.0
        %6011 = vmatpush1.msra.mxu0 0.0
        %6012 = vmatprep.subr.mxu0 0.0
        %6013 = vmatpush1.msra.mxu0 0.0
        %6014 = vmatprep.subr.mxu0 0.0
        %6015 = vmatpush1.msra.mxu0 0.0
        %6016 = vmatprep.subr.mxu0 0.0
        %6017 = vmatpush1.msra.mxu0 0.0
        %6018 = vmatprep.subr.mxu0 0.0
        %6019 = vmatpush1.msra.mxu0 0.0
        %6020 = vmatprep.subr.mxu0 0.0
        %6021 = vmatpush1.msra.mxu0 0.0
        %6022 = vmatprep.subr.mxu0 0.0
        %6023 = vmatpush1.msra.mxu0 0.0
        %6024 = vmatprep.subr.mxu0 0.0
        %6025 = vmatpush1.msra.mxu0 0.0
        %6026 = vmatprep.subr.mxu0 0.0
        %6027 = vmatpush1.msra.mxu0 0.0
        %6028 = vmatprep.subr.mxu0 0.0
        %6029 = vmatpush1.msra.mxu0 0.0
        %6030 = vmatprep.subr.mxu0 0.0
        %6031 = vmatpush1.msra.mxu0 0.0
        %6032 = vmatprep.subr.mxu0 0.0
        %6033 = vmatpush1.msra.mxu0 0.0
        %6034 = vmatprep.mubr.f32.mxu0 0.0
        %6035 = vmatmul.mubr.f32.gmra.mrb[0].mxu0 %v5968
        %v6036 = vpop.f32.mrb[0].mxu0
        %v6037 = vadd.f32 0.0, %v6036
        %v6038 = vpop.f32.mrb[0].mxu0
        %6039 = vdwg.mxu0
        %v6041 = vsel %vm1487, %v5808, 0
        %6043 = vmatprep.subr.mxu0 0.0
        %6044 = vmatpush1.msra.mxu0 %v5890
        %6045 = vmatprep.subr.mxu0 0.0
        %6046 = vmatpush1.msra.mxu0 0.0
        %6047 = vmatprep.subr.mxu0 0.0
        %6048 = vmatpush1.msra.mxu0 0.0
        %6049 = vmatprep.subr.mxu0 0.0
        %6050 = vmatpush1.msra.mxu0 0.0
        %6051 = vmatprep.subr.mxu0 0.0
        %6052 = vmatpush1.msra.mxu0 0.0
        %6053 = vmatprep.subr.mxu0 0.0
        %6054 = vmatpush1.msra.mxu0 0.0
        %6055 = vmatprep.subr.mxu0 0.0
        %6056 = vmatpush1.msra.mxu0 0.0
        %6057 = vmatprep.subr.mxu0 0.0
        %6058 = vmatpush1.msra.mxu0 0.0
        %6059 = vmatprep.subr.mxu0 0.0
        %6060 = vmatpush1.msra.mxu0 0.0
        %6061 = vmatprep.subr.mxu0 0.0
        %6062 = vmatpush1.msra.mxu0 0.0
        %6063 = vmatprep.subr.mxu0 0.0
        %6064 = vmatpush1.msra.mxu0 0.0
        %6065 = vmatprep.subr.mxu0 0.0
        %6066 = vmatpush1.msra.mxu0 0.0
        %6067 = vmatprep.subr.mxu0 0.0
        %6068 = vmatpush1.msra.mxu0 0.0
        %6069 = vmatprep.subr.mxu0 0.0
        %6070 = vmatpush1.msra.mxu0 0.0
        %6071 = vmatprep.subr.mxu0 0.0
        %6072 = vmatpush1.msra.mxu0 0.0
        %6073 = vmatprep.subr.mxu0 0.0
        %6074 = vmatpush1.msra.mxu0 0.0
        %6075 = vmatprep.subr.mxu0 0.0
        %6076 = vmatpush1.msra.mxu0 0.0
        %6077 = vmatprep.subr.mxu0 0.0
        %6078 = vmatpush1.msra.mxu0 0.0
        %6079 = vmatprep.subr.mxu0 0.0
        %6080 = vmatpush1.msra.mxu0 0.0
        %6081 = vmatprep.subr.mxu0 0.0
        %6082 = vmatpush1.msra.mxu0 0.0
        %6083 = vmatprep.subr.mxu0 0.0
        %6084 = vmatpush1.msra.mxu0 0.0
        %6085 = vmatprep.subr.mxu0 0.0
        %6086 = vmatpush1.msra.mxu0 0.0
        %6087 = vmatprep.subr.mxu0 0.0
        %6088 = vmatpush1.msra.mxu0 0.0
        %6089 = vmatprep.subr.mxu0 0.0
        %6090 = vmatpush1.msra.mxu0 0.0
        %6091 = vmatprep.subr.mxu0 0.0
        %6092 = vmatpush1.msra.mxu0 0.0
        %6093 = vmatprep.subr.mxu0 0.0
        %6094 = vmatpush1.msra.mxu0 0.0
        %6095 = vmatprep.subr.mxu0 0.0
        %6096 = vmatpush1.msra.mxu0 0.0
        %6097 = vmatprep.subr.mxu0 0.0
        %6098 = vmatpush1.msra.mxu0 0.0
        %6099 = vmatprep.subr.mxu0 0.0
        %6100 = vmatpush1.msra.mxu0 0.0
        %6101 = vmatprep.subr.mxu0 0.0
        %6102 = vmatpush1.msra.mxu0 0.0
        %6103 = vmatprep.subr.mxu0 0.0
        %6104 = vmatpush1.msra.mxu0 0.0
        %6105 = vmatprep.subr.mxu0 0.0
        %6106 = vmatpush1.msra.mxu0 0.0
        %6107 = vmatprep.mubr.f32.mxu0 0.0
        %6108 = vmatmul.mubr.f32.gmra.mrb[0].mxu0 %v6041
        %v6109 = vpop.f32.mrb[0].mxu0
        %v6110 = vadd.f32 0.0, %v6109
        %v6111 = vpop.f32.mrb[0].mxu0
        %6112 = vdwg.mxu0
        %v6114 = vsel %vm1487, %v5884, 0
        %6116 = vmatprep.subr.mxu0 0.0
        %6117 = vmatpush1.msra.mxu0 %v5891
        %6118 = vmatprep.subr.mxu0 0.0
        %6119 = vmatpush1.msra.mxu0 0.0
        %6120 = vmatprep.subr.mxu0 0.0
        %6121 = vmatpush1.msra.mxu0 0.0
        %6122 = vmatprep.subr.mxu0 0.0
        %6123 = vmatpush1.msra.mxu0 0.0
        %6124 = vmatprep.subr.mxu0 0.0
        %6125 = vmatpush1.msra.mxu0 0.0
        %6126 = vmatprep.subr.mxu0 0.0
        %6127 = vmatpush1.msra.mxu0 0.0
        %6128 = vmatprep.subr.mxu0 0.0
        %6129 = vmatpush1.msra.mxu0 0.0
        %6130 = vmatprep.subr.mxu0 0.0
        %6131 = vmatpush1.msra.mxu0 0.0
        %6132 = vmatprep.subr.mxu0 0.0
        %6133 = vmatpush1.msra.mxu0 0.0
        %6134 = vmatprep.subr.mxu0 0.0
        %6135 = vmatpush1.msra.mxu0 0.0
        %6136 = vmatprep.subr.mxu0 0.0
        %6137 = vmatpush1.msra.mxu0 0.0
        %6138 = vmatprep.subr.mxu0 0.0
        %6139 = vmatpush1.msra.mxu0 0.0
        %6140 = vmatprep.subr.mxu0 0.0
        %6141 = vmatpush1.msra.mxu0 0.0
        %6142 = vmatprep.subr.mxu0 0.0
        %6143 = vmatpush1.msra.mxu0 0.0
        %6144 = vmatprep.subr.mxu0 0.0
        %6145 = vmatpush1.msra.mxu0 0.0
        %6146 = vmatprep.subr.mxu0 0.0
        %6147 = vmatpush1.msra.mxu0 0.0
        %6148 = vmatprep.subr.mxu0 0.0
        %6149 = vmatpush1.msra.mxu0 0.0
        %6150 = vmatprep.subr.mxu0 0.0
        %6151 = vmatpush1.msra.mxu0 0.0
        %6152 = vmatprep.subr.mxu0 0.0
        %6153 = vmatpush1.msra.mxu0 0.0
        %6154 = vmatprep.subr.mxu0 0.0
        %6155 = vmatpush1.msra.mxu0 0.0
        %6156 = vmatprep.subr.mxu0 0.0
        %6157 = vmatpush1.msra.mxu0 0.0
        %6158 = vmatprep.subr.mxu0 0.0
        %6159 = vmatpush1.msra.mxu0 0.0
        %6160 = vmatprep.subr.mxu0 0.0
        %6161 = vmatpush1.msra.mxu0 0.0
        %6162 = vmatprep.subr.mxu0 0.0
        %6163 = vmatpush1.msra.mxu0 0.0
        %6164 = vmatprep.subr.mxu0 0.0
        %6165 = vmatpush1.msra.mxu0 0.0
        %6166 = vmatprep.subr.mxu0 0.0
        %6167 = vmatpush1.msra.mxu0 0.0
        %6168 = vmatprep.subr.mxu0 0.0
        %6169 = vmatpush1.msra.mxu0 0.0
        %6170 = vmatprep.subr.mxu0 0.0
        %6171 = vmatpush1.msra.mxu0 0.0
        %6172 = vmatprep.subr.mxu0 0.0
        %6173 = vmatpush1.msra.mxu0 0.0
        %6174 = vmatprep.subr.mxu0 0.0
        %6175 = vmatpush1.msra.mxu0 0.0
        %6176 = vmatprep.subr.mxu0 0.0
        %6177 = vmatpush1.msra.mxu0 0.0
        %6178 = vmatprep.subr.mxu0 0.0
        %6179 = vmatpush1.msra.mxu0 0.0
        %6180 = vmatprep.mubr.f32.mxu0 0.0
        %6181 = vmatmul.mubr.f32.gmra.mrb[0].mxu0 %v6114
        %v6182 = vpop.f32.mrb[0].mxu0
        %v6183 = vadd.f32 0.0, %v6182
        %v6184 = vpop.f32.mrb[0].mxu0
        %6185 = vdwg.mxu0
        %v6186 = vsel %vm1112, %v5964, 0.0
        %v6187 = vsel %vm1112, %v6037, 0.0
        %v6188 = vadd.f32 %v6186, %v6187
        %v6189 = vsel %vm1112, %v6110, 0.0
        %v6190 = vadd.f32 %v6188, %v6189
        %v6191 = vsel %vm1112, %v6183, 0.0
        %v6192 = vadd.f32 %v6190, %v6191
        %v6194 = vlaneseq
        %v6195 = vshrl.u32 %v6194, 7
        %v6196 = vsub.s32 0, %v6195
        %v6197 = vrot.slane %v5893, %v6196
        %v6199 = vadd.f32 %v6192, %v6197
        %v6200 = vadd.f32 %v5141, %v6199
        %s6201 = scalar_lea.vmem %s18, 1
        %v6202 = vld [vmem:[%s6201] sm:$0x1]
        %s6203 = scalar_lea.vmem %s19, 1
        %v6204 = vld [vmem:[%s6203] sm:$0x1]
        %v6205 = vsel %vm1112, %v6200, 0.0
        %6206 = vadd.xlane.f32.xlu0 %v6205
        %v6207 = vpop.xlane.xlu0 %6206
        %v6208 = vmul.f32 %v6207, %v2469
        %v6209 = vsub.f32 %v6200, %v6208
        %v6210 = vmul.f32 %v6209, %v6209
        %v6211 = vsel %vm1112, %v6210, 0.0
        %6212 = vadd.xlane.f32.xlu0 %v6211
        %v6213 = vpop.xlane.xlu0 %6212
        %v6214 = vmul.f32 %v6213, %v2469
        %v6215 = vadd.f32 %v6214, 1e-05
        %v6216 = vrsqrt.pop %v6215
        %v6217 = vmul.f32 %v6209, %v6216
        %v6219 = vlaneseq
        %v6220 = vshrl.u32 %v6219, 7
        %v6221 = vsub.s32 0, %v6220
        %v6222 = vrot.slane %v6202, %v6221
        %v6224 = vmul.f32 %v6217, %v6222
        %v6226 = vlaneseq
        %v6227 = vshrl.u32 %v6226, 7
        %v6228 = vsub.s32 0, %v6227
        %v6229 = vrot.slane %v6204, %v6228
        %v6231 = vadd.f32 %v6224, %v6229
        %s6232 = scalar_lea.vmem %s20, 32
        %v6233 = vld [vmem:[%s6232] sm:$0xff]
        %v6234 = vld [vmem:[%s6232 + $0x8] sm:$0xff]
        %v6235 = vld [vmem:[%s6232 + $0x10] sm:$0xff]
        %v6236 = vld [vmem:[%s6232 + $0x18] sm:$0xff]
        %s6237 = scalar_lea.vmem %s21, 1
        %v6238 = vld [vmem:[%s6237] sm:$0x1]
        %v6240 = vlaneseq
        %v6241 = vshrl.u32 %v6240, 7
        %v6242 = vsub.s32 0, %v6241
        %v6243 = vrot.slane %v6238, %v6242
        %v6246 = vsel %vm1112, %v6231, 0
        %6248 = vmatprep.subr.mxu0 0.0
        %6249 = vmatpush1.msra.mxu0 %v6233
        %6250 = vmatprep.subr.mxu0 0.0
        %6251 = vmatpush1.msra.mxu0 %v6234
        %6252 = vmatprep.subr.mxu0 0.0
        %6253 = vmatpush1.msra.mxu0 %v6235
        %6254 = vmatprep.subr.mxu0 0.0
        %6255 = vmatpush1.msra.mxu0 %v6236
        %6256 = vmatprep.subr.mxu0 0.0
        %6257 = vmatpush1.msra.mxu0 0.0
        %6258 = vmatprep.subr.mxu0 0.0
        %6259 = vmatpush1.msra.mxu0 0.0
        %6260 = vmatprep.subr.mxu0 0.0
        %6261 = vmatpush1.msra.mxu0 0.0
        %6262 = vmatprep.subr.mxu0 0.0
        %6263 = vmatpush1.msra.mxu0 0.0
        %6264 = vmatprep.subr.mxu0 0.0
        %6265 = vmatpush1.msra.mxu0 0.0
        %6266 = vmatprep.subr.mxu0 0.0
        %6267 = vmatpush1.msra.mxu0 0.0
        %6268 = vmatprep.subr.mxu0 0.0
        %6269 = vmatpush1.msra.mxu0 0.0
        %6270 = vmatprep.subr.mxu0 0.0
        %6271 = vmatpush1.msra.mxu0 0.0
        %6272 = vmatprep.subr.mxu0 0.0
        %6273 = vmatpush1.msra.mxu0 0.0
        %6274 = vmatprep.subr.mxu0 0.0
        %6275 = vmatpush1.msra.mxu0 0.0
        %6276 = vmatprep.subr.mxu0 0.0
        %6277 = vmatpush1.msra.mxu0 0.0
        %6278 = vmatprep.subr.mxu0 0.0
        %6279 = vmatpush1.msra.mxu0 0.0
        %6280 = vmatprep.subr.mxu0 0.0
        %6281 = vmatpush1.msra.mxu0 0.0
        %6282 = vmatprep.subr.mxu0 0.0
        %6283 = vmatpush1.msra.mxu0 0.0
        %6284 = vmatprep.subr.mxu0 0.0
        %6285 = vmatpush1.msra.mxu0 0.0
        %6286 = vmatprep.subr.mxu0 0.0
        %6287 = vmatpush1.msra.mxu0 0.0
        %6288 = vmatprep.subr.mxu0 0.0
        %6289 = vmatpush1.msra.mxu0 0.0
        %6290 = vmatprep.subr.mxu0 0.0
        %6291 = vmatpush1.msra.mxu0 0.0
        %6292 = vmatprep.subr.mxu0 0.0
        %6293 = vmatpush1.msra.mxu0 0.0
        %6294 = vmatprep.subr.mxu0 0.0
        %6295 = vmatpush1.msra.mxu0 0.0
        %6296 = vmatprep.subr.mxu0 0.0
        %6297 = vmatpush1.msra.mxu0 0.0
        %6298 = vmatprep.subr.mxu0 0.0
        %6299 = vmatpush1.msra.mxu0 0.0
        %6300 = vmatprep.subr.mxu0 0.0
        %6301 = vmatpush1.msra.mxu0 0.0
        %6302 = vmatprep.subr.mxu0 0.0
        %6303 = vmatpush1.msra.mxu0 0.0
        %6304 = vmatprep.subr.mxu0 0.0
        %6305 = vmatpush1.msra.mxu0 0.0
        %6306 = vmatprep.subr.mxu0 0.0
        %6307 = vmatpush1.msra.mxu0 0.0
        %6308 = vmatprep.subr.mxu0 0.0
        %6309 = vmatpush1.msra.mxu0 0.0
        %6310 = vmatprep.subr.mxu0 0.0
        %6311 = vmatpush1.msra.mxu0 0.0
        %6312 = vmatprep.mubr.f32.mxu0 0.0
        %6313 = vmatmul.mubr.f32.gmra.mrb[0].mxu0 %v6246
        %v6314 = vpop.f32.mrb[0].mxu0
        %v6315 = vadd.f32 %v6243, %v6314
        %v6316 = vpop.f32.mrb[0].mxu0
        %6317 = vdwg.mxu0
        %v6318 = vmax.f32 %v6315, 0.0
        %s6319 = scalar_lea.vmem [#allocation19], 64
        %v6320 = vld [vmem:[%s6319] sm:$0xff]
        %v6321 = vld [vmem:[%s6319 + $0x8] sm:$0xff]
        %v6322 = vld [vmem:[%s6319 + $0x10] sm:$0xff]
        %v6323 = vld [vmem:[%s6319 + $0x18] sm:$0xff]
        %v6324 = vld [vmem:[%s6319 + $0x20] sm:$0xff]
        %v6325 = vld [vmem:[%s6319 + $0x28] sm:$0xff]
        %v6326 = vld [vmem:[%s6319 + $0x30] sm:$0xff]
        %v6327 = vld [vmem:[%s6319 + $0x38] sm:$0xff]
        %s6328 = scalar_lea.vmem %s23, 1
        %v6329 = vld [vmem:[%s6328] sm:$0x1]
        %v6331 = vlaneseq
        %v6332 = vshrl.u32 %v6331, 7
        %v6333 = vsub.s32 0, %v6332
        %v6334 = vrot.slane %v6329, %v6333
        %v6337 = vsel %vm3678, %v6318, 0
        %6339 = vmatprep.subr.mxu0 0.0
        %6340 = vmatpush1.msra.mxu0 %v6320
        %6341 = vmatprep.subr.mxu0 0.0
        %6342 = vmatpush1.msra.mxu0 %v6321
        %6343 = vmatprep.subr.mxu0 0.0
        %6344 = vmatpush1.msra.mxu0 %v6322
        %6345 = vmatprep.subr.mxu0 0.0
        %6346 = vmatpush1.msra.mxu0 %v6323
        %6347 = vmatprep.subr.mxu0 0.0
        %6348 = vmatpush1.msra.mxu0 %v6324
        %6349 = vmatprep.subr.mxu0 0.0
        %6350 = vmatpush1.msra.mxu0 %v6325
        %6351 = vmatprep.subr.mxu0 0.0
        %6352 = vmatpush1.msra.mxu0 %v6326
        %6353 = vmatprep.subr.mxu0 0.0
        %6354 = vmatpush1.msra.mxu0 %v6327
        %6355 = vmatprep.subr.mxu0 0.0
        %6356 = vmatpush1.msra.mxu0 0.0
        %6357 = vmatprep.subr.mxu0 0.0
        %6358 = vmatpush1.msra.mxu0 0.0
        %6359 = vmatprep.subr.mxu0 0.0
        %6360 = vmatpush1.msra.mxu0 0.0
        %6361 = vmatprep.subr.mxu0 0.0
        %6362 = vmatpush1.msra.mxu0 0.0
        %6363 = vmatprep.subr.mxu0 0.0
        %6364 = vmatpush1.msra.mxu0 0.0
        %6365 = vmatprep.subr.mxu0 0.0
        %6366 = vmatpush1.msra.mxu0 0.0
        %6367 = vmatprep.subr.mxu0 0.0
        %6368 = vmatpush1.msra.mxu0 0.0
        %6369 = vmatprep.subr.mxu0 0.0
        %6370 = vmatpush1.msra.mxu0 0.0
        %6371 = vmatprep.subr.mxu0 0.0
        %6372 = vmatpush1.msra.mxu0 0.0
        %6373 = vmatprep.subr.mxu0 0.0
        %6374 = vmatpush1.msra.mxu0 0.0
        %6375 = vmatprep.subr.mxu0 0.0
        %6376 = vmatpush1.msra.mxu0 0.0
        %6377 = vmatprep.subr.mxu0 0.0
        %6378 = vmatpush1.msra.mxu0 0.0
        %6379 = vmatprep.subr.mxu0 0.0
        %6380 = vmatpush1.msra.mxu0 0.0
        %6381 = vmatprep.subr.mxu0 0.0
        %6382 = vmatpush1.msra.mxu0 0.0
        %6383 = vmatprep.subr.mxu0 0.0
        %6384 = vmatpush1.msra.mxu0 0.0
        %6385 = vmatprep.subr.mxu0 0.0
        %6386 = vmatpush1.msra.mxu0 0.0
        %6387 = vmatprep.subr.mxu0 0.0
        %6388 = vmatpush1.msra.mxu0 0.0
        %6389 = vmatprep.subr.mxu0 0.0
        %6390 = vmatpush1.msra.mxu0 0.0
        %6391 = vmatprep.subr.mxu0 0.0
        %6392 = vmatpush1.msra.mxu0 0.0
        %6393 = vmatprep.subr.mxu0 0.0
        %6394 = vmatpush1.msra.mxu0 0.0
        %6395 = vmatprep.subr.mxu0 0.0
        %6396 = vmatpush1.msra.mxu0 0.0
        %6397 = vmatprep.subr.mxu0 0.0
        %6398 = vmatpush1.msra.mxu0 0.0
        %6399 = vmatprep.subr.mxu0 0.0
        %6400 = vmatpush1.msra.mxu0 0.0
        %6401 = vmatprep.subr.mxu0 0.0
        %6402 = vmatpush1.msra.mxu0 0.0
        %6403 = vmatprep.mubr.f32.mxu0 0.0
        %6404 = vmatmul.mubr.f32.gmra.mrb[0].mxu0 %v6337
        %v6405 = vpop.f32.mrb[0].mxu0
        %v6406 = vadd.f32 %v6334, %v6405
        %v6407 = vpop.f32.mrb[0].mxu0
        %6408 = vdwg.mxu0
        %v6409 = vadd.f32 %v6231, %v6406
        %s6410 = scalar_lea.vmem %s24, 1
        %v6411 = vld [vmem:[%s6410] sm:$0x1]
        %s6412 = scalar_lea.vmem %s25, 1
        %v6413 = vld [vmem:[%s6412] sm:$0x1]
        %v6414 = vsel %vm1112, %v6409, 0.0
        %6415 = vadd.xlane.f32.xlu0 %v6414
        %v6416 = vpop.xlane.xlu0 %6415
        %v6417 = vmul.f32 %v6416, %v2469
        %v6418 = vsub.f32 %v6409, %v6417
        %v6419 = vmul.f32 %v6418, %v6418
        %v6420 = vsel %vm1112, %v6419, 0.0
        %6421 = vadd.xlane.f32.xlu0 %v6420
        %v6422 = vpop.xlane.xlu0 %6421
        %v6423 = vmul.f32 %v6422, %v2469
        %v6424 = vadd.f32 %v6423, 1e-05
        %v6425 = vrsqrt.pop %v6424
        %v6426 = vmul.f32 %v6418, %v6425
        %v6428 = vlaneseq
        %v6429 = vshrl.u32 %v6428, 7
        %v6430 = vsub.s32 0, %v6429
        %v6431 = vrot.slane %v6411, %v6430
        %v6433 = vmul.f32 %v6426, %v6431
        %v6435 = vlaneseq
        %v6436 = vshrl.u32 %v6435, 7
        %v6437 = vsub.s32 0, %v6436
        %v6438 = vrot.slane %v6413, %v6437
        %v6440 = vadd.f32 %v6433, %v6438
        %v6441 = vld [vmem:[#allocation21] sm:$0xff]
        %v6442 = vld [vmem:[#allocation21 + $0x8] sm:$0xff]
        %v6443 = vld [vmem:[#allocation21 + $0x10] sm:$0xff]
        %v6444 = vld [vmem:[#allocation21 + $0x18] sm:$0xff]
        %v6445 = vld [vmem:[%s27] sm:$0x1]
        %v6447 = vlaneseq
        %v6448 = vshrl.u32 %v6447, 7
        %v6449 = vsub.s32 0, %v6448
        %v6450 = vrot.slane %v6445, %v6449
        %v6453 = vsel %vm1112, %v6440, 0
        %6455 = vmatprep.subr.mxu0 0.0
        %6456 = vmatpush1.msra.mxu0 %v6441
        %6457 = vmatprep.subr.mxu0 0.0
        %6458 = vmatpush1.msra.mxu0 %v6442
        %6459 = vmatprep.subr.mxu0 0.0
        %6460 = vmatpush1.msra.mxu0 %v6443
        %6461 = vmatprep.subr.mxu0 0.0
        %6462 = vmatpush1.msra.mxu0 %v6444
        %6463 = vmatprep.subr.mxu0 0.0
        %6464 = vmatpush1.msra.mxu0 0.0
        %6465 = vmatprep.subr.mxu0 0.0
        %6466 = vmatpush1.msra.mxu0 0.0
        %6467 = vmatprep.subr.mxu0 0.0
        %6468 = vmatpush1.msra.mxu0 0.0
        %6469 = vmatprep.subr.mxu0 0.0
        %6470 = vmatpush1.msra.mxu0 0.0
        %6471 = vmatprep.subr.mxu0 0.0
        %6472 = vmatpush1.msra.mxu0 0.0
        %6473 = vmatprep.subr.mxu0 0.0
        %6474 = vmatpush1.msra.mxu0 0.0
        %6475 = vmatprep.subr.mxu0 0.0
        %6476 = vmatpush1.msra.mxu0 0.0
        %6477 = vmatprep.subr.mxu0 0.0
        %6478 = vmatpush1.msra.mxu0 0.0
        %6479 = vmatprep.subr.mxu0 0.0
        %6480 = vmatpush1.msra.mxu0 0.0
        %6481 = vmatprep.subr.mxu0 0.0
        %6482 = vmatpush1.msra.mxu0 0.0
        %6483 = vmatprep.subr.mxu0 0.0
        %6484 = vmatpush1.msra.mxu0 0.0
        %6485 = vmatprep.subr.mxu0 0.0
        %6486 = vmatpush1.msra.mxu0 0.0
        %6487 = vmatprep.subr.mxu0 0.0
        %6488 = vmatpush1.msra.mxu0 0.0
        %6489 = vmatprep.subr.mxu0 0.0
        %6490 = vmatpush1.msra.mxu0 0.0
        %6491 = vmatprep.subr.mxu0 0.0
        %6492 = vmatpush1.msra.mxu0 0.0
        %6493 = vmatprep.subr.mxu0 0.0
        %6494 = vmatpush1.msra.mxu0 0.0
        %6495 = vmatprep.subr.mxu0 0.0
        %6496 = vmatpush1.msra.mxu0 0.0
        %6497 = vmatprep.subr.mxu0 0.0
        %6498 = vmatpush1.msra.mxu0 0.0
        %6499 = vmatprep.subr.mxu0 0.0
        %6500 = vmatpush1.msra.mxu0 0.0
        %6501 = vmatprep.subr.mxu0 0.0
        %6502 = vmatpush1.msra.mxu0 0.0
        %6503 = vmatprep.subr.mxu0 0.0
        %6504 = vmatpush1.msra.mxu0 0.0
        %6505 = vmatprep.subr.mxu0 0.0
        %6506 = vmatpush1.msra.mxu0 0.0
        %6507 = vmatprep.subr.mxu0 0.0
        %6508 = vmatpush1.msra.mxu0 0.0
        %6509 = vmatprep.subr.mxu0 0.0
        %6510 = vmatpush1.msra.mxu0 0.0
        %6511 = vmatprep.subr.mxu0 0.0
        %6512 = vmatpush1.msra.mxu0 0.0
        %6513 = vmatprep.subr.mxu0 0.0
        %6514 = vmatpush1.msra.mxu0 0.0
        %6515 = vmatprep.subr.mxu0 0.0
        %6516 = vmatpush1.msra.mxu0 0.0
        %6517 = vmatprep.subr.mxu0 0.0
        %6518 = vmatpush1.msra.mxu0 0.0
        %6519 = vmatprep.mubr.f32.mxu0 0.0
        %6520 = vmatmul.mubr.f32.gmra.mrb[0].mxu0 %v6453
        %v6521 = vpop.f32.mrb[0].mxu0
        %v6522 = vadd.f32 %v6450, %v6521
        %v6523 = vpop.f32.mrb[0].mxu0
        %6524 = vdwg.mxu0
        %vm6525 = vcmask 31744
        %6526 = vst.msk [vmem:[%s1104] sm:$0xff] %vm6525, %v6522
        %p6527 = scmp.lt.s32.totalorder %s52, 1
        %s6528 = scalar_select %p6527, %s52, 1
        %s6529 = smul.addr %s6528, 8
        %s6530 = scalar_lea.vmem %s28, %s6529
        // Predicated region
        $region185: #{_lambda_.1} parent=131 // pred_check
          %p6531 = pneg %p678
        $region186: #{_lambda_.1} parent=131 // pred_check_branch
          %6533 = sbr.rel (%p6531) target = $region188
        $region187: #{_lambda_.1} parent=131 // pred_region
          _
        $region188: #{_lambda_.1} parent=131 // pred_fallthru
          _
      $region132: #{_lambda_.1} parent=5 // pred_fallthru
        _
      %p6534 = scmp.le.s32.totalorder 2, %s47
      // Predicated region
      $region189: #{_lambda_.1} parent=5 // pred_check
        %p6535 = pneg %p6534
      $region190: #{_lambda_.1} parent=5 // pred_check_branch
        %6537 = sbr.rel (%p6535) target = $region192
      $region191: #{_lambda_.1} parent=5 // pred_region
        %s6538 = ssub.s32 %s47, 2
        // Predicated region
        $region193: #{_lambda_.1} parent=191 // pred_check
          %p6539 = pneg %p684
        $region194: #{_lambda_.1} parent=191 // pred_check_branch
          %6541 = sbr.rel (%p6539) target = $region196
        $region195: #{_lambda_.1} parent=191 // pred_region
          %p6542 = scmp.lt.s32.totalorder %s53, 1
          %s6543 = scalar_select %p6542, %s53, 1
          %s6544 = smul.addr %s6543, 8
          %s6545 = scalar_lea.vmem %s28, %s6544
        $region196: #{_lambda_.1} parent=191 // pred_fallthru
          _
      $region192: #{_lambda_.1} parent=5 // pred_fallthru
        _
    $region6: #{_lambda_.1} parent=1 // loop_footer
      %s51 = sadd.s32 1, %s47
    $region7: #{_lambda_.1} parent=1 // loop_footer_branch
      %46 = sbr.rel target = $region3
    $region8: #{_lambda_.1} parent=1 // loop_exit
      _
    %6546 = vsyncpa [#allocation3], 1
    %s6547 = scalar_lea.sflag [#allocation3], 1
    %6548 = vsyncpa %s6547, 1
    %6549 = vsyncpa [#allocation5], 1
    %s6550 = scalar_lea.sflag [#allocation5], 1
    %6551 = vsyncpa %s6550, 1
    %6552 = vsyncpa [#allocation8], 1
    %s6553 = scalar_lea.sflag [#allocation8], 1
    %6554 = vsyncpa %s6553, 1
    %6555 = vsyncpa [#allocation11], 1
    %6556 = vsyncpa [#allocation14], 1
    %6557 = vsyncpa [#allocation17], 1
    %6558 = vsyncpa [#allocation20], 1

</llo_original>
